<compile_context>
chip_gen: v6e
topology: v6e:2x2x1
jax: 0.10.0
libtpu: 0.0.40
codegen_flags: <defaults>
</compile_context>

<pallas_src>
import functools

import numpy as np
import jax
import jax.numpy as jnp
from jax import lax
from jax.experimental import pallas as pl
from jax.experimental.pallas import tpu as pltpu

LEAKY_SLOPE = 0.2
BN_EPS = 1e-3          # nn.BatchNorm2d(eps=0.001)
KH = KW = 3            # both convs in basic_block are 3x3, padding 1


def _act_scratch_dtype(Wo):
    # bf16 activation scratch requires the per-tap collapse
    # (Ho, Wo, C) -> (Ho*Wo, C) to be packed-tile exact (Wo % 16 == 0);
    # otherwise keep the padded scratch in f32 (proven path) and cast to bf16
    # at the im2col write instead.
    return jnp.bfloat16 if Wo % 16 == 0 else jnp.float32


# ----------------------------------------------------------------------------
# Fused basic_block kernel (one batch element per grid step)
# ----------------------------------------------------------------------------
def _make_block_kernel(H, W, Cin, Cout, stride, has_proj):
    Ho, Wo = H // stride, W // stride

    def kernel(x_ref, w1_ref, b1_ref, s1_ref, t1_ref,
               w2_ref, b2_ref, s2_ref, t2_ref,
               o_ref, xp_ref, col1_ref, x1p_ref, col2_ref):

        # ---- zero only the thin halo strips of the padded scratches --------
        # (re-done every step: under megacore sharding each core has its own
        #  scratch and program_id()==0 may never run on core 1; the strips are
        #  tiny and the interiors are fully overwritten below)
        def zero_halo(ref, h, w, c):
            dt = ref.dtype
            ref[pl.ds(0, 1), :, :] = jnp.zeros((1, w + 4, c), dt)      # top
            ref[pl.ds(h + 1, 1), :, :] = jnp.zeros((1, w + 4, c), dt)  # bottom
            ref[:, pl.ds(0, 2), :] = jnp.zeros((h + 2, 2, c), dt)      # left
            ref[:, pl.ds(w + 2, 2), :] = jnp.zeros((h + 2, 2, c), dt)  # right

        zero_halo(xp_ref, H, W, Cin)
        zero_halo(x1p_ref, Ho, Wo, Cout)

        # ---- im2col: pack the 9 taps into the matmul K dimension -----------
        # Padded buffer layout: logical padded column pj lives at buffer
        # column pj + 1 (interior starts at column 2 => even packed offsets
        # for all stores); rows are unshifted (leading dim, addressing only).
        def build_cols(pad_ref, col_ref, hout, wout, c, s):
            for kh in range(KH):
                for kw in range(KW):
                    t = kh * KW + kw
                    if s == 1:
                        patch = pad_ref[pl.ds(kh, hout),
                                        pl.ds(kw + 1, wout), :]
                    else:                                  # in-kernel stride-2
                        patch = pad_ref[pl.ds(kh, hout, stride=s),
                                        pl.ds(kw + 1, wout, stride=s), :]
                    col_ref[:, pl.ds(t * c, c)] = (
                        patch.reshape(hout * wout, c).astype(col_ref.dtype))

        # ---- conv1 branch: BN1 (eval, folded) -> LeakyReLU -> 3x3 conv ------
        x = x_ref[...]                                     # (H, W, Cin) f32
        a = x * s1_ref[0] + t1_ref[0]
        a = jnp.where(a >= 0, a, LEAKY_SLOPE * a)
        xp_ref[pl.ds(1, H), pl.ds(2, W), :] = a.astype(xp_ref.dtype)

        build_cols(xp_ref, col1_ref, Ho, Wo, Cin, stride)
        h1 = jnp.dot(col1_ref[...], w1_ref[...],
                     preferred_element_type=jnp.float32) + b1_ref[0]

        # ---- residual branch: BN2 -> LeakyReLU -> 3x3 conv (stride 1) -------
        h1 = h1 * s2_ref[0] + t2_ref[0]
        h1 = jnp.where(h1 >= 0, h1, LEAKY_SLOPE * h1)
        x1p_ref[pl.ds(1, Ho), pl.ds(2, Wo), :] = (
            h1.reshape(Ho, Wo, Cout).astype(x1p_ref.dtype))

        build_cols(x1p_ref, col2_ref, Ho, Wo, Cout, 1)

        if has_proj:
            # 1x1 projection shortcut folded into the conv2 dot: the raw
            # (possibly strided) input fills the trailing Cin K-columns; the
            # projection weights were appended to w2 host-side and bs folded
            # into the bias.
            if stride == 1:
                xs = x
            else:
                xs = x_ref[pl.ds(0, Ho, stride=stride),
                           pl.ds(0, Wo, stride=stride), :]
            col2_ref[:, pl.ds(KH * KW * Cout, Cin)] = (
                xs.reshape(Ho * Wo, Cin).astype(col2_ref.dtype))

        y = jnp.dot(col2_ref[...], w2_ref[...],
                    preferred_element_type=jnp.float32) + b2_ref[0]

        if not has_proj:
            y = y + x.reshape(H * W, Cin)                  # identity add, f32

        o_ref[...] = y.astype(o_ref.dtype)

    return kernel


@functools.lru_cache(maxsize=None)
def _block_call(N, H, W, Cin, Cout, stride, has_proj):
    Ho, Wo = H // stride, W // stride
    K1 = KH * KW * Cin
    K2 = KH * KW * Cout + (Cin if has_proj else 0)
    act_dt = _act_scratch_dtype(Wo)
    kernel = _make_block_kernel(H, W, Cin, Cout, stride, has_proj)

    in_specs = [
        pl.BlockSpec((None, H, W, Cin), lambda n: (n, 0, 0, 0)),   # x (f32)
        pl.BlockSpec((K1, Cout), lambda n: (0, 0)),                # w1 packed (bf16)
        pl.BlockSpec((1, Cout), lambda n: (0, 0)),                 # b1
        pl.BlockSpec((1, Cin), lambda n: (0, 0)),                  # s1 (BN1 scale)
        pl.BlockSpec((1, Cin), lambda n: (0, 0)),                  # t1 (BN1 shift)
        pl.BlockSpec((K2, Cout), lambda n: (0, 0)),                # w2 (+proj) packed
        pl.BlockSpec((1, Cout), lambda n: (0, 0)),                 # b2 (+bs)
        pl.BlockSpec((1, Cout), lambda n: (0, 0)),                 # s2 (BN2 scale)
        pl.BlockSpec((1, Cout), lambda n: (0, 0)),                 # t2 (BN2 shift)
    ]

    flops = 2 * N * Ho * Wo * Cout * (K1 + K2)
    bytes_accessed = (4 * N * H * W * Cin                 # input
                      + 4 * N * Ho * Wo * Cout            # output
                      + 2 * (K1 + K2) * Cout              # bf16 packed weights
                      + 4 * (2 * Cin + 4 * Cout))         # BN params + biases

    fn = pl.pallas_call(
        kernel,
        out_shape=jax.ShapeDtypeStruct((N, Ho * Wo, Cout), jnp.float32),
        grid=(N,),
        in_specs=in_specs,
        out_specs=pl.BlockSpec((None, Ho * Wo, Cout), lambda n: (n, 0, 0)),
        scratch_shapes=[
            pltpu.VMEM((H + 2, W + 4, Cin), act_dt),      # padded BN1/ReLU(x)
            pltpu.VMEM((Ho * Wo, K1), jnp.bfloat16),      # im2col for conv1
            pltpu.VMEM((Ho + 2, Wo + 4, Cout), act_dt),   # padded BN2/ReLU(x1)
            pltpu.VMEM((Ho * Wo, K2), jnp.bfloat16),      # im2col for conv2 (+proj)
        ],
        compiler_params=pltpu.CompilerParams(
            dimension_semantics=("parallel",),     # v7x: shard batch over 2 TCs
            vmem_limit_bytes=32 * 1024 * 1024,
        ),
        cost_estimate=pl.CostEstimate(flops=flops, transcendentals=0,
                                      bytes_accessed=bytes_accessed),
    )
    return jax.jit(fn)


# ----------------------------------------------------------------------------
# Public wrapper (NCHW in / NCHW out, like the PyTorch module)
# ----------------------------------------------------------------------------
def basic_block_forward(params, x_nchw):
    x = jnp.transpose(x_nchw, (0, 2, 3, 1)).astype(jnp.float32)   # NCHW -> NHWC
    N, H, W, Cin = x.shape
    Cout = params['cout']
    stride = params['stride']
    assert Cin == params['cin']
    assert H % stride == 0 and W % stride == 0, "spatial dims must divide stride"
    has_proj = params['ws'] is not None
    Ho, Wo = H // stride, W // stride

    fn = _block_call(N, H, W, Cin, Cout, stride, has_proj)

    # K-packed weights: (3,3,Ci,Co) -> (9*Ci, Co); projection appended to w2.
    w1p = params['w1'].reshape(KH * KW * Cin, Cout).astype(jnp.bfloat16)
    w2p = params['w2'].reshape(KH * KW * Cout, Cout)
    b2 = params['b2']
    if has_proj:
        w2p = jnp.concatenate([w2p, params['ws']], axis=0)
        b2 = b2 + params['bs']
    w2p = w2p.astype(jnp.bfloat16)

    args = [
        x,
        w1p,
        params['b1'].reshape(1, Cout).astype(jnp.float32),
        params['s1'].reshape(1, Cin).astype(jnp.float32),
        params['t1'].reshape(1, Cin).astype(jnp.float32),
        w2p,
        b2.reshape(1, Cout).astype(jnp.float32),
        params['s2'].reshape(1, Cout).astype(jnp.float32),
        params['t2'].reshape(1, Cout).astype(jnp.float32),
    ]
    y = fn(*args)                                   # (N, Ho*Wo, Cout)
    y = y.reshape(N, Ho, Wo, Cout)
    return jnp.transpose(y, (0, 3, 1, 2))           # NHWC -> NCHW


# ----------------------------------------------------------------------------
# Deterministic parameter construction (synthetic weights, no checkpoint)
# ----------------------------------------------------------------------------
def init_basic_block(key, cin, cout, stride=1):
    keys = list(jax.random.split(key, 16))
    nk = lambda: keys.pop()

    def conv_init(ci, co, kh, kw):
        fan_in = ci * kh * kw
        bound = 1.0 / np.sqrt(fan_in)
        w = jax.random.uniform(nk(), (kh, kw, ci, co), jnp.float32, -bound, bound)
        b = jax.random.uniform(nk(), (co,), jnp.float32, -bound, bound)
        return w, b

    def bn_fold(c):
        gamma = 1.0 + 0.1 * jax.random.normal(nk(), (c,), jnp.float32)
        beta = 0.1 * jax.random.normal(nk(), (c,), jnp.float32)
        mean = 0.1 * jax.random.normal(nk(), (c,), jnp.float32)
        var = 0.9 + 0.2 * jax.random.uniform(nk(), (c,), jnp.float32)
        scale = gamma / jnp.sqrt(var + BN_EPS)
        shift = beta - mean * scale
        return scale, shift

    w1, b1 = conv_init(cin, cout, 3, 3)
    s1, t1 = bn_fold(cin)
    w2, b2 = conv_init(cout, cout, 3, 3)
    s2, t2 = bn_fold(cout)
    if cin != cout or stride != 1:
        ws4, bs = conv_init(cin, cout, 1, 1)
        ws = ws4.reshape(cin, cout)
    else:
        ws, bs = None, None
    return dict(cin=cin, cout=cout, stride=stride,
                w1=w1, b1=b1, s1=s1, t1=t1,
                w2=w2, b2=b2, s2=s2, t2=t2, ws=ws, bs=bs)


# ----------------------------------------------------------------------------
# Pure-JAX reference (for numerical validation against the fused kernel)
# ----------------------------------------------------------------------------
def basic_block_reference(params, x_nchw):
    x = jnp.transpose(x_nchw, (0, 2, 3, 1)).astype(jnp.float32)
    s = params['stride']

    def bn_relu_conv(inp, w, b, sc, sh, stride):
        a = inp * sc + sh
        a = jnp.where(a >= 0, a, LEAKY_SLOPE * a)
        y = lax.conv_general_dilated(
            a, w, (stride, stride), ((1, 1), (1, 1)),
            dimension_numbers=('NHWC', 'HWIO', 'NHWC'),
            precision=lax.Precision.HIGHEST)
        return y + b

    x1 = bn_relu_conv(x, params['w1'], params['b1'], params['s1'], params['t1'], s)
    x2 = bn_relu_conv(x1, params['w2'], params['b2'], params['s2'], params['t2'], 1)
    if params['ws'] is not None:
        w = params['ws'].reshape(1, 1, params['cin'], params['cout'])
        sc = lax.conv_general_dilated(
            x, w, (s, s), ((0, 0), (0, 0)),
            dimension_numbers=('NHWC', 'HWIO', 'NHWC'),
            precision=lax.Precision.HIGHEST) + params['bs']
    else:
        sc = x
    return jnp.transpose(sc + x2, (0, 3, 1, 2))


if __name__ == "__main__":
    key = jax.random.PRNGKey(0)
    x = jax.random.uniform(key, (2, 4, 16, 16), jnp.float32)   # N, C, H, W

    configs = [
        (jax.random.PRNGKey(1), 4, 32, 1),   # projection shortcut (cin != cout)
        (jax.random.PRNGKey(2), 32, 32, 1),  # identity shortcut
        (jax.random.PRNGKey(3), 32, 64, 2),  # stride-2 downsampling block
    ]
    cur = x
    for k, cin, cout, stride in configs:
        p = init_basic_block(k, cin, cout, stride)
        y = basic_block_forward(p, cur)
        y = jax.block_until_ready(y)
        ref = basic_block_reference(p, cur)
        assert y.shape == ref.shape, (y.shape, ref.shape)
        assert bool(jnp.all(jnp.isfinite(y)))
        err = float(jnp.max(jnp.abs(y - ref)))
        scale = float(jnp.max(jnp.abs(ref))) + 1e-6
        # bf16 matmul operands with f32 accumulation -> small deviation allowed
        assert err <= 5e-2 * scale + 1e-2, (err, scale)
        cur = y

    assert cur.shape == (2, 64, 8, 8), cur.shape
    print("KERNEL_OK")
</pallas_src>

<mosaic_0001>
module attributes {stable_mosaic.version = 11 : i64} {
  func.func @kernel(%arg0: i32, %arg1: memref<1x16x16x4xf32, #tpu.memory_space<vmem>>, %arg2: memref<36x32xbf16, #tpu.memory_space<vmem>>, %arg3: memref<1x32xf32, #tpu.memory_space<vmem>>, %arg4: memref<1x4xf32, #tpu.memory_space<vmem>>, %arg5: memref<1x4xf32, #tpu.memory_space<vmem>>, %arg6: memref<292x32xbf16, #tpu.memory_space<vmem>>, %arg7: memref<1x32xf32, #tpu.memory_space<vmem>>, %arg8: memref<1x32xf32, #tpu.memory_space<vmem>>, %arg9: memref<1x32xf32, #tpu.memory_space<vmem>>, %arg10: memref<1x256x32xf32, #tpu.memory_space<vmem>>, %arg11: memref<18x20x4xbf16, #tpu.memory_space<vmem>>, %arg12: memref<256x36xbf16, #tpu.memory_space<vmem>>, %arg13: memref<18x20x32xbf16, #tpu.memory_space<vmem>>, %arg14: memref<256x292xbf16, #tpu.memory_space<vmem>>) attributes {dimension_semantics = [#tpu.dimension_semantics<parallel>], iteration_bounds = array<i64: 2>, scalar_prefetch = 0 : i64, scratch_operands = 4 : i64, tpu.core_type = #tpu.core_type<tc>, window_params = [{transform_indices = @transform_0, window_bounds = array<i64: 1, 16, 16, 4>}, {pipeline_mode = #tpu.pipeline_mode<synchronous>, transform_indices = @transform_1, window_bounds = array<i64: 36, 32>}, {pipeline_mode = #tpu.pipeline_mode<synchronous>, transform_indices = @transform_2, window_bounds = array<i64: 1, 32>}, {pipeline_mode = #tpu.pipeline_mode<synchronous>, transform_indices = @transform_3, window_bounds = array<i64: 1, 4>}, {pipeline_mode = #tpu.pipeline_mode<synchronous>, transform_indices = @transform_4, window_bounds = array<i64: 1, 4>}, {pipeline_mode = #tpu.pipeline_mode<synchronous>, transform_indices = @transform_5, window_bounds = array<i64: 292, 32>}, {pipeline_mode = #tpu.pipeline_mode<synchronous>, transform_indices = @transform_6, window_bounds = array<i64: 1, 32>}, {pipeline_mode = #tpu.pipeline_mode<synchronous>, transform_indices = @transform_7, window_bounds = array<i64: 1, 32>}, {pipeline_mode = #tpu.pipeline_mode<synchronous>, transform_indices = @transform_8, window_bounds = array<i64: 1, 32>}, {transform_indices = @transform_9, window_bounds = array<i64: 1, 256, 32>}]} {
    %cst = arith.constant 0.000000e+00 : bf16
    %0 = vector.broadcast %cst : bf16 to vector<1x20x4xbf16>
    %c0 = arith.constant 0 : index
    %c0_0 = arith.constant 0 : index
    %c0_1 = arith.constant 0 : index
    %1 = vector.load %arg11[%c0, %c0_0, %c0_1] : memref<18x20x4xbf16, #tpu.memory_space<vmem>>, vector<1x20x4xbf16>
    tpu.vector_store %arg11[%c0, %c0_0, %c0_1], %0 {strides = array<i32>} : memref<18x20x4xbf16, #tpu.memory_space<vmem>>, vector<1x20x4xbf16>,
    %cst_2 = arith.constant 0.000000e+00 : bf16
    %2 = vector.broadcast %cst_2 : bf16 to vector<1x20x4xbf16>
    %c17 = arith.constant 17 : index
    %c0_3 = arith.constant 0 : index
    %c0_4 = arith.constant 0 : index
    %3 = vector.load %arg11[%c17, %c0_3, %c0_4] : memref<18x20x4xbf16, #tpu.memory_space<vmem>>, vector<1x20x4xbf16>
    tpu.vector_store %arg11[%c17, %c0_3, %c0_4], %2 {strides = array<i32>} : memref<18x20x4xbf16, #tpu.memory_space<vmem>>, vector<1x20x4xbf16>,
    %cst_5 = arith.constant 0.000000e+00 : bf16
    %4 = vector.broadcast %cst_5 : bf16 to vector<18x2x4xbf16>
    %c0_6 = arith.constant 0 : index
    %c0_7 = arith.constant 0 : index
    %c0_8 = arith.constant 0 : index
    %5 = vector.load %arg11[%c0_6, %c0_7, %c0_8] : memref<18x20x4xbf16, #tpu.memory_space<vmem>>, vector<18x2x4xbf16>
    tpu.vector_store %arg11[%c0_6, %c0_7, %c0_8], %4 {strides = array<i32>} : memref<18x20x4xbf16, #tpu.memory_space<vmem>>, vector<18x2x4xbf16>,
    %cst_9 = arith.constant 0.000000e+00 : bf16
    %6 = vector.broadcast %cst_9 : bf16 to vector<18x2x4xbf16>
    %c0_10 = arith.constant 0 : index
    %c18 = arith.constant 18 : index
    %c0_11 = arith.constant 0 : index
    %7 = vector.load %arg11[%c0_10, %c18, %c0_11] : memref<18x20x4xbf16, #tpu.memory_space<vmem>>, vector<18x2x4xbf16>
    tpu.vector_store %arg11[%c0_10, %c18, %c0_11], %6 {strides = array<i32>} : memref<18x20x4xbf16, #tpu.memory_space<vmem>>, vector<18x2x4xbf16>,
    %cst_12 = arith.constant 0.000000e+00 : bf16
    %8 = vector.broadcast %cst_12 : bf16 to vector<1x20x32xbf16>
    %c0_13 = arith.constant 0 : index
    %c0_14 = arith.constant 0 : index
    %c0_15 = arith.constant 0 : index
    %9 = vector.load %arg13[%c0_13, %c0_14, %c0_15] : memref<18x20x32xbf16, #tpu.memory_space<vmem>>, vector<1x20x32xbf16>
    tpu.vector_store %arg13[%c0_13, %c0_14, %c0_15], %8 {strides = array<i32>} : memref<18x20x32xbf16, #tpu.memory_space<vmem>>, vector<1x20x32xbf16>,
    %cst_16 = arith.constant 0.000000e+00 : bf16
    %10 = vector.broadcast %cst_16 : bf16 to vector<1x20x32xbf16>
    %c17_17 = arith.constant 17 : index
    %c0_18 = arith.constant 0 : index
    %c0_19 = arith.constant 0 : index
    %11 = vector.load %arg13[%c17_17, %c0_18, %c0_19] : memref<18x20x32xbf16, #tpu.memory_space<vmem>>, vector<1x20x32xbf16>
    tpu.vector_store %arg13[%c17_17, %c0_18, %c0_19], %10 {strides = array<i32>} : memref<18x20x32xbf16, #tpu.memory_space<vmem>>, vector<1x20x32xbf16>,
    %cst_20 = arith.constant 0.000000e+00 : bf16
    %12 = vector.broadcast %cst_20 : bf16 to vector<18x2x32xbf16>
    %c0_21 = arith.constant 0 : index
    %c0_22 = arith.constant 0 : index
    %c0_23 = arith.constant 0 : index
    %13 = vector.load %arg13[%c0_21, %c0_22, %c0_23] : memref<18x20x32xbf16, #tpu.memory_space<vmem>>, vector<18x2x32xbf16>
    tpu.vector_store %arg13[%c0_21, %c0_22, %c0_23], %12 {strides = array<i32>} : memref<18x20x32xbf16, #tpu.memory_space<vmem>>, vector<18x2x32xbf16>,
    %cst_24 = arith.constant 0.000000e+00 : bf16
    %14 = vector.broadcast %cst_24 : bf16 to vector<18x2x32xbf16>
    %c0_25 = arith.constant 0 : index
    %c18_26 = arith.constant 18 : index
    %c0_27 = arith.constant 0 : index
    %15 = vector.load %arg13[%c0_25, %c18_26, %c0_27] : memref<18x20x32xbf16, #tpu.memory_space<vmem>>, vector<18x2x32xbf16>
    tpu.vector_store %arg13[%c0_25, %c18_26, %c0_27], %14 {strides = array<i32>} : memref<18x20x32xbf16, #tpu.memory_space<vmem>>, vector<18x2x32xbf16>,
    %c0_28 = arith.constant 0 : index
    %c0_29 = arith.constant 0 : index
    %c0_30 = arith.constant 0 : index
    %c0_31 = arith.constant 0 : index
    %16 = vector.load %arg1[%c0_28, %c0_29, %c0_30, %c0_31] : memref<1x16x16x4xf32, #tpu.memory_space<vmem>>, vector<1x16x16x4xf32>
    %17 = vector.shape_cast %16 : vector<1x16x16x4xf32> to vector<16x16x4xf32>
    %c0_32 = arith.constant 0 : index
    %c0_33 = arith.constant 0 : index
    %18 = vector.load %arg4[%c0_32, %c0_33] : memref<1x4xf32, #tpu.memory_space<vmem>>, vector<1x4xf32>
    %19 = vector.shape_cast %18 : vector<1x4xf32> to vector<4xf32>
    %20 = vector.shape_cast %19 : vector<4xf32> to vector<1x1x4xf32>
    %21 = vector.broadcast %20 : vector<1x1x4xf32> to vector<16x16x4xf32>
    %22 = arith.mulf %17, %21 : vector<16x16x4xf32>
    %c0_34 = arith.constant 0 : index
    %c0_35 = arith.constant 0 : index
    %23 = vector.load %arg5[%c0_34, %c0_35] : memref<1x4xf32, #tpu.memory_space<vmem>>, vector<1x4xf32>
    %24 = vector.shape_cast %23 : vector<1x4xf32> to vector<4xf32>
    %25 = vector.shape_cast %24 : vector<4xf32> to vector<1x1x4xf32>
    %26 = vector.broadcast %25 : vector<1x1x4xf32> to vector<16x16x4xf32>
    %27 = arith.addf %22, %26 : vector<16x16x4xf32>
    %cst_36 = arith.constant 0.000000e+00 : f32
    %28 = vector.broadcast %cst_36 : f32 to vector<16x16x4xf32>
    %29 = arith.cmpf oge, %27, %28 : vector<16x16x4xf32>
    %cst_37 = arith.constant 2.000000e-01 : f32
    %30 = vector.broadcast %cst_37 : f32 to vector<16x16x4xf32>
    %31 = arith.mulf %30, %27 : vector<16x16x4xf32>
    %32 = arith.select %29, %27, %31 : vector<16x16x4xi1>, vector<16x16x4xf32>
    %33 = arith.truncf %32 : vector<16x16x4xf32> to vector<16x16x4xbf16>
    %c1 = arith.constant 1 : index
    %c2 = arith.constant 2 : index
    %c0_38 = arith.constant 0 : index
    %34 = vector.load %arg11[%c1, %c2, %c0_38] : memref<18x20x4xbf16, #tpu.memory_space<vmem>>, vector<16x16x4xbf16>
    tpu.vector_store %arg11[%c1, %c2, %c0_38], %33 {strides = array<i32>} : memref<18x20x4xbf16, #tpu.memory_space<vmem>>, vector<16x16x4xbf16>,
    %c0_39 = arith.constant 0 : index
    %c1_40 = arith.constant 1 : index
    %c0_41 = arith.constant 0 : index
    %35 = vector.load %arg11[%c0_39, %c1_40, %c0_41] : memref<18x20x4xbf16, #tpu.memory_space<vmem>>, vector<16x16x4xbf16>
    %36 = vector.shape_cast %35 : vector<16x16x4xbf16> to vector<256x4xbf16>
    %c0_42 = arith.constant 0 : index
    %c0_43 = arith.constant 0 : index
    %37 = vector.load %arg12[%c0_42, %c0_43] : memref<256x36xbf16, #tpu.memory_space<vmem>>, vector<256x4xbf16>
    tpu.vector_store %arg12[%c0_42, %c0_43], %36 {strides = array<i32>} : memref<256x36xbf16, #tpu.memory_space<vmem>>, vector<256x4xbf16>,
    %c0_44 = arith.constant 0 : index
    %c2_45 = arith.constant 2 : index
    %c0_46 = arith.constant 0 : index
    %38 = vector.load %arg11[%c0_44, %c2_45, %c0_46] : memref<18x20x4xbf16, #tpu.memory_space<vmem>>, vector<16x16x4xbf16>
    %39 = vector.shape_cast %38 : vector<16x16x4xbf16> to vector<256x4xbf16>
    %c0_47 = arith.constant 0 : index
    %c4 = arith.constant 4 : index
    %40 = vector.load %arg12[%c0_47, %c4] : memref<256x36xbf16, #tpu.memory_space<vmem>>, vector<256x4xbf16>
    tpu.vector_store %arg12[%c0_47, %c4], %39 {strides = array<i32>} : memref<256x36xbf16, #tpu.memory_space<vmem>>, vector<256x4xbf16>,
    %c0_48 = arith.constant 0 : index
    %c3 = arith.constant 3 : index
    %c0_49 = arith.constant 0 : index
    %41 = vector.load %arg11[%c0_48, %c3, %c0_49] : memref<18x20x4xbf16, #tpu.memory_space<vmem>>, vector<16x16x4xbf16>
    %42 = vector.shape_cast %41 : vector<16x16x4xbf16> to vector<256x4xbf16>
    %c0_50 = arith.constant 0 : index
    %c8 = arith.constant 8 : index
    %43 = vector.load %arg12[%c0_50, %c8] : memref<256x36xbf16, #tpu.memory_space<vmem>>, vector<256x4xbf16>
    tpu.vector_store %arg12[%c0_50, %c8], %42 {strides = array<i32>} : memref<256x36xbf16, #tpu.memory_space<vmem>>, vector<256x4xbf16>,
    %c1_51 = arith.constant 1 : index
    %c1_52 = arith.constant 1 : index
    %c0_53 = arith.constant 0 : index
    %44 = vector.load %arg11[%c1_51, %c1_52, %c0_53] : memref<18x20x4xbf16, #tpu.memory_space<vmem>>, vector<16x16x4xbf16>
    %45 = vector.shape_cast %44 : vector<16x16x4xbf16> to vector<256x4xbf16>
    %c0_54 = arith.constant 0 : index
    %c12 = arith.constant 12 : index
    %46 = vector.load %arg12[%c0_54, %c12] : memref<256x36xbf16, #tpu.memory_space<vmem>>, vector<256x4xbf16>
    tpu.vector_store %arg12[%c0_54, %c12], %45 {strides = array<i32>} : memref<256x36xbf16, #tpu.memory_space<vmem>>, vector<256x4xbf16>,
    %c1_55 = arith.constant 1 : index
    %c2_56 = arith.constant 2 : index
    %c0_57 = arith.constant 0 : index
    %47 = vector.load %arg11[%c1_55, %c2_56, %c0_57] : memref<18x20x4xbf16, #tpu.memory_space<vmem>>, vector<16x16x4xbf16>
    %48 = vector.shape_cast %47 : vector<16x16x4xbf16> to vector<256x4xbf16>
    %c0_58 = arith.constant 0 : index
    %c16 = arith.constant 16 : index
    %49 = vector.load %arg12[%c0_58, %c16] : memref<256x36xbf16, #tpu.memory_space<vmem>>, vector<256x4xbf16>
    tpu.vector_store %arg12[%c0_58, %c16], %48 {strides = array<i32>} : memref<256x36xbf16, #tpu.memory_space<vmem>>, vector<256x4xbf16>,
    %c1_59 = arith.constant 1 : index
    %c3_60 = arith.constant 3 : index
    %c0_61 = arith.constant 0 : index
    %50 = vector.load %arg11[%c1_59, %c3_60, %c0_61] : memref<18x20x4xbf16, #tpu.memory_space<vmem>>, vector<16x16x4xbf16>
    %51 = vector.shape_cast %50 : vector<16x16x4xbf16> to vector<256x4xbf16>
    %c0_62 = arith.constant 0 : index
    %c20 = arith.constant 20 : index
    %52 = vector.load %arg12[%c0_62, %c20] : memref<256x36xbf16, #tpu.memory_space<vmem>>, vector<256x4xbf16>
    tpu.vector_store %arg12[%c0_62, %c20], %51 {strides = array<i32>} : memref<256x36xbf16, #tpu.memory_space<vmem>>, vector<256x4xbf16>,
    %c2_63 = arith.constant 2 : index
    %c1_64 = arith.constant 1 : index
    %c0_65 = arith.constant 0 : index
    %53 = vector.load %arg11[%c2_63, %c1_64, %c0_65] : memref<18x20x4xbf16, #tpu.memory_space<vmem>>, vector<16x16x4xbf16>
    %54 = vector.shape_cast %53 : vector<16x16x4xbf16> to vector<256x4xbf16>
    %c0_66 = arith.constant 0 : index
    %c24 = arith.constant 24 : index
    %55 = vector.load %arg12[%c0_66, %c24] : memref<256x36xbf16, #tpu.memory_space<vmem>>, vector<256x4xbf16>
    tpu.vector_store %arg12[%c0_66, %c24], %54 {strides = array<i32>} : memref<256x36xbf16, #tpu.memory_space<vmem>>, vector<256x4xbf16>,
    %c2_67 = arith.constant 2 : index
    %c2_68 = arith.constant 2 : index
    %c0_69 = arith.constant 0 : index
    %56 = vector.load %arg11[%c2_67, %c2_68, %c0_69] : memref<18x20x4xbf16, #tpu.memory_space<vmem>>, vector<16x16x4xbf16>
    %57 = vector.shape_cast %56 : vector<16x16x4xbf16> to vector<256x4xbf16>
    %c0_70 = arith.constant 0 : index
    %c28 = arith.constant 28 : index
    %58 = vector.load %arg12[%c0_70, %c28] : memref<256x36xbf16, #tpu.memory_space<vmem>>, vector<256x4xbf16>
    tpu.vector_store %arg12[%c0_70, %c28], %57 {strides = array<i32>} : memref<256x36xbf16, #tpu.memory_space<vmem>>, vector<256x4xbf16>,
    %c2_71 = arith.constant 2 : index
    %c3_72 = arith.constant 3 : index
    %c0_73 = arith.constant 0 : index
    %59 = vector.load %arg11[%c2_71, %c3_72, %c0_73] : memref<18x20x4xbf16, #tpu.memory_space<vmem>>, vector<16x16x4xbf16>
    %60 = vector.shape_cast %59 : vector<16x16x4xbf16> to vector<256x4xbf16>
    %c0_74 = arith.constant 0 : index
    %c32 = arith.constant 32 : index
    %61 = vector.load %arg12[%c0_74, %c32] : memref<256x36xbf16, #tpu.memory_space<vmem>>, vector<256x4xbf16>
    tpu.vector_store %arg12[%c0_74, %c32], %60 {strides = array<i32>} : memref<256x36xbf16, #tpu.memory_space<vmem>>, vector<256x4xbf16>,
    %c0_75 = arith.constant 0 : index
    %c0_76 = arith.constant 0 : index
    %62 = vector.load %arg12[%c0_75, %c0_76] : memref<256x36xbf16, #tpu.memory_space<vmem>>, vector<256x36xbf16>
    %c0_77 = arith.constant 0 : index
    %c0_78 = arith.constant 0 : index
    %63 = vector.load %arg2[%c0_77, %c0_78] : memref<36x32xbf16, #tpu.memory_space<vmem>>, vector<36x32xbf16>
    %cst_79 = arith.constant dense<0.000000e+00> : vector<256x32xf32>
    %64 = tpu.matmul %62, %63, %cst_79 {dimension_numbers = #tpu.dot_dimension_numbers<[1], [0], [0], [1], [0, 0, 1, 1], [], []>} : vector<256x36xbf16>, vector<36x32xbf16>, vector<256x32xf32> -> vector<256x32xf32>
    %c0_80 = arith.constant 0 : index
    %c0_81 = arith.constant 0 : index
    %65 = vector.load %arg3[%c0_80, %c0_81] : memref<1x32xf32, #tpu.memory_space<vmem>>, vector<1x32xf32>
    %66 = vector.shape_cast %65 : vector<1x32xf32> to vector<32xf32>
    %67 = vector.shape_cast %66 : vector<32xf32> to vector<1x32xf32>
    %68 = vector.broadcast %67 : vector<1x32xf32> to vector<256x32xf32>
    %69 = arith.addf %64, %68 : vector<256x32xf32>
    %c0_82 = arith.constant 0 : index
    %c0_83 = arith.constant 0 : index
    %70 = vector.load %arg8[%c0_82, %c0_83] : memref<1x32xf32, #tpu.memory_space<vmem>>, vector<1x32xf32>
    %71 = vector.shape_cast %70 : vector<1x32xf32> to vector<32xf32>
    %72 = vector.shape_cast %71 : vector<32xf32> to vector<1x32xf32>
    %73 = vector.broadcast %72 : vector<1x32xf32> to vector<256x32xf32>
    %74 = arith.mulf %69, %73 : vector<256x32xf32>
    %c0_84 = arith.constant 0 : index
    %c0_85 = arith.constant 0 : index
    %75 = vector.load %arg9[%c0_84, %c0_85] : memref<1x32xf32, #tpu.memory_space<vmem>>, vector<1x32xf32>
    %76 = vector.shape_cast %75 : vector<1x32xf32> to vector<32xf32>
    %77 = vector.shape_cast %76 : vector<32xf32> to vector<1x32xf32>
    %78 = vector.broadcast %77 : vector<1x32xf32> to vector<256x32xf32>
    %79 = arith.addf %74, %78 : vector<256x32xf32>
    %cst_86 = arith.constant 0.000000e+00 : f32
    %80 = vector.broadcast %cst_86 : f32 to vector<256x32xf32>
    %81 = arith.cmpf oge, %79, %80 : vector<256x32xf32>
    %cst_87 = arith.constant 2.000000e-01 : f32
    %82 = vector.broadcast %cst_87 : f32 to vector<256x32xf32>
    %83 = arith.mulf %82, %79 : vector<256x32xf32>
    %84 = arith.select %81, %79, %83 : vector<256x32xi1>, vector<256x32xf32>
    %85 = vector.shape_cast %84 : vector<256x32xf32> to vector<16x16x32xf32>
    %86 = arith.truncf %85 : vector<16x16x32xf32> to vector<16x16x32xbf16>
    %c1_88 = arith.constant 1 : index
    %c2_89 = arith.constant 2 : index
    %c0_90 = arith.constant 0 : index
    %87 = vector.load %arg13[%c1_88, %c2_89, %c0_90] : memref<18x20x32xbf16, #tpu.memory_space<vmem>>, vector<16x16x32xbf16>
    tpu.vector_store %arg13[%c1_88, %c2_89, %c0_90], %86 {strides = array<i32>} : memref<18x20x32xbf16, #tpu.memory_space<vmem>>, vector<16x16x32xbf16>,
    %c0_91 = arith.constant 0 : index
    %c1_92 = arith.constant 1 : index
    %c0_93 = arith.constant 0 : index
    %88 = vector.load %arg13[%c0_91, %c1_92, %c0_93] : memref<18x20x32xbf16, #tpu.memory_space<vmem>>, vector<16x16x32xbf16>
    %89 = vector.shape_cast %88 : vector<16x16x32xbf16> to vector<256x32xbf16>
    %c0_94 = arith.constant 0 : index
    %c0_95 = arith.constant 0 : index
    %90 = vector.load %arg14[%c0_94, %c0_95] : memref<256x292xbf16, #tpu.memory_space<vmem>>, vector<256x32xbf16>
    tpu.vector_store %arg14[%c0_94, %c0_95], %89 {strides = array<i32>} : memref<256x292xbf16, #tpu.memory_space<vmem>>, vector<256x32xbf16>,
    %c0_96 = arith.constant 0 : index
    %c2_97 = arith.constant 2 : index
    %c0_98 = arith.constant 0 : index
    %91 = vector.load %arg13[%c0_96, %c2_97, %c0_98] : memref<18x20x32xbf16, #tpu.memory_space<vmem>>, vector<16x16x32xbf16>
    %92 = vector.shape_cast %91 : vector<16x16x32xbf16> to vector<256x32xbf16>
    %c0_99 = arith.constant 0 : index
    %c32_100 = arith.constant 32 : index
    %93 = vector.load %arg14[%c0_99, %c32_100] : memref<256x292xbf16, #tpu.memory_space<vmem>>, vector<256x32xbf16>
    tpu.vector_store %arg14[%c0_99, %c32_100], %92 {strides = array<i32>} : memref<256x292xbf16, #tpu.memory_space<vmem>>, vector<256x32xbf16>,
    %c0_101 = arith.constant 0 : index
    %c3_102 = arith.constant 3 : index
    %c0_103 = arith.constant 0 : index
    %94 = vector.load %arg13[%c0_101, %c3_102, %c0_103] : memref<18x20x32xbf16, #tpu.memory_space<vmem>>, vector<16x16x32xbf16>
    %95 = vector.shape_cast %94 : vector<16x16x32xbf16> to vector<256x32xbf16>
    %c0_104 = arith.constant 0 : index
    %c64 = arith.constant 64 : index
    %96 = vector.load %arg14[%c0_104, %c64] : memref<256x292xbf16, #tpu.memory_space<vmem>>, vector<256x32xbf16>
    tpu.vector_store %arg14[%c0_104, %c64], %95 {strides = array<i32>} : memref<256x292xbf16, #tpu.memory_space<vmem>>, vector<256x32xbf16>,
    %c1_105 = arith.constant 1 : index
    %c1_106 = arith.constant 1 : index
    %c0_107 = arith.constant 0 : index
    %97 = vector.load %arg13[%c1_105, %c1_106, %c0_107] : memref<18x20x32xbf16, #tpu.memory_space<vmem>>, vector<16x16x32xbf16>
    %98 = vector.shape_cast %97 : vector<16x16x32xbf16> to vector<256x32xbf16>
    %c0_108 = arith.constant 0 : index
    %c96 = arith.constant 96 : index
    %99 = vector.load %arg14[%c0_108, %c96] : memref<256x292xbf16, #tpu.memory_space<vmem>>, vector<256x32xbf16>
    tpu.vector_store %arg14[%c0_108, %c96], %98 {strides = array<i32>} : memref<256x292xbf16, #tpu.memory_space<vmem>>, vector<256x32xbf16>,
    %c1_109 = arith.constant 1 : index
    %c2_110 = arith.constant 2 : index
    %c0_111 = arith.constant 0 : index
    %100 = vector.load %arg13[%c1_109, %c2_110, %c0_111] : memref<18x20x32xbf16, #tpu.memory_space<vmem>>, vector<16x16x32xbf16>
    %101 = vector.shape_cast %100 : vector<16x16x32xbf16> to vector<256x32xbf16>
    %c0_112 = arith.constant 0 : index
    %c128 = arith.constant 128 : index
    %102 = vector.load %arg14[%c0_112, %c128] : memref<256x292xbf16, #tpu.memory_space<vmem>>, vector<256x32xbf16>
    tpu.vector_store %arg14[%c0_112, %c128], %101 {strides = array<i32>} : memref<256x292xbf16, #tpu.memory_space<vmem>>, vector<256x32xbf16>,
    %c1_113 = arith.constant 1 : index
    %c3_114 = arith.constant 3 : index
    %c0_115 = arith.constant 0 : index
    %103 = vector.load %arg13[%c1_113, %c3_114, %c0_115] : memref<18x20x32xbf16, #tpu.memory_space<vmem>>, vector<16x16x32xbf16>
    %104 = vector.shape_cast %103 : vector<16x16x32xbf16> to vector<256x32xbf16>
    %c0_116 = arith.constant 0 : index
    %c160 = arith.constant 160 : index
    %105 = vector.load %arg14[%c0_116, %c160] : memref<256x292xbf16, #tpu.memory_space<vmem>>, vector<256x32xbf16>
    tpu.vector_store %arg14[%c0_116, %c160], %104 {strides = array<i32>} : memref<256x292xbf16, #tpu.memory_space<vmem>>, vector<256x32xbf16>,
    %c2_117 = arith.constant 2 : index
    %c1_118 = arith.constant 1 : index
    %c0_119 = arith.constant 0 : index
    %106 = vector.load %arg13[%c2_117, %c1_118, %c0_119] : memref<18x20x32xbf16, #tpu.memory_space<vmem>>, vector<16x16x32xbf16>
    %107 = vector.shape_cast %106 : vector<16x16x32xbf16> to vector<256x32xbf16>
    %c0_120 = arith.constant 0 : index
    %c192 = arith.constant 192 : index
    %108 = vector.load %arg14[%c0_120, %c192] : memref<256x292xbf16, #tpu.memory_space<vmem>>, vector<256x32xbf16>
    tpu.vector_store %arg14[%c0_120, %c192], %107 {strides = array<i32>} : memref<256x292xbf16, #tpu.memory_space<vmem>>, vector<256x32xbf16>,
    %c2_121 = arith.constant 2 : index
    %c2_122 = arith.constant 2 : index
    %c0_123 = arith.constant 0 : index
    %109 = vector.load %arg13[%c2_121, %c2_122, %c0_123] : memref<18x20x32xbf16, #tpu.memory_space<vmem>>, vector<16x16x32xbf16>
    %110 = vector.shape_cast %109 : vector<16x16x32xbf16> to vector<256x32xbf16>
    %c0_124 = arith.constant 0 : index
    %c224 = arith.constant 224 : index
    %111 = vector.load %arg14[%c0_124, %c224] : memref<256x292xbf16, #tpu.memory_space<vmem>>, vector<256x32xbf16>
    tpu.vector_store %arg14[%c0_124, %c224], %110 {strides = array<i32>} : memref<256x292xbf16, #tpu.memory_space<vmem>>, vector<256x32xbf16>,
    %c2_125 = arith.constant 2 : index
    %c3_126 = arith.constant 3 : index
    %c0_127 = arith.constant 0 : index
    %112 = vector.load %arg13[%c2_125, %c3_126, %c0_127] : memref<18x20x32xbf16, #tpu.memory_space<vmem>>, vector<16x16x32xbf16>
    %113 = vector.shape_cast %112 : vector<16x16x32xbf16> to vector<256x32xbf16>
    %c0_128 = arith.constant 0 : index
    %c256 = arith.constant 256 : index
    %114 = vector.load %arg14[%c0_128, %c256] : memref<256x292xbf16, #tpu.memory_space<vmem>>, vector<256x32xbf16>
    tpu.vector_store %arg14[%c0_128, %c256], %113 {strides = array<i32>} : memref<256x292xbf16, #tpu.memory_space<vmem>>, vector<256x32xbf16>,
    %115 = vector.shape_cast %17 : vector<16x16x4xf32> to vector<256x4xf32>
    %116 = arith.truncf %115 : vector<256x4xf32> to vector<256x4xbf16>
    %c0_129 = arith.constant 0 : index
    %c288 = arith.constant 288 : index
    %117 = vector.load %arg14[%c0_129, %c288] : memref<256x292xbf16, #tpu.memory_space<vmem>>, vector<256x4xbf16>
    tpu.vector_store %arg14[%c0_129, %c288], %116 {strides = array<i32>} : memref<256x292xbf16, #tpu.memory_space<vmem>>, vector<256x4xbf16>,
    %c0_130 = arith.constant 0 : index
    %c0_131 = arith.constant 0 : index
    %118 = vector.load %arg14[%c0_130, %c0_131] : memref<256x292xbf16, #tpu.memory_space<vmem>>, vector<256x292xbf16>
    %c0_132 = arith.constant 0 : index
    %c0_133 = arith.constant 0 : index
    %119 = vector.load %arg6[%c0_132, %c0_133] : memref<292x32xbf16, #tpu.memory_space<vmem>>, vector<292x32xbf16>
    %cst_134 = arith.constant dense<0.000000e+00> : vector<256x32xf32>
    %120 = tpu.matmul %118, %119, %cst_134 {dimension_numbers = #tpu.dot_dimension_numbers<[1], [0], [0], [1], [0, 0, 1, 1], [], []>} : vector<256x292xbf16>, vector<292x32xbf16>, vector<256x32xf32> -> vector<256x32xf32>
    %c0_135 = arith.constant 0 : index
    %c0_136 = arith.constant 0 : index
    %121 = vector.load %arg7[%c0_135, %c0_136] : memref<1x32xf32, #tpu.memory_space<vmem>>, vector<1x32xf32>
    %122 = vector.shape_cast %121 : vector<1x32xf32> to vector<32xf32>
    %123 = vector.shape_cast %122 : vector<32xf32> to vector<1x32xf32>
    %124 = vector.broadcast %123 : vector<1x32xf32> to vector<256x32xf32>
    %125 = arith.addf %120, %124 : vector<256x32xf32>
    %c0_137 = arith.constant 0 : index
    %c0_138 = arith.constant 0 : index
    %c0_139 = arith.constant 0 : index
    %126 = vector.load %arg10[%c0_137, %c0_138, %c0_139] : memref<1x256x32xf32, #tpu.memory_space<vmem>>, vector<1x256x32xf32>
    %127 = vector.shape_cast %126 : vector<1x256x32xf32> to vector<256x32xf32>
    %128 = vector.shape_cast %125 : vector<256x32xf32> to vector<1x256x32xf32>
    tpu.vector_store %arg10[%c0_137, %c0_138, %c0_139], %128 {strides = array<i32>} : memref<1x256x32xf32, #tpu.memory_space<vmem>>, vector<1x256x32xf32>,
    return
  }
  func.func @transform_0(%arg0: i32) -> (i32, i32, i32, i32) {
    %c0_i32 = arith.constant 0 : i32
    %c0_i32_0 = arith.constant 0 : i32
    %c0_i32_1 = arith.constant 0 : i32
    %c0_i32_2 = arith.constant 0 : i32
    return %arg0, %c0_i32, %c0_i32_0, %c0_i32_1 : i32, i32, i32, i32
  }
  func.func @transform_1(%arg0: i32) -> (i32, i32) {
    %c0_i32 = arith.constant 0 : i32
    %c0_i32_0 = arith.constant 0 : i32
    %c0_i32_1 = arith.constant 0 : i32
    return %c0_i32, %c0_i32_0 : i32, i32
  }
  func.func @transform_2(%arg0: i32) -> (i32, i32) {
    %c0_i32 = arith.constant 0 : i32
    %c0_i32_0 = arith.constant 0 : i32
    %c0_i32_1 = arith.constant 0 : i32
    return %c0_i32, %c0_i32_0 : i32, i32
  }
  func.func @transform_3(%arg0: i32) -> (i32, i32) {
    %c0_i32 = arith.constant 0 : i32
    %c0_i32_0 = arith.constant 0 : i32
    %c0_i32_1 = arith.constant 0 : i32
    return %c0_i32, %c0_i32_0 : i32, i32
  }
  func.func @transform_4(%arg0: i32) -> (i32, i32) {
    %c0_i32 = arith.constant 0 : i32
    %c0_i32_0 = arith.constant 0 : i32
    %c0_i32_1 = arith.constant 0 : i32
    return %c0_i32, %c0_i32_0 : i32, i32
  }
  func.func @transform_5(%arg0: i32) -> (i32, i32) {
    %c0_i32 = arith.constant 0 : i32
    %c0_i32_0 = arith.constant 0 : i32
    %c0_i32_1 = arith.constant 0 : i32
    return %c0_i32, %c0_i32_0 : i32, i32
  }
  func.func @transform_6(%arg0: i32) -> (i32, i32) {
    %c0_i32 = arith.constant 0 : i32
    %c0_i32_0 = arith.constant 0 : i32
    %c0_i32_1 = arith.constant 0 : i32
    return %c0_i32, %c0_i32_0 : i32, i32
  }
  func.func @transform_7(%arg0: i32) -> (i32, i32) {
    %c0_i32 = arith.constant 0 : i32
    %c0_i32_0 = arith.constant 0 : i32
    %c0_i32_1 = arith.constant 0 : i32
    return %c0_i32, %c0_i32_0 : i32, i32
  }
  func.func @transform_8(%arg0: i32) -> (i32, i32) {
    %c0_i32 = arith.constant 0 : i32
    %c0_i32_0 = arith.constant 0 : i32
    %c0_i32_1 = arith.constant 0 : i32
    return %c0_i32, %c0_i32_0 : i32, i32
  }
  func.func @transform_9(%arg0: i32) -> (i32, i32, i32) {
    %c0_i32 = arith.constant 0 : i32
    %c0_i32_0 = arith.constant 0 : i32
    %c0_i32_1 = arith.constant 0 : i32
    return %arg0, %c0_i32, %c0_i32_0 : i32, i32, i32
  }
}

</mosaic_0001>

<llo_original>
// kernel: tpu_custom_call.1
$region0: #{tpu_custom_call.1}
  #allocation0 [shape = 'u32[]', space=smem, size = 0x4, offset = 0x4, fixed_abs, tag = 'smem constant byte address 0x4 - core index']
  #allocation1 [shape = 'u32[144,128]{1,0:T(1,128)}', space=vmem, size = 0x12000, scoped, tag = 'internal scratch']
  #allocation2 [shape = 'bf16[18,20,4]{2,1,0:T(8,128)(2,1)}', space=vmem, size = 0x1b000, scoped, tag = 'scratch operand']
  #allocation3 [shape = 'bf16[256,36]{1,0:T(8,128)(2,1)}', space=vmem, size = 0x10000, scoped, tag = 'scratch operand']
  #allocation4 [shape = 'bf16[18,20,32]{2,1,0:T(8,128)(2,1)}', space=vmem, size = 0x1b000, scoped, tag = 'scratch operand']
  #allocation5 [shape = 'bf16[256,292]{1,0:T(8,128)(2,1)}', space=vmem, size = 0x30000, scoped, tag = 'scratch operand']
  %s0 = inlined_call_operand.vmem [shape: f32[2,16,16,4], index: 0, kind: input, shape index: {}]
  %s1 = inlined_call_operand.vmem [shape: bf16[36,32], index: 1, kind: input, shape index: {}]
  %s2 = inlined_call_operand.vmem [shape: f32[1,32], index: 2, kind: input, shape index: {}]
  %s3 = inlined_call_operand.vmem [shape: f32[1,4], index: 3, kind: input, shape index: {}]
  %s4 = inlined_call_operand.vmem [shape: f32[1,4], index: 4, kind: input, shape index: {}]
  %s5 = inlined_call_operand.vmem [shape: bf16[292,32], index: 5, kind: input, shape index: {}]
  %s6 = inlined_call_operand.vmem [shape: f32[1,32], index: 6, kind: input, shape index: {}]
  %s7 = inlined_call_operand.vmem [shape: f32[1,32], index: 7, kind: input, shape index: {}]
  %s8 = inlined_call_operand.vmem [shape: f32[1,32], index: 8, kind: input, shape index: {}]
  %s9 = inlined_call_operand.vmem [shape: f32[2,256,32], index: 9, kind: output, shape index: {}]
  %s10 = sld [smem:[#allocation0]]
  $region69: #{tpu_custom_call.1} parent=0
    _
  %s12 = ssub.s32 1, %s10
  %s13 = scalar_select 0, %s12, %s10
  loop: start=0, step=1, limit=4
  $region2: #{tpu_custom_call.1} parent=0 // loop_pre_header
    _
  $region3: #{tpu_custom_call.1} parent=0 // loop_header
    %s15 = sphi 0, %s19
    %p16 = scmp.ge.s32.totalorder %s15, 4
    %s25 = sphi 0, %s27
    %s28 = sphi 0, %s25
    %s29 = sphi 0, %s28
    %s45 = sphi 0, %s29
    %s49 = sphi 0, %s49
    %s51 = sphi 0, %s49
    %s52 = sphi 0, %s51
    %s66 = sphi 0, %s52
    %s70 = sphi 0, %s70
    %s72 = sphi 0, %s70
    %s73 = sphi 0, %s72
    %s87 = sphi 0, %s73
    %s91 = sphi 0, %s91
    %s93 = sphi 0, %s91
    %s94 = sphi 0, %s93
    %s108 = sphi 0, %s94
    %s112 = sphi 0, %s112
    %s114 = sphi 0, %s112
    %s115 = sphi 0, %s114
    %s129 = sphi 0, %s115
    %s133 = sphi 0, %s133
    %s135 = sphi 0, %s133
    %s136 = sphi 0, %s135
    %s150 = sphi 0, %s136
    %s154 = sphi 0, %s154
    %s156 = sphi 0, %s154
    %s157 = sphi 0, %s156
    %s171 = sphi 0, %s157
    %s175 = sphi 0, %s175
    %s177 = sphi 0, %s175
    %s178 = sphi 0, %s177
    %s192 = sphi 0, %s178
    %s196 = sphi 0, %s196
    %s198 = sphi 0, %s196
    %s199 = sphi 0, %s198
    %s213 = sphi 0, %s199
    %s219 = sphi 0, %s221
    %s222 = sphi 0, %s219
    %s223 = sphi 0, %s222
    %s239 = sphi 0, %s223
  $region4: #{tpu_custom_call.1} parent=0 // loop_header_branch
    %18 = sbr.rel (%p16) target = $region8
  $region5: #{tpu_custom_call.1} parent=0 // loop_body
    %s20 = ssub.s32 %s15, 1
    %s21 = ssub.s32 %s15, 2
    %s22 = sadd.s32 %s15, 1
    %s23 = ssub.s32 %s15, %s22
    %p24 = scmp.eq.s32.totalorder %s23, 0
    %s26 = sadd.s32 %s25, 1
    %s27 = scalar_select %p24, %s25, %s26
    %p30 = pneg %p24
    %p31 = scmp.eq.s32.totalorder %s15, 1
    %p32 = por %p30, %p31
    %p33 = scmp.ne.s32.totalorder %s25, %s28
    %p34 = scmp.eq.s32.totalorder %s15, 0
    %p35 = por %p33, %p34
    %p36 = scmp.ne.s32.totalorder %s25, %s28
    %p37 = scmp.eq.s32.totalorder %s20, 1
    %p38 = por %p36, %p37
    %p39 = scmp.ne.s32.totalorder %s28, %s29
    %p40 = scmp.eq.s32.totalorder %s20, 0
    %p41 = por %p39, %p40
    %p42 = scmp.ne.s32.totalorder %s28, %s29
    %p43 = scmp.eq.s32.totalorder %s21, 1
    %p44 = por %p42, %p43
    %p46 = scmp.ne.s32.totalorder %s29, %s45
    %p47 = scmp.eq.s32.totalorder %s21, 0
    %p48 = por %p46, %p47
    %s50 = sadd.s32 %s49, 1
    %p53 = scmp.eq.s32.totalorder %s15, 1
    %p54 = scmp.ne.s32.totalorder %s49, %s51
    %p55 = scmp.eq.s32.totalorder %s15, 0
    %p56 = por %p54, %p55
    %p57 = scmp.ne.s32.totalorder %s49, %s51
    %p58 = scmp.eq.s32.totalorder %s20, 1
    %p59 = por %p57, %p58
    %p60 = scmp.ne.s32.totalorder %s51, %s52
    %p61 = scmp.eq.s32.totalorder %s20, 0
    %p62 = por %p60, %p61
    %p63 = scmp.ne.s32.totalorder %s51, %s52
    %p64 = scmp.eq.s32.totalorder %s21, 1
    %p65 = por %p63, %p64
    %p67 = scmp.ne.s32.totalorder %s52, %s66
    %p68 = scmp.eq.s32.totalorder %s21, 0
    %p69 = por %p67, %p68
    %s71 = sadd.s32 %s70, 1
    %p74 = scmp.eq.s32.totalorder %s15, 1
    %p75 = scmp.ne.s32.totalorder %s70, %s72
    %p76 = scmp.eq.s32.totalorder %s15, 0
    %p77 = por %p75, %p76
    %p78 = scmp.ne.s32.totalorder %s70, %s72
    %p79 = scmp.eq.s32.totalorder %s20, 1
    %p80 = por %p78, %p79
    %p81 = scmp.ne.s32.totalorder %s72, %s73
    %p82 = scmp.eq.s32.totalorder %s20, 0
    %p83 = por %p81, %p82
    %p84 = scmp.ne.s32.totalorder %s72, %s73
    %p85 = scmp.eq.s32.totalorder %s21, 1
    %p86 = por %p84, %p85
    %p88 = scmp.ne.s32.totalorder %s73, %s87
    %p89 = scmp.eq.s32.totalorder %s21, 0
    %p90 = por %p88, %p89
    %s92 = sadd.s32 %s91, 1
    %p95 = scmp.eq.s32.totalorder %s15, 1
    %p96 = scmp.ne.s32.totalorder %s91, %s93
    %p97 = scmp.eq.s32.totalorder %s15, 0
    %p98 = por %p96, %p97
    %p99 = scmp.ne.s32.totalorder %s91, %s93
    %p100 = scmp.eq.s32.totalorder %s20, 1
    %p101 = por %p99, %p100
    %p102 = scmp.ne.s32.totalorder %s93, %s94
    %p103 = scmp.eq.s32.totalorder %s20, 0
    %p104 = por %p102, %p103
    %p105 = scmp.ne.s32.totalorder %s93, %s94
    %p106 = scmp.eq.s32.totalorder %s21, 1
    %p107 = por %p105, %p106
    %p109 = scmp.ne.s32.totalorder %s94, %s108
    %p110 = scmp.eq.s32.totalorder %s21, 0
    %p111 = por %p109, %p110
    %s113 = sadd.s32 %s112, 1
    %p116 = scmp.eq.s32.totalorder %s15, 1
    %p117 = scmp.ne.s32.totalorder %s112, %s114
    %p118 = scmp.eq.s32.totalorder %s15, 0
    %p119 = por %p117, %p118
    %p120 = scmp.ne.s32.totalorder %s112, %s114
    %p121 = scmp.eq.s32.totalorder %s20, 1
    %p122 = por %p120, %p121
    %p123 = scmp.ne.s32.totalorder %s114, %s115
    %p124 = scmp.eq.s32.totalorder %s20, 0
    %p125 = por %p123, %p124
    %p126 = scmp.ne.s32.totalorder %s114, %s115
    %p127 = scmp.eq.s32.totalorder %s21, 1
    %p128 = por %p126, %p127
    %p130 = scmp.ne.s32.totalorder %s115, %s129
    %p131 = scmp.eq.s32.totalorder %s21, 0
    %p132 = por %p130, %p131
    %s134 = sadd.s32 %s133, 1
    %p137 = scmp.eq.s32.totalorder %s15, 1
    %p138 = scmp.ne.s32.totalorder %s133, %s135
    %p139 = scmp.eq.s32.totalorder %s15, 0
    %p140 = por %p138, %p139
    %p141 = scmp.ne.s32.totalorder %s133, %s135
    %p142 = scmp.eq.s32.totalorder %s20, 1
    %p143 = por %p141, %p142
    %p144 = scmp.ne.s32.totalorder %s135, %s136
    %p145 = scmp.eq.s32.totalorder %s20, 0
    %p146 = por %p144, %p145
    %p147 = scmp.ne.s32.totalorder %s135, %s136
    %p148 = scmp.eq.s32.totalorder %s21, 1
    %p149 = por %p147, %p148
    %p151 = scmp.ne.s32.totalorder %s136, %s150
    %p152 = scmp.eq.s32.totalorder %s21, 0
    %p153 = por %p151, %p152
    %s155 = sadd.s32 %s154, 1
    %p158 = scmp.eq.s32.totalorder %s15, 1
    %p159 = scmp.ne.s32.totalorder %s154, %s156
    %p160 = scmp.eq.s32.totalorder %s15, 0
    %p161 = por %p159, %p160
    %p162 = scmp.ne.s32.totalorder %s154, %s156
    %p163 = scmp.eq.s32.totalorder %s20, 1
    %p164 = por %p162, %p163
    %p165 = scmp.ne.s32.totalorder %s156, %s157
    %p166 = scmp.eq.s32.totalorder %s20, 0
    %p167 = por %p165, %p166
    %p168 = scmp.ne.s32.totalorder %s156, %s157
    %p169 = scmp.eq.s32.totalorder %s21, 1
    %p170 = por %p168, %p169
    %p172 = scmp.ne.s32.totalorder %s157, %s171
    %p173 = scmp.eq.s32.totalorder %s21, 0
    %p174 = por %p172, %p173
    %s176 = sadd.s32 %s175, 1
    %p179 = scmp.eq.s32.totalorder %s15, 1
    %p180 = scmp.ne.s32.totalorder %s175, %s177
    %p181 = scmp.eq.s32.totalorder %s15, 0
    %p182 = por %p180, %p181
    %p183 = scmp.ne.s32.totalorder %s175, %s177
    %p184 = scmp.eq.s32.totalorder %s20, 1
    %p185 = por %p183, %p184
    %p186 = scmp.ne.s32.totalorder %s177, %s178
    %p187 = scmp.eq.s32.totalorder %s20, 0
    %p188 = por %p186, %p187
    %p189 = scmp.ne.s32.totalorder %s177, %s178
    %p190 = scmp.eq.s32.totalorder %s21, 1
    %p191 = por %p189, %p190
    %p193 = scmp.ne.s32.totalorder %s178, %s192
    %p194 = scmp.eq.s32.totalorder %s21, 0
    %p195 = por %p193, %p194
    %s197 = sadd.s32 %s196, 1
    %p200 = scmp.eq.s32.totalorder %s15, 1
    %p201 = scmp.ne.s32.totalorder %s196, %s198
    %p202 = scmp.eq.s32.totalorder %s15, 0
    %p203 = por %p201, %p202
    %p204 = scmp.ne.s32.totalorder %s196, %s198
    %p205 = scmp.eq.s32.totalorder %s20, 1
    %p206 = por %p204, %p205
    %p207 = scmp.ne.s32.totalorder %s198, %s199
    %p208 = scmp.eq.s32.totalorder %s20, 0
    %p209 = por %p207, %p208
    %p210 = scmp.ne.s32.totalorder %s198, %s199
    %p211 = scmp.eq.s32.totalorder %s21, 1
    %p212 = por %p210, %p211
    %p214 = scmp.ne.s32.totalorder %s199, %s213
    %p215 = scmp.eq.s32.totalorder %s21, 0
    %p216 = por %p214, %p215
    %s217 = ssub.s32 %s15, %s22
    %p218 = scmp.eq.s32.totalorder %s217, 0
    %s220 = sadd.s32 %s219, 1
    %s221 = scalar_select %p218, %s219, %s220
    %p224 = pneg %p218
    %p225 = scmp.eq.s32.totalorder %s15, 1
    %p226 = por %p224, %p225
    %p227 = scmp.ne.s32.totalorder %s219, %s222
    %p228 = scmp.eq.s32.totalorder %s15, 0
    %p229 = por %p227, %p228
    %p230 = scmp.ne.s32.totalorder %s219, %s222
    %p231 = scmp.eq.s32.totalorder %s20, 1
    %p232 = por %p230, %p231
    %p233 = scmp.ne.s32.totalorder %s222, %s223
    %p234 = scmp.eq.s32.totalorder %s20, 0
    %p235 = por %p233, %p234
    %p236 = scmp.ne.s32.totalorder %s222, %s223
    %p237 = scmp.eq.s32.totalorder %s21, 1
    %p238 = por %p236, %p237
    %p240 = scmp.ne.s32.totalorder %s223, %s239
    %p241 = scmp.eq.s32.totalorder %s21, 0
    %p242 = por %p240, %p241
    %p243 = scmp.le.s32.totalorder 1, %s15
    %p244 = scmp.lt.s32.totalorder %s15, 3
    %p245 = pnand %p243, %p244
    %p246 = pneg %p245
    // Predicated region
    $region9: #{tpu_custom_call.1} parent=5 // pred_check
      _
    $region10: #{tpu_custom_call.1} parent=5 // pred_check_branch
      %248 = sbr.rel (%p245) target = $region12
    $region11: #{tpu_custom_call.1} parent=5 // pred_region
      %s249 = ssub.s32 %s15, 1
      // Predicated region
      $region13: #{tpu_custom_call.1} parent=11 // pred_check
        %p250 = pneg %p62
      $region14: #{tpu_custom_call.1} parent=11 // pred_check_branch
        %252 = sbr.rel (%p250) target = $region16
      $region15: #{tpu_custom_call.1} parent=11 // pred_region
        _
      $region16: #{tpu_custom_call.1} parent=11 // pred_fallthru
        _
      // Predicated region
      $region17: #{tpu_custom_call.1} parent=11 // pred_check
        %p253 = pneg %p83
      $region18: #{tpu_custom_call.1} parent=11 // pred_check_branch
        %255 = sbr.rel (%p253) target = $region20
      $region19: #{tpu_custom_call.1} parent=11 // pred_region
        _
      $region20: #{tpu_custom_call.1} parent=11 // pred_fallthru
        _
      // Predicated region
      $region21: #{tpu_custom_call.1} parent=11 // pred_check
        %p256 = pneg %p104
      $region22: #{tpu_custom_call.1} parent=11 // pred_check_branch
        %258 = sbr.rel (%p256) target = $region24
      $region23: #{tpu_custom_call.1} parent=11 // pred_region
        _
      $region24: #{tpu_custom_call.1} parent=11 // pred_fallthru
        _
      // Predicated region
      $region25: #{tpu_custom_call.1} parent=11 // pred_check
        %p259 = pneg %p125
      $region26: #{tpu_custom_call.1} parent=11 // pred_check_branch
        %261 = sbr.rel (%p259) target = $region28
      $region27: #{tpu_custom_call.1} parent=11 // pred_region
        _
      $region28: #{tpu_custom_call.1} parent=11 // pred_fallthru
        _
      // Predicated region
      $region29: #{tpu_custom_call.1} parent=11 // pred_check
        %p262 = pneg %p146
      $region30: #{tpu_custom_call.1} parent=11 // pred_check_branch
        %264 = sbr.rel (%p262) target = $region32
      $region31: #{tpu_custom_call.1} parent=11 // pred_region
        _
      $region32: #{tpu_custom_call.1} parent=11 // pred_fallthru
        _
      // Predicated region
      $region33: #{tpu_custom_call.1} parent=11 // pred_check
        %p265 = pneg %p167
      $region34: #{tpu_custom_call.1} parent=11 // pred_check_branch
        %267 = sbr.rel (%p265) target = $region36
      $region35: #{tpu_custom_call.1} parent=11 // pred_region
        _
      $region36: #{tpu_custom_call.1} parent=11 // pred_fallthru
        _
      // Predicated region
      $region37: #{tpu_custom_call.1} parent=11 // pred_check
        %p268 = pneg %p188
      $region38: #{tpu_custom_call.1} parent=11 // pred_check_branch
        %270 = sbr.rel (%p268) target = $region40
      $region39: #{tpu_custom_call.1} parent=11 // pred_region
        _
      $region40: #{tpu_custom_call.1} parent=11 // pred_fallthru
        _
      // Predicated region
      $region41: #{tpu_custom_call.1} parent=11 // pred_check
        %p271 = pneg %p209
      $region42: #{tpu_custom_call.1} parent=11 // pred_check_branch
        %273 = sbr.rel (%p271) target = $region44
      $region43: #{tpu_custom_call.1} parent=11 // pred_region
        _
      $region44: #{tpu_custom_call.1} parent=11 // pred_fallthru
        _
    $region12: #{tpu_custom_call.1} parent=5 // pred_fallthru
      _
    %p274 = scmp.lt.s32.totalorder %s15, 2
    // Predicated region
    $region45: #{tpu_custom_call.1} parent=5 // pred_check
      %p275 = pneg %p274
    $region46: #{tpu_custom_call.1} parent=5 // pred_check_branch
      %277 = sbr.rel (%p275) target = $region48
    $region47: #{tpu_custom_call.1} parent=5 // pred_region
      // Predicated region
      $region49: #{tpu_custom_call.1} parent=47 // pred_check
        %p278 = pneg %p35
      $region50: #{tpu_custom_call.1} parent=47 // pred_check_branch
        %280 = sbr.rel (%p278) target = $region52
      $region51: #{tpu_custom_call.1} parent=47 // pred_region
        %p281 = scmp.lt.s32.totalorder %s15, 1
        %s282 = scalar_select %p281, %s15, 1
        %s283 = smul.addr %s282, 32
        %s284 = smul.addr %s283, 8
        %s285 = scalar_lea.vmem %s0, %s284
      $region52: #{tpu_custom_call.1} parent=47 // pred_fallthru
        _
    $region48: #{tpu_custom_call.1} parent=5 // pred_fallthru
      _
    %p286 = scmp.le.s32.totalorder 1, %s15
    %p287 = scmp.lt.s32.totalorder %s15, 3
    %p288 = pnand %p286, %p287
    %p289 = pneg %p288
    // Predicated region
    $region53: #{tpu_custom_call.1} parent=5 // pred_check
      _
    $region54: #{tpu_custom_call.1} parent=5 // pred_check_branch
      %291 = sbr.rel (%p288) target = $region56
    $region55: #{tpu_custom_call.1} parent=5 // pred_region
      %s292 = ssub.s32 %s15, 1
      %p293 = scmp.lt.s32.totalorder %s20, 1
      %s294 = scalar_select %p293, %s20, 1
      %s295 = smul.addr %s294, 32
      %s296 = smul.addr %s295, 8
      %s297 = scalar_lea.vmem %s0, %s296
      %p298 = pneg %p41
      %p299 = pneg %p38
      %p300 = pneg %p62
      %p301 = pneg %p59
      %p302 = pneg %p83
      %p303 = pneg %p80
      %p304 = pneg %p104
      %p305 = pneg %p101
      %p306 = pneg %p125
      %p307 = pneg %p122
      %p308 = pneg %p146
      %p309 = pneg %p143
      %p310 = pneg %p167
      %p311 = pneg %p164
      %p312 = pneg %p188
      %p313 = pneg %p185
      %p314 = pneg %p209
      %p315 = pneg %p206
      %p316 = pneg %p235
      %p317 = pneg %p232
      %p318 = scmp.lt.s32.totalorder %s20, 1
      %s319 = scalar_select %p318, %s20, 1
      %s320 = smul.addr %s319, 32
      %s321 = smul.addr %s320, 8
      %s322 = scalar_lea.vmem %s9, %s321
      %p323 = scmp.lt.s32.totalorder %s20, 1
      %s324 = scalar_select %p323, %s20, 1
      %s325 = smul.addr %s324, 32
      %s326 = smul.addr %s325, 8
      %s327 = scalar_lea.vmem %s0, %s326
      %p328 = scmp.lt.s32.totalorder %s20, 1
      %s329 = scalar_select %p328, %s20, 1
      %s330 = smul.addr %s329, 32
      %s331 = smul.addr %s330, 8
      %s332 = scalar_lea.vmem %s9, %s331
      %vm334 = vcmask 27648
      %335 = vst.msk [vmem:[#allocation2] sm:$0xf] %vm334, 0
      %336 = vst.msk [vmem:[#allocation2 + $0x4] sm:$0xf] %vm334, 0
      %vm337 = vcmask 25600
      %338 = vst.msk [vmem:[#allocation2 + $0x8] sm:$0x3] %vm337, 0
      %s339 = scalar_lea.vmem [#allocation2], 204
      %340 = vst.msk [vmem:[%s339] sm:$0xf] %vm334, 0
      %341 = vst.msk [vmem:[%s339 + $0x4] sm:$0xf] %vm334, 0
      %342 = vst.msk [vmem:[%s339 + $0x8] sm:$0x3] %vm337, 0
      %vm343 = vcmask 24576
      %344 = vst.msk [vmem:[#allocation2] sm:$0x1] %vm343, 0
      %345 = vst.msk [vmem:[#allocation2 + $0xc] sm:$0x1] %vm343, 0
      %346 = vst.msk [vmem:[#allocation2 + $0x18] sm:$0x1] %vm343, 0
      %347 = vst.msk [vmem:[#allocation2 + $0x24] sm:$0x1] %vm343, 0
      %348 = vst.msk [vmem:[#allocation2 + $0x30] sm:$0x1] %vm343, 0
      %349 = vst.msk [vmem:[#allocation2 + $0x3c] sm:$0x1] %vm343, 0
      %350 = vst.msk [vmem:[#allocation2 + $0x48] sm:$0x1] %vm343, 0
      %351 = vst.msk [vmem:[#allocation2 + $0x54] sm:$0x1] %vm343, 0
      %352 = vst.msk [vmem:[#allocation2 + $0x60] sm:$0x1] %vm343, 0
      %353 = vst.msk [vmem:[#allocation2 + $0x6c] sm:$0x1] %vm343, 0
      %354 = vst.msk [vmem:[#allocation2 + $0x78] sm:$0x1] %vm343, 0
      %355 = vst.msk [vmem:[#allocation2 + $0x84] sm:$0x1] %vm343, 0
      %356 = vst.msk [vmem:[#allocation2 + $0x90] sm:$0x1] %vm343, 0
      %357 = vst.msk [vmem:[#allocation2 + $0x9c] sm:$0x1] %vm343, 0
      %358 = vst.msk [vmem:[#allocation2 + $0xa8] sm:$0x1] %vm343, 0
      %359 = vst.msk [vmem:[#allocation2 + $0xb4] sm:$0x1] %vm343, 0
      %360 = vst.msk [vmem:[#allocation2 + $0xc0] sm:$0x1] %vm343, 0
      %361 = vst.msk [vmem:[#allocation2 + $0xcc] sm:$0x1] %vm343, 0
      %vm362 = vcmask 25601
      %363 = vst.msk [vmem:[#allocation2 + $0x8] sm:$0x2] %vm362, 0
      %364 = vst.msk [vmem:[#allocation2 + $0x14] sm:$0x2] %vm362, 0
      %365 = vst.msk [vmem:[#allocation2 + $0x20] sm:$0x2] %vm362, 0
      %366 = vst.msk [vmem:[#allocation2 + $0x2c] sm:$0x2] %vm362, 0
      %367 = vst.msk [vmem:[#allocation2 + $0x38] sm:$0x2] %vm362, 0
      %368 = vst.msk [vmem:[#allocation2 + $0x44] sm:$0x2] %vm362, 0
      %369 = vst.msk [vmem:[#allocation2 + $0x50] sm:$0x2] %vm362, 0
      %370 = vst.msk [vmem:[#allocation2 + $0x5c] sm:$0x2] %vm362, 0
      %371 = vst.msk [vmem:[#allocation2 + $0x68] sm:$0x2] %vm362, 0
      %372 = vst.msk [vmem:[#allocation2 + $0x74] sm:$0x2] %vm362, 0
      %373 = vst.msk [vmem:[#allocation2 + $0x80] sm:$0x2] %vm362, 0
      %374 = vst.msk [vmem:[#allocation2 + $0x8c] sm:$0x2] %vm362, 0
      %375 = vst.msk [vmem:[#allocation2 + $0x98] sm:$0x2] %vm362, 0
      %376 = vst.msk [vmem:[#allocation2 + $0xa4] sm:$0x2] %vm362, 0
      %377 = vst.msk [vmem:[#allocation2 + $0xb0] sm:$0x2] %vm362, 0
      %378 = vst.msk [vmem:[#allocation2 + $0xbc] sm:$0x2] %vm362, 0
      %379 = vst.msk [vmem:[#allocation2 + $0xc8] sm:$0x2] %vm362, 0
      %380 = vst.msk [vmem:[#allocation2 + $0xd4] sm:$0x2] %vm362, 0
      %vm381 = vcmask 257024
      %382 = vst.msk [vmem:[#allocation4] sm:$0xf] %vm381, 0
      %383 = vst.msk [vmem:[#allocation4 + $0x4] sm:$0xf] %vm381, 0
      %vm384 = vcmask 254976
      %385 = vst.msk [vmem:[#allocation4 + $0x8] sm:$0x3] %vm384, 0
      %s386 = scalar_lea.vmem [#allocation4], 204
      %387 = vst.msk [vmem:[%s386] sm:$0xf] %vm381, 0
      %388 = vst.msk [vmem:[%s386 + $0x4] sm:$0xf] %vm381, 0
      %389 = vst.msk [vmem:[%s386 + $0x8] sm:$0x3] %vm384, 0
      %vm390 = vcmask 253952
      %391 = vst.msk [vmem:[#allocation4] sm:$0x1] %vm390, 0
      %392 = vst.msk [vmem:[#allocation4 + $0xc] sm:$0x1] %vm390, 0
      %393 = vst.msk [vmem:[#allocation4 + $0x18] sm:$0x1] %vm390, 0
      %394 = vst.msk [vmem:[#allocation4 + $0x24] sm:$0x1] %vm390, 0
      %395 = vst.msk [vmem:[#allocation4 + $0x30] sm:$0x1] %vm390, 0
      %396 = vst.msk [vmem:[#allocation4 + $0x3c] sm:$0x1] %vm390, 0
      %397 = vst.msk [vmem:[#allocation4 + $0x48] sm:$0x1] %vm390, 0
      %398 = vst.msk [vmem:[#allocation4 + $0x54] sm:$0x1] %vm390, 0
      %399 = vst.msk [vmem:[#allocation4 + $0x60] sm:$0x1] %vm390, 0
      %400 = vst.msk [vmem:[#allocation4 + $0x6c] sm:$0x1] %vm390, 0
      %401 = vst.msk [vmem:[#allocation4 + $0x78] sm:$0x1] %vm390, 0
      %402 = vst.msk [vmem:[#allocation4 + $0x84] sm:$0x1] %vm390, 0
      %403 = vst.msk [vmem:[#allocation4 + $0x90] sm:$0x1] %vm390, 0
      %404 = vst.msk [vmem:[#allocation4 + $0x9c] sm:$0x1] %vm390, 0
      %405 = vst.msk [vmem:[#allocation4 + $0xa8] sm:$0x1] %vm390, 0
      %406 = vst.msk [vmem:[#allocation4 + $0xb4] sm:$0x1] %vm390, 0
      %407 = vst.msk [vmem:[#allocation4 + $0xc0] sm:$0x1] %vm390, 0
      %408 = vst.msk [vmem:[#allocation4 + $0xcc] sm:$0x1] %vm390, 0
      %vm409 = vcmask 254977
      %410 = vst.msk [vmem:[#allocation4 + $0x8] sm:$0x2] %vm409, 0
      %411 = vst.msk [vmem:[#allocation4 + $0x14] sm:$0x2] %vm409, 0
      %412 = vst.msk [vmem:[#allocation4 + $0x20] sm:$0x2] %vm409, 0
      %413 = vst.msk [vmem:[#allocation4 + $0x2c] sm:$0x2] %vm409, 0
      %414 = vst.msk [vmem:[#allocation4 + $0x38] sm:$0x2] %vm409, 0
      %415 = vst.msk [vmem:[#allocation4 + $0x44] sm:$0x2] %vm409, 0
      %416 = vst.msk [vmem:[#allocation4 + $0x50] sm:$0x2] %vm409, 0
      %417 = vst.msk [vmem:[#allocation4 + $0x5c] sm:$0x2] %vm409, 0
      %418 = vst.msk [vmem:[#allocation4 + $0x68] sm:$0x2] %vm409, 0
      %419 = vst.msk [vmem:[#allocation4 + $0x74] sm:$0x2] %vm409, 0
      %420 = vst.msk [vmem:[#allocation4 + $0x80] sm:$0x2] %vm409, 0
      %421 = vst.msk [vmem:[#allocation4 + $0x8c] sm:$0x2] %vm409, 0
      %422 = vst.msk [vmem:[#allocation4 + $0x98] sm:$0x2] %vm409, 0
      %423 = vst.msk [vmem:[#allocation4 + $0xa4] sm:$0x2] %vm409, 0
      %424 = vst.msk [vmem:[#allocation4 + $0xb0] sm:$0x2] %vm409, 0
      %425 = vst.msk [vmem:[#allocation4 + $0xbc] sm:$0x2] %vm409, 0
      %426 = vst.msk [vmem:[#allocation4 + $0xc8] sm:$0x2] %vm409, 0
      %427 = vst.msk [vmem:[#allocation4 + $0xd4] sm:$0x2] %vm409, 0
      %v428 = vld [vmem:[%s327] sm:$0xff]
      %v429 = vld [vmem:[%s327 + $0x8] sm:$0xff]
      %v430 = vld [vmem:[%s327 + $0x10] sm:$0xff]
      %v431 = vld [vmem:[%s327 + $0x18] sm:$0xff]
      %v432 = vld [vmem:[%s327 + $0x20] sm:$0xff]
      %v433 = vld [vmem:[%s327 + $0x28] sm:$0xff]
      %v434 = vld [vmem:[%s327 + $0x30] sm:$0xff]
      %v435 = vld [vmem:[%s327 + $0x38] sm:$0xff]
      %v436 = vld [vmem:[%s327 + $0x40] sm:$0xff]
      %v437 = vld [vmem:[%s327 + $0x48] sm:$0xff]
      %v438 = vld [vmem:[%s327 + $0x50] sm:$0xff]
      %v439 = vld [vmem:[%s327 + $0x58] sm:$0xff]
      %v440 = vld [vmem:[%s327 + $0x60] sm:$0xff]
      %v441 = vld [vmem:[%s327 + $0x68] sm:$0xff]
      %v442 = vld [vmem:[%s327 + $0x70] sm:$0xff]
      %v443 = vld [vmem:[%s327 + $0x78] sm:$0xff]
      %v444 = vld [vmem:[%s327 + $0x80] sm:$0xff]
      %v445 = vld [vmem:[%s327 + $0x88] sm:$0xff]
      %v446 = vld [vmem:[%s327 + $0x90] sm:$0xff]
      %v447 = vld [vmem:[%s327 + $0x98] sm:$0xff]
      %v448 = vld [vmem:[%s327 + $0xa0] sm:$0xff]
      %v449 = vld [vmem:[%s327 + $0xa8] sm:$0xff]
      %v450 = vld [vmem:[%s327 + $0xb0] sm:$0xff]
      %v451 = vld [vmem:[%s327 + $0xb8] sm:$0xff]
      %v452 = vld [vmem:[%s327 + $0xc0] sm:$0xff]
      %v453 = vld [vmem:[%s327 + $0xc8] sm:$0xff]
      %v454 = vld [vmem:[%s327 + $0xd0] sm:$0xff]
      %v455 = vld [vmem:[%s327 + $0xd8] sm:$0xff]
      %v456 = vld [vmem:[%s327 + $0xe0] sm:$0xff]
      %v457 = vld [vmem:[%s327 + $0xe8] sm:$0xff]
      %v458 = vld [vmem:[%s327 + $0xf0] sm:$0xff]
      %v459 = vld [vmem:[%s327 + $0xf8] sm:$0xff]
      %v460 = vld [vmem:[%s3] sm:$0x1]
      %v462 = vlaneseq
      %v463 = vshrl.u32 %v462, 7
      %v464 = vsub.s32 0, %v463
      %v465 = vrot.slane %v460, %v464
      %v467 = vmul.f32 %v428, %v465
      %v468 = vmul.f32 %v429, %v465
      %v469 = vmul.f32 %v430, %v465
      %v470 = vmul.f32 %v431, %v465
      %v471 = vmul.f32 %v432, %v465
      %v472 = vmul.f32 %v433, %v465
      %v473 = vmul.f32 %v434, %v465
      %v474 = vmul.f32 %v435, %v465
      %v475 = vmul.f32 %v436, %v465
      %v476 = vmul.f32 %v437, %v465
      %v477 = vmul.f32 %v438, %v465
      %v478 = vmul.f32 %v439, %v465
      %v479 = vmul.f32 %v440, %v465
      %v480 = vmul.f32 %v441, %v465
      %v481 = vmul.f32 %v442, %v465
      %v482 = vmul.f32 %v443, %v465
      %v483 = vmul.f32 %v444, %v465
      %v484 = vmul.f32 %v445, %v465
      %v485 = vmul.f32 %v446, %v465
      %v486 = vmul.f32 %v447, %v465
      %v487 = vmul.f32 %v448, %v465
      %v488 = vmul.f32 %v449, %v465
      %v489 = vmul.f32 %v450, %v465
      %v490 = vmul.f32 %v451, %v465
      %v491 = vmul.f32 %v452, %v465
      %v492 = vmul.f32 %v453, %v465
      %v493 = vmul.f32 %v454, %v465
      %v494 = vmul.f32 %v455, %v465
      %v495 = vmul.f32 %v456, %v465
      %v496 = vmul.f32 %v457, %v465
      %v497 = vmul.f32 %v458, %v465
      %v498 = vmul.f32 %v459, %v465
      %v499 = vld [vmem:[%s4] sm:$0x1]
      %v501 = vlaneseq
      %v502 = vshrl.u32 %v501, 7
      %v503 = vsub.s32 0, %v502
      %v504 = vrot.slane %v499, %v503
      %v506 = vadd.f32 %v467, %v504
      %v507 = vadd.f32 %v468, %v504
      %v508 = vadd.f32 %v469, %v504
      %v509 = vadd.f32 %v470, %v504
      %v510 = vadd.f32 %v471, %v504
      %v511 = vadd.f32 %v472, %v504
      %v512 = vadd.f32 %v473, %v504
      %v513 = vadd.f32 %v474, %v504
      %v514 = vadd.f32 %v475, %v504
      %v515 = vadd.f32 %v476, %v504
      %v516 = vadd.f32 %v477, %v504
      %v517 = vadd.f32 %v478, %v504
      %v518 = vadd.f32 %v479, %v504
      %v519 = vadd.f32 %v480, %v504
      %v520 = vadd.f32 %v481, %v504
      %v521 = vadd.f32 %v482, %v504
      %v522 = vadd.f32 %v483, %v504
      %v523 = vadd.f32 %v484, %v504
      %v524 = vadd.f32 %v485, %v504
      %v525 = vadd.f32 %v486, %v504
      %v526 = vadd.f32 %v487, %v504
      %v527 = vadd.f32 %v488, %v504
      %v528 = vadd.f32 %v489, %v504
      %v529 = vadd.f32 %v490, %v504
      %v530 = vadd.f32 %v491, %v504
      %v531 = vadd.f32 %v492, %v504
      %v532 = vadd.f32 %v493, %v504
      %v533 = vadd.f32 %v494, %v504
      %v534 = vadd.f32 %v495, %v504
      %v535 = vadd.f32 %v496, %v504
      %v536 = vadd.f32 %v497, %v504
      %v537 = vadd.f32 %v498, %v504
      %vm538 = vcmp.ge.f32.partialorder %v506, 0.0
      %vm539 = vcmp.ge.f32.partialorder %v507, 0.0
      %vm540 = vcmp.ge.f32.partialorder %v508, 0.0
      %vm541 = vcmp.ge.f32.partialorder %v509, 0.0
      %vm542 = vcmp.ge.f32.partialorder %v510, 0.0
      %vm543 = vcmp.ge.f32.partialorder %v511, 0.0
      %vm544 = vcmp.ge.f32.partialorder %v512, 0.0
      %vm545 = vcmp.ge.f32.partialorder %v513, 0.0
      %vm546 = vcmp.ge.f32.partialorder %v514, 0.0
      %vm547 = vcmp.ge.f32.partialorder %v515, 0.0
      %vm548 = vcmp.ge.f32.partialorder %v516, 0.0
      %vm549 = vcmp.ge.f32.partialorder %v517, 0.0
      %vm550 = vcmp.ge.f32.partialorder %v518, 0.0
      %vm551 = vcmp.ge.f32.partialorder %v519, 0.0
      %vm552 = vcmp.ge.f32.partialorder %v520, 0.0
      %vm553 = vcmp.ge.f32.partialorder %v521, 0.0
      %vm554 = vcmp.ge.f32.partialorder %v522, 0.0
      %vm555 = vcmp.ge.f32.partialorder %v523, 0.0
      %vm556 = vcmp.ge.f32.partialorder %v524, 0.0
      %vm557 = vcmp.ge.f32.partialorder %v525, 0.0
      %vm558 = vcmp.ge.f32.partialorder %v526, 0.0
      %vm559 = vcmp.ge.f32.partialorder %v527, 0.0
      %vm560 = vcmp.ge.f32.partialorder %v528, 0.0
      %vm561 = vcmp.ge.f32.partialorder %v529, 0.0
      %vm562 = vcmp.ge.f32.partialorder %v530, 0.0
      %vm563 = vcmp.ge.f32.partialorder %v531, 0.0
      %vm564 = vcmp.ge.f32.partialorder %v532, 0.0
      %vm565 = vcmp.ge.f32.partialorder %v533, 0.0
      %vm566 = vcmp.ge.f32.partialorder %v534, 0.0
      %vm567 = vcmp.ge.f32.partialorder %v535, 0.0
      %vm568 = vcmp.ge.f32.partialorder %v536, 0.0
      %vm569 = vcmp.ge.f32.partialorder %v537, 0.0
      %v570 = vmul.f32 %v506, 0.2
      %v571 = vmul.f32 %v507, 0.2
      %v572 = vmul.f32 %v508, 0.2
      %v573 = vmul.f32 %v509, 0.2
      %v574 = vmul.f32 %v510, 0.2
      %v575 = vmul.f32 %v511, 0.2
      %v576 = vmul.f32 %v512, 0.2
      %v577 = vmul.f32 %v513, 0.2
      %v578 = vmul.f32 %v514, 0.2
      %v579 = vmul.f32 %v515, 0.2
      %v580 = vmul.f32 %v516, 0.2
      %v581 = vmul.f32 %v517, 0.2
      %v582 = vmul.f32 %v518, 0.2
      %v583 = vmul.f32 %v519, 0.2
      %v584 = vmul.f32 %v520, 0.2
      %v585 = vmul.f32 %v521, 0.2
      %v586 = vmul.f32 %v522, 0.2
      %v587 = vmul.f32 %v523, 0.2
      %v588 = vmul.f32 %v524, 0.2
      %v589 = vmul.f32 %v525, 0.2
      %v590 = vmul.f32 %v526, 0.2
      %v591 = vmul.f32 %v527, 0.2
      %v592 = vmul.f32 %v528, 0.2
      %v593 = vmul.f32 %v529, 0.2
      %v594 = vmul.f32 %v530, 0.2
      %v595 = vmul.f32 %v531, 0.2
      %v596 = vmul.f32 %v532, 0.2
      %v597 = vmul.f32 %v533, 0.2
      %v598 = vmul.f32 %v534, 0.2
      %v599 = vmul.f32 %v535, 0.2
      %v600 = vmul.f32 %v536, 0.2
      %v601 = vmul.f32 %v537, 0.2
      %v602 = vsel %vm538, %v506, %v570
      %v603 = vsel %vm539, %v507, %v571
      %v604 = vsel %vm540, %v508, %v572
      %v605 = vsel %vm541, %v509, %v573
      %v606 = vsel %vm542, %v510, %v574
      %v607 = vsel %vm543, %v511, %v575
      %v608 = vsel %vm544, %v512, %v576
      %v609 = vsel %vm545, %v513, %v577
      %v610 = vsel %vm546, %v514, %v578
      %v611 = vsel %vm547, %v515, %v579
      %v612 = vsel %vm548, %v516, %v580
      %v613 = vsel %vm549, %v517, %v581
      %v614 = vsel %vm550, %v518, %v582
      %v615 = vsel %vm551, %v519, %v583
      %v616 = vsel %vm552, %v520, %v584
      %v617 = vsel %vm553, %v521, %v585
      %v618 = vsel %vm554, %v522, %v586
      %v619 = vsel %vm555, %v523, %v587
      %v620 = vsel %vm556, %v524, %v588
      %v621 = vsel %vm557, %v525, %v589
      %v622 = vsel %vm558, %v526, %v590
      %v623 = vsel %vm559, %v527, %v591
      %v624 = vsel %vm560, %v528, %v592
      %v625 = vsel %vm561, %v529, %v593
      %v626 = vsel %vm562, %v530, %v594
      %v627 = vsel %vm563, %v531, %v595
      %v628 = vsel %vm564, %v532, %v596
      %v629 = vsel %vm565, %v533, %v597
      %v630 = vsel %vm566, %v534, %v598
      %v631 = vsel %vm567, %v535, %v599
      %v632 = vsel %vm568, %v536, %v600
      %v633 = vsel %vm569, %v537, %v601
      %v634 = vpack.c.bf16 %v603, %v602
      %v635 = vpack.c.bf16 %v605, %v604
      %v636 = vpack.c.bf16 %v607, %v606
      %v637 = vpack.c.bf16 %v609, %v608
      %v638 = vpack.c.bf16 %v611, %v610
      %v639 = vpack.c.bf16 %v613, %v612
      %v640 = vpack.c.bf16 %v615, %v614
      %v641 = vpack.c.bf16 %v617, %v616
      %v642 = vpack.c.bf16 %v619, %v618
      %v643 = vpack.c.bf16 %v621, %v620
      %v644 = vpack.c.bf16 %v623, %v622
      %v645 = vpack.c.bf16 %v625, %v624
      %v646 = vpack.c.bf16 %v627, %v626
      %v647 = vpack.c.bf16 %v629, %v628
      %v648 = vpack.c.bf16 %v631, %v630
      %v649 = vpack.c.bf16 %v633, %v632
      %v666 = vunpack.c.l.b16 %v634
      %v667 = vunpack.c.h.b16 %v634
      %v668 = vunpack.c.l.b16 %v635
      %v669 = vunpack.c.h.b16 %v635
      %v670 = vunpack.c.l.b16 %v636
      %v671 = vunpack.c.h.b16 %v636
      %v672 = vunpack.c.l.b16 %v637
      %v673 = vunpack.c.h.b16 %v637
      %v674 = vunpack.c.l.b16 %v638
      %v675 = vunpack.c.h.b16 %v638
      %v676 = vunpack.c.l.b16 %v639
      %v677 = vunpack.c.h.b16 %v639
      %v678 = vunpack.c.l.b16 %v640
      %v679 = vunpack.c.h.b16 %v640
      %v680 = vunpack.c.l.b16 %v641
      %v681 = vunpack.c.h.b16 %v641
      %v682 = vunpack.c.l.b16 %v642
      %v683 = vunpack.c.h.b16 %v642
      %v684 = vunpack.c.l.b16 %v643
      %v685 = vunpack.c.h.b16 %v643
      %v686 = vunpack.c.l.b16 %v644
      %v687 = vunpack.c.h.b16 %v644
      %v688 = vunpack.c.l.b16 %v645
      %v689 = vunpack.c.h.b16 %v645
      %v690 = vunpack.c.l.b16 %v646
      %v691 = vunpack.c.h.b16 %v646
      %v692 = vunpack.c.l.b16 %v647
      %v693 = vunpack.c.h.b16 %v647
      %v694 = vunpack.c.l.b16 %v648
      %v695 = vunpack.c.h.b16 %v648
      %v696 = vunpack.c.l.b16 %v649
      %v697 = vunpack.c.h.b16 %v649
      %v698 = vpack.c.b16 %v666, %v666
      %v699 = vpack.c.b16 %v667, %v667
      %v700 = vpack.c.b16 %v668, %v668
      %v701 = vpack.c.b16 %v669, %v669
      %v702 = vpack.c.b16 %v670, %v670
      %v703 = vpack.c.b16 %v671, %v671
      %v704 = vpack.c.b16 %v672, %v672
      %v705 = vpack.c.b16 %v673, %v673
      %v706 = vpack.c.b16 %v674, %v674
      %v707 = vpack.c.b16 %v675, %v675
      %v708 = vpack.c.b16 %v676, %v676
      %v709 = vpack.c.b16 %v677, %v677
      %v710 = vpack.c.b16 %v678, %v678
      %v711 = vpack.c.b16 %v679, %v679
      %v712 = vpack.c.b16 %v680, %v680
      %v713 = vpack.c.b16 %v681, %v681
      %v714 = vpack.c.b16 %v682, %v682
      %v715 = vpack.c.b16 %v683, %v683
      %v716 = vpack.c.b16 %v684, %v684
      %v717 = vpack.c.b16 %v685, %v685
      %v718 = vpack.c.b16 %v686, %v686
      %v719 = vpack.c.b16 %v687, %v687
      %v720 = vpack.c.b16 %v688, %v688
      %v721 = vpack.c.b16 %v689, %v689
      %v722 = vpack.c.b16 %v690, %v690
      %v723 = vpack.c.b16 %v691, %v691
      %v724 = vpack.c.b16 %v692, %v692
      %v725 = vpack.c.b16 %v693, %v693
      %v726 = vpack.c.b16 %v694, %v694
      %v727 = vpack.c.b16 %v695, %v695
      %v728 = vpack.c.b16 %v696, %v696
      %v729 = vpack.c.b16 %v697, %v697
      %vm730 = vcmask 1040384
      %vm731 = vcmask 1044484
      %vm732 = vmor %vm730, %vm731
      %v733 = vrot.slane %v698, 7
      %v734 = vrot.slane %v733, 4
      %v735 = vrot.slane %v699, 7
      %v736 = vsel %vm732, %v734, %v735
      %v737 = vrot.slane %v735, 4
      %v738 = vrot.slane %v700, 7
      %v739 = vrot.slane %v738, 4
      %v740 = vrot.slane %v701, 7
      %v741 = vsel %vm732, %v739, %v740
      %v742 = vrot.slane %v740, 4
      %v743 = vrot.slane %v702, 7
      %v744 = vrot.slane %v743, 4
      %v745 = vrot.slane %v703, 7
      %v746 = vsel %vm732, %v744, %v745
      %v747 = vrot.slane %v745, 4
      %v748 = vrot.slane %v704, 7
      %v749 = vrot.slane %v748, 4
      %v750 = vrot.slane %v705, 7
      %v751 = vsel %vm732, %v749, %v750
      %v752 = vrot.slane %v750, 4
      %v753 = vrot.slane %v706, 7
      %v754 = vrot.slane %v753, 4
      %v755 = vrot.slane %v707, 7
      %v756 = vsel %vm732, %v754, %v755
      %v757 = vrot.slane %v755, 4
      %v758 = vrot.slane %v708, 7
      %v759 = vrot.slane %v758, 4
      %v760 = vrot.slane %v709, 7
      %v761 = vsel %vm732, %v759, %v760
      %v762 = vrot.slane %v760, 4
      %v763 = vrot.slane %v710, 7
      %v764 = vrot.slane %v763, 4
      %v765 = vrot.slane %v711, 7
      %v766 = vsel %vm732, %v764, %v765
      %v767 = vrot.slane %v765, 4
      %v768 = vrot.slane %v712, 7
      %v769 = vrot.slane %v768, 4
      %v770 = vrot.slane %v713, 7
      %v771 = vsel %vm732, %v769, %v770
      %v772 = vrot.slane %v770, 4
      %v773 = vrot.slane %v714, 7
      %v774 = vrot.slane %v773, 4
      %v775 = vrot.slane %v715, 7
      %v776 = vsel %vm732, %v774, %v775
      %v777 = vrot.slane %v775, 4
      %v778 = vrot.slane %v716, 7
      %v779 = vrot.slane %v778, 4
      %v780 = vrot.slane %v717, 7
      %v781 = vsel %vm732, %v779, %v780
      %v782 = vrot.slane %v780, 4
      %v783 = vrot.slane %v718, 7
      %v784 = vrot.slane %v783, 4
      %v785 = vrot.slane %v719, 7
      %v786 = vsel %vm732, %v784, %v785
      %v787 = vrot.slane %v785, 4
      %v788 = vrot.slane %v720, 7
      %v789 = vrot.slane %v788, 4
      %v790 = vrot.slane %v721, 7
      %v791 = vsel %vm732, %v789, %v790
      %v792 = vrot.slane %v790, 4
      %v793 = vrot.slane %v722, 7
      %v794 = vrot.slane %v793, 4
      %v795 = vrot.slane %v723, 7
      %v796 = vsel %vm732, %v794, %v795
      %v797 = vrot.slane %v795, 4
      %v798 = vrot.slane %v724, 7
      %v799 = vrot.slane %v798, 4
      %v800 = vrot.slane %v725, 7
      %v801 = vsel %vm732, %v799, %v800
      %v802 = vrot.slane %v800, 4
      %v803 = vrot.slane %v726, 7
      %v804 = vrot.slane %v803, 4
      %v805 = vrot.slane %v727, 7
      %v806 = vsel %vm732, %v804, %v805
      %v807 = vrot.slane %v805, 4
      %v808 = vrot.slane %v728, 7
      %v809 = vrot.slane %v808, 4
      %v810 = vrot.slane %v729, 7
      %v811 = vsel %vm732, %v809, %v810
      %v812 = vrot.slane %v810, 4
      %s861 = scalar_lea.vmem [#allocation2], 12
      %vm862 = vcmask 27649
      %863 = vst.msk [vmem:[%s861] sm:$0xe] %vm862, %v733
      %864 = vst.msk [vmem:[%s861 + $0x4] sm:$0xf] %vm334, %v736
      %865 = vst.msk [vmem:[%s861 + $0x8] sm:$0x1] %vm343, %v737
      %866 = vst.msk [vmem:[%s861 + $0xc] sm:$0xe] %vm862, %v738
      %867 = vst.msk [vmem:[%s861 + $0x10] sm:$0xf] %vm334, %v741
      %868 = vst.msk [vmem:[%s861 + $0x14] sm:$0x1] %vm343, %v742
      %869 = vst.msk [vmem:[%s861 + $0x18] sm:$0xe] %vm862, %v743
      %870 = vst.msk [vmem:[%s861 + $0x1c] sm:$0xf] %vm334, %v746
      %871 = vst.msk [vmem:[%s861 + $0x20] sm:$0x1] %vm343, %v747
      %872 = vst.msk [vmem:[%s861 + $0x24] sm:$0xe] %vm862, %v748
      %873 = vst.msk [vmem:[%s861 + $0x28] sm:$0xf] %vm334, %v751
      %874 = vst.msk [vmem:[%s861 + $0x2c] sm:$0x1] %vm343, %v752
      %875 = vst.msk [vmem:[%s861 + $0x30] sm:$0xe] %vm862, %v753
      %876 = vst.msk [vmem:[%s861 + $0x34] sm:$0xf] %vm334, %v756
      %877 = vst.msk [vmem:[%s861 + $0x38] sm:$0x1] %vm343, %v757
      %878 = vst.msk [vmem:[%s861 + $0x3c] sm:$0xe] %vm862, %v758
      %879 = vst.msk [vmem:[%s861 + $0x40] sm:$0xf] %vm334, %v761
      %880 = vst.msk [vmem:[%s861 + $0x44] sm:$0x1] %vm343, %v762
      %881 = vst.msk [vmem:[%s861 + $0x48] sm:$0xe] %vm862, %v763
      %882 = vst.msk [vmem:[%s861 + $0x4c] sm:$0xf] %vm334, %v766
      %883 = vst.msk [vmem:[%s861 + $0x50] sm:$0x1] %vm343, %v767
      %884 = vst.msk [vmem:[%s861 + $0x54] sm:$0xe] %vm862, %v768
      %885 = vst.msk [vmem:[%s861 + $0x58] sm:$0xf] %vm334, %v771
      %886 = vst.msk [vmem:[%s861 + $0x5c] sm:$0x1] %vm343, %v772
      %887 = vst.msk [vmem:[%s861 + $0x60] sm:$0xe] %vm862, %v773
      %888 = vst.msk [vmem:[%s861 + $0x64] sm:$0xf] %vm334, %v776
      %889 = vst.msk [vmem:[%s861 + $0x68] sm:$0x1] %vm343, %v777
      %890 = vst.msk [vmem:[%s861 + $0x6c] sm:$0xe] %vm862, %v778
      %891 = vst.msk [vmem:[%s861 + $0x70] sm:$0xf] %vm334, %v781
      %892 = vst.msk [vmem:[%s861 + $0x74] sm:$0x1] %vm343, %v782
      %893 = vst.msk [vmem:[%s861 + $0x78] sm:$0xe] %vm862, %v783
      %894 = vst.msk [vmem:[%s861 + $0x7c] sm:$0xf] %vm334, %v786
      %895 = vst.msk [vmem:[%s861 + $0x80] sm:$0x1] %vm343, %v787
      %896 = vst.msk [vmem:[%s861 + $0x84] sm:$0xe] %vm862, %v788
      %897 = vst.msk [vmem:[%s861 + $0x88] sm:$0xf] %vm334, %v791
      %898 = vst.msk [vmem:[%s861 + $0x8c] sm:$0x1] %vm343, %v792
      %899 = vst.msk [vmem:[%s861 + $0x90] sm:$0xe] %vm862, %v793
      %900 = vst.msk [vmem:[%s861 + $0x94] sm:$0xf] %vm334, %v796
      %901 = vst.msk [vmem:[%s861 + $0x98] sm:$0x1] %vm343, %v797
      %902 = vst.msk [vmem:[%s861 + $0x9c] sm:$0xe] %vm862, %v798
      %903 = vst.msk [vmem:[%s861 + $0xa0] sm:$0xf] %vm334, %v801
      %904 = vst.msk [vmem:[%s861 + $0xa4] sm:$0x1] %vm343, %v802
      %905 = vst.msk [vmem:[%s861 + $0xa8] sm:$0xe] %vm862, %v803
      %906 = vst.msk [vmem:[%s861 + $0xac] sm:$0xf] %vm334, %v806
      %907 = vst.msk [vmem:[%s861 + $0xb0] sm:$0x1] %vm343, %v807
      %908 = vst.msk [vmem:[%s861 + $0xb4] sm:$0xe] %vm862, %v808
      %909 = vst.msk [vmem:[%s861 + $0xb8] sm:$0xf] %vm334, %v811
      %910 = vst.msk [vmem:[%s861 + $0xbc] sm:$0x1] %vm343, %v812
      %v911 = vld [vmem:[#allocation2] sm:$0xf]
      %v912 = vld [vmem:[#allocation2 + $0x4] sm:$0xf]
      %v913 = vld [vmem:[#allocation2 + $0x8] sm:$0x1]
      %v914 = vld [vmem:[#allocation2 + $0xc] sm:$0xf]
      %v915 = vld [vmem:[#allocation2 + $0x10] sm:$0xf]
      %v916 = vld [vmem:[#allocation2 + $0x14] sm:$0x1]
      %v917 = vld [vmem:[#allocation2 + $0x18] sm:$0xf]
      %v918 = vld [vmem:[#allocation2 + $0x1c] sm:$0xf]
      %v919 = vld [vmem:[#allocation2 + $0x20] sm:$0x1]
      %v920 = vld [vmem:[#allocation2 + $0x24] sm:$0xf]
      %v921 = vld [vmem:[#allocation2 + $0x28] sm:$0xf]
      %v922 = vld [vmem:[#allocation2 + $0x2c] sm:$0x1]
      %v923 = vld [vmem:[#allocation2 + $0x30] sm:$0xf]
      %v924 = vld [vmem:[#allocation2 + $0x34] sm:$0xf]
      %v925 = vld [vmem:[#allocation2 + $0x38] sm:$0x1]
      %v926 = vld [vmem:[#allocation2 + $0x3c] sm:$0xf]
      %v927 = vld [vmem:[#allocation2 + $0x40] sm:$0xf]
      %v928 = vld [vmem:[#allocation2 + $0x44] sm:$0x1]
      %v929 = vld [vmem:[#allocation2 + $0x48] sm:$0xf]
      %v930 = vld [vmem:[#allocation2 + $0x4c] sm:$0xf]
      %v931 = vld [vmem:[#allocation2 + $0x50] sm:$0x1]
      %v932 = vld [vmem:[#allocation2 + $0x54] sm:$0xf]
      %v933 = vld [vmem:[#allocation2 + $0x58] sm:$0xf]
      %v934 = vld [vmem:[#allocation2 + $0x5c] sm:$0x1]
      %v935 = vld [vmem:[#allocation2 + $0x60] sm:$0xf]
      %v936 = vld [vmem:[#allocation2 + $0x64] sm:$0xf]
      %v937 = vld [vmem:[#allocation2 + $0x68] sm:$0x1]
      %v938 = vld [vmem:[#allocation2 + $0x6c] sm:$0xf]
      %v939 = vld [vmem:[#allocation2 + $0x70] sm:$0xf]
      %v940 = vld [vmem:[#allocation2 + $0x74] sm:$0x1]
      %v941 = vld [vmem:[#allocation2 + $0x78] sm:$0xf]
      %v942 = vld [vmem:[#allocation2 + $0x7c] sm:$0xf]
      %v943 = vld [vmem:[#allocation2 + $0x80] sm:$0x1]
      %v944 = vld [vmem:[#allocation2 + $0x84] sm:$0xf]
      %v945 = vld [vmem:[#allocation2 + $0x88] sm:$0xf]
      %v946 = vld [vmem:[#allocation2 + $0x8c] sm:$0x1]
      %v947 = vld [vmem:[#allocation2 + $0x90] sm:$0xf]
      %v948 = vld [vmem:[#allocation2 + $0x94] sm:$0xf]
      %v949 = vld [vmem:[#allocation2 + $0x98] sm:$0x1]
      %v950 = vld [vmem:[#allocation2 + $0x9c] sm:$0xf]
      %v951 = vld [vmem:[#allocation2 + $0xa0] sm:$0xf]
      %v952 = vld [vmem:[#allocation2 + $0xa4] sm:$0x1]
      %v953 = vld [vmem:[#allocation2 + $0xa8] sm:$0xf]
      %v954 = vld [vmem:[#allocation2 + $0xac] sm:$0xf]
      %v955 = vld [vmem:[#allocation2 + $0xb0] sm:$0x1]
      %v956 = vld [vmem:[#allocation2 + $0xb4] sm:$0xf]
      %v957 = vld [vmem:[#allocation2 + $0xb8] sm:$0xf]
      %v958 = vld [vmem:[#allocation2 + $0xbc] sm:$0x1]
      %vm959 = vsmask.f32 3328
      %vm960 = vsmask.f32 7440
      %vm961 = vmor %vm959, %vm960
      %v963 = vshrl.u32 %v911, 16
      %v965 = vrot.slane %v963, 4
      %v966 = vshll.u32 %v911, 16
      %v968 = vrot.slane %v966, 5
      %v969 = vor.u32 %v965, %v968
      %v970 = vrot.slane %v969, 4
      %v972 = vshll.u32 %v912, 16
      %v974 = vrot.slane %v972, 5
      %v975 = vsel %vm961, %v970, %v974
      %v976 = vshrl.u32 %v912, 16
      %v978 = vrot.slane %v976, 4
      %v979 = vor.u32 %v978, %v974
      %v980 = vrot.slane %v979, 4
      %v982 = vshll.u32 %v913, 16
      %v984 = vrot.slane %v982, 5
      %v985 = vsel %vm961, %v980, %v984
      %v987 = vshrl.u32 %v914, 16
      %v989 = vrot.slane %v987, 4
      %v990 = vshll.u32 %v914, 16
      %v992 = vrot.slane %v990, 5
      %v993 = vor.u32 %v989, %v992
      %v994 = vrot.slane %v993, 4
      %v996 = vshll.u32 %v915, 16
      %v998 = vrot.slane %v996, 5
      %v999 = vsel %vm961, %v994, %v998
      %v1000 = vshrl.u32 %v915, 16
      %v1002 = vrot.slane %v1000, 4
      %v1003 = vor.u32 %v1002, %v998
      %v1004 = vrot.slane %v1003, 4
      %v1006 = vshll.u32 %v916, 16
      %v1008 = vrot.slane %v1006, 5
      %v1009 = vsel %vm961, %v1004, %v1008
      %v1011 = vshrl.u32 %v917, 16
      %v1013 = vrot.slane %v1011, 4
      %v1014 = vshll.u32 %v917, 16
      %v1016 = vrot.slane %v1014, 5
      %v1017 = vor.u32 %v1013, %v1016
      %v1018 = vrot.slane %v1017, 4
      %v1020 = vshll.u32 %v918, 16
      %v1022 = vrot.slane %v1020, 5
      %v1023 = vsel %vm961, %v1018, %v1022
      %v1024 = vshrl.u32 %v918, 16
      %v1026 = vrot.slane %v1024, 4
      %v1027 = vor.u32 %v1026, %v1022
      %v1028 = vrot.slane %v1027, 4
      %v1030 = vshll.u32 %v919, 16
      %v1032 = vrot.slane %v1030, 5
      %v1033 = vsel %vm961, %v1028, %v1032
      %v1035 = vshrl.u32 %v920, 16
      %v1037 = vrot.slane %v1035, 4
      %v1038 = vshll.u32 %v920, 16
      %v1040 = vrot.slane %v1038, 5
      %v1041 = vor.u32 %v1037, %v1040
      %v1042 = vrot.slane %v1041, 4
      %v1044 = vshll.u32 %v921, 16
      %v1046 = vrot.slane %v1044, 5
      %v1047 = vsel %vm961, %v1042, %v1046
      %v1048 = vshrl.u32 %v921, 16
      %v1050 = vrot.slane %v1048, 4
      %v1051 = vor.u32 %v1050, %v1046
      %v1052 = vrot.slane %v1051, 4
      %v1054 = vshll.u32 %v922, 16
      %v1056 = vrot.slane %v1054, 5
      %v1057 = vsel %vm961, %v1052, %v1056
      %v1059 = vshrl.u32 %v923, 16
      %v1061 = vrot.slane %v1059, 4
      %v1062 = vshll.u32 %v923, 16
      %v1064 = vrot.slane %v1062, 5
      %v1065 = vor.u32 %v1061, %v1064
      %v1066 = vrot.slane %v1065, 4
      %v1068 = vshll.u32 %v924, 16
      %v1070 = vrot.slane %v1068, 5
      %v1071 = vsel %vm961, %v1066, %v1070
      %v1072 = vshrl.u32 %v924, 16
      %v1074 = vrot.slane %v1072, 4
      %v1075 = vor.u32 %v1074, %v1070
      %v1076 = vrot.slane %v1075, 4
      %v1078 = vshll.u32 %v925, 16
      %v1080 = vrot.slane %v1078, 5
      %v1081 = vsel %vm961, %v1076, %v1080
      %v1083 = vshrl.u32 %v926, 16
      %v1085 = vrot.slane %v1083, 4
      %v1086 = vshll.u32 %v926, 16
      %v1088 = vrot.slane %v1086, 5
      %v1089 = vor.u32 %v1085, %v1088
      %v1090 = vrot.slane %v1089, 4
      %v1092 = vshll.u32 %v927, 16
      %v1094 = vrot.slane %v1092, 5
      %v1095 = vsel %vm961, %v1090, %v1094
      %v1096 = vshrl.u32 %v927, 16
      %v1098 = vrot.slane %v1096, 4
      %v1099 = vor.u32 %v1098, %v1094
      %v1100 = vrot.slane %v1099, 4
      %v1102 = vshll.u32 %v928, 16
      %v1104 = vrot.slane %v1102, 5
      %v1105 = vsel %vm961, %v1100, %v1104
      %v1107 = vshrl.u32 %v929, 16
      %v1109 = vrot.slane %v1107, 4
      %v1110 = vshll.u32 %v929, 16
      %v1112 = vrot.slane %v1110, 5
      %v1113 = vor.u32 %v1109, %v1112
      %v1114 = vrot.slane %v1113, 4
      %v1116 = vshll.u32 %v930, 16
      %v1118 = vrot.slane %v1116, 5
      %v1119 = vsel %vm961, %v1114, %v1118
      %v1120 = vshrl.u32 %v930, 16
      %v1122 = vrot.slane %v1120, 4
      %v1123 = vor.u32 %v1122, %v1118
      %v1124 = vrot.slane %v1123, 4
      %v1126 = vshll.u32 %v931, 16
      %v1128 = vrot.slane %v1126, 5
      %v1129 = vsel %vm961, %v1124, %v1128
      %v1131 = vshrl.u32 %v932, 16
      %v1133 = vrot.slane %v1131, 4
      %v1134 = vshll.u32 %v932, 16
      %v1136 = vrot.slane %v1134, 5
      %v1137 = vor.u32 %v1133, %v1136
      %v1138 = vrot.slane %v1137, 4
      %v1140 = vshll.u32 %v933, 16
      %v1142 = vrot.slane %v1140, 5
      %v1143 = vsel %vm961, %v1138, %v1142
      %v1144 = vshrl.u32 %v933, 16
      %v1146 = vrot.slane %v1144, 4
      %v1147 = vor.u32 %v1146, %v1142
      %v1148 = vrot.slane %v1147, 4
      %v1150 = vshll.u32 %v934, 16
      %v1152 = vrot.slane %v1150, 5
      %v1153 = vsel %vm961, %v1148, %v1152
      %v1155 = vshrl.u32 %v935, 16
      %v1157 = vrot.slane %v1155, 4
      %v1158 = vshll.u32 %v935, 16
      %v1160 = vrot.slane %v1158, 5
      %v1161 = vor.u32 %v1157, %v1160
      %v1162 = vrot.slane %v1161, 4
      %v1164 = vshll.u32 %v936, 16
      %v1166 = vrot.slane %v1164, 5
      %v1167 = vsel %vm961, %v1162, %v1166
      %v1168 = vshrl.u32 %v936, 16
      %v1170 = vrot.slane %v1168, 4
      %v1171 = vor.u32 %v1170, %v1166
      %v1172 = vrot.slane %v1171, 4
      %v1174 = vshll.u32 %v937, 16
      %v1176 = vrot.slane %v1174, 5
      %v1177 = vsel %vm961, %v1172, %v1176
      %v1179 = vshrl.u32 %v938, 16
      %v1181 = vrot.slane %v1179, 4
      %v1182 = vshll.u32 %v938, 16
      %v1184 = vrot.slane %v1182, 5
      %v1185 = vor.u32 %v1181, %v1184
      %v1186 = vrot.slane %v1185, 4
      %v1188 = vshll.u32 %v939, 16
      %v1190 = vrot.slane %v1188, 5
      %v1191 = vsel %vm961, %v1186, %v1190
      %v1192 = vshrl.u32 %v939, 16
      %v1194 = vrot.slane %v1192, 4
      %v1195 = vor.u32 %v1194, %v1190
      %v1196 = vrot.slane %v1195, 4
      %v1198 = vshll.u32 %v940, 16
      %v1200 = vrot.slane %v1198, 5
      %v1201 = vsel %vm961, %v1196, %v1200
      %v1203 = vshrl.u32 %v941, 16
      %v1205 = vrot.slane %v1203, 4
      %v1206 = vshll.u32 %v941, 16
      %v1208 = vrot.slane %v1206, 5
      %v1209 = vor.u32 %v1205, %v1208
      %v1210 = vrot.slane %v1209, 4
      %v1212 = vshll.u32 %v942, 16
      %v1214 = vrot.slane %v1212, 5
      %v1215 = vsel %vm961, %v1210, %v1214
      %v1216 = vshrl.u32 %v942, 16
      %v1218 = vrot.slane %v1216, 4
      %v1219 = vor.u32 %v1218, %v1214
      %v1220 = vrot.slane %v1219, 4
      %v1222 = vshll.u32 %v943, 16
      %v1224 = vrot.slane %v1222, 5
      %v1225 = vsel %vm961, %v1220, %v1224
      %v1227 = vshrl.u32 %v944, 16
      %v1229 = vrot.slane %v1227, 4
      %v1230 = vshll.u32 %v944, 16
      %v1232 = vrot.slane %v1230, 5
      %v1233 = vor.u32 %v1229, %v1232
      %v1234 = vrot.slane %v1233, 4
      %v1236 = vshll.u32 %v945, 16
      %v1238 = vrot.slane %v1236, 5
      %v1239 = vsel %vm961, %v1234, %v1238
      %v1240 = vshrl.u32 %v945, 16
      %v1242 = vrot.slane %v1240, 4
      %v1243 = vor.u32 %v1242, %v1238
      %v1244 = vrot.slane %v1243, 4
      %v1246 = vshll.u32 %v946, 16
      %v1248 = vrot.slane %v1246, 5
      %v1249 = vsel %vm961, %v1244, %v1248
      %v1251 = vshrl.u32 %v947, 16
      %v1253 = vrot.slane %v1251, 4
      %v1254 = vshll.u32 %v947, 16
      %v1256 = vrot.slane %v1254, 5
      %v1257 = vor.u32 %v1253, %v1256
      %v1258 = vrot.slane %v1257, 4
      %v1260 = vshll.u32 %v948, 16
      %v1262 = vrot.slane %v1260, 5
      %v1263 = vsel %vm961, %v1258, %v1262
      %v1264 = vshrl.u32 %v948, 16
      %v1266 = vrot.slane %v1264, 4
      %v1267 = vor.u32 %v1266, %v1262
      %v1268 = vrot.slane %v1267, 4
      %v1270 = vshll.u32 %v949, 16
      %v1272 = vrot.slane %v1270, 5
      %v1273 = vsel %vm961, %v1268, %v1272
      %v1275 = vshrl.u32 %v950, 16
      %v1277 = vrot.slane %v1275, 4
      %v1278 = vshll.u32 %v950, 16
      %v1280 = vrot.slane %v1278, 5
      %v1281 = vor.u32 %v1277, %v1280
      %v1282 = vrot.slane %v1281, 4
      %v1284 = vshll.u32 %v951, 16
      %v1286 = vrot.slane %v1284, 5
      %v1287 = vsel %vm961, %v1282, %v1286
      %v1288 = vshrl.u32 %v951, 16
      %v1290 = vrot.slane %v1288, 4
      %v1291 = vor.u32 %v1290, %v1286
      %v1292 = vrot.slane %v1291, 4
      %v1294 = vshll.u32 %v952, 16
      %v1296 = vrot.slane %v1294, 5
      %v1297 = vsel %vm961, %v1292, %v1296
      %v1299 = vshrl.u32 %v953, 16
      %v1301 = vrot.slane %v1299, 4
      %v1302 = vshll.u32 %v953, 16
      %v1304 = vrot.slane %v1302, 5
      %v1305 = vor.u32 %v1301, %v1304
      %v1306 = vrot.slane %v1305, 4
      %v1308 = vshll.u32 %v954, 16
      %v1310 = vrot.slane %v1308, 5
      %v1311 = vsel %vm961, %v1306, %v1310
      %v1312 = vshrl.u32 %v954, 16
      %v1314 = vrot.slane %v1312, 4
      %v1315 = vor.u32 %v1314, %v1310
      %v1316 = vrot.slane %v1315, 4
      %v1318 = vshll.u32 %v955, 16
      %v1320 = vrot.slane %v1318, 5
      %v1321 = vsel %vm961, %v1316, %v1320
      %v1323 = vshrl.u32 %v956, 16
      %v1325 = vrot.slane %v1323, 4
      %v1326 = vshll.u32 %v956, 16
      %v1328 = vrot.slane %v1326, 5
      %v1329 = vor.u32 %v1325, %v1328
      %v1330 = vrot.slane %v1329, 4
      %v1332 = vshll.u32 %v957, 16
      %v1334 = vrot.slane %v1332, 5
      %v1335 = vsel %vm961, %v1330, %v1334
      %v1336 = vshrl.u32 %v957, 16
      %v1338 = vrot.slane %v1336, 4
      %v1339 = vor.u32 %v1338, %v1334
      %v1340 = vrot.slane %v1339, 4
      %v1342 = vshll.u32 %v958, 16
      %v1344 = vrot.slane %v1342, 5
      %v1345 = vsel %vm961, %v1340, %v1344
      %1378 = vst.msk [vmem:[#allocation3] sm:$0xf] %vm334, %v975
      %1379 = vst.msk [vmem:[#allocation3 + $0x4] sm:$0xf] %vm334, %v985
      %1380 = vst.msk [vmem:[#allocation3 + $0x8] sm:$0xf] %vm334, %v999
      %1381 = vst.msk [vmem:[#allocation3 + $0xc] sm:$0xf] %vm334, %v1009
      %1382 = vst.msk [vmem:[#allocation3 + $0x10] sm:$0xf] %vm334, %v1023
      %1383 = vst.msk [vmem:[#allocation3 + $0x14] sm:$0xf] %vm334, %v1033
      %1384 = vst.msk [vmem:[#allocation3 + $0x18] sm:$0xf] %vm334, %v1047
      %1385 = vst.msk [vmem:[#allocation3 + $0x1c] sm:$0xf] %vm334, %v1057
      %1386 = vst.msk [vmem:[#allocation3 + $0x20] sm:$0xf] %vm334, %v1071
      %1387 = vst.msk [vmem:[#allocation3 + $0x24] sm:$0xf] %vm334, %v1081
      %1388 = vst.msk [vmem:[#allocation3 + $0x28] sm:$0xf] %vm334, %v1095
      %1389 = vst.msk [vmem:[#allocation3 + $0x2c] sm:$0xf] %vm334, %v1105
      %1390 = vst.msk [vmem:[#allocation3 + $0x30] sm:$0xf] %vm334, %v1119
      %1391 = vst.msk [vmem:[#allocation3 + $0x34] sm:$0xf] %vm334, %v1129
      %1392 = vst.msk [vmem:[#allocation3 + $0x38] sm:$0xf] %vm334, %v1143
      %1393 = vst.msk [vmem:[#allocation3 + $0x3c] sm:$0xf] %vm334, %v1153
      %1394 = vst.msk [vmem:[#allocation3 + $0x40] sm:$0xf] %vm334, %v1167
      %1395 = vst.msk [vmem:[#allocation3 + $0x44] sm:$0xf] %vm334, %v1177
      %1396 = vst.msk [vmem:[#allocation3 + $0x48] sm:$0xf] %vm334, %v1191
      %1397 = vst.msk [vmem:[#allocation3 + $0x4c] sm:$0xf] %vm334, %v1201
      %1398 = vst.msk [vmem:[#allocation3 + $0x50] sm:$0xf] %vm334, %v1215
      %1399 = vst.msk [vmem:[#allocation3 + $0x54] sm:$0xf] %vm334, %v1225
      %1400 = vst.msk [vmem:[#allocation3 + $0x58] sm:$0xf] %vm334, %v1239
      %1401 = vst.msk [vmem:[#allocation3 + $0x5c] sm:$0xf] %vm334, %v1249
      %1402 = vst.msk [vmem:[#allocation3 + $0x60] sm:$0xf] %vm334, %v1263
      %1403 = vst.msk [vmem:[#allocation3 + $0x64] sm:$0xf] %vm334, %v1273
      %1404 = vst.msk [vmem:[#allocation3 + $0x68] sm:$0xf] %vm334, %v1287
      %1405 = vst.msk [vmem:[#allocation3 + $0x6c] sm:$0xf] %vm334, %v1297
      %1406 = vst.msk [vmem:[#allocation3 + $0x70] sm:$0xf] %vm334, %v1311
      %1407 = vst.msk [vmem:[#allocation3 + $0x74] sm:$0xf] %vm334, %v1321
      %1408 = vst.msk [vmem:[#allocation3 + $0x78] sm:$0xf] %vm334, %v1335
      %1409 = vst.msk [vmem:[#allocation3 + $0x7c] sm:$0xf] %vm334, %v1345
      %v1410 = vld [vmem:[#allocation2] sm:$0xe]
      %v1411 = vld [vmem:[#allocation2 + $0x4] sm:$0xf]
      %v1412 = vld [vmem:[#allocation2 + $0x8] sm:$0x1]
      %v1413 = vld [vmem:[#allocation2 + $0xc] sm:$0xe]
      %v1414 = vld [vmem:[#allocation2 + $0x10] sm:$0xf]
      %v1415 = vld [vmem:[#allocation2 + $0x14] sm:$0x1]
      %v1416 = vld [vmem:[#allocation2 + $0x18] sm:$0xe]
      %v1417 = vld [vmem:[#allocation2 + $0x1c] sm:$0xf]
      %v1418 = vld [vmem:[#allocation2 + $0x20] sm:$0x1]
      %v1419 = vld [vmem:[#allocation2 + $0x24] sm:$0xe]
      %v1420 = vld [vmem:[#allocation2 + $0x28] sm:$0xf]
      %v1421 = vld [vmem:[#allocation2 + $0x2c] sm:$0x1]
      %v1422 = vld [vmem:[#allocation2 + $0x30] sm:$0xe]
      %v1423 = vld [vmem:[#allocation2 + $0x34] sm:$0xf]
      %v1424 = vld [vmem:[#allocation2 + $0x38] sm:$0x1]
      %v1425 = vld [vmem:[#allocation2 + $0x3c] sm:$0xe]
      %v1426 = vld [vmem:[#allocation2 + $0x40] sm:$0xf]
      %v1427 = vld [vmem:[#allocation2 + $0x44] sm:$0x1]
      %v1428 = vld [vmem:[#allocation2 + $0x48] sm:$0xe]
      %v1429 = vld [vmem:[#allocation2 + $0x4c] sm:$0xf]
      %v1430 = vld [vmem:[#allocation2 + $0x50] sm:$0x1]
      %v1431 = vld [vmem:[#allocation2 + $0x54] sm:$0xe]
      %v1432 = vld [vmem:[#allocation2 + $0x58] sm:$0xf]
      %v1433 = vld [vmem:[#allocation2 + $0x5c] sm:$0x1]
      %v1434 = vld [vmem:[#allocation2 + $0x60] sm:$0xe]
      %v1435 = vld [vmem:[#allocation2 + $0x64] sm:$0xf]
      %v1436 = vld [vmem:[#allocation2 + $0x68] sm:$0x1]
      %v1437 = vld [vmem:[#allocation2 + $0x6c] sm:$0xe]
      %v1438 = vld [vmem:[#allocation2 + $0x70] sm:$0xf]
      %v1439 = vld [vmem:[#allocation2 + $0x74] sm:$0x1]
      %v1440 = vld [vmem:[#allocation2 + $0x78] sm:$0xe]
      %v1441 = vld [vmem:[#allocation2 + $0x7c] sm:$0xf]
      %v1442 = vld [vmem:[#allocation2 + $0x80] sm:$0x1]
      %v1443 = vld [vmem:[#allocation2 + $0x84] sm:$0xe]
      %v1444 = vld [vmem:[#allocation2 + $0x88] sm:$0xf]
      %v1445 = vld [vmem:[#allocation2 + $0x8c] sm:$0x1]
      %v1446 = vld [vmem:[#allocation2 + $0x90] sm:$0xe]
      %v1447 = vld [vmem:[#allocation2 + $0x94] sm:$0xf]
      %v1448 = vld [vmem:[#allocation2 + $0x98] sm:$0x1]
      %v1449 = vld [vmem:[#allocation2 + $0x9c] sm:$0xe]
      %v1450 = vld [vmem:[#allocation2 + $0xa0] sm:$0xf]
      %v1451 = vld [vmem:[#allocation2 + $0xa4] sm:$0x1]
      %v1452 = vld [vmem:[#allocation2 + $0xa8] sm:$0xe]
      %v1453 = vld [vmem:[#allocation2 + $0xac] sm:$0xf]
      %v1454 = vld [vmem:[#allocation2 + $0xb0] sm:$0x1]
      %v1455 = vld [vmem:[#allocation2 + $0xb4] sm:$0xe]
      %v1456 = vld [vmem:[#allocation2 + $0xb8] sm:$0xf]
      %v1457 = vld [vmem:[#allocation2 + $0xbc] sm:$0x1]
      %vm1506 = vcmask 1042432
      %vm1507 = vcmask 1046532
      %vm1508 = vmor %vm1506, %vm1507
      %v1509 = vrot.slane %v1410, 5
      %v1510 = vrot.slane %v1509, 4
      %v1511 = vrot.slane %v1411, 5
      %v1512 = vsel %vm1508, %v1510, %v1511
      %v1513 = vrot.slane %v1511, 4
      %v1514 = vrot.slane %v1412, 5
      %v1515 = vsel %vm1508, %v1513, %v1514
      %v1516 = vrot.slane %v1413, 5
      %v1517 = vrot.slane %v1516, 4
      %v1518 = vrot.slane %v1414, 5
      %v1519 = vsel %vm1508, %v1517, %v1518
      %v1520 = vrot.slane %v1518, 4
      %v1521 = vrot.slane %v1415, 5
      %v1522 = vsel %vm1508, %v1520, %v1521
      %v1523 = vrot.slane %v1416, 5
      %v1524 = vrot.slane %v1523, 4
      %v1525 = vrot.slane %v1417, 5
      %v1526 = vsel %vm1508, %v1524, %v1525
      %v1527 = vrot.slane %v1525, 4
      %v1528 = vrot.slane %v1418, 5
      %v1529 = vsel %vm1508, %v1527, %v1528
      %v1530 = vrot.slane %v1419, 5
      %v1531 = vrot.slane %v1530, 4
      %v1532 = vrot.slane %v1420, 5
      %v1533 = vsel %vm1508, %v1531, %v1532
      %v1534 = vrot.slane %v1532, 4
      %v1535 = vrot.slane %v1421, 5
      %v1536 = vsel %vm1508, %v1534, %v1535
      %v1537 = vrot.slane %v1422, 5
      %v1538 = vrot.slane %v1537, 4
      %v1539 = vrot.slane %v1423, 5
      %v1540 = vsel %vm1508, %v1538, %v1539
      %v1541 = vrot.slane %v1539, 4
      %v1542 = vrot.slane %v1424, 5
      %v1543 = vsel %vm1508, %v1541, %v1542
      %v1544 = vrot.slane %v1425, 5
      %v1545 = vrot.slane %v1544, 4
      %v1546 = vrot.slane %v1426, 5
      %v1547 = vsel %vm1508, %v1545, %v1546
      %v1548 = vrot.slane %v1546, 4
      %v1549 = vrot.slane %v1427, 5
      %v1550 = vsel %vm1508, %v1548, %v1549
      %v1551 = vrot.slane %v1428, 5
      %v1552 = vrot.slane %v1551, 4
      %v1553 = vrot.slane %v1429, 5
      %v1554 = vsel %vm1508, %v1552, %v1553
      %v1555 = vrot.slane %v1553, 4
      %v1556 = vrot.slane %v1430, 5
      %v1557 = vsel %vm1508, %v1555, %v1556
      %v1558 = vrot.slane %v1431, 5
      %v1559 = vrot.slane %v1558, 4
      %v1560 = vrot.slane %v1432, 5
      %v1561 = vsel %vm1508, %v1559, %v1560
      %v1562 = vrot.slane %v1560, 4
      %v1563 = vrot.slane %v1433, 5
      %v1564 = vsel %vm1508, %v1562, %v1563
      %v1565 = vrot.slane %v1434, 5
      %v1566 = vrot.slane %v1565, 4
      %v1567 = vrot.slane %v1435, 5
      %v1568 = vsel %vm1508, %v1566, %v1567
      %v1569 = vrot.slane %v1567, 4
      %v1570 = vrot.slane %v1436, 5
      %v1571 = vsel %vm1508, %v1569, %v1570
      %v1572 = vrot.slane %v1437, 5
      %v1573 = vrot.slane %v1572, 4
      %v1574 = vrot.slane %v1438, 5
      %v1575 = vsel %vm1508, %v1573, %v1574
      %v1576 = vrot.slane %v1574, 4
      %v1577 = vrot.slane %v1439, 5
      %v1578 = vsel %vm1508, %v1576, %v1577
      %v1579 = vrot.slane %v1440, 5
      %v1580 = vrot.slane %v1579, 4
      %v1581 = vrot.slane %v1441, 5
      %v1582 = vsel %vm1508, %v1580, %v1581
      %v1583 = vrot.slane %v1581, 4
      %v1584 = vrot.slane %v1442, 5
      %v1585 = vsel %vm1508, %v1583, %v1584
      %v1586 = vrot.slane %v1443, 5
      %v1587 = vrot.slane %v1586, 4
      %v1588 = vrot.slane %v1444, 5
      %v1589 = vsel %vm1508, %v1587, %v1588
      %v1590 = vrot.slane %v1588, 4
      %v1591 = vrot.slane %v1445, 5
      %v1592 = vsel %vm1508, %v1590, %v1591
      %v1593 = vrot.slane %v1446, 5
      %v1594 = vrot.slane %v1593, 4
      %v1595 = vrot.slane %v1447, 5
      %v1596 = vsel %vm1508, %v1594, %v1595
      %v1597 = vrot.slane %v1595, 4
      %v1598 = vrot.slane %v1448, 5
      %v1599 = vsel %vm1508, %v1597, %v1598
      %v1600 = vrot.slane %v1449, 5
      %v1601 = vrot.slane %v1600, 4
      %v1602 = vrot.slane %v1450, 5
      %v1603 = vsel %vm1508, %v1601, %v1602
      %v1604 = vrot.slane %v1602, 4
      %v1605 = vrot.slane %v1451, 5
      %v1606 = vsel %vm1508, %v1604, %v1605
      %v1607 = vrot.slane %v1452, 5
      %v1608 = vrot.slane %v1607, 4
      %v1609 = vrot.slane %v1453, 5
      %v1610 = vsel %vm1508, %v1608, %v1609
      %v1611 = vrot.slane %v1609, 4
      %v1612 = vrot.slane %v1454, 5
      %v1613 = vsel %vm1508, %v1611, %v1612
      %v1614 = vrot.slane %v1455, 5
      %v1615 = vrot.slane %v1614, 4
      %v1616 = vrot.slane %v1456, 5
      %v1617 = vsel %vm1508, %v1615, %v1616
      %v1618 = vrot.slane %v1616, 4
      %v1619 = vrot.slane %v1457, 5
      %v1620 = vsel %vm1508, %v1618, %v1619
      %1621 = vrot.lane.b32.xlu0 %v1512, 4
      %v1622 = vpop.permute.xlu0 %1621
      %1623 = vrot.lane.b32.xlu0 %v1515, 4
      %v1624 = vpop.permute.xlu0 %1623
      %1625 = vrot.lane.b32.xlu0 %v1519, 4
      %v1626 = vpop.permute.xlu0 %1625
      %1627 = vrot.lane.b32.xlu0 %v1522, 4
      %v1628 = vpop.permute.xlu0 %1627
      %1629 = vrot.lane.b32.xlu0 %v1526, 4
      %v1630 = vpop.permute.xlu0 %1629
      %1631 = vrot.lane.b32.xlu0 %v1529, 4
      %v1632 = vpop.permute.xlu0 %1631
      %1633 = vrot.lane.b32.xlu0 %v1533, 4
      %v1634 = vpop.permute.xlu0 %1633
      %1635 = vrot.lane.b32.xlu0 %v1536, 4
      %v1636 = vpop.permute.xlu0 %1635
      %1637 = vrot.lane.b32.xlu0 %v1540, 4
      %v1638 = vpop.permute.xlu0 %1637
      %1639 = vrot.lane.b32.xlu0 %v1543, 4
      %v1640 = vpop.permute.xlu0 %1639
      %1641 = vrot.lane.b32.xlu0 %v1547, 4
      %v1642 = vpop.permute.xlu0 %1641
      %1643 = vrot.lane.b32.xlu0 %v1550, 4
      %v1644 = vpop.permute.xlu0 %1643
      %1645 = vrot.lane.b32.xlu0 %v1554, 4
      %v1646 = vpop.permute.xlu0 %1645
      %1647 = vrot.lane.b32.xlu0 %v1557, 4
      %v1648 = vpop.permute.xlu0 %1647
      %1649 = vrot.lane.b32.xlu0 %v1561, 4
      %v1650 = vpop.permute.xlu0 %1649
      %1651 = vrot.lane.b32.xlu0 %v1564, 4
      %v1652 = vpop.permute.xlu0 %1651
      %1653 = vrot.lane.b32.xlu0 %v1568, 4
      %v1654 = vpop.permute.xlu0 %1653
      %1655 = vrot.lane.b32.xlu0 %v1571, 4
      %v1656 = vpop.permute.xlu0 %1655
      %1657 = vrot.lane.b32.xlu0 %v1575, 4
      %v1658 = vpop.permute.xlu0 %1657
      %1659 = vrot.lane.b32.xlu0 %v1578, 4
      %v1660 = vpop.permute.xlu0 %1659
      %1661 = vrot.lane.b32.xlu0 %v1582, 4
      %v1662 = vpop.permute.xlu0 %1661
      %1663 = vrot.lane.b32.xlu0 %v1585, 4
      %v1664 = vpop.permute.xlu0 %1663
      %1665 = vrot.lane.b32.xlu0 %v1589, 4
      %v1666 = vpop.permute.xlu0 %1665
      %1667 = vrot.lane.b32.xlu0 %v1592, 4
      %v1668 = vpop.permute.xlu0 %1667
      %1669 = vrot.lane.b32.xlu0 %v1596, 4
      %v1670 = vpop.permute.xlu0 %1669
      %1671 = vrot.lane.b32.xlu0 %v1599, 4
      %v1672 = vpop.permute.xlu0 %1671
      %1673 = vrot.lane.b32.xlu0 %v1603, 4
      %v1674 = vpop.permute.xlu0 %1673
      %1675 = vrot.lane.b32.xlu0 %v1606, 4
      %v1676 = vpop.permute.xlu0 %1675
      %1677 = vrot.lane.b32.xlu0 %v1610, 4
      %v1678 = vpop.permute.xlu0 %1677
      %1679 = vrot.lane.b32.xlu0 %v1613, 4
      %v1680 = vpop.permute.xlu0 %1679
      %1681 = vrot.lane.b32.xlu0 %v1617, 4
      %v1682 = vpop.permute.xlu0 %1681
      %1683 = vrot.lane.b32.xlu0 %v1620, 4
      %v1684 = vpop.permute.xlu0 %1683
      %vm1717 = vcmask 60448
      %1718 = vst.msk [vmem:[#allocation3] sm:$0xf] %vm1717, %v1622
      %1719 = vst.msk [vmem:[#allocation3 + $0x4] sm:$0xf] %vm1717, %v1624
      %1720 = vst.msk [vmem:[#allocation3 + $0x8] sm:$0xf] %vm1717, %v1626
      %1721 = vst.msk [vmem:[#allocation3 + $0xc] sm:$0xf] %vm1717, %v1628
      %1722 = vst.msk [vmem:[#allocation3 + $0x10] sm:$0xf] %vm1717, %v1630
      %1723 = vst.msk [vmem:[#allocation3 + $0x14] sm:$0xf] %vm1717, %v1632
      %1724 = vst.msk [vmem:[#allocation3 + $0x18] sm:$0xf] %vm1717, %v1634
      %1725 = vst.msk [vmem:[#allocation3 + $0x1c] sm:$0xf] %vm1717, %v1636
      %1726 = vst.msk [vmem:[#allocation3 + $0x20] sm:$0xf] %vm1717, %v1638
      %1727 = vst.msk [vmem:[#allocation3 + $0x24] sm:$0xf] %vm1717, %v1640
      %1728 = vst.msk [vmem:[#allocation3 + $0x28] sm:$0xf] %vm1717, %v1642
      %1729 = vst.msk [vmem:[#allocation3 + $0x2c] sm:$0xf] %vm1717, %v1644
      %1730 = vst.msk [vmem:[#allocation3 + $0x30] sm:$0xf] %vm1717, %v1646
      %1731 = vst.msk [vmem:[#allocation3 + $0x34] sm:$0xf] %vm1717, %v1648
      %1732 = vst.msk [vmem:[#allocation3 + $0x38] sm:$0xf] %vm1717, %v1650
      %1733 = vst.msk [vmem:[#allocation3 + $0x3c] sm:$0xf] %vm1717, %v1652
      %1734 = vst.msk [vmem:[#allocation3 + $0x40] sm:$0xf] %vm1717, %v1654
      %1735 = vst.msk [vmem:[#allocation3 + $0x44] sm:$0xf] %vm1717, %v1656
      %1736 = vst.msk [vmem:[#allocation3 + $0x48] sm:$0xf] %vm1717, %v1658
      %1737 = vst.msk [vmem:[#allocation3 + $0x4c] sm:$0xf] %vm1717, %v1660
      %1738 = vst.msk [vmem:[#allocation3 + $0x50] sm:$0xf] %vm1717, %v1662
      %1739 = vst.msk [vmem:[#allocation3 + $0x54] sm:$0xf] %vm1717, %v1664
      %1740 = vst.msk [vmem:[#allocation3 + $0x58] sm:$0xf] %vm1717, %v1666
      %1741 = vst.msk [vmem:[#allocation3 + $0x5c] sm:$0xf] %vm1717, %v1668
      %1742 = vst.msk [vmem:[#allocation3 + $0x60] sm:$0xf] %vm1717, %v1670
      %1743 = vst.msk [vmem:[#allocation3 + $0x64] sm:$0xf] %vm1717, %v1672
      %1744 = vst.msk [vmem:[#allocation3 + $0x68] sm:$0xf] %vm1717, %v1674
      %1745 = vst.msk [vmem:[#allocation3 + $0x6c] sm:$0xf] %vm1717, %v1676
      %1746 = vst.msk [vmem:[#allocation3 + $0x70] sm:$0xf] %vm1717, %v1678
      %1747 = vst.msk [vmem:[#allocation3 + $0x74] sm:$0xf] %vm1717, %v1680
      %1748 = vst.msk [vmem:[#allocation3 + $0x78] sm:$0xf] %vm1717, %v1682
      %1749 = vst.msk [vmem:[#allocation3 + $0x7c] sm:$0xf] %vm1717, %v1684
      %v1750 = vld [vmem:[#allocation2] sm:$0xe]
      %v1751 = vld [vmem:[#allocation2 + $0x4] sm:$0xf]
      %v1752 = vld [vmem:[#allocation2 + $0x8] sm:$0x3]
      %v1753 = vld [vmem:[#allocation2 + $0xc] sm:$0xe]
      %v1754 = vld [vmem:[#allocation2 + $0x10] sm:$0xf]
      %v1755 = vld [vmem:[#allocation2 + $0x14] sm:$0x3]
      %v1756 = vld [vmem:[#allocation2 + $0x18] sm:$0xe]
      %v1757 = vld [vmem:[#allocation2 + $0x1c] sm:$0xf]
      %v1758 = vld [vmem:[#allocation2 + $0x20] sm:$0x3]
      %v1759 = vld [vmem:[#allocation2 + $0x24] sm:$0xe]
      %v1760 = vld [vmem:[#allocation2 + $0x28] sm:$0xf]
      %v1761 = vld [vmem:[#allocation2 + $0x2c] sm:$0x3]
      %v1762 = vld [vmem:[#allocation2 + $0x30] sm:$0xe]
      %v1763 = vld [vmem:[#allocation2 + $0x34] sm:$0xf]
      %v1764 = vld [vmem:[#allocation2 + $0x38] sm:$0x3]
      %v1765 = vld [vmem:[#allocation2 + $0x3c] sm:$0xe]
      %v1766 = vld [vmem:[#allocation2 + $0x40] sm:$0xf]
      %v1767 = vld [vmem:[#allocation2 + $0x44] sm:$0x3]
      %v1768 = vld [vmem:[#allocation2 + $0x48] sm:$0xe]
      %v1769 = vld [vmem:[#allocation2 + $0x4c] sm:$0xf]
      %v1770 = vld [vmem:[#allocation2 + $0x50] sm:$0x3]
      %v1771 = vld [vmem:[#allocation2 + $0x54] sm:$0xe]
      %v1772 = vld [vmem:[#allocation2 + $0x58] sm:$0xf]
      %v1773 = vld [vmem:[#allocation2 + $0x5c] sm:$0x3]
      %v1774 = vld [vmem:[#allocation2 + $0x60] sm:$0xe]
      %v1775 = vld [vmem:[#allocation2 + $0x64] sm:$0xf]
      %v1776 = vld [vmem:[#allocation2 + $0x68] sm:$0x3]
      %v1777 = vld [vmem:[#allocation2 + $0x6c] sm:$0xe]
      %v1778 = vld [vmem:[#allocation2 + $0x70] sm:$0xf]
      %v1779 = vld [vmem:[#allocation2 + $0x74] sm:$0x3]
      %v1780 = vld [vmem:[#allocation2 + $0x78] sm:$0xe]
      %v1781 = vld [vmem:[#allocation2 + $0x7c] sm:$0xf]
      %v1782 = vld [vmem:[#allocation2 + $0x80] sm:$0x3]
      %v1783 = vld [vmem:[#allocation2 + $0x84] sm:$0xe]
      %v1784 = vld [vmem:[#allocation2 + $0x88] sm:$0xf]
      %v1785 = vld [vmem:[#allocation2 + $0x8c] sm:$0x3]
      %v1786 = vld [vmem:[#allocation2 + $0x90] sm:$0xe]
      %v1787 = vld [vmem:[#allocation2 + $0x94] sm:$0xf]
      %v1788 = vld [vmem:[#allocation2 + $0x98] sm:$0x3]
      %v1789 = vld [vmem:[#allocation2 + $0x9c] sm:$0xe]
      %v1790 = vld [vmem:[#allocation2 + $0xa0] sm:$0xf]
      %v1791 = vld [vmem:[#allocation2 + $0xa4] sm:$0x3]
      %v1792 = vld [vmem:[#allocation2 + $0xa8] sm:$0xe]
      %v1793 = vld [vmem:[#allocation2 + $0xac] sm:$0xf]
      %v1794 = vld [vmem:[#allocation2 + $0xb0] sm:$0x3]
      %v1795 = vld [vmem:[#allocation2 + $0xb4] sm:$0xe]
      %v1796 = vld [vmem:[#allocation2 + $0xb8] sm:$0xf]
      %v1797 = vld [vmem:[#allocation2 + $0xbc] sm:$0x3]
      %vm1798 = vsmask.f32 2304
      %vm1799 = vsmask.f32 6416
      %vm1800 = vmor %vm1798, %vm1799
      %v1802 = vshrl.u32 %v1750, 16
      %v1804 = vrot.slane %v1802, 5
      %v1805 = vshll.u32 %v1750, 16
      %v1807 = vrot.slane %v1805, 6
      %v1808 = vor.u32 %v1804, %v1807
      %v1809 = vrot.slane %v1808, 4
      %v1811 = vshrl.u32 %v1751, 16
      %v1813 = vrot.slane %v1811, 5
      %v1814 = vshll.u32 %v1751, 16
      %v1816 = vrot.slane %v1814, 6
      %v1817 = vor.u32 %v1813, %v1816
      %v1818 = vsel %vm1800, %v1809, %v1817
      %v1819 = vrot.slane %v1817, 4
      %v1821 = vshrl.u32 %v1752, 16
      %v1823 = vrot.slane %v1821, 5
      %v1824 = vshll.u32 %v1752, 16
      %v1826 = vrot.slane %v1824, 6
      %v1827 = vor.u32 %v1823, %v1826
      %v1828 = vsel %vm1800, %v1819, %v1827
      %v1830 = vshrl.u32 %v1753, 16
      %v1832 = vrot.slane %v1830, 5
      %v1833 = vshll.u32 %v1753, 16
      %v1835 = vrot.slane %v1833, 6
      %v1836 = vor.u32 %v1832, %v1835
      %v1837 = vrot.slane %v1836, 4
      %v1839 = vshrl.u32 %v1754, 16
      %v1841 = vrot.slane %v1839, 5
      %v1842 = vshll.u32 %v1754, 16
      %v1844 = vrot.slane %v1842, 6
      %v1845 = vor.u32 %v1841, %v1844
      %v1846 = vsel %vm1800, %v1837, %v1845
      %v1847 = vrot.slane %v1845, 4
      %v1849 = vshrl.u32 %v1755, 16
      %v1851 = vrot.slane %v1849, 5
      %v1852 = vshll.u32 %v1755, 16
      %v1854 = vrot.slane %v1852, 6
      %v1855 = vor.u32 %v1851, %v1854
      %v1856 = vsel %vm1800, %v1847, %v1855
      %v1858 = vshrl.u32 %v1756, 16
      %v1860 = vrot.slane %v1858, 5
      %v1861 = vshll.u32 %v1756, 16
      %v1863 = vrot.slane %v1861, 6
      %v1864 = vor.u32 %v1860, %v1863
      %v1865 = vrot.slane %v1864, 4
      %v1867 = vshrl.u32 %v1757, 16
      %v1869 = vrot.slane %v1867, 5
      %v1870 = vshll.u32 %v1757, 16
      %v1872 = vrot.slane %v1870, 6
      %v1873 = vor.u32 %v1869, %v1872
      %v1874 = vsel %vm1800, %v1865, %v1873
      %v1875 = vrot.slane %v1873, 4
      %v1877 = vshrl.u32 %v1758, 16
      %v1879 = vrot.slane %v1877, 5
      %v1880 = vshll.u32 %v1758, 16
      %v1882 = vrot.slane %v1880, 6
      %v1883 = vor.u32 %v1879, %v1882
      %v1884 = vsel %vm1800, %v1875, %v1883
      %v1886 = vshrl.u32 %v1759, 16
      %v1888 = vrot.slane %v1886, 5
      %v1889 = vshll.u32 %v1759, 16
      %v1891 = vrot.slane %v1889, 6
      %v1892 = vor.u32 %v1888, %v1891
      %v1893 = vrot.slane %v1892, 4
      %v1895 = vshrl.u32 %v1760, 16
      %v1897 = vrot.slane %v1895, 5
      %v1898 = vshll.u32 %v1760, 16
      %v1900 = vrot.slane %v1898, 6
      %v1901 = vor.u32 %v1897, %v1900
      %v1902 = vsel %vm1800, %v1893, %v1901
      %v1903 = vrot.slane %v1901, 4
      %v1905 = vshrl.u32 %v1761, 16
      %v1907 = vrot.slane %v1905, 5
      %v1908 = vshll.u32 %v1761, 16
      %v1910 = vrot.slane %v1908, 6
      %v1911 = vor.u32 %v1907, %v1910
      %v1912 = vsel %vm1800, %v1903, %v1911
      %v1914 = vshrl.u32 %v1762, 16
      %v1916 = vrot.slane %v1914, 5
      %v1917 = vshll.u32 %v1762, 16
      %v1919 = vrot.slane %v1917, 6
      %v1920 = vor.u32 %v1916, %v1919
      %v1921 = vrot.slane %v1920, 4
      %v1923 = vshrl.u32 %v1763, 16
      %v1925 = vrot.slane %v1923, 5
      %v1926 = vshll.u32 %v1763, 16
      %v1928 = vrot.slane %v1926, 6
      %v1929 = vor.u32 %v1925, %v1928
      %v1930 = vsel %vm1800, %v1921, %v1929
      %v1931 = vrot.slane %v1929, 4
      %v1933 = vshrl.u32 %v1764, 16
      %v1935 = vrot.slane %v1933, 5
      %v1936 = vshll.u32 %v1764, 16
      %v1938 = vrot.slane %v1936, 6
      %v1939 = vor.u32 %v1935, %v1938
      %v1940 = vsel %vm1800, %v1931, %v1939
      %v1942 = vshrl.u32 %v1765, 16
      %v1944 = vrot.slane %v1942, 5
      %v1945 = vshll.u32 %v1765, 16
      %v1947 = vrot.slane %v1945, 6
      %v1948 = vor.u32 %v1944, %v1947
      %v1949 = vrot.slane %v1948, 4
      %v1951 = vshrl.u32 %v1766, 16
      %v1953 = vrot.slane %v1951, 5
      %v1954 = vshll.u32 %v1766, 16
      %v1956 = vrot.slane %v1954, 6
      %v1957 = vor.u32 %v1953, %v1956
      %v1958 = vsel %vm1800, %v1949, %v1957
      %v1959 = vrot.slane %v1957, 4
      %v1961 = vshrl.u32 %v1767, 16
      %v1963 = vrot.slane %v1961, 5
      %v1964 = vshll.u32 %v1767, 16
      %v1966 = vrot.slane %v1964, 6
      %v1967 = vor.u32 %v1963, %v1966
      %v1968 = vsel %vm1800, %v1959, %v1967
      %v1970 = vshrl.u32 %v1768, 16
      %v1972 = vrot.slane %v1970, 5
      %v1973 = vshll.u32 %v1768, 16
      %v1975 = vrot.slane %v1973, 6
      %v1976 = vor.u32 %v1972, %v1975
      %v1977 = vrot.slane %v1976, 4
      %v1979 = vshrl.u32 %v1769, 16
      %v1981 = vrot.slane %v1979, 5
      %v1982 = vshll.u32 %v1769, 16
      %v1984 = vrot.slane %v1982, 6
      %v1985 = vor.u32 %v1981, %v1984
      %v1986 = vsel %vm1800, %v1977, %v1985
      %v1987 = vrot.slane %v1985, 4
      %v1989 = vshrl.u32 %v1770, 16
      %v1991 = vrot.slane %v1989, 5
      %v1992 = vshll.u32 %v1770, 16
      %v1994 = vrot.slane %v1992, 6
      %v1995 = vor.u32 %v1991, %v1994
      %v1996 = vsel %vm1800, %v1987, %v1995
      %v1998 = vshrl.u32 %v1771, 16
      %v2000 = vrot.slane %v1998, 5
      %v2001 = vshll.u32 %v1771, 16
      %v2003 = vrot.slane %v2001, 6
      %v2004 = vor.u32 %v2000, %v2003
      %v2005 = vrot.slane %v2004, 4
      %v2007 = vshrl.u32 %v1772, 16
      %v2009 = vrot.slane %v2007, 5
      %v2010 = vshll.u32 %v1772, 16
      %v2012 = vrot.slane %v2010, 6
      %v2013 = vor.u32 %v2009, %v2012
      %v2014 = vsel %vm1800, %v2005, %v2013
      %v2015 = vrot.slane %v2013, 4
      %v2017 = vshrl.u32 %v1773, 16
      %v2019 = vrot.slane %v2017, 5
      %v2020 = vshll.u32 %v1773, 16
      %v2022 = vrot.slane %v2020, 6
      %v2023 = vor.u32 %v2019, %v2022
      %v2024 = vsel %vm1800, %v2015, %v2023
      %v2026 = vshrl.u32 %v1774, 16
      %v2028 = vrot.slane %v2026, 5
      %v2029 = vshll.u32 %v1774, 16
      %v2031 = vrot.slane %v2029, 6
      %v2032 = vor.u32 %v2028, %v2031
      %v2033 = vrot.slane %v2032, 4
      %v2035 = vshrl.u32 %v1775, 16
      %v2037 = vrot.slane %v2035, 5
      %v2038 = vshll.u32 %v1775, 16
      %v2040 = vrot.slane %v2038, 6
      %v2041 = vor.u32 %v2037, %v2040
      %v2042 = vsel %vm1800, %v2033, %v2041
      %v2043 = vrot.slane %v2041, 4
      %v2045 = vshrl.u32 %v1776, 16
      %v2047 = vrot.slane %v2045, 5
      %v2048 = vshll.u32 %v1776, 16
      %v2050 = vrot.slane %v2048, 6
      %v2051 = vor.u32 %v2047, %v2050
      %v2052 = vsel %vm1800, %v2043, %v2051
      %v2054 = vshrl.u32 %v1777, 16
      %v2056 = vrot.slane %v2054, 5
      %v2057 = vshll.u32 %v1777, 16
      %v2059 = vrot.slane %v2057, 6
      %v2060 = vor.u32 %v2056, %v2059
      %v2061 = vrot.slane %v2060, 4
      %v2063 = vshrl.u32 %v1778, 16
      %v2065 = vrot.slane %v2063, 5
      %v2066 = vshll.u32 %v1778, 16
      %v2068 = vrot.slane %v2066, 6
      %v2069 = vor.u32 %v2065, %v2068
      %v2070 = vsel %vm1800, %v2061, %v2069
      %v2071 = vrot.slane %v2069, 4
      %v2073 = vshrl.u32 %v1779, 16
      %v2075 = vrot.slane %v2073, 5
      %v2076 = vshll.u32 %v1779, 16
      %v2078 = vrot.slane %v2076, 6
      %v2079 = vor.u32 %v2075, %v2078
      %v2080 = vsel %vm1800, %v2071, %v2079
      %v2082 = vshrl.u32 %v1780, 16
      %v2084 = vrot.slane %v2082, 5
      %v2085 = vshll.u32 %v1780, 16
      %v2087 = vrot.slane %v2085, 6
      %v2088 = vor.u32 %v2084, %v2087
      %v2089 = vrot.slane %v2088, 4
      %v2091 = vshrl.u32 %v1781, 16
      %v2093 = vrot.slane %v2091, 5
      %v2094 = vshll.u32 %v1781, 16
      %v2096 = vrot.slane %v2094, 6
      %v2097 = vor.u32 %v2093, %v2096
      %v2098 = vsel %vm1800, %v2089, %v2097
      %v2099 = vrot.slane %v2097, 4
      %v2101 = vshrl.u32 %v1782, 16
      %v2103 = vrot.slane %v2101, 5
      %v2104 = vshll.u32 %v1782, 16
      %v2106 = vrot.slane %v2104, 6
      %v2107 = vor.u32 %v2103, %v2106
      %v2108 = vsel %vm1800, %v2099, %v2107
      %v2110 = vshrl.u32 %v1783, 16
      %v2112 = vrot.slane %v2110, 5
      %v2113 = vshll.u32 %v1783, 16
      %v2115 = vrot.slane %v2113, 6
      %v2116 = vor.u32 %v2112, %v2115
      %v2117 = vrot.slane %v2116, 4
      %v2119 = vshrl.u32 %v1784, 16
      %v2121 = vrot.slane %v2119, 5
      %v2122 = vshll.u32 %v1784, 16
      %v2124 = vrot.slane %v2122, 6
      %v2125 = vor.u32 %v2121, %v2124
      %v2126 = vsel %vm1800, %v2117, %v2125
      %v2127 = vrot.slane %v2125, 4
      %v2129 = vshrl.u32 %v1785, 16
      %v2131 = vrot.slane %v2129, 5
      %v2132 = vshll.u32 %v1785, 16
      %v2134 = vrot.slane %v2132, 6
      %v2135 = vor.u32 %v2131, %v2134
      %v2136 = vsel %vm1800, %v2127, %v2135
      %v2138 = vshrl.u32 %v1786, 16
      %v2140 = vrot.slane %v2138, 5
      %v2141 = vshll.u32 %v1786, 16
      %v2143 = vrot.slane %v2141, 6
      %v2144 = vor.u32 %v2140, %v2143
      %v2145 = vrot.slane %v2144, 4
      %v2147 = vshrl.u32 %v1787, 16
      %v2149 = vrot.slane %v2147, 5
      %v2150 = vshll.u32 %v1787, 16
      %v2152 = vrot.slane %v2150, 6
      %v2153 = vor.u32 %v2149, %v2152
      %v2154 = vsel %vm1800, %v2145, %v2153
      %v2155 = vrot.slane %v2153, 4
      %v2157 = vshrl.u32 %v1788, 16
      %v2159 = vrot.slane %v2157, 5
      %v2160 = vshll.u32 %v1788, 16
      %v2162 = vrot.slane %v2160, 6
      %v2163 = vor.u32 %v2159, %v2162
      %v2164 = vsel %vm1800, %v2155, %v2163
      %v2166 = vshrl.u32 %v1789, 16
      %v2168 = vrot.slane %v2166, 5
      %v2169 = vshll.u32 %v1789, 16
      %v2171 = vrot.slane %v2169, 6
      %v2172 = vor.u32 %v2168, %v2171
      %v2173 = vrot.slane %v2172, 4
      %v2175 = vshrl.u32 %v1790, 16
      %v2177 = vrot.slane %v2175, 5
      %v2178 = vshll.u32 %v1790, 16
      %v2180 = vrot.slane %v2178, 6
      %v2181 = vor.u32 %v2177, %v2180
      %v2182 = vsel %vm1800, %v2173, %v2181
      %v2183 = vrot.slane %v2181, 4
      %v2185 = vshrl.u32 %v1791, 16
      %v2187 = vrot.slane %v2185, 5
      %v2188 = vshll.u32 %v1791, 16
      %v2190 = vrot.slane %v2188, 6
      %v2191 = vor.u32 %v2187, %v2190
      %v2192 = vsel %vm1800, %v2183, %v2191
      %v2194 = vshrl.u32 %v1792, 16
      %v2196 = vrot.slane %v2194, 5
      %v2197 = vshll.u32 %v1792, 16
      %v2199 = vrot.slane %v2197, 6
      %v2200 = vor.u32 %v2196, %v2199
      %v2201 = vrot.slane %v2200, 4
      %v2203 = vshrl.u32 %v1793, 16
      %v2205 = vrot.slane %v2203, 5
      %v2206 = vshll.u32 %v1793, 16
      %v2208 = vrot.slane %v2206, 6
      %v2209 = vor.u32 %v2205, %v2208
      %v2210 = vsel %vm1800, %v2201, %v2209
      %v2211 = vrot.slane %v2209, 4
      %v2213 = vshrl.u32 %v1794, 16
      %v2215 = vrot.slane %v2213, 5
      %v2216 = vshll.u32 %v1794, 16
      %v2218 = vrot.slane %v2216, 6
      %v2219 = vor.u32 %v2215, %v2218
      %v2220 = vsel %vm1800, %v2211, %v2219
      %v2222 = vshrl.u32 %v1795, 16
      %v2224 = vrot.slane %v2222, 5
      %v2225 = vshll.u32 %v1795, 16
      %v2227 = vrot.slane %v2225, 6
      %v2228 = vor.u32 %v2224, %v2227
      %v2229 = vrot.slane %v2228, 4
      %v2231 = vshrl.u32 %v1796, 16
      %v2233 = vrot.slane %v2231, 5
      %v2234 = vshll.u32 %v1796, 16
      %v2236 = vrot.slane %v2234, 6
      %v2237 = vor.u32 %v2233, %v2236
      %v2238 = vsel %vm1800, %v2229, %v2237
      %v2239 = vrot.slane %v2237, 4
      %v2241 = vshrl.u32 %v1797, 16
      %v2243 = vrot.slane %v2241, 5
      %v2244 = vshll.u32 %v1797, 16
      %v2246 = vrot.slane %v2244, 6
      %v2247 = vor.u32 %v2243, %v2246
      %v2248 = vsel %vm1800, %v2239, %v2247
      %2249 = vrot.lane.b32.xlu0 %v1818, 8
      %v2250 = vpop.permute.xlu0 %2249
      %2251 = vrot.lane.b32.xlu0 %v1828, 8
      %v2252 = vpop.permute.xlu0 %2251
      %2253 = vrot.lane.b32.xlu0 %v1846, 8
      %v2254 = vpop.permute.xlu0 %2253
      %2255 = vrot.lane.b32.xlu0 %v1856, 8
      %v2256 = vpop.permute.xlu0 %2255
      %2257 = vrot.lane.b32.xlu0 %v1874, 8
      %v2258 = vpop.permute.xlu0 %2257
      %2259 = vrot.lane.b32.xlu0 %v1884, 8
      %v2260 = vpop.permute.xlu0 %2259
      %2261 = vrot.lane.b32.xlu0 %v1902, 8
      %v2262 = vpop.permute.xlu0 %2261
      %2263 = vrot.lane.b32.xlu0 %v1912, 8
      %v2264 = vpop.permute.xlu0 %2263
      %2265 = vrot.lane.b32.xlu0 %v1930, 8
      %v2266 = vpop.permute.xlu0 %2265
      %2267 = vrot.lane.b32.xlu0 %v1940, 8
      %v2268 = vpop.permute.xlu0 %2267
      %2269 = vrot.lane.b32.xlu0 %v1958, 8
      %v2270 = vpop.permute.xlu0 %2269
      %2271 = vrot.lane.b32.xlu0 %v1968, 8
      %v2272 = vpop.permute.xlu0 %2271
      %2273 = vrot.lane.b32.xlu0 %v1986, 8
      %v2274 = vpop.permute.xlu0 %2273
      %2275 = vrot.lane.b32.xlu0 %v1996, 8
      %v2276 = vpop.permute.xlu0 %2275
      %2277 = vrot.lane.b32.xlu0 %v2014, 8
      %v2278 = vpop.permute.xlu0 %2277
      %2279 = vrot.lane.b32.xlu0 %v2024, 8
      %v2280 = vpop.permute.xlu0 %2279
      %2281 = vrot.lane.b32.xlu0 %v2042, 8
      %v2282 = vpop.permute.xlu0 %2281
      %2283 = vrot.lane.b32.xlu0 %v2052, 8
      %v2284 = vpop.permute.xlu0 %2283
      %2285 = vrot.lane.b32.xlu0 %v2070, 8
      %v2286 = vpop.permute.xlu0 %2285
      %2287 = vrot.lane.b32.xlu0 %v2080, 8
      %v2288 = vpop.permute.xlu0 %2287
      %2289 = vrot.lane.b32.xlu0 %v2098, 8
      %v2290 = vpop.permute.xlu0 %2289
      %2291 = vrot.lane.b32.xlu0 %v2108, 8
      %v2292 = vpop.permute.xlu0 %2291
      %2293 = vrot.lane.b32.xlu0 %v2126, 8
      %v2294 = vpop.permute.xlu0 %2293
      %2295 = vrot.lane.b32.xlu0 %v2136, 8
      %v2296 = vpop.permute.xlu0 %2295
      %2297 = vrot.lane.b32.xlu0 %v2154, 8
      %v2298 = vpop.permute.xlu0 %2297
      %2299 = vrot.lane.b32.xlu0 %v2164, 8
      %v2300 = vpop.permute.xlu0 %2299
      %2301 = vrot.lane.b32.xlu0 %v2182, 8
      %v2302 = vpop.permute.xlu0 %2301
      %2303 = vrot.lane.b32.xlu0 %v2192, 8
      %v2304 = vpop.permute.xlu0 %2303
      %2305 = vrot.lane.b32.xlu0 %v2210, 8
      %v2306 = vpop.permute.xlu0 %2305
      %2307 = vrot.lane.b32.xlu0 %v2220, 8
      %v2308 = vpop.permute.xlu0 %2307
      %2309 = vrot.lane.b32.xlu0 %v2238, 8
      %v2310 = vpop.permute.xlu0 %2309
      %2311 = vrot.lane.b32.xlu0 %v2248, 8
      %v2312 = vpop.permute.xlu0 %2311
      %vm2345 = vcmask 93248
      %2346 = vst.msk [vmem:[#allocation3] sm:$0xf] %vm2345, %v2250
      %2347 = vst.msk [vmem:[#allocation3 + $0x4] sm:$0xf] %vm2345, %v2252
      %2348 = vst.msk [vmem:[#allocation3 + $0x8] sm:$0xf] %vm2345, %v2254
      %2349 = vst.msk [vmem:[#allocation3 + $0xc] sm:$0xf] %vm2345, %v2256
      %2350 = vst.msk [vmem:[#allocation3 + $0x10] sm:$0xf] %vm2345, %v2258
      %2351 = vst.msk [vmem:[#allocation3 + $0x14] sm:$0xf] %vm2345, %v2260
      %2352 = vst.msk [vmem:[#allocation3 + $0x18] sm:$0xf] %vm2345, %v2262
      %2353 = vst.msk [vmem:[#allocation3 + $0x1c] sm:$0xf] %vm2345, %v2264
      %2354 = vst.msk [vmem:[#allocation3 + $0x20] sm:$0xf] %vm2345, %v2266
      %2355 = vst.msk [vmem:[#allocation3 + $0x24] sm:$0xf] %vm2345, %v2268
      %2356 = vst.msk [vmem:[#allocation3 + $0x28] sm:$0xf] %vm2345, %v2270
      %2357 = vst.msk [vmem:[#allocation3 + $0x2c] sm:$0xf] %vm2345, %v2272
      %2358 = vst.msk [vmem:[#allocation3 + $0x30] sm:$0xf] %vm2345, %v2274
      %2359 = vst.msk [vmem:[#allocation3 + $0x34] sm:$0xf] %vm2345, %v2276
      %2360 = vst.msk [vmem:[#allocation3 + $0x38] sm:$0xf] %vm2345, %v2278
      %2361 = vst.msk [vmem:[#allocation3 + $0x3c] sm:$0xf] %vm2345, %v2280
      %2362 = vst.msk [vmem:[#allocation3 + $0x40] sm:$0xf] %vm2345, %v2282
      %2363 = vst.msk [vmem:[#allocation3 + $0x44] sm:$0xf] %vm2345, %v2284
      %2364 = vst.msk [vmem:[#allocation3 + $0x48] sm:$0xf] %vm2345, %v2286
      %2365 = vst.msk [vmem:[#allocation3 + $0x4c] sm:$0xf] %vm2345, %v2288
      %2366 = vst.msk [vmem:[#allocation3 + $0x50] sm:$0xf] %vm2345, %v2290
      %2367 = vst.msk [vmem:[#allocation3 + $0x54] sm:$0xf] %vm2345, %v2292
      %2368 = vst.msk [vmem:[#allocation3 + $0x58] sm:$0xf] %vm2345, %v2294
      %2369 = vst.msk [vmem:[#allocation3 + $0x5c] sm:$0xf] %vm2345, %v2296
      %2370 = vst.msk [vmem:[#allocation3 + $0x60] sm:$0xf] %vm2345, %v2298
      %2371 = vst.msk [vmem:[#allocation3 + $0x64] sm:$0xf] %vm2345, %v2300
      %2372 = vst.msk [vmem:[#allocation3 + $0x68] sm:$0xf] %vm2345, %v2302
      %2373 = vst.msk [vmem:[#allocation3 + $0x6c] sm:$0xf] %vm2345, %v2304
      %2374 = vst.msk [vmem:[#allocation3 + $0x70] sm:$0xf] %vm2345, %v2306
      %2375 = vst.msk [vmem:[#allocation3 + $0x74] sm:$0xf] %vm2345, %v2308
      %2376 = vst.msk [vmem:[#allocation3 + $0x78] sm:$0xf] %vm2345, %v2310
      %2377 = vst.msk [vmem:[#allocation3 + $0x7c] sm:$0xf] %vm2345, %v2312
      %v2378 = vld [vmem:[%s861] sm:$0xf]
      %v2379 = vld [vmem:[%s861 + $0x4] sm:$0xf]
      %v2380 = vld [vmem:[%s861 + $0x8] sm:$0x1]
      %v2381 = vld [vmem:[%s861 + $0xc] sm:$0xf]
      %v2382 = vld [vmem:[%s861 + $0x10] sm:$0xf]
      %v2383 = vld [vmem:[%s861 + $0x14] sm:$0x1]
      %v2384 = vld [vmem:[%s861 + $0x18] sm:$0xf]
      %v2385 = vld [vmem:[%s861 + $0x1c] sm:$0xf]
      %v2386 = vld [vmem:[%s861 + $0x20] sm:$0x1]
      %v2387 = vld [vmem:[%s861 + $0x24] sm:$0xf]
      %v2388 = vld [vmem:[%s861 + $0x28] sm:$0xf]
      %v2389 = vld [vmem:[%s861 + $0x2c] sm:$0x1]
      %v2390 = vld [vmem:[%s861 + $0x30] sm:$0xf]
      %v2391 = vld [vmem:[%s861 + $0x34] sm:$0xf]
      %v2392 = vld [vmem:[%s861 + $0x38] sm:$0x1]
      %v2393 = vld [vmem:[%s861 + $0x3c] sm:$0xf]
      %v2394 = vld [vmem:[%s861 + $0x40] sm:$0xf]
      %v2395 = vld [vmem:[%s861 + $0x44] sm:$0x1]
      %v2396 = vld [vmem:[%s861 + $0x48] sm:$0xf]
      %v2397 = vld [vmem:[%s861 + $0x4c] sm:$0xf]
      %v2398 = vld [vmem:[%s861 + $0x50] sm:$0x1]
      %v2399 = vld [vmem:[%s861 + $0x54] sm:$0xf]
      %v2400 = vld [vmem:[%s861 + $0x58] sm:$0xf]
      %v2401 = vld [vmem:[%s861 + $0x5c] sm:$0x1]
      %v2402 = vld [vmem:[%s861 + $0x60] sm:$0xf]
      %v2403 = vld [vmem:[%s861 + $0x64] sm:$0xf]
      %v2404 = vld [vmem:[%s861 + $0x68] sm:$0x1]
      %v2405 = vld [vmem:[%s861 + $0x6c] sm:$0xf]
      %v2406 = vld [vmem:[%s861 + $0x70] sm:$0xf]
      %v2407 = vld [vmem:[%s861 + $0x74] sm:$0x1]
      %v2408 = vld [vmem:[%s861 + $0x78] sm:$0xf]
      %v2409 = vld [vmem:[%s861 + $0x7c] sm:$0xf]
      %v2410 = vld [vmem:[%s861 + $0x80] sm:$0x1]
      %v2411 = vld [vmem:[%s861 + $0x84] sm:$0xf]
      %v2412 = vld [vmem:[%s861 + $0x88] sm:$0xf]
      %v2413 = vld [vmem:[%s861 + $0x8c] sm:$0x1]
      %v2414 = vld [vmem:[%s861 + $0x90] sm:$0xf]
      %v2415 = vld [vmem:[%s861 + $0x94] sm:$0xf]
      %v2416 = vld [vmem:[%s861 + $0x98] sm:$0x1]
      %v2417 = vld [vmem:[%s861 + $0x9c] sm:$0xf]
      %v2418 = vld [vmem:[%s861 + $0xa0] sm:$0xf]
      %v2419 = vld [vmem:[%s861 + $0xa4] sm:$0x1]
      %v2420 = vld [vmem:[%s861 + $0xa8] sm:$0xf]
      %v2421 = vld [vmem:[%s861 + $0xac] sm:$0xf]
      %v2422 = vld [vmem:[%s861 + $0xb0] sm:$0x1]
      %v2423 = vld [vmem:[%s861 + $0xb4] sm:$0xf]
      %v2424 = vld [vmem:[%s861 + $0xb8] sm:$0xf]
      %v2425 = vld [vmem:[%s861 + $0xbc] sm:$0x1]
      %v2427 = vshrl.u32 %v2378, 16
      %v2429 = vrot.slane %v2427, 4
      %v2430 = vshll.u32 %v2378, 16
      %v2432 = vrot.slane %v2430, 5
      %v2433 = vor.u32 %v2429, %v2432
      %v2434 = vrot.slane %v2433, 4
      %v2436 = vshll.u32 %v2379, 16
      %v2438 = vrot.slane %v2436, 5
      %v2439 = vsel %vm961, %v2434, %v2438
      %v2440 = vshrl.u32 %v2379, 16
      %v2442 = vrot.slane %v2440, 4
      %v2443 = vor.u32 %v2442, %v2438
      %v2444 = vrot.slane %v2443, 4
      %v2446 = vshll.u32 %v2380, 16
      %v2448 = vrot.slane %v2446, 5
      %v2449 = vsel %vm961, %v2444, %v2448
      %v2451 = vshrl.u32 %v2381, 16
      %v2453 = vrot.slane %v2451, 4
      %v2454 = vshll.u32 %v2381, 16
      %v2456 = vrot.slane %v2454, 5
      %v2457 = vor.u32 %v2453, %v2456
      %v2458 = vrot.slane %v2457, 4
      %v2460 = vshll.u32 %v2382, 16
      %v2462 = vrot.slane %v2460, 5
      %v2463 = vsel %vm961, %v2458, %v2462
      %v2464 = vshrl.u32 %v2382, 16
      %v2466 = vrot.slane %v2464, 4
      %v2467 = vor.u32 %v2466, %v2462
      %v2468 = vrot.slane %v2467, 4
      %v2470 = vshll.u32 %v2383, 16
      %v2472 = vrot.slane %v2470, 5
      %v2473 = vsel %vm961, %v2468, %v2472
      %v2475 = vshrl.u32 %v2384, 16
      %v2477 = vrot.slane %v2475, 4
      %v2478 = vshll.u32 %v2384, 16
      %v2480 = vrot.slane %v2478, 5
      %v2481 = vor.u32 %v2477, %v2480
      %v2482 = vrot.slane %v2481, 4
      %v2484 = vshll.u32 %v2385, 16
      %v2486 = vrot.slane %v2484, 5
      %v2487 = vsel %vm961, %v2482, %v2486
      %v2488 = vshrl.u32 %v2385, 16
      %v2490 = vrot.slane %v2488, 4
      %v2491 = vor.u32 %v2490, %v2486
      %v2492 = vrot.slane %v2491, 4
      %v2494 = vshll.u32 %v2386, 16
      %v2496 = vrot.slane %v2494, 5
      %v2497 = vsel %vm961, %v2492, %v2496
      %v2499 = vshrl.u32 %v2387, 16
      %v2501 = vrot.slane %v2499, 4
      %v2502 = vshll.u32 %v2387, 16
      %v2504 = vrot.slane %v2502, 5
      %v2505 = vor.u32 %v2501, %v2504
      %v2506 = vrot.slane %v2505, 4
      %v2508 = vshll.u32 %v2388, 16
      %v2510 = vrot.slane %v2508, 5
      %v2511 = vsel %vm961, %v2506, %v2510
      %v2512 = vshrl.u32 %v2388, 16
      %v2514 = vrot.slane %v2512, 4
      %v2515 = vor.u32 %v2514, %v2510
      %v2516 = vrot.slane %v2515, 4
      %v2518 = vshll.u32 %v2389, 16
      %v2520 = vrot.slane %v2518, 5
      %v2521 = vsel %vm961, %v2516, %v2520
      %v2523 = vshrl.u32 %v2390, 16
      %v2525 = vrot.slane %v2523, 4
      %v2526 = vshll.u32 %v2390, 16
      %v2528 = vrot.slane %v2526, 5
      %v2529 = vor.u32 %v2525, %v2528
      %v2530 = vrot.slane %v2529, 4
      %v2532 = vshll.u32 %v2391, 16
      %v2534 = vrot.slane %v2532, 5
      %v2535 = vsel %vm961, %v2530, %v2534
      %v2536 = vshrl.u32 %v2391, 16
      %v2538 = vrot.slane %v2536, 4
      %v2539 = vor.u32 %v2538, %v2534
      %v2540 = vrot.slane %v2539, 4
      %v2542 = vshll.u32 %v2392, 16
      %v2544 = vrot.slane %v2542, 5
      %v2545 = vsel %vm961, %v2540, %v2544
      %v2547 = vshrl.u32 %v2393, 16
      %v2549 = vrot.slane %v2547, 4
      %v2550 = vshll.u32 %v2393, 16
      %v2552 = vrot.slane %v2550, 5
      %v2553 = vor.u32 %v2549, %v2552
      %v2554 = vrot.slane %v2553, 4
      %v2556 = vshll.u32 %v2394, 16
      %v2558 = vrot.slane %v2556, 5
      %v2559 = vsel %vm961, %v2554, %v2558
      %v2560 = vshrl.u32 %v2394, 16
      %v2562 = vrot.slane %v2560, 4
      %v2563 = vor.u32 %v2562, %v2558
      %v2564 = vrot.slane %v2563, 4
      %v2566 = vshll.u32 %v2395, 16
      %v2568 = vrot.slane %v2566, 5
      %v2569 = vsel %vm961, %v2564, %v2568
      %v2571 = vshrl.u32 %v2396, 16
      %v2573 = vrot.slane %v2571, 4
      %v2574 = vshll.u32 %v2396, 16
      %v2576 = vrot.slane %v2574, 5
      %v2577 = vor.u32 %v2573, %v2576
      %v2578 = vrot.slane %v2577, 4
      %v2580 = vshll.u32 %v2397, 16
      %v2582 = vrot.slane %v2580, 5
      %v2583 = vsel %vm961, %v2578, %v2582
      %v2584 = vshrl.u32 %v2397, 16
      %v2586 = vrot.slane %v2584, 4
      %v2587 = vor.u32 %v2586, %v2582
      %v2588 = vrot.slane %v2587, 4
      %v2590 = vshll.u32 %v2398, 16
      %v2592 = vrot.slane %v2590, 5
      %v2593 = vsel %vm961, %v2588, %v2592
      %v2595 = vshrl.u32 %v2399, 16
      %v2597 = vrot.slane %v2595, 4
      %v2598 = vshll.u32 %v2399, 16
      %v2600 = vrot.slane %v2598, 5
      %v2601 = vor.u32 %v2597, %v2600
      %v2602 = vrot.slane %v2601, 4
      %v2604 = vshll.u32 %v2400, 16
      %v2606 = vrot.slane %v2604, 5
      %v2607 = vsel %vm961, %v2602, %v2606
      %v2608 = vshrl.u32 %v2400, 16
      %v2610 = vrot.slane %v2608, 4
      %v2611 = vor.u32 %v2610, %v2606
      %v2612 = vrot.slane %v2611, 4
      %v2614 = vshll.u32 %v2401, 16
      %v2616 = vrot.slane %v2614, 5
      %v2617 = vsel %vm961, %v2612, %v2616
      %v2619 = vshrl.u32 %v2402, 16
      %v2621 = vrot.slane %v2619, 4
      %v2622 = vshll.u32 %v2402, 16
      %v2624 = vrot.slane %v2622, 5
      %v2625 = vor.u32 %v2621, %v2624
      %v2626 = vrot.slane %v2625, 4
      %v2628 = vshll.u32 %v2403, 16
      %v2630 = vrot.slane %v2628, 5
      %v2631 = vsel %vm961, %v2626, %v2630
      %v2632 = vshrl.u32 %v2403, 16
      %v2634 = vrot.slane %v2632, 4
      %v2635 = vor.u32 %v2634, %v2630
      %v2636 = vrot.slane %v2635, 4
      %v2638 = vshll.u32 %v2404, 16
      %v2640 = vrot.slane %v2638, 5
      %v2641 = vsel %vm961, %v2636, %v2640
      %v2643 = vshrl.u32 %v2405, 16
      %v2645 = vrot.slane %v2643, 4
      %v2646 = vshll.u32 %v2405, 16
      %v2648 = vrot.slane %v2646, 5
      %v2649 = vor.u32 %v2645, %v2648
      %v2650 = vrot.slane %v2649, 4
      %v2652 = vshll.u32 %v2406, 16
      %v2654 = vrot.slane %v2652, 5
      %v2655 = vsel %vm961, %v2650, %v2654
      %v2656 = vshrl.u32 %v2406, 16
      %v2658 = vrot.slane %v2656, 4
      %v2659 = vor.u32 %v2658, %v2654
      %v2660 = vrot.slane %v2659, 4
      %v2662 = vshll.u32 %v2407, 16
      %v2664 = vrot.slane %v2662, 5
      %v2665 = vsel %vm961, %v2660, %v2664
      %v2667 = vshrl.u32 %v2408, 16
      %v2669 = vrot.slane %v2667, 4
      %v2670 = vshll.u32 %v2408, 16
      %v2672 = vrot.slane %v2670, 5
      %v2673 = vor.u32 %v2669, %v2672
      %v2674 = vrot.slane %v2673, 4
      %v2676 = vshll.u32 %v2409, 16
      %v2678 = vrot.slane %v2676, 5
      %v2679 = vsel %vm961, %v2674, %v2678
      %v2680 = vshrl.u32 %v2409, 16
      %v2682 = vrot.slane %v2680, 4
      %v2683 = vor.u32 %v2682, %v2678
      %v2684 = vrot.slane %v2683, 4
      %v2686 = vshll.u32 %v2410, 16
      %v2688 = vrot.slane %v2686, 5
      %v2689 = vsel %vm961, %v2684, %v2688
      %v2691 = vshrl.u32 %v2411, 16
      %v2693 = vrot.slane %v2691, 4
      %v2694 = vshll.u32 %v2411, 16
      %v2696 = vrot.slane %v2694, 5
      %v2697 = vor.u32 %v2693, %v2696
      %v2698 = vrot.slane %v2697, 4
      %v2700 = vshll.u32 %v2412, 16
      %v2702 = vrot.slane %v2700, 5
      %v2703 = vsel %vm961, %v2698, %v2702
      %v2704 = vshrl.u32 %v2412, 16
      %v2706 = vrot.slane %v2704, 4
      %v2707 = vor.u32 %v2706, %v2702
      %v2708 = vrot.slane %v2707, 4
      %v2710 = vshll.u32 %v2413, 16
      %v2712 = vrot.slane %v2710, 5
      %v2713 = vsel %vm961, %v2708, %v2712
      %v2715 = vshrl.u32 %v2414, 16
      %v2717 = vrot.slane %v2715, 4
      %v2718 = vshll.u32 %v2414, 16
      %v2720 = vrot.slane %v2718, 5
      %v2721 = vor.u32 %v2717, %v2720
      %v2722 = vrot.slane %v2721, 4
      %v2724 = vshll.u32 %v2415, 16
      %v2726 = vrot.slane %v2724, 5
      %v2727 = vsel %vm961, %v2722, %v2726
      %v2728 = vshrl.u32 %v2415, 16
      %v2730 = vrot.slane %v2728, 4
      %v2731 = vor.u32 %v2730, %v2726
      %v2732 = vrot.slane %v2731, 4
      %v2734 = vshll.u32 %v2416, 16
      %v2736 = vrot.slane %v2734, 5
      %v2737 = vsel %vm961, %v2732, %v2736
      %v2739 = vshrl.u32 %v2417, 16
      %v2741 = vrot.slane %v2739, 4
      %v2742 = vshll.u32 %v2417, 16
      %v2744 = vrot.slane %v2742, 5
      %v2745 = vor.u32 %v2741, %v2744
      %v2746 = vrot.slane %v2745, 4
      %v2748 = vshll.u32 %v2418, 16
      %v2750 = vrot.slane %v2748, 5
      %v2751 = vsel %vm961, %v2746, %v2750
      %v2752 = vshrl.u32 %v2418, 16
      %v2754 = vrot.slane %v2752, 4
      %v2755 = vor.u32 %v2754, %v2750
      %v2756 = vrot.slane %v2755, 4
      %v2758 = vshll.u32 %v2419, 16
      %v2760 = vrot.slane %v2758, 5
      %v2761 = vsel %vm961, %v2756, %v2760
      %v2763 = vshrl.u32 %v2420, 16
      %v2765 = vrot.slane %v2763, 4
      %v2766 = vshll.u32 %v2420, 16
      %v2768 = vrot.slane %v2766, 5
      %v2769 = vor.u32 %v2765, %v2768
      %v2770 = vrot.slane %v2769, 4
      %v2772 = vshll.u32 %v2421, 16
      %v2774 = vrot.slane %v2772, 5
      %v2775 = vsel %vm961, %v2770, %v2774
      %v2776 = vshrl.u32 %v2421, 16
      %v2778 = vrot.slane %v2776, 4
      %v2779 = vor.u32 %v2778, %v2774
      %v2780 = vrot.slane %v2779, 4
      %v2782 = vshll.u32 %v2422, 16
      %v2784 = vrot.slane %v2782, 5
      %v2785 = vsel %vm961, %v2780, %v2784
      %v2787 = vshrl.u32 %v2423, 16
      %v2789 = vrot.slane %v2787, 4
      %v2790 = vshll.u32 %v2423, 16
      %v2792 = vrot.slane %v2790, 5
      %v2793 = vor.u32 %v2789, %v2792
      %v2794 = vrot.slane %v2793, 4
      %v2796 = vshll.u32 %v2424, 16
      %v2798 = vrot.slane %v2796, 5
      %v2799 = vsel %vm961, %v2794, %v2798
      %v2800 = vshrl.u32 %v2424, 16
      %v2802 = vrot.slane %v2800, 4
      %v2803 = vor.u32 %v2802, %v2798
      %v2804 = vrot.slane %v2803, 4
      %v2806 = vshll.u32 %v2425, 16
      %v2808 = vrot.slane %v2806, 5
      %v2809 = vsel %vm961, %v2804, %v2808
      %2810 = vrot.lane.b32.xlu0 %v2439, 12
      %v2811 = vpop.permute.xlu0 %2810
      %2812 = vrot.lane.b32.xlu0 %v2449, 12
      %v2813 = vpop.permute.xlu0 %2812
      %2814 = vrot.lane.b32.xlu0 %v2463, 12
      %v2815 = vpop.permute.xlu0 %2814
      %2816 = vrot.lane.b32.xlu0 %v2473, 12
      %v2817 = vpop.permute.xlu0 %2816
      %2818 = vrot.lane.b32.xlu0 %v2487, 12
      %v2819 = vpop.permute.xlu0 %2818
      %2820 = vrot.lane.b32.xlu0 %v2497, 12
      %v2821 = vpop.permute.xlu0 %2820
      %2822 = vrot.lane.b32.xlu0 %v2511, 12
      %v2823 = vpop.permute.xlu0 %2822
      %2824 = vrot.lane.b32.xlu0 %v2521, 12
      %v2825 = vpop.permute.xlu0 %2824
      %2826 = vrot.lane.b32.xlu0 %v2535, 12
      %v2827 = vpop.permute.xlu0 %2826
      %2828 = vrot.lane.b32.xlu0 %v2545, 12
      %v2829 = vpop.permute.xlu0 %2828
      %2830 = vrot.lane.b32.xlu0 %v2559, 12
      %v2831 = vpop.permute.xlu0 %2830
      %2832 = vrot.lane.b32.xlu0 %v2569, 12
      %v2833 = vpop.permute.xlu0 %2832
      %2834 = vrot.lane.b32.xlu0 %v2583, 12
      %v2835 = vpop.permute.xlu0 %2834
      %2836 = vrot.lane.b32.xlu0 %v2593, 12
      %v2837 = vpop.permute.xlu0 %2836
      %2838 = vrot.lane.b32.xlu0 %v2607, 12
      %v2839 = vpop.permute.xlu0 %2838
      %2840 = vrot.lane.b32.xlu0 %v2617, 12
      %v2841 = vpop.permute.xlu0 %2840
      %2842 = vrot.lane.b32.xlu0 %v2631, 12
      %v2843 = vpop.permute.xlu0 %2842
      %2844 = vrot.lane.b32.xlu0 %v2641, 12
      %v2845 = vpop.permute.xlu0 %2844
      %2846 = vrot.lane.b32.xlu0 %v2655, 12
      %v2847 = vpop.permute.xlu0 %2846
      %2848 = vrot.lane.b32.xlu0 %v2665, 12
      %v2849 = vpop.permute.xlu0 %2848
      %2850 = vrot.lane.b32.xlu0 %v2679, 12
      %v2851 = vpop.permute.xlu0 %2850
      %2852 = vrot.lane.b32.xlu0 %v2689, 12
      %v2853 = vpop.permute.xlu0 %2852
      %2854 = vrot.lane.b32.xlu0 %v2703, 12
      %v2855 = vpop.permute.xlu0 %2854
      %2856 = vrot.lane.b32.xlu0 %v2713, 12
      %v2857 = vpop.permute.xlu0 %2856
      %2858 = vrot.lane.b32.xlu0 %v2727, 12
      %v2859 = vpop.permute.xlu0 %2858
      %2860 = vrot.lane.b32.xlu0 %v2737, 12
      %v2861 = vpop.permute.xlu0 %2860
      %2862 = vrot.lane.b32.xlu0 %v2751, 12
      %v2863 = vpop.permute.xlu0 %2862
      %2864 = vrot.lane.b32.xlu0 %v2761, 12
      %v2865 = vpop.permute.xlu0 %2864
      %2866 = vrot.lane.b32.xlu0 %v2775, 12
      %v2867 = vpop.permute.xlu0 %2866
      %2868 = vrot.lane.b32.xlu0 %v2785, 12
      %v2869 = vpop.permute.xlu0 %2868
      %2870 = vrot.lane.b32.xlu0 %v2799, 12
      %v2871 = vpop.permute.xlu0 %2870
      %2872 = vrot.lane.b32.xlu0 %v2809, 12
      %v2873 = vpop.permute.xlu0 %2872
      %vm2906 = vcmask 126048
      %2907 = vst.msk [vmem:[#allocation3] sm:$0xf] %vm2906, %v2811
      %2908 = vst.msk [vmem:[#allocation3 + $0x4] sm:$0xf] %vm2906, %v2813
      %2909 = vst.msk [vmem:[#allocation3 + $0x8] sm:$0xf] %vm2906, %v2815
      %2910 = vst.msk [vmem:[#allocation3 + $0xc] sm:$0xf] %vm2906, %v2817
      %2911 = vst.msk [vmem:[#allocation3 + $0x10] sm:$0xf] %vm2906, %v2819
      %2912 = vst.msk [vmem:[#allocation3 + $0x14] sm:$0xf] %vm2906, %v2821
      %2913 = vst.msk [vmem:[#allocation3 + $0x18] sm:$0xf] %vm2906, %v2823
      %2914 = vst.msk [vmem:[#allocation3 + $0x1c] sm:$0xf] %vm2906, %v2825
      %2915 = vst.msk [vmem:[#allocation3 + $0x20] sm:$0xf] %vm2906, %v2827
      %2916 = vst.msk [vmem:[#allocation3 + $0x24] sm:$0xf] %vm2906, %v2829
      %2917 = vst.msk [vmem:[#allocation3 + $0x28] sm:$0xf] %vm2906, %v2831
      %2918 = vst.msk [vmem:[#allocation3 + $0x2c] sm:$0xf] %vm2906, %v2833
      %2919 = vst.msk [vmem:[#allocation3 + $0x30] sm:$0xf] %vm2906, %v2835
      %2920 = vst.msk [vmem:[#allocation3 + $0x34] sm:$0xf] %vm2906, %v2837
      %2921 = vst.msk [vmem:[#allocation3 + $0x38] sm:$0xf] %vm2906, %v2839
      %2922 = vst.msk [vmem:[#allocation3 + $0x3c] sm:$0xf] %vm2906, %v2841
      %2923 = vst.msk [vmem:[#allocation3 + $0x40] sm:$0xf] %vm2906, %v2843
      %2924 = vst.msk [vmem:[#allocation3 + $0x44] sm:$0xf] %vm2906, %v2845
      %2925 = vst.msk [vmem:[#allocation3 + $0x48] sm:$0xf] %vm2906, %v2847
      %2926 = vst.msk [vmem:[#allocation3 + $0x4c] sm:$0xf] %vm2906, %v2849
      %2927 = vst.msk [vmem:[#allocation3 + $0x50] sm:$0xf] %vm2906, %v2851
      %2928 = vst.msk [vmem:[#allocation3 + $0x54] sm:$0xf] %vm2906, %v2853
      %2929 = vst.msk [vmem:[#allocation3 + $0x58] sm:$0xf] %vm2906, %v2855
      %2930 = vst.msk [vmem:[#allocation3 + $0x5c] sm:$0xf] %vm2906, %v2857
      %2931 = vst.msk [vmem:[#allocation3 + $0x60] sm:$0xf] %vm2906, %v2859
      %2932 = vst.msk [vmem:[#allocation3 + $0x64] sm:$0xf] %vm2906, %v2861
      %2933 = vst.msk [vmem:[#allocation3 + $0x68] sm:$0xf] %vm2906, %v2863
      %2934 = vst.msk [vmem:[#allocation3 + $0x6c] sm:$0xf] %vm2906, %v2865
      %2935 = vst.msk [vmem:[#allocation3 + $0x70] sm:$0xf] %vm2906, %v2867
      %2936 = vst.msk [vmem:[#allocation3 + $0x74] sm:$0xf] %vm2906, %v2869
      %2937 = vst.msk [vmem:[#allocation3 + $0x78] sm:$0xf] %vm2906, %v2871
      %2938 = vst.msk [vmem:[#allocation3 + $0x7c] sm:$0xf] %vm2906, %v2873
      %v2939 = vld [vmem:[%s861] sm:$0xe]
      %v2940 = vld [vmem:[%s861 + $0x4] sm:$0xf]
      %v2941 = vld [vmem:[%s861 + $0x8] sm:$0x1]
      %v2942 = vld [vmem:[%s861 + $0xc] sm:$0xe]
      %v2943 = vld [vmem:[%s861 + $0x10] sm:$0xf]
      %v2944 = vld [vmem:[%s861 + $0x14] sm:$0x1]
      %v2945 = vld [vmem:[%s861 + $0x18] sm:$0xe]
      %v2946 = vld [vmem:[%s861 + $0x1c] sm:$0xf]
      %v2947 = vld [vmem:[%s861 + $0x20] sm:$0x1]
      %v2948 = vld [vmem:[%s861 + $0x24] sm:$0xe]
      %v2949 = vld [vmem:[%s861 + $0x28] sm:$0xf]
      %v2950 = vld [vmem:[%s861 + $0x2c] sm:$0x1]
      %v2951 = vld [vmem:[%s861 + $0x30] sm:$0xe]
      %v2952 = vld [vmem:[%s861 + $0x34] sm:$0xf]
      %v2953 = vld [vmem:[%s861 + $0x38] sm:$0x1]
      %v2954 = vld [vmem:[%s861 + $0x3c] sm:$0xe]
      %v2955 = vld [vmem:[%s861 + $0x40] sm:$0xf]
      %v2956 = vld [vmem:[%s861 + $0x44] sm:$0x1]
      %v2957 = vld [vmem:[%s861 + $0x48] sm:$0xe]
      %v2958 = vld [vmem:[%s861 + $0x4c] sm:$0xf]
      %v2959 = vld [vmem:[%s861 + $0x50] sm:$0x1]
      %v2960 = vld [vmem:[%s861 + $0x54] sm:$0xe]
      %v2961 = vld [vmem:[%s861 + $0x58] sm:$0xf]
      %v2962 = vld [vmem:[%s861 + $0x5c] sm:$0x1]
      %v2963 = vld [vmem:[%s861 + $0x60] sm:$0xe]
      %v2964 = vld [vmem:[%s861 + $0x64] sm:$0xf]
      %v2965 = vld [vmem:[%s861 + $0x68] sm:$0x1]
      %v2966 = vld [vmem:[%s861 + $0x6c] sm:$0xe]
      %v2967 = vld [vmem:[%s861 + $0x70] sm:$0xf]
      %v2968 = vld [vmem:[%s861 + $0x74] sm:$0x1]
      %v2969 = vld [vmem:[%s861 + $0x78] sm:$0xe]
      %v2970 = vld [vmem:[%s861 + $0x7c] sm:$0xf]
      %v2971 = vld [vmem:[%s861 + $0x80] sm:$0x1]
      %v2972 = vld [vmem:[%s861 + $0x84] sm:$0xe]
      %v2973 = vld [vmem:[%s861 + $0x88] sm:$0xf]
      %v2974 = vld [vmem:[%s861 + $0x8c] sm:$0x1]
      %v2975 = vld [vmem:[%s861 + $0x90] sm:$0xe]
      %v2976 = vld [vmem:[%s861 + $0x94] sm:$0xf]
      %v2977 = vld [vmem:[%s861 + $0x98] sm:$0x1]
      %v2978 = vld [vmem:[%s861 + $0x9c] sm:$0xe]
      %v2979 = vld [vmem:[%s861 + $0xa0] sm:$0xf]
      %v2980 = vld [vmem:[%s861 + $0xa4] sm:$0x1]
      %v2981 = vld [vmem:[%s861 + $0xa8] sm:$0xe]
      %v2982 = vld [vmem:[%s861 + $0xac] sm:$0xf]
      %v2983 = vld [vmem:[%s861 + $0xb0] sm:$0x1]
      %v2984 = vld [vmem:[%s861 + $0xb4] sm:$0xe]
      %v2985 = vld [vmem:[%s861 + $0xb8] sm:$0xf]
      %v2986 = vld [vmem:[%s861 + $0xbc] sm:$0x1]
      %v3035 = vrot.slane %v2939, 5
      %v3036 = vrot.slane %v3035, 4
      %v3037 = vrot.slane %v2940, 5
      %v3038 = vsel %vm1508, %v3036, %v3037
      %v3039 = vrot.slane %v3037, 4
      %v3040 = vrot.slane %v2941, 5
      %v3041 = vsel %vm1508, %v3039, %v3040
      %v3042 = vrot.slane %v2942, 5
      %v3043 = vrot.slane %v3042, 4
      %v3044 = vrot.slane %v2943, 5
      %v3045 = vsel %vm1508, %v3043, %v3044
      %v3046 = vrot.slane %v3044, 4
      %v3047 = vrot.slane %v2944, 5
      %v3048 = vsel %vm1508, %v3046, %v3047
      %v3049 = vrot.slane %v2945, 5
      %v3050 = vrot.slane %v3049, 4
      %v3051 = vrot.slane %v2946, 5
      %v3052 = vsel %vm1508, %v3050, %v3051
      %v3053 = vrot.slane %v3051, 4
      %v3054 = vrot.slane %v2947, 5
      %v3055 = vsel %vm1508, %v3053, %v3054
      %v3056 = vrot.slane %v2948, 5
      %v3057 = vrot.slane %v3056, 4
      %v3058 = vrot.slane %v2949, 5
      %v3059 = vsel %vm1508, %v3057, %v3058
      %v3060 = vrot.slane %v3058, 4
      %v3061 = vrot.slane %v2950, 5
      %v3062 = vsel %vm1508, %v3060, %v3061
      %v3063 = vrot.slane %v2951, 5
      %v3064 = vrot.slane %v3063, 4
      %v3065 = vrot.slane %v2952, 5
      %v3066 = vsel %vm1508, %v3064, %v3065
      %v3067 = vrot.slane %v3065, 4
      %v3068 = vrot.slane %v2953, 5
      %v3069 = vsel %vm1508, %v3067, %v3068
      %v3070 = vrot.slane %v2954, 5
      %v3071 = vrot.slane %v3070, 4
      %v3072 = vrot.slane %v2955, 5
      %v3073 = vsel %vm1508, %v3071, %v3072
      %v3074 = vrot.slane %v3072, 4
      %v3075 = vrot.slane %v2956, 5
      %v3076 = vsel %vm1508, %v3074, %v3075
      %v3077 = vrot.slane %v2957, 5
      %v3078 = vrot.slane %v3077, 4
      %v3079 = vrot.slane %v2958, 5
      %v3080 = vsel %vm1508, %v3078, %v3079
      %v3081 = vrot.slane %v3079, 4
      %v3082 = vrot.slane %v2959, 5
      %v3083 = vsel %vm1508, %v3081, %v3082
      %v3084 = vrot.slane %v2960, 5
      %v3085 = vrot.slane %v3084, 4
      %v3086 = vrot.slane %v2961, 5
      %v3087 = vsel %vm1508, %v3085, %v3086
      %v3088 = vrot.slane %v3086, 4
      %v3089 = vrot.slane %v2962, 5
      %v3090 = vsel %vm1508, %v3088, %v3089
      %v3091 = vrot.slane %v2963, 5
      %v3092 = vrot.slane %v3091, 4
      %v3093 = vrot.slane %v2964, 5
      %v3094 = vsel %vm1508, %v3092, %v3093
      %v3095 = vrot.slane %v3093, 4
      %v3096 = vrot.slane %v2965, 5
      %v3097 = vsel %vm1508, %v3095, %v3096
      %v3098 = vrot.slane %v2966, 5
      %v3099 = vrot.slane %v3098, 4
      %v3100 = vrot.slane %v2967, 5
      %v3101 = vsel %vm1508, %v3099, %v3100
      %v3102 = vrot.slane %v3100, 4
      %v3103 = vrot.slane %v2968, 5
      %v3104 = vsel %vm1508, %v3102, %v3103
      %v3105 = vrot.slane %v2969, 5
      %v3106 = vrot.slane %v3105, 4
      %v3107 = vrot.slane %v2970, 5
      %v3108 = vsel %vm1508, %v3106, %v3107
      %v3109 = vrot.slane %v3107, 4
      %v3110 = vrot.slane %v2971, 5
      %v3111 = vsel %vm1508, %v3109, %v3110
      %v3112 = vrot.slane %v2972, 5
      %v3113 = vrot.slane %v3112, 4
      %v3114 = vrot.slane %v2973, 5
      %v3115 = vsel %vm1508, %v3113, %v3114
      %v3116 = vrot.slane %v3114, 4
      %v3117 = vrot.slane %v2974, 5
      %v3118 = vsel %vm1508, %v3116, %v3117
      %v3119 = vrot.slane %v2975, 5
      %v3120 = vrot.slane %v3119, 4
      %v3121 = vrot.slane %v2976, 5
      %v3122 = vsel %vm1508, %v3120, %v3121
      %v3123 = vrot.slane %v3121, 4
      %v3124 = vrot.slane %v2977, 5
      %v3125 = vsel %vm1508, %v3123, %v3124
      %v3126 = vrot.slane %v2978, 5
      %v3127 = vrot.slane %v3126, 4
      %v3128 = vrot.slane %v2979, 5
      %v3129 = vsel %vm1508, %v3127, %v3128
      %v3130 = vrot.slane %v3128, 4
      %v3131 = vrot.slane %v2980, 5
      %v3132 = vsel %vm1508, %v3130, %v3131
      %v3133 = vrot.slane %v2981, 5
      %v3134 = vrot.slane %v3133, 4
      %v3135 = vrot.slane %v2982, 5
      %v3136 = vsel %vm1508, %v3134, %v3135
      %v3137 = vrot.slane %v3135, 4
      %v3138 = vrot.slane %v2983, 5
      %v3139 = vsel %vm1508, %v3137, %v3138
      %v3140 = vrot.slane %v2984, 5
      %v3141 = vrot.slane %v3140, 4
      %v3142 = vrot.slane %v2985, 5
      %v3143 = vsel %vm1508, %v3141, %v3142
      %v3144 = vrot.slane %v3142, 4
      %v3145 = vrot.slane %v2986, 5
      %v3146 = vsel %vm1508, %v3144, %v3145
      %3147 = vrot.lane.b32.xlu0 %v3038, 16
      %v3148 = vpop.permute.xlu0 %3147
      %3149 = vrot.lane.b32.xlu0 %v3041, 16
      %v3150 = vpop.permute.xlu0 %3149
      %3151 = vrot.lane.b32.xlu0 %v3045, 16
      %v3152 = vpop.permute.xlu0 %3151
      %3153 = vrot.lane.b32.xlu0 %v3048, 16
      %v3154 = vpop.permute.xlu0 %3153
      %3155 = vrot.lane.b32.xlu0 %v3052, 16
      %v3156 = vpop.permute.xlu0 %3155
      %3157 = vrot.lane.b32.xlu0 %v3055, 16
      %v3158 = vpop.permute.xlu0 %3157
      %3159 = vrot.lane.b32.xlu0 %v3059, 16
      %v3160 = vpop.permute.xlu0 %3159
      %3161 = vrot.lane.b32.xlu0 %v3062, 16
      %v3162 = vpop.permute.xlu0 %3161
      %3163 = vrot.lane.b32.xlu0 %v3066, 16
      %v3164 = vpop.permute.xlu0 %3163
      %3165 = vrot.lane.b32.xlu0 %v3069, 16
      %v3166 = vpop.permute.xlu0 %3165
      %3167 = vrot.lane.b32.xlu0 %v3073, 16
      %v3168 = vpop.permute.xlu0 %3167
      %3169 = vrot.lane.b32.xlu0 %v3076, 16
      %v3170 = vpop.permute.xlu0 %3169
      %3171 = vrot.lane.b32.xlu0 %v3080, 16
      %v3172 = vpop.permute.xlu0 %3171
      %3173 = vrot.lane.b32.xlu0 %v3083, 16
      %v3174 = vpop.permute.xlu0 %3173
      %3175 = vrot.lane.b32.xlu0 %v3087, 16
      %v3176 = vpop.permute.xlu0 %3175
      %3177 = vrot.lane.b32.xlu0 %v3090, 16
      %v3178 = vpop.permute.xlu0 %3177
      %3179 = vrot.lane.b32.xlu0 %v3094, 16
      %v3180 = vpop.permute.xlu0 %3179
      %3181 = vrot.lane.b32.xlu0 %v3097, 16
      %v3182 = vpop.permute.xlu0 %3181
      %3183 = vrot.lane.b32.xlu0 %v3101, 16
      %v3184 = vpop.permute.xlu0 %3183
      %3185 = vrot.lane.b32.xlu0 %v3104, 16
      %v3186 = vpop.permute.xlu0 %3185
      %3187 = vrot.lane.b32.xlu0 %v3108, 16
      %v3188 = vpop.permute.xlu0 %3187
      %3189 = vrot.lane.b32.xlu0 %v3111, 16
      %v3190 = vpop.permute.xlu0 %3189
      %3191 = vrot.lane.b32.xlu0 %v3115, 16
      %v3192 = vpop.permute.xlu0 %3191
      %3193 = vrot.lane.b32.xlu0 %v3118, 16
      %v3194 = vpop.permute.xlu0 %3193
      %3195 = vrot.lane.b32.xlu0 %v3122, 16
      %v3196 = vpop.permute.xlu0 %3195
      %3197 = vrot.lane.b32.xlu0 %v3125, 16
      %v3198 = vpop.permute.xlu0 %3197
      %3199 = vrot.lane.b32.xlu0 %v3129, 16
      %v3200 = vpop.permute.xlu0 %3199
      %3201 = vrot.lane.b32.xlu0 %v3132, 16
      %v3202 = vpop.permute.xlu0 %3201
      %3203 = vrot.lane.b32.xlu0 %v3136, 16
      %v3204 = vpop.permute.xlu0 %3203
      %3205 = vrot.lane.b32.xlu0 %v3139, 16
      %v3206 = vpop.permute.xlu0 %3205
      %3207 = vrot.lane.b32.xlu0 %v3143, 16
      %v3208 = vpop.permute.xlu0 %3207
      %3209 = vrot.lane.b32.xlu0 %v3146, 16
      %v3210 = vpop.permute.xlu0 %3209
      %vm3243 = vcmask 158848
      %3244 = vst.msk [vmem:[#allocation3] sm:$0xf] %vm3243, %v3148
      %3245 = vst.msk [vmem:[#allocation3 + $0x4] sm:$0xf] %vm3243, %v3150
      %3246 = vst.msk [vmem:[#allocation3 + $0x8] sm:$0xf] %vm3243, %v3152
      %3247 = vst.msk [vmem:[#allocation3 + $0xc] sm:$0xf] %vm3243, %v3154
      %3248 = vst.msk [vmem:[#allocation3 + $0x10] sm:$0xf] %vm3243, %v3156
      %3249 = vst.msk [vmem:[#allocation3 + $0x14] sm:$0xf] %vm3243, %v3158
      %3250 = vst.msk [vmem:[#allocation3 + $0x18] sm:$0xf] %vm3243, %v3160
      %3251 = vst.msk [vmem:[#allocation3 + $0x1c] sm:$0xf] %vm3243, %v3162
      %3252 = vst.msk [vmem:[#allocation3 + $0x20] sm:$0xf] %vm3243, %v3164
      %3253 = vst.msk [vmem:[#allocation3 + $0x24] sm:$0xf] %vm3243, %v3166
      %3254 = vst.msk [vmem:[#allocation3 + $0x28] sm:$0xf] %vm3243, %v3168
      %3255 = vst.msk [vmem:[#allocation3 + $0x2c] sm:$0xf] %vm3243, %v3170
      %3256 = vst.msk [vmem:[#allocation3 + $0x30] sm:$0xf] %vm3243, %v3172
      %3257 = vst.msk [vmem:[#allocation3 + $0x34] sm:$0xf] %vm3243, %v3174
      %3258 = vst.msk [vmem:[#allocation3 + $0x38] sm:$0xf] %vm3243, %v3176
      %3259 = vst.msk [vmem:[#allocation3 + $0x3c] sm:$0xf] %vm3243, %v3178
      %3260 = vst.msk [vmem:[#allocation3 + $0x40] sm:$0xf] %vm3243, %v3180
      %3261 = vst.msk [vmem:[#allocation3 + $0x44] sm:$0xf] %vm3243, %v3182
      %3262 = vst.msk [vmem:[#allocation3 + $0x48] sm:$0xf] %vm3243, %v3184
      %3263 = vst.msk [vmem:[#allocation3 + $0x4c] sm:$0xf] %vm3243, %v3186
      %3264 = vst.msk [vmem:[#allocation3 + $0x50] sm:$0xf] %vm3243, %v3188
      %3265 = vst.msk [vmem:[#allocation3 + $0x54] sm:$0xf] %vm3243, %v3190
      %3266 = vst.msk [vmem:[#allocation3 + $0x58] sm:$0xf] %vm3243, %v3192
      %3267 = vst.msk [vmem:[#allocation3 + $0x5c] sm:$0xf] %vm3243, %v3194
      %3268 = vst.msk [vmem:[#allocation3 + $0x60] sm:$0xf] %vm3243, %v3196
      %3269 = vst.msk [vmem:[#allocation3 + $0x64] sm:$0xf] %vm3243, %v3198
      %3270 = vst.msk [vmem:[#allocation3 + $0x68] sm:$0xf] %vm3243, %v3200
      %3271 = vst.msk [vmem:[#allocation3 + $0x6c] sm:$0xf] %vm3243, %v3202
      %3272 = vst.msk [vmem:[#allocation3 + $0x70] sm:$0xf] %vm3243, %v3204
      %3273 = vst.msk [vmem:[#allocation3 + $0x74] sm:$0xf] %vm3243, %v3206
      %3274 = vst.msk [vmem:[#allocation3 + $0x78] sm:$0xf] %vm3243, %v3208
      %3275 = vst.msk [vmem:[#allocation3 + $0x7c] sm:$0xf] %vm3243, %v3210
      %v3276 = vld [vmem:[%s861] sm:$0xe]
      %v3277 = vld [vmem:[%s861 + $0x4] sm:$0xf]
      %v3278 = vld [vmem:[%s861 + $0x8] sm:$0x3]
      %v3279 = vld [vmem:[%s861 + $0xc] sm:$0xe]
      %v3280 = vld [vmem:[%s861 + $0x10] sm:$0xf]
      %v3281 = vld [vmem:[%s861 + $0x14] sm:$0x3]
      %v3282 = vld [vmem:[%s861 + $0x18] sm:$0xe]
      %v3283 = vld [vmem:[%s861 + $0x1c] sm:$0xf]
      %v3284 = vld [vmem:[%s861 + $0x20] sm:$0x3]
      %v3285 = vld [vmem:[%s861 + $0x24] sm:$0xe]
      %v3286 = vld [vmem:[%s861 + $0x28] sm:$0xf]
      %v3287 = vld [vmem:[%s861 + $0x2c] sm:$0x3]
      %v3288 = vld [vmem:[%s861 + $0x30] sm:$0xe]
      %v3289 = vld [vmem:[%s861 + $0x34] sm:$0xf]
      %v3290 = vld [vmem:[%s861 + $0x38] sm:$0x3]
      %v3291 = vld [vmem:[%s861 + $0x3c] sm:$0xe]
      %v3292 = vld [vmem:[%s861 + $0x40] sm:$0xf]
      %v3293 = vld [vmem:[%s861 + $0x44] sm:$0x3]
      %v3294 = vld [vmem:[%s861 + $0x48] sm:$0xe]
      %v3295 = vld [vmem:[%s861 + $0x4c] sm:$0xf]
      %v3296 = vld [vmem:[%s861 + $0x50] sm:$0x3]
      %v3297 = vld [vmem:[%s861 + $0x54] sm:$0xe]
      %v3298 = vld [vmem:[%s861 + $0x58] sm:$0xf]
      %v3299 = vld [vmem:[%s861 + $0x5c] sm:$0x3]
      %v3300 = vld [vmem:[%s861 + $0x60] sm:$0xe]
      %v3301 = vld [vmem:[%s861 + $0x64] sm:$0xf]
      %v3302 = vld [vmem:[%s861 + $0x68] sm:$0x3]
      %v3303 = vld [vmem:[%s861 + $0x6c] sm:$0xe]
      %v3304 = vld [vmem:[%s861 + $0x70] sm:$0xf]
      %v3305 = vld [vmem:[%s861 + $0x74] sm:$0x3]
      %v3306 = vld [vmem:[%s861 + $0x78] sm:$0xe]
      %v3307 = vld [vmem:[%s861 + $0x7c] sm:$0xf]
      %v3308 = vld [vmem:[%s861 + $0x80] sm:$0x3]
      %v3309 = vld [vmem:[%s861 + $0x84] sm:$0xe]
      %v3310 = vld [vmem:[%s861 + $0x88] sm:$0xf]
      %v3311 = vld [vmem:[%s861 + $0x8c] sm:$0x3]
      %v3312 = vld [vmem:[%s861 + $0x90] sm:$0xe]
      %v3313 = vld [vmem:[%s861 + $0x94] sm:$0xf]
      %v3314 = vld [vmem:[%s861 + $0x98] sm:$0x3]
      %v3315 = vld [vmem:[%s861 + $0x9c] sm:$0xe]
      %v3316 = vld [vmem:[%s861 + $0xa0] sm:$0xf]
      %v3317 = vld [vmem:[%s861 + $0xa4] sm:$0x3]
      %v3318 = vld [vmem:[%s861 + $0xa8] sm:$0xe]
      %v3319 = vld [vmem:[%s861 + $0xac] sm:$0xf]
      %v3320 = vld [vmem:[%s861 + $0xb0] sm:$0x3]
      %v3321 = vld [vmem:[%s861 + $0xb4] sm:$0xe]
      %v3322 = vld [vmem:[%s861 + $0xb8] sm:$0xf]
      %v3323 = vld [vmem:[%s861 + $0xbc] sm:$0x3]
      %v3325 = vshrl.u32 %v3276, 16
      %v3327 = vrot.slane %v3325, 5
      %v3328 = vshll.u32 %v3276, 16
      %v3330 = vrot.slane %v3328, 6
      %v3331 = vor.u32 %v3327, %v3330
      %v3332 = vrot.slane %v3331, 4
      %v3334 = vshrl.u32 %v3277, 16
      %v3336 = vrot.slane %v3334, 5
      %v3337 = vshll.u32 %v3277, 16
      %v3339 = vrot.slane %v3337, 6
      %v3340 = vor.u32 %v3336, %v3339
      %v3341 = vsel %vm1800, %v3332, %v3340
      %v3342 = vrot.slane %v3340, 4
      %v3344 = vshrl.u32 %v3278, 16
      %v3346 = vrot.slane %v3344, 5
      %v3347 = vshll.u32 %v3278, 16
      %v3349 = vrot.slane %v3347, 6
      %v3350 = vor.u32 %v3346, %v3349
      %v3351 = vsel %vm1800, %v3342, %v3350
      %v3353 = vshrl.u32 %v3279, 16
      %v3355 = vrot.slane %v3353, 5
      %v3356 = vshll.u32 %v3279, 16
      %v3358 = vrot.slane %v3356, 6
      %v3359 = vor.u32 %v3355, %v3358
      %v3360 = vrot.slane %v3359, 4
      %v3362 = vshrl.u32 %v3280, 16
      %v3364 = vrot.slane %v3362, 5
      %v3365 = vshll.u32 %v3280, 16
      %v3367 = vrot.slane %v3365, 6
      %v3368 = vor.u32 %v3364, %v3367
      %v3369 = vsel %vm1800, %v3360, %v3368
      %v3370 = vrot.slane %v3368, 4
      %v3372 = vshrl.u32 %v3281, 16
      %v3374 = vrot.slane %v3372, 5
      %v3375 = vshll.u32 %v3281, 16
      %v3377 = vrot.slane %v3375, 6
      %v3378 = vor.u32 %v3374, %v3377
      %v3379 = vsel %vm1800, %v3370, %v3378
      %v3381 = vshrl.u32 %v3282, 16
      %v3383 = vrot.slane %v3381, 5
      %v3384 = vshll.u32 %v3282, 16
      %v3386 = vrot.slane %v3384, 6
      %v3387 = vor.u32 %v3383, %v3386
      %v3388 = vrot.slane %v3387, 4
      %v3390 = vshrl.u32 %v3283, 16
      %v3392 = vrot.slane %v3390, 5
      %v3393 = vshll.u32 %v3283, 16
      %v3395 = vrot.slane %v3393, 6
      %v3396 = vor.u32 %v3392, %v3395
      %v3397 = vsel %vm1800, %v3388, %v3396
      %v3398 = vrot.slane %v3396, 4
      %v3400 = vshrl.u32 %v3284, 16
      %v3402 = vrot.slane %v3400, 5
      %v3403 = vshll.u32 %v3284, 16
      %v3405 = vrot.slane %v3403, 6
      %v3406 = vor.u32 %v3402, %v3405
      %v3407 = vsel %vm1800, %v3398, %v3406
      %v3409 = vshrl.u32 %v3285, 16
      %v3411 = vrot.slane %v3409, 5
      %v3412 = vshll.u32 %v3285, 16
      %v3414 = vrot.slane %v3412, 6
      %v3415 = vor.u32 %v3411, %v3414
      %v3416 = vrot.slane %v3415, 4
      %v3418 = vshrl.u32 %v3286, 16
      %v3420 = vrot.slane %v3418, 5
      %v3421 = vshll.u32 %v3286, 16
      %v3423 = vrot.slane %v3421, 6
      %v3424 = vor.u32 %v3420, %v3423
      %v3425 = vsel %vm1800, %v3416, %v3424
      %v3426 = vrot.slane %v3424, 4
      %v3428 = vshrl.u32 %v3287, 16
      %v3430 = vrot.slane %v3428, 5
      %v3431 = vshll.u32 %v3287, 16
      %v3433 = vrot.slane %v3431, 6
      %v3434 = vor.u32 %v3430, %v3433
      %v3435 = vsel %vm1800, %v3426, %v3434
      %v3437 = vshrl.u32 %v3288, 16
      %v3439 = vrot.slane %v3437, 5
      %v3440 = vshll.u32 %v3288, 16
      %v3442 = vrot.slane %v3440, 6
      %v3443 = vor.u32 %v3439, %v3442
      %v3444 = vrot.slane %v3443, 4
      %v3446 = vshrl.u32 %v3289, 16
      %v3448 = vrot.slane %v3446, 5
      %v3449 = vshll.u32 %v3289, 16
      %v3451 = vrot.slane %v3449, 6
      %v3452 = vor.u32 %v3448, %v3451
      %v3453 = vsel %vm1800, %v3444, %v3452
      %v3454 = vrot.slane %v3452, 4
      %v3456 = vshrl.u32 %v3290, 16
      %v3458 = vrot.slane %v3456, 5
      %v3459 = vshll.u32 %v3290, 16
      %v3461 = vrot.slane %v3459, 6
      %v3462 = vor.u32 %v3458, %v3461
      %v3463 = vsel %vm1800, %v3454, %v3462
      %v3465 = vshrl.u32 %v3291, 16
      %v3467 = vrot.slane %v3465, 5
      %v3468 = vshll.u32 %v3291, 16
      %v3470 = vrot.slane %v3468, 6
      %v3471 = vor.u32 %v3467, %v3470
      %v3472 = vrot.slane %v3471, 4
      %v3474 = vshrl.u32 %v3292, 16
      %v3476 = vrot.slane %v3474, 5
      %v3477 = vshll.u32 %v3292, 16
      %v3479 = vrot.slane %v3477, 6
      %v3480 = vor.u32 %v3476, %v3479
      %v3481 = vsel %vm1800, %v3472, %v3480
      %v3482 = vrot.slane %v3480, 4
      %v3484 = vshrl.u32 %v3293, 16
      %v3486 = vrot.slane %v3484, 5
      %v3487 = vshll.u32 %v3293, 16
      %v3489 = vrot.slane %v3487, 6
      %v3490 = vor.u32 %v3486, %v3489
      %v3491 = vsel %vm1800, %v3482, %v3490
      %v3493 = vshrl.u32 %v3294, 16
      %v3495 = vrot.slane %v3493, 5
      %v3496 = vshll.u32 %v3294, 16
      %v3498 = vrot.slane %v3496, 6
      %v3499 = vor.u32 %v3495, %v3498
      %v3500 = vrot.slane %v3499, 4
      %v3502 = vshrl.u32 %v3295, 16
      %v3504 = vrot.slane %v3502, 5
      %v3505 = vshll.u32 %v3295, 16
      %v3507 = vrot.slane %v3505, 6
      %v3508 = vor.u32 %v3504, %v3507
      %v3509 = vsel %vm1800, %v3500, %v3508
      %v3510 = vrot.slane %v3508, 4
      %v3512 = vshrl.u32 %v3296, 16
      %v3514 = vrot.slane %v3512, 5
      %v3515 = vshll.u32 %v3296, 16
      %v3517 = vrot.slane %v3515, 6
      %v3518 = vor.u32 %v3514, %v3517
      %v3519 = vsel %vm1800, %v3510, %v3518
      %v3521 = vshrl.u32 %v3297, 16
      %v3523 = vrot.slane %v3521, 5
      %v3524 = vshll.u32 %v3297, 16
      %v3526 = vrot.slane %v3524, 6
      %v3527 = vor.u32 %v3523, %v3526
      %v3528 = vrot.slane %v3527, 4
      %v3530 = vshrl.u32 %v3298, 16
      %v3532 = vrot.slane %v3530, 5
      %v3533 = vshll.u32 %v3298, 16
      %v3535 = vrot.slane %v3533, 6
      %v3536 = vor.u32 %v3532, %v3535
      %v3537 = vsel %vm1800, %v3528, %v3536
      %v3538 = vrot.slane %v3536, 4
      %v3540 = vshrl.u32 %v3299, 16
      %v3542 = vrot.slane %v3540, 5
      %v3543 = vshll.u32 %v3299, 16
      %v3545 = vrot.slane %v3543, 6
      %v3546 = vor.u32 %v3542, %v3545
      %v3547 = vsel %vm1800, %v3538, %v3546
      %v3549 = vshrl.u32 %v3300, 16
      %v3551 = vrot.slane %v3549, 5
      %v3552 = vshll.u32 %v3300, 16
      %v3554 = vrot.slane %v3552, 6
      %v3555 = vor.u32 %v3551, %v3554
      %v3556 = vrot.slane %v3555, 4
      %v3558 = vshrl.u32 %v3301, 16
      %v3560 = vrot.slane %v3558, 5
      %v3561 = vshll.u32 %v3301, 16
      %v3563 = vrot.slane %v3561, 6
      %v3564 = vor.u32 %v3560, %v3563
      %v3565 = vsel %vm1800, %v3556, %v3564
      %v3566 = vrot.slane %v3564, 4
      %v3568 = vshrl.u32 %v3302, 16
      %v3570 = vrot.slane %v3568, 5
      %v3571 = vshll.u32 %v3302, 16
      %v3573 = vrot.slane %v3571, 6
      %v3574 = vor.u32 %v3570, %v3573
      %v3575 = vsel %vm1800, %v3566, %v3574
      %v3577 = vshrl.u32 %v3303, 16
      %v3579 = vrot.slane %v3577, 5
      %v3580 = vshll.u32 %v3303, 16
      %v3582 = vrot.slane %v3580, 6
      %v3583 = vor.u32 %v3579, %v3582
      %v3584 = vrot.slane %v3583, 4
      %v3586 = vshrl.u32 %v3304, 16
      %v3588 = vrot.slane %v3586, 5
      %v3589 = vshll.u32 %v3304, 16
      %v3591 = vrot.slane %v3589, 6
      %v3592 = vor.u32 %v3588, %v3591
      %v3593 = vsel %vm1800, %v3584, %v3592
      %v3594 = vrot.slane %v3592, 4
      %v3596 = vshrl.u32 %v3305, 16
      %v3598 = vrot.slane %v3596, 5
      %v3599 = vshll.u32 %v3305, 16
      %v3601 = vrot.slane %v3599, 6
      %v3602 = vor.u32 %v3598, %v3601
      %v3603 = vsel %vm1800, %v3594, %v3602
      %v3605 = vshrl.u32 %v3306, 16
      %v3607 = vrot.slane %v3605, 5
      %v3608 = vshll.u32 %v3306, 16
      %v3610 = vrot.slane %v3608, 6
      %v3611 = vor.u32 %v3607, %v3610
      %v3612 = vrot.slane %v3611, 4
      %v3614 = vshrl.u32 %v3307, 16
      %v3616 = vrot.slane %v3614, 5
      %v3617 = vshll.u32 %v3307, 16
      %v3619 = vrot.slane %v3617, 6
      %v3620 = vor.u32 %v3616, %v3619
      %v3621 = vsel %vm1800, %v3612, %v3620
      %v3622 = vrot.slane %v3620, 4
      %v3624 = vshrl.u32 %v3308, 16
      %v3626 = vrot.slane %v3624, 5
      %v3627 = vshll.u32 %v3308, 16
      %v3629 = vrot.slane %v3627, 6
      %v3630 = vor.u32 %v3626, %v3629
      %v3631 = vsel %vm1800, %v3622, %v3630
      %v3633 = vshrl.u32 %v3309, 16
      %v3635 = vrot.slane %v3633, 5
      %v3636 = vshll.u32 %v3309, 16
      %v3638 = vrot.slane %v3636, 6
      %v3639 = vor.u32 %v3635, %v3638
      %v3640 = vrot.slane %v3639, 4
      %v3642 = vshrl.u32 %v3310, 16
      %v3644 = vrot.slane %v3642, 5
      %v3645 = vshll.u32 %v3310, 16
      %v3647 = vrot.slane %v3645, 6
      %v3648 = vor.u32 %v3644, %v3647
      %v3649 = vsel %vm1800, %v3640, %v3648
      %v3650 = vrot.slane %v3648, 4
      %v3652 = vshrl.u32 %v3311, 16
      %v3654 = vrot.slane %v3652, 5
      %v3655 = vshll.u32 %v3311, 16
      %v3657 = vrot.slane %v3655, 6
      %v3658 = vor.u32 %v3654, %v3657
      %v3659 = vsel %vm1800, %v3650, %v3658
      %v3661 = vshrl.u32 %v3312, 16
      %v3663 = vrot.slane %v3661, 5
      %v3664 = vshll.u32 %v3312, 16
      %v3666 = vrot.slane %v3664, 6
      %v3667 = vor.u32 %v3663, %v3666
      %v3668 = vrot.slane %v3667, 4
      %v3670 = vshrl.u32 %v3313, 16
      %v3672 = vrot.slane %v3670, 5
      %v3673 = vshll.u32 %v3313, 16
      %v3675 = vrot.slane %v3673, 6
      %v3676 = vor.u32 %v3672, %v3675
      %v3677 = vsel %vm1800, %v3668, %v3676
      %v3678 = vrot.slane %v3676, 4
      %v3680 = vshrl.u32 %v3314, 16
      %v3682 = vrot.slane %v3680, 5
      %v3683 = vshll.u32 %v3314, 16
      %v3685 = vrot.slane %v3683, 6
      %v3686 = vor.u32 %v3682, %v3685
      %v3687 = vsel %vm1800, %v3678, %v3686
      %v3689 = vshrl.u32 %v3315, 16
      %v3691 = vrot.slane %v3689, 5
      %v3692 = vshll.u32 %v3315, 16
      %v3694 = vrot.slane %v3692, 6
      %v3695 = vor.u32 %v3691, %v3694
      %v3696 = vrot.slane %v3695, 4
      %v3698 = vshrl.u32 %v3316, 16
      %v3700 = vrot.slane %v3698, 5
      %v3701 = vshll.u32 %v3316, 16
      %v3703 = vrot.slane %v3701, 6
      %v3704 = vor.u32 %v3700, %v3703
      %v3705 = vsel %vm1800, %v3696, %v3704
      %v3706 = vrot.slane %v3704, 4
      %v3708 = vshrl.u32 %v3317, 16
      %v3710 = vrot.slane %v3708, 5
      %v3711 = vshll.u32 %v3317, 16
      %v3713 = vrot.slane %v3711, 6
      %v3714 = vor.u32 %v3710, %v3713
      %v3715 = vsel %vm1800, %v3706, %v3714
      %v3717 = vshrl.u32 %v3318, 16
      %v3719 = vrot.slane %v3717, 5
      %v3720 = vshll.u32 %v3318, 16
      %v3722 = vrot.slane %v3720, 6
      %v3723 = vor.u32 %v3719, %v3722
      %v3724 = vrot.slane %v3723, 4
      %v3726 = vshrl.u32 %v3319, 16
      %v3728 = vrot.slane %v3726, 5
      %v3729 = vshll.u32 %v3319, 16
      %v3731 = vrot.slane %v3729, 6
      %v3732 = vor.u32 %v3728, %v3731
      %v3733 = vsel %vm1800, %v3724, %v3732
      %v3734 = vrot.slane %v3732, 4
      %v3736 = vshrl.u32 %v3320, 16
      %v3738 = vrot.slane %v3736, 5
      %v3739 = vshll.u32 %v3320, 16
      %v3741 = vrot.slane %v3739, 6
      %v3742 = vor.u32 %v3738, %v3741
      %v3743 = vsel %vm1800, %v3734, %v3742
      %v3745 = vshrl.u32 %v3321, 16
      %v3747 = vrot.slane %v3745, 5
      %v3748 = vshll.u32 %v3321, 16
      %v3750 = vrot.slane %v3748, 6
      %v3751 = vor.u32 %v3747, %v3750
      %v3752 = vrot.slane %v3751, 4
      %v3754 = vshrl.u32 %v3322, 16
      %v3756 = vrot.slane %v3754, 5
      %v3757 = vshll.u32 %v3322, 16
      %v3759 = vrot.slane %v3757, 6
      %v3760 = vor.u32 %v3756, %v3759
      %v3761 = vsel %vm1800, %v3752, %v3760
      %v3762 = vrot.slane %v3760, 4
      %v3764 = vshrl.u32 %v3323, 16
      %v3766 = vrot.slane %v3764, 5
      %v3767 = vshll.u32 %v3323, 16
      %v3769 = vrot.slane %v3767, 6
      %v3770 = vor.u32 %v3766, %v3769
      %v3771 = vsel %vm1800, %v3762, %v3770
      %3772 = vrot.lane.b32.xlu0 %v3341, 20
      %v3773 = vpop.permute.xlu0 %3772
      %3774 = vrot.lane.b32.xlu0 %v3351, 20
      %v3775 = vpop.permute.xlu0 %3774
      %3776 = vrot.lane.b32.xlu0 %v3369, 20
      %v3777 = vpop.permute.xlu0 %3776
      %3778 = vrot.lane.b32.xlu0 %v3379, 20
      %v3779 = vpop.permute.xlu0 %3778
      %3780 = vrot.lane.b32.xlu0 %v3397, 20
      %v3781 = vpop.permute.xlu0 %3780
      %3782 = vrot.lane.b32.xlu0 %v3407, 20
      %v3783 = vpop.permute.xlu0 %3782
      %3784 = vrot.lane.b32.xlu0 %v3425, 20
      %v3785 = vpop.permute.xlu0 %3784
      %3786 = vrot.lane.b32.xlu0 %v3435, 20
      %v3787 = vpop.permute.xlu0 %3786
      %3788 = vrot.lane.b32.xlu0 %v3453, 20
      %v3789 = vpop.permute.xlu0 %3788
      %3790 = vrot.lane.b32.xlu0 %v3463, 20
      %v3791 = vpop.permute.xlu0 %3790
      %3792 = vrot.lane.b32.xlu0 %v3481, 20
      %v3793 = vpop.permute.xlu0 %3792
      %3794 = vrot.lane.b32.xlu0 %v3491, 20
      %v3795 = vpop.permute.xlu0 %3794
      %3796 = vrot.lane.b32.xlu0 %v3509, 20
      %v3797 = vpop.permute.xlu0 %3796
      %3798 = vrot.lane.b32.xlu0 %v3519, 20
      %v3799 = vpop.permute.xlu0 %3798
      %3800 = vrot.lane.b32.xlu0 %v3537, 20
      %v3801 = vpop.permute.xlu0 %3800
      %3802 = vrot.lane.b32.xlu0 %v3547, 20
      %v3803 = vpop.permute.xlu0 %3802
      %3804 = vrot.lane.b32.xlu0 %v3565, 20
      %v3805 = vpop.permute.xlu0 %3804
      %3806 = vrot.lane.b32.xlu0 %v3575, 20
      %v3807 = vpop.permute.xlu0 %3806
      %3808 = vrot.lane.b32.xlu0 %v3593, 20
      %v3809 = vpop.permute.xlu0 %3808
      %3810 = vrot.lane.b32.xlu0 %v3603, 20
      %v3811 = vpop.permute.xlu0 %3810
      %3812 = vrot.lane.b32.xlu0 %v3621, 20
      %v3813 = vpop.permute.xlu0 %3812
      %3814 = vrot.lane.b32.xlu0 %v3631, 20
      %v3815 = vpop.permute.xlu0 %3814
      %3816 = vrot.lane.b32.xlu0 %v3649, 20
      %v3817 = vpop.permute.xlu0 %3816
      %3818 = vrot.lane.b32.xlu0 %v3659, 20
      %v3819 = vpop.permute.xlu0 %3818
      %3820 = vrot.lane.b32.xlu0 %v3677, 20
      %v3821 = vpop.permute.xlu0 %3820
      %3822 = vrot.lane.b32.xlu0 %v3687, 20
      %v3823 = vpop.permute.xlu0 %3822
      %3824 = vrot.lane.b32.xlu0 %v3705, 20
      %v3825 = vpop.permute.xlu0 %3824
      %3826 = vrot.lane.b32.xlu0 %v3715, 20
      %v3827 = vpop.permute.xlu0 %3826
      %3828 = vrot.lane.b32.xlu0 %v3733, 20
      %v3829 = vpop.permute.xlu0 %3828
      %3830 = vrot.lane.b32.xlu0 %v3743, 20
      %v3831 = vpop.permute.xlu0 %3830
      %3832 = vrot.lane.b32.xlu0 %v3761, 20
      %v3833 = vpop.permute.xlu0 %3832
      %3834 = vrot.lane.b32.xlu0 %v3771, 20
      %v3835 = vpop.permute.xlu0 %3834
      %vm3868 = vcmask 191648
      %3869 = vst.msk [vmem:[#allocation3] sm:$0xf] %vm3868, %v3773
      %3870 = vst.msk [vmem:[#allocation3 + $0x4] sm:$0xf] %vm3868, %v3775
      %3871 = vst.msk [vmem:[#allocation3 + $0x8] sm:$0xf] %vm3868, %v3777
      %3872 = vst.msk [vmem:[#allocation3 + $0xc] sm:$0xf] %vm3868, %v3779
      %3873 = vst.msk [vmem:[#allocation3 + $0x10] sm:$0xf] %vm3868, %v3781
      %3874 = vst.msk [vmem:[#allocation3 + $0x14] sm:$0xf] %vm3868, %v3783
      %3875 = vst.msk [vmem:[#allocation3 + $0x18] sm:$0xf] %vm3868, %v3785
      %3876 = vst.msk [vmem:[#allocation3 + $0x1c] sm:$0xf] %vm3868, %v3787
      %3877 = vst.msk [vmem:[#allocation3 + $0x20] sm:$0xf] %vm3868, %v3789
      %3878 = vst.msk [vmem:[#allocation3 + $0x24] sm:$0xf] %vm3868, %v3791
      %3879 = vst.msk [vmem:[#allocation3 + $0x28] sm:$0xf] %vm3868, %v3793
      %3880 = vst.msk [vmem:[#allocation3 + $0x2c] sm:$0xf] %vm3868, %v3795
      %3881 = vst.msk [vmem:[#allocation3 + $0x30] sm:$0xf] %vm3868, %v3797
      %3882 = vst.msk [vmem:[#allocation3 + $0x34] sm:$0xf] %vm3868, %v3799
      %3883 = vst.msk [vmem:[#allocation3 + $0x38] sm:$0xf] %vm3868, %v3801
      %3884 = vst.msk [vmem:[#allocation3 + $0x3c] sm:$0xf] %vm3868, %v3803
      %3885 = vst.msk [vmem:[#allocation3 + $0x40] sm:$0xf] %vm3868, %v3805
      %3886 = vst.msk [vmem:[#allocation3 + $0x44] sm:$0xf] %vm3868, %v3807
      %3887 = vst.msk [vmem:[#allocation3 + $0x48] sm:$0xf] %vm3868, %v3809
      %3888 = vst.msk [vmem:[#allocation3 + $0x4c] sm:$0xf] %vm3868, %v3811
      %3889 = vst.msk [vmem:[#allocation3 + $0x50] sm:$0xf] %vm3868, %v3813
      %3890 = vst.msk [vmem:[#allocation3 + $0x54] sm:$0xf] %vm3868, %v3815
      %3891 = vst.msk [vmem:[#allocation3 + $0x58] sm:$0xf] %vm3868, %v3817
      %3892 = vst.msk [vmem:[#allocation3 + $0x5c] sm:$0xf] %vm3868, %v3819
      %3893 = vst.msk [vmem:[#allocation3 + $0x60] sm:$0xf] %vm3868, %v3821
      %3894 = vst.msk [vmem:[#allocation3 + $0x64] sm:$0xf] %vm3868, %v3823
      %3895 = vst.msk [vmem:[#allocation3 + $0x68] sm:$0xf] %vm3868, %v3825
      %3896 = vst.msk [vmem:[#allocation3 + $0x6c] sm:$0xf] %vm3868, %v3827
      %3897 = vst.msk [vmem:[#allocation3 + $0x70] sm:$0xf] %vm3868, %v3829
      %3898 = vst.msk [vmem:[#allocation3 + $0x74] sm:$0xf] %vm3868, %v3831
      %3899 = vst.msk [vmem:[#allocation3 + $0x78] sm:$0xf] %vm3868, %v3833
      %3900 = vst.msk [vmem:[#allocation3 + $0x7c] sm:$0xf] %vm3868, %v3835
      %s3901 = scalar_lea.vmem [#allocation2], 24
      %v3902 = vld [vmem:[%s3901] sm:$0xf]
      %v3903 = vld [vmem:[%s3901 + $0x4] sm:$0xf]
      %v3904 = vld [vmem:[%s3901 + $0x8] sm:$0x1]
      %v3905 = vld [vmem:[%s3901 + $0xc] sm:$0xf]
      %v3906 = vld [vmem:[%s3901 + $0x10] sm:$0xf]
      %v3907 = vld [vmem:[%s3901 + $0x14] sm:$0x1]
      %v3908 = vld [vmem:[%s3901 + $0x18] sm:$0xf]
      %v3909 = vld [vmem:[%s3901 + $0x1c] sm:$0xf]
      %v3910 = vld [vmem:[%s3901 + $0x20] sm:$0x1]
      %v3911 = vld [vmem:[%s3901 + $0x24] sm:$0xf]
      %v3912 = vld [vmem:[%s3901 + $0x28] sm:$0xf]
      %v3913 = vld [vmem:[%s3901 + $0x2c] sm:$0x1]
      %v3914 = vld [vmem:[%s3901 + $0x30] sm:$0xf]
      %v3915 = vld [vmem:[%s3901 + $0x34] sm:$0xf]
      %v3916 = vld [vmem:[%s3901 + $0x38] sm:$0x1]
      %v3917 = vld [vmem:[%s3901 + $0x3c] sm:$0xf]
      %v3918 = vld [vmem:[%s3901 + $0x40] sm:$0xf]
      %v3919 = vld [vmem:[%s3901 + $0x44] sm:$0x1]
      %v3920 = vld [vmem:[%s3901 + $0x48] sm:$0xf]
      %v3921 = vld [vmem:[%s3901 + $0x4c] sm:$0xf]
      %v3922 = vld [vmem:[%s3901 + $0x50] sm:$0x1]
      %v3923 = vld [vmem:[%s3901 + $0x54] sm:$0xf]
      %v3924 = vld [vmem:[%s3901 + $0x58] sm:$0xf]
      %v3925 = vld [vmem:[%s3901 + $0x5c] sm:$0x1]
      %v3926 = vld [vmem:[%s3901 + $0x60] sm:$0xf]
      %v3927 = vld [vmem:[%s3901 + $0x64] sm:$0xf]
      %v3928 = vld [vmem:[%s3901 + $0x68] sm:$0x1]
      %v3929 = vld [vmem:[%s3901 + $0x6c] sm:$0xf]
      %v3930 = vld [vmem:[%s3901 + $0x70] sm:$0xf]
      %v3931 = vld [vmem:[%s3901 + $0x74] sm:$0x1]
      %v3932 = vld [vmem:[%s3901 + $0x78] sm:$0xf]
      %v3933 = vld [vmem:[%s3901 + $0x7c] sm:$0xf]
      %v3934 = vld [vmem:[%s3901 + $0x80] sm:$0x1]
      %v3935 = vld [vmem:[%s3901 + $0x84] sm:$0xf]
      %v3936 = vld [vmem:[%s3901 + $0x88] sm:$0xf]
      %v3937 = vld [vmem:[%s3901 + $0x8c] sm:$0x1]
      %v3938 = vld [vmem:[%s3901 + $0x90] sm:$0xf]
      %v3939 = vld [vmem:[%s3901 + $0x94] sm:$0xf]
      %v3940 = vld [vmem:[%s3901 + $0x98] sm:$0x1]
      %v3941 = vld [vmem:[%s3901 + $0x9c] sm:$0xf]
      %v3942 = vld [vmem:[%s3901 + $0xa0] sm:$0xf]
      %v3943 = vld [vmem:[%s3901 + $0xa4] sm:$0x1]
      %v3944 = vld [vmem:[%s3901 + $0xa8] sm:$0xf]
      %v3945 = vld [vmem:[%s3901 + $0xac] sm:$0xf]
      %v3946 = vld [vmem:[%s3901 + $0xb0] sm:$0x1]
      %v3947 = vld [vmem:[%s3901 + $0xb4] sm:$0xf]
      %v3948 = vld [vmem:[%s3901 + $0xb8] sm:$0xf]
      %v3949 = vld [vmem:[%s3901 + $0xbc] sm:$0x1]
      %v3951 = vshrl.u32 %v3902, 16
      %v3953 = vrot.slane %v3951, 4
      %v3954 = vshll.u32 %v3902, 16
      %v3956 = vrot.slane %v3954, 5
      %v3957 = vor.u32 %v3953, %v3956
      %v3958 = vrot.slane %v3957, 4
      %v3960 = vshll.u32 %v3903, 16
      %v3962 = vrot.slane %v3960, 5
      %v3963 = vsel %vm961, %v3958, %v3962
      %v3964 = vshrl.u32 %v3903, 16
      %v3966 = vrot.slane %v3964, 4
      %v3967 = vor.u32 %v3966, %v3962
      %v3968 = vrot.slane %v3967, 4
      %v3970 = vshll.u32 %v3904, 16
      %v3972 = vrot.slane %v3970, 5
      %v3973 = vsel %vm961, %v3968, %v3972
      %v3975 = vshrl.u32 %v3905, 16
      %v3977 = vrot.slane %v3975, 4
      %v3978 = vshll.u32 %v3905, 16
      %v3980 = vrot.slane %v3978, 5
      %v3981 = vor.u32 %v3977, %v3980
      %v3982 = vrot.slane %v3981, 4
      %v3984 = vshll.u32 %v3906, 16
      %v3986 = vrot.slane %v3984, 5
      %v3987 = vsel %vm961, %v3982, %v3986
      %v3988 = vshrl.u32 %v3906, 16
      %v3990 = vrot.slane %v3988, 4
      %v3991 = vor.u32 %v3990, %v3986
      %v3992 = vrot.slane %v3991, 4
      %v3994 = vshll.u32 %v3907, 16
      %v3996 = vrot.slane %v3994, 5
      %v3997 = vsel %vm961, %v3992, %v3996
      %v3999 = vshrl.u32 %v3908, 16
      %v4001 = vrot.slane %v3999, 4
      %v4002 = vshll.u32 %v3908, 16
      %v4004 = vrot.slane %v4002, 5
      %v4005 = vor.u32 %v4001, %v4004
      %v4006 = vrot.slane %v4005, 4
      %v4008 = vshll.u32 %v3909, 16
      %v4010 = vrot.slane %v4008, 5
      %v4011 = vsel %vm961, %v4006, %v4010
      %v4012 = vshrl.u32 %v3909, 16
      %v4014 = vrot.slane %v4012, 4
      %v4015 = vor.u32 %v4014, %v4010
      %v4016 = vrot.slane %v4015, 4
      %v4018 = vshll.u32 %v3910, 16
      %v4020 = vrot.slane %v4018, 5
      %v4021 = vsel %vm961, %v4016, %v4020
      %v4023 = vshrl.u32 %v3911, 16
      %v4025 = vrot.slane %v4023, 4
      %v4026 = vshll.u32 %v3911, 16
      %v4028 = vrot.slane %v4026, 5
      %v4029 = vor.u32 %v4025, %v4028
      %v4030 = vrot.slane %v4029, 4
      %v4032 = vshll.u32 %v3912, 16
      %v4034 = vrot.slane %v4032, 5
      %v4035 = vsel %vm961, %v4030, %v4034
      %v4036 = vshrl.u32 %v3912, 16
      %v4038 = vrot.slane %v4036, 4
      %v4039 = vor.u32 %v4038, %v4034
      %v4040 = vrot.slane %v4039, 4
      %v4042 = vshll.u32 %v3913, 16
      %v4044 = vrot.slane %v4042, 5
      %v4045 = vsel %vm961, %v4040, %v4044
      %v4047 = vshrl.u32 %v3914, 16
      %v4049 = vrot.slane %v4047, 4
      %v4050 = vshll.u32 %v3914, 16
      %v4052 = vrot.slane %v4050, 5
      %v4053 = vor.u32 %v4049, %v4052
      %v4054 = vrot.slane %v4053, 4
      %v4056 = vshll.u32 %v3915, 16
      %v4058 = vrot.slane %v4056, 5
      %v4059 = vsel %vm961, %v4054, %v4058
      %v4060 = vshrl.u32 %v3915, 16
      %v4062 = vrot.slane %v4060, 4
      %v4063 = vor.u32 %v4062, %v4058
      %v4064 = vrot.slane %v4063, 4
      %v4066 = vshll.u32 %v3916, 16
      %v4068 = vrot.slane %v4066, 5
      %v4069 = vsel %vm961, %v4064, %v4068
      %v4071 = vshrl.u32 %v3917, 16
      %v4073 = vrot.slane %v4071, 4
      %v4074 = vshll.u32 %v3917, 16
      %v4076 = vrot.slane %v4074, 5
      %v4077 = vor.u32 %v4073, %v4076
      %v4078 = vrot.slane %v4077, 4
      %v4080 = vshll.u32 %v3918, 16
      %v4082 = vrot.slane %v4080, 5
      %v4083 = vsel %vm961, %v4078, %v4082
      %v4084 = vshrl.u32 %v3918, 16
      %v4086 = vrot.slane %v4084, 4
      %v4087 = vor.u32 %v4086, %v4082
      %v4088 = vrot.slane %v4087, 4
      %v4090 = vshll.u32 %v3919, 16
      %v4092 = vrot.slane %v4090, 5
      %v4093 = vsel %vm961, %v4088, %v4092
      %v4095 = vshrl.u32 %v3920, 16
      %v4097 = vrot.slane %v4095, 4
      %v4098 = vshll.u32 %v3920, 16
      %v4100 = vrot.slane %v4098, 5
      %v4101 = vor.u32 %v4097, %v4100
      %v4102 = vrot.slane %v4101, 4
      %v4104 = vshll.u32 %v3921, 16
      %v4106 = vrot.slane %v4104, 5
      %v4107 = vsel %vm961, %v4102, %v4106
      %v4108 = vshrl.u32 %v3921, 16
      %v4110 = vrot.slane %v4108, 4
      %v4111 = vor.u32 %v4110, %v4106
      %v4112 = vrot.slane %v4111, 4
      %v4114 = vshll.u32 %v3922, 16
      %v4116 = vrot.slane %v4114, 5
      %v4117 = vsel %vm961, %v4112, %v4116
      %v4119 = vshrl.u32 %v3923, 16
      %v4121 = vrot.slane %v4119, 4
      %v4122 = vshll.u32 %v3923, 16
      %v4124 = vrot.slane %v4122, 5
      %v4125 = vor.u32 %v4121, %v4124
      %v4126 = vrot.slane %v4125, 4
      %v4128 = vshll.u32 %v3924, 16
      %v4130 = vrot.slane %v4128, 5
      %v4131 = vsel %vm961, %v4126, %v4130
      %v4132 = vshrl.u32 %v3924, 16
      %v4134 = vrot.slane %v4132, 4
      %v4135 = vor.u32 %v4134, %v4130
      %v4136 = vrot.slane %v4135, 4
      %v4138 = vshll.u32 %v3925, 16
      %v4140 = vrot.slane %v4138, 5
      %v4141 = vsel %vm961, %v4136, %v4140
      %v4143 = vshrl.u32 %v3926, 16
      %v4145 = vrot.slane %v4143, 4
      %v4146 = vshll.u32 %v3926, 16
      %v4148 = vrot.slane %v4146, 5
      %v4149 = vor.u32 %v4145, %v4148
      %v4150 = vrot.slane %v4149, 4
      %v4152 = vshll.u32 %v3927, 16
      %v4154 = vrot.slane %v4152, 5
      %v4155 = vsel %vm961, %v4150, %v4154
      %v4156 = vshrl.u32 %v3927, 16
      %v4158 = vrot.slane %v4156, 4
      %v4159 = vor.u32 %v4158, %v4154
      %v4160 = vrot.slane %v4159, 4
      %v4162 = vshll.u32 %v3928, 16
      %v4164 = vrot.slane %v4162, 5
      %v4165 = vsel %vm961, %v4160, %v4164
      %v4167 = vshrl.u32 %v3929, 16
      %v4169 = vrot.slane %v4167, 4
      %v4170 = vshll.u32 %v3929, 16
      %v4172 = vrot.slane %v4170, 5
      %v4173 = vor.u32 %v4169, %v4172
      %v4174 = vrot.slane %v4173, 4
      %v4176 = vshll.u32 %v3930, 16
      %v4178 = vrot.slane %v4176, 5
      %v4179 = vsel %vm961, %v4174, %v4178
      %v4180 = vshrl.u32 %v3930, 16
      %v4182 = vrot.slane %v4180, 4
      %v4183 = vor.u32 %v4182, %v4178
      %v4184 = vrot.slane %v4183, 4
      %v4186 = vshll.u32 %v3931, 16
      %v4188 = vrot.slane %v4186, 5
      %v4189 = vsel %vm961, %v4184, %v4188
      %v4191 = vshrl.u32 %v3932, 16
      %v4193 = vrot.slane %v4191, 4
      %v4194 = vshll.u32 %v3932, 16
      %v4196 = vrot.slane %v4194, 5
      %v4197 = vor.u32 %v4193, %v4196
      %v4198 = vrot.slane %v4197, 4
      %v4200 = vshll.u32 %v3933, 16
      %v4202 = vrot.slane %v4200, 5
      %v4203 = vsel %vm961, %v4198, %v4202
      %v4204 = vshrl.u32 %v3933, 16
      %v4206 = vrot.slane %v4204, 4
      %v4207 = vor.u32 %v4206, %v4202
      %v4208 = vrot.slane %v4207, 4
      %v4210 = vshll.u32 %v3934, 16
      %v4212 = vrot.slane %v4210, 5
      %v4213 = vsel %vm961, %v4208, %v4212
      %v4215 = vshrl.u32 %v3935, 16
      %v4217 = vrot.slane %v4215, 4
      %v4218 = vshll.u32 %v3935, 16
      %v4220 = vrot.slane %v4218, 5
      %v4221 = vor.u32 %v4217, %v4220
      %v4222 = vrot.slane %v4221, 4
      %v4224 = vshll.u32 %v3936, 16
      %v4226 = vrot.slane %v4224, 5
      %v4227 = vsel %vm961, %v4222, %v4226
      %v4228 = vshrl.u32 %v3936, 16
      %v4230 = vrot.slane %v4228, 4
      %v4231 = vor.u32 %v4230, %v4226
      %v4232 = vrot.slane %v4231, 4
      %v4234 = vshll.u32 %v3937, 16
      %v4236 = vrot.slane %v4234, 5
      %v4237 = vsel %vm961, %v4232, %v4236
      %v4239 = vshrl.u32 %v3938, 16
      %v4241 = vrot.slane %v4239, 4
      %v4242 = vshll.u32 %v3938, 16
      %v4244 = vrot.slane %v4242, 5
      %v4245 = vor.u32 %v4241, %v4244
      %v4246 = vrot.slane %v4245, 4
      %v4248 = vshll.u32 %v3939, 16
      %v4250 = vrot.slane %v4248, 5
      %v4251 = vsel %vm961, %v4246, %v4250
      %v4252 = vshrl.u32 %v3939, 16
      %v4254 = vrot.slane %v4252, 4
      %v4255 = vor.u32 %v4254, %v4250
      %v4256 = vrot.slane %v4255, 4
      %v4258 = vshll.u32 %v3940, 16
      %v4260 = vrot.slane %v4258, 5
      %v4261 = vsel %vm961, %v4256, %v4260
      %v4263 = vshrl.u32 %v3941, 16
      %v4265 = vrot.slane %v4263, 4
      %v4266 = vshll.u32 %v3941, 16
      %v4268 = vrot.slane %v4266, 5
      %v4269 = vor.u32 %v4265, %v4268
      %v4270 = vrot.slane %v4269, 4
      %v4272 = vshll.u32 %v3942, 16
      %v4274 = vrot.slane %v4272, 5
      %v4275 = vsel %vm961, %v4270, %v4274
      %v4276 = vshrl.u32 %v3942, 16
      %v4278 = vrot.slane %v4276, 4
      %v4279 = vor.u32 %v4278, %v4274
      %v4280 = vrot.slane %v4279, 4
      %v4282 = vshll.u32 %v3943, 16
      %v4284 = vrot.slane %v4282, 5
      %v4285 = vsel %vm961, %v4280, %v4284
      %v4287 = vshrl.u32 %v3944, 16
      %v4289 = vrot.slane %v4287, 4
      %v4290 = vshll.u32 %v3944, 16
      %v4292 = vrot.slane %v4290, 5
      %v4293 = vor.u32 %v4289, %v4292
      %v4294 = vrot.slane %v4293, 4
      %v4296 = vshll.u32 %v3945, 16
      %v4298 = vrot.slane %v4296, 5
      %v4299 = vsel %vm961, %v4294, %v4298
      %v4300 = vshrl.u32 %v3945, 16
      %v4302 = vrot.slane %v4300, 4
      %v4303 = vor.u32 %v4302, %v4298
      %v4304 = vrot.slane %v4303, 4
      %v4306 = vshll.u32 %v3946, 16
      %v4308 = vrot.slane %v4306, 5
      %v4309 = vsel %vm961, %v4304, %v4308
      %v4311 = vshrl.u32 %v3947, 16
      %v4313 = vrot.slane %v4311, 4
      %v4314 = vshll.u32 %v3947, 16
      %v4316 = vrot.slane %v4314, 5
      %v4317 = vor.u32 %v4313, %v4316
      %v4318 = vrot.slane %v4317, 4
      %v4320 = vshll.u32 %v3948, 16
      %v4322 = vrot.slane %v4320, 5
      %v4323 = vsel %vm961, %v4318, %v4322
      %v4324 = vshrl.u32 %v3948, 16
      %v4326 = vrot.slane %v4324, 4
      %v4327 = vor.u32 %v4326, %v4322
      %v4328 = vrot.slane %v4327, 4
      %v4330 = vshll.u32 %v3949, 16
      %v4332 = vrot.slane %v4330, 5
      %v4333 = vsel %vm961, %v4328, %v4332
      %4334 = vrot.lane.b32.xlu0 %v3963, 24
      %v4335 = vpop.permute.xlu0 %4334
      %4336 = vrot.lane.b32.xlu0 %v3973, 24
      %v4337 = vpop.permute.xlu0 %4336
      %4338 = vrot.lane.b32.xlu0 %v3987, 24
      %v4339 = vpop.permute.xlu0 %4338
      %4340 = vrot.lane.b32.xlu0 %v3997, 24
      %v4341 = vpop.permute.xlu0 %4340
      %4342 = vrot.lane.b32.xlu0 %v4011, 24
      %v4343 = vpop.permute.xlu0 %4342
      %4344 = vrot.lane.b32.xlu0 %v4021, 24
      %v4345 = vpop.permute.xlu0 %4344
      %4346 = vrot.lane.b32.xlu0 %v4035, 24
      %v4347 = vpop.permute.xlu0 %4346
      %4348 = vrot.lane.b32.xlu0 %v4045, 24
      %v4349 = vpop.permute.xlu0 %4348
      %4350 = vrot.lane.b32.xlu0 %v4059, 24
      %v4351 = vpop.permute.xlu0 %4350
      %4352 = vrot.lane.b32.xlu0 %v4069, 24
      %v4353 = vpop.permute.xlu0 %4352
      %4354 = vrot.lane.b32.xlu0 %v4083, 24
      %v4355 = vpop.permute.xlu0 %4354
      %4356 = vrot.lane.b32.xlu0 %v4093, 24
      %v4357 = vpop.permute.xlu0 %4356
      %4358 = vrot.lane.b32.xlu0 %v4107, 24
      %v4359 = vpop.permute.xlu0 %4358
      %4360 = vrot.lane.b32.xlu0 %v4117, 24
      %v4361 = vpop.permute.xlu0 %4360
      %4362 = vrot.lane.b32.xlu0 %v4131, 24
      %v4363 = vpop.permute.xlu0 %4362
      %4364 = vrot.lane.b32.xlu0 %v4141, 24
      %v4365 = vpop.permute.xlu0 %4364
      %4366 = vrot.lane.b32.xlu0 %v4155, 24
      %v4367 = vpop.permute.xlu0 %4366
      %4368 = vrot.lane.b32.xlu0 %v4165, 24
      %v4369 = vpop.permute.xlu0 %4368
      %4370 = vrot.lane.b32.xlu0 %v4179, 24
      %v4371 = vpop.permute.xlu0 %4370
      %4372 = vrot.lane.b32.xlu0 %v4189, 24
      %v4373 = vpop.permute.xlu0 %4372
      %4374 = vrot.lane.b32.xlu0 %v4203, 24
      %v4375 = vpop.permute.xlu0 %4374
      %4376 = vrot.lane.b32.xlu0 %v4213, 24
      %v4377 = vpop.permute.xlu0 %4376
      %4378 = vrot.lane.b32.xlu0 %v4227, 24
      %v4379 = vpop.permute.xlu0 %4378
      %4380 = vrot.lane.b32.xlu0 %v4237, 24
      %v4381 = vpop.permute.xlu0 %4380
      %4382 = vrot.lane.b32.xlu0 %v4251, 24
      %v4383 = vpop.permute.xlu0 %4382
      %4384 = vrot.lane.b32.xlu0 %v4261, 24
      %v4385 = vpop.permute.xlu0 %4384
      %4386 = vrot.lane.b32.xlu0 %v4275, 24
      %v4387 = vpop.permute.xlu0 %4386
      %4388 = vrot.lane.b32.xlu0 %v4285, 24
      %v4389 = vpop.permute.xlu0 %4388
      %4390 = vrot.lane.b32.xlu0 %v4299, 24
      %v4391 = vpop.permute.xlu0 %4390
      %4392 = vrot.lane.b32.xlu0 %v4309, 24
      %v4393 = vpop.permute.xlu0 %4392
      %4394 = vrot.lane.b32.xlu0 %v4323, 24
      %v4395 = vpop.permute.xlu0 %4394
      %4396 = vrot.lane.b32.xlu0 %v4333, 24
      %v4397 = vpop.permute.xlu0 %4396
      %vm4430 = vcmask 224448
      %4431 = vst.msk [vmem:[#allocation3] sm:$0xf] %vm4430, %v4335
      %4432 = vst.msk [vmem:[#allocation3 + $0x4] sm:$0xf] %vm4430, %v4337
      %4433 = vst.msk [vmem:[#allocation3 + $0x8] sm:$0xf] %vm4430, %v4339
      %4434 = vst.msk [vmem:[#allocation3 + $0xc] sm:$0xf] %vm4430, %v4341
      %4435 = vst.msk [vmem:[#allocation3 + $0x10] sm:$0xf] %vm4430, %v4343
      %4436 = vst.msk [vmem:[#allocation3 + $0x14] sm:$0xf] %vm4430, %v4345
      %4437 = vst.msk [vmem:[#allocation3 + $0x18] sm:$0xf] %vm4430, %v4347
      %4438 = vst.msk [vmem:[#allocation3 + $0x1c] sm:$0xf] %vm4430, %v4349
      %4439 = vst.msk [vmem:[#allocation3 + $0x20] sm:$0xf] %vm4430, %v4351
      %4440 = vst.msk [vmem:[#allocation3 + $0x24] sm:$0xf] %vm4430, %v4353
      %4441 = vst.msk [vmem:[#allocation3 + $0x28] sm:$0xf] %vm4430, %v4355
      %4442 = vst.msk [vmem:[#allocation3 + $0x2c] sm:$0xf] %vm4430, %v4357
      %4443 = vst.msk [vmem:[#allocation3 + $0x30] sm:$0xf] %vm4430, %v4359
      %4444 = vst.msk [vmem:[#allocation3 + $0x34] sm:$0xf] %vm4430, %v4361
      %4445 = vst.msk [vmem:[#allocation3 + $0x38] sm:$0xf] %vm4430, %v4363
      %4446 = vst.msk [vmem:[#allocation3 + $0x3c] sm:$0xf] %vm4430, %v4365
      %4447 = vst.msk [vmem:[#allocation3 + $0x40] sm:$0xf] %vm4430, %v4367
      %4448 = vst.msk [vmem:[#allocation3 + $0x44] sm:$0xf] %vm4430, %v4369
      %4449 = vst.msk [vmem:[#allocation3 + $0x48] sm:$0xf] %vm4430, %v4371
      %4450 = vst.msk [vmem:[#allocation3 + $0x4c] sm:$0xf] %vm4430, %v4373
      %4451 = vst.msk [vmem:[#allocation3 + $0x50] sm:$0xf] %vm4430, %v4375
      %4452 = vst.msk [vmem:[#allocation3 + $0x54] sm:$0xf] %vm4430, %v4377
      %4453 = vst.msk [vmem:[#allocation3 + $0x58] sm:$0xf] %vm4430, %v4379
      %4454 = vst.msk [vmem:[#allocation3 + $0x5c] sm:$0xf] %vm4430, %v4381
      %4455 = vst.msk [vmem:[#allocation3 + $0x60] sm:$0xf] %vm4430, %v4383
      %4456 = vst.msk [vmem:[#allocation3 + $0x64] sm:$0xf] %vm4430, %v4385
      %4457 = vst.msk [vmem:[#allocation3 + $0x68] sm:$0xf] %vm4430, %v4387
      %4458 = vst.msk [vmem:[#allocation3 + $0x6c] sm:$0xf] %vm4430, %v4389
      %4459 = vst.msk [vmem:[#allocation3 + $0x70] sm:$0xf] %vm4430, %v4391
      %4460 = vst.msk [vmem:[#allocation3 + $0x74] sm:$0xf] %vm4430, %v4393
      %4461 = vst.msk [vmem:[#allocation3 + $0x78] sm:$0xf] %vm4430, %v4395
      %4462 = vst.msk [vmem:[#allocation3 + $0x7c] sm:$0xf] %vm4430, %v4397
      %v4463 = vld [vmem:[%s3901] sm:$0xe]
      %v4464 = vld [vmem:[%s3901 + $0x4] sm:$0xf]
      %v4465 = vld [vmem:[%s3901 + $0x8] sm:$0x1]
      %v4466 = vld [vmem:[%s3901 + $0xc] sm:$0xe]
      %v4467 = vld [vmem:[%s3901 + $0x10] sm:$0xf]
      %v4468 = vld [vmem:[%s3901 + $0x14] sm:$0x1]
      %v4469 = vld [vmem:[%s3901 + $0x18] sm:$0xe]
      %v4470 = vld [vmem:[%s3901 + $0x1c] sm:$0xf]
      %v4471 = vld [vmem:[%s3901 + $0x20] sm:$0x1]
      %v4472 = vld [vmem:[%s3901 + $0x24] sm:$0xe]
      %v4473 = vld [vmem:[%s3901 + $0x28] sm:$0xf]
      %v4474 = vld [vmem:[%s3901 + $0x2c] sm:$0x1]
      %v4475 = vld [vmem:[%s3901 + $0x30] sm:$0xe]
      %v4476 = vld [vmem:[%s3901 + $0x34] sm:$0xf]
      %v4477 = vld [vmem:[%s3901 + $0x38] sm:$0x1]
      %v4478 = vld [vmem:[%s3901 + $0x3c] sm:$0xe]
      %v4479 = vld [vmem:[%s3901 + $0x40] sm:$0xf]
      %v4480 = vld [vmem:[%s3901 + $0x44] sm:$0x1]
      %v4481 = vld [vmem:[%s3901 + $0x48] sm:$0xe]
      %v4482 = vld [vmem:[%s3901 + $0x4c] sm:$0xf]
      %v4483 = vld [vmem:[%s3901 + $0x50] sm:$0x1]
      %v4484 = vld [vmem:[%s3901 + $0x54] sm:$0xe]
      %v4485 = vld [vmem:[%s3901 + $0x58] sm:$0xf]
      %v4486 = vld [vmem:[%s3901 + $0x5c] sm:$0x1]
      %v4487 = vld [vmem:[%s3901 + $0x60] sm:$0xe]
      %v4488 = vld [vmem:[%s3901 + $0x64] sm:$0xf]
      %v4489 = vld [vmem:[%s3901 + $0x68] sm:$0x1]
      %v4490 = vld [vmem:[%s3901 + $0x6c] sm:$0xe]
      %v4491 = vld [vmem:[%s3901 + $0x70] sm:$0xf]
      %v4492 = vld [vmem:[%s3901 + $0x74] sm:$0x1]
      %v4493 = vld [vmem:[%s3901 + $0x78] sm:$0xe]
      %v4494 = vld [vmem:[%s3901 + $0x7c] sm:$0xf]
      %v4495 = vld [vmem:[%s3901 + $0x80] sm:$0x1]
      %v4496 = vld [vmem:[%s3901 + $0x84] sm:$0xe]
      %v4497 = vld [vmem:[%s3901 + $0x88] sm:$0xf]
      %v4498 = vld [vmem:[%s3901 + $0x8c] sm:$0x1]
      %v4499 = vld [vmem:[%s3901 + $0x90] sm:$0xe]
      %v4500 = vld [vmem:[%s3901 + $0x94] sm:$0xf]
      %v4501 = vld [vmem:[%s3901 + $0x98] sm:$0x1]
      %v4502 = vld [vmem:[%s3901 + $0x9c] sm:$0xe]
      %v4503 = vld [vmem:[%s3901 + $0xa0] sm:$0xf]
      %v4504 = vld [vmem:[%s3901 + $0xa4] sm:$0x1]
      %v4505 = vld [vmem:[%s3901 + $0xa8] sm:$0xe]
      %v4506 = vld [vmem:[%s3901 + $0xac] sm:$0xf]
      %v4507 = vld [vmem:[%s3901 + $0xb0] sm:$0x1]
      %v4508 = vld [vmem:[%s3901 + $0xb4] sm:$0xe]
      %v4509 = vld [vmem:[%s3901 + $0xb8] sm:$0xf]
      %v4510 = vld [vmem:[%s3901 + $0xbc] sm:$0x1]
      %v4559 = vrot.slane %v4463, 5
      %v4560 = vrot.slane %v4559, 4
      %v4561 = vrot.slane %v4464, 5
      %v4562 = vsel %vm1508, %v4560, %v4561
      %v4563 = vrot.slane %v4561, 4
      %v4564 = vrot.slane %v4465, 5
      %v4565 = vsel %vm1508, %v4563, %v4564
      %v4566 = vrot.slane %v4466, 5
      %v4567 = vrot.slane %v4566, 4
      %v4568 = vrot.slane %v4467, 5
      %v4569 = vsel %vm1508, %v4567, %v4568
      %v4570 = vrot.slane %v4568, 4
      %v4571 = vrot.slane %v4468, 5
      %v4572 = vsel %vm1508, %v4570, %v4571
      %v4573 = vrot.slane %v4469, 5
      %v4574 = vrot.slane %v4573, 4
      %v4575 = vrot.slane %v4470, 5
      %v4576 = vsel %vm1508, %v4574, %v4575
      %v4577 = vrot.slane %v4575, 4
      %v4578 = vrot.slane %v4471, 5
      %v4579 = vsel %vm1508, %v4577, %v4578
      %v4580 = vrot.slane %v4472, 5
      %v4581 = vrot.slane %v4580, 4
      %v4582 = vrot.slane %v4473, 5
      %v4583 = vsel %vm1508, %v4581, %v4582
      %v4584 = vrot.slane %v4582, 4
      %v4585 = vrot.slane %v4474, 5
      %v4586 = vsel %vm1508, %v4584, %v4585
      %v4587 = vrot.slane %v4475, 5
      %v4588 = vrot.slane %v4587, 4
      %v4589 = vrot.slane %v4476, 5
      %v4590 = vsel %vm1508, %v4588, %v4589
      %v4591 = vrot.slane %v4589, 4
      %v4592 = vrot.slane %v4477, 5
      %v4593 = vsel %vm1508, %v4591, %v4592
      %v4594 = vrot.slane %v4478, 5
      %v4595 = vrot.slane %v4594, 4
      %v4596 = vrot.slane %v4479, 5
      %v4597 = vsel %vm1508, %v4595, %v4596
      %v4598 = vrot.slane %v4596, 4
      %v4599 = vrot.slane %v4480, 5
      %v4600 = vsel %vm1508, %v4598, %v4599
      %v4601 = vrot.slane %v4481, 5
      %v4602 = vrot.slane %v4601, 4
      %v4603 = vrot.slane %v4482, 5
      %v4604 = vsel %vm1508, %v4602, %v4603
      %v4605 = vrot.slane %v4603, 4
      %v4606 = vrot.slane %v4483, 5
      %v4607 = vsel %vm1508, %v4605, %v4606
      %v4608 = vrot.slane %v4484, 5
      %v4609 = vrot.slane %v4608, 4
      %v4610 = vrot.slane %v4485, 5
      %v4611 = vsel %vm1508, %v4609, %v4610
      %v4612 = vrot.slane %v4610, 4
      %v4613 = vrot.slane %v4486, 5
      %v4614 = vsel %vm1508, %v4612, %v4613
      %v4615 = vrot.slane %v4487, 5
      %v4616 = vrot.slane %v4615, 4
      %v4617 = vrot.slane %v4488, 5
      %v4618 = vsel %vm1508, %v4616, %v4617
      %v4619 = vrot.slane %v4617, 4
      %v4620 = vrot.slane %v4489, 5
      %v4621 = vsel %vm1508, %v4619, %v4620
      %v4622 = vrot.slane %v4490, 5
      %v4623 = vrot.slane %v4622, 4
      %v4624 = vrot.slane %v4491, 5
      %v4625 = vsel %vm1508, %v4623, %v4624
      %v4626 = vrot.slane %v4624, 4
      %v4627 = vrot.slane %v4492, 5
      %v4628 = vsel %vm1508, %v4626, %v4627
      %v4629 = vrot.slane %v4493, 5
      %v4630 = vrot.slane %v4629, 4
      %v4631 = vrot.slane %v4494, 5
      %v4632 = vsel %vm1508, %v4630, %v4631
      %v4633 = vrot.slane %v4631, 4
      %v4634 = vrot.slane %v4495, 5
      %v4635 = vsel %vm1508, %v4633, %v4634
      %v4636 = vrot.slane %v4496, 5
      %v4637 = vrot.slane %v4636, 4
      %v4638 = vrot.slane %v4497, 5
      %v4639 = vsel %vm1508, %v4637, %v4638
      %v4640 = vrot.slane %v4638, 4
      %v4641 = vrot.slane %v4498, 5
      %v4642 = vsel %vm1508, %v4640, %v4641
      %v4643 = vrot.slane %v4499, 5
      %v4644 = vrot.slane %v4643, 4
      %v4645 = vrot.slane %v4500, 5
      %v4646 = vsel %vm1508, %v4644, %v4645
      %v4647 = vrot.slane %v4645, 4
      %v4648 = vrot.slane %v4501, 5
      %v4649 = vsel %vm1508, %v4647, %v4648
      %v4650 = vrot.slane %v4502, 5
      %v4651 = vrot.slane %v4650, 4
      %v4652 = vrot.slane %v4503, 5
      %v4653 = vsel %vm1508, %v4651, %v4652
      %v4654 = vrot.slane %v4652, 4
      %v4655 = vrot.slane %v4504, 5
      %v4656 = vsel %vm1508, %v4654, %v4655
      %v4657 = vrot.slane %v4505, 5
      %v4658 = vrot.slane %v4657, 4
      %v4659 = vrot.slane %v4506, 5
      %v4660 = vsel %vm1508, %v4658, %v4659
      %v4661 = vrot.slane %v4659, 4
      %v4662 = vrot.slane %v4507, 5
      %v4663 = vsel %vm1508, %v4661, %v4662
      %v4664 = vrot.slane %v4508, 5
      %v4665 = vrot.slane %v4664, 4
      %v4666 = vrot.slane %v4509, 5
      %v4667 = vsel %vm1508, %v4665, %v4666
      %v4668 = vrot.slane %v4666, 4
      %v4669 = vrot.slane %v4510, 5
      %v4670 = vsel %vm1508, %v4668, %v4669
      %4671 = vrot.lane.b32.xlu0 %v4562, 28
      %v4672 = vpop.permute.xlu0 %4671
      %4673 = vrot.lane.b32.xlu0 %v4565, 28
      %v4674 = vpop.permute.xlu0 %4673
      %4675 = vrot.lane.b32.xlu0 %v4569, 28
      %v4676 = vpop.permute.xlu0 %4675
      %4677 = vrot.lane.b32.xlu0 %v4572, 28
      %v4678 = vpop.permute.xlu0 %4677
      %4679 = vrot.lane.b32.xlu0 %v4576, 28
      %v4680 = vpop.permute.xlu0 %4679
      %4681 = vrot.lane.b32.xlu0 %v4579, 28
      %v4682 = vpop.permute.xlu0 %4681
      %4683 = vrot.lane.b32.xlu0 %v4583, 28
      %v4684 = vpop.permute.xlu0 %4683
      %4685 = vrot.lane.b32.xlu0 %v4586, 28
      %v4686 = vpop.permute.xlu0 %4685
      %4687 = vrot.lane.b32.xlu0 %v4590, 28
      %v4688 = vpop.permute.xlu0 %4687
      %4689 = vrot.lane.b32.xlu0 %v4593, 28
      %v4690 = vpop.permute.xlu0 %4689
      %4691 = vrot.lane.b32.xlu0 %v4597, 28
      %v4692 = vpop.permute.xlu0 %4691
      %4693 = vrot.lane.b32.xlu0 %v4600, 28
      %v4694 = vpop.permute.xlu0 %4693
      %4695 = vrot.lane.b32.xlu0 %v4604, 28
      %v4696 = vpop.permute.xlu0 %4695
      %4697 = vrot.lane.b32.xlu0 %v4607, 28
      %v4698 = vpop.permute.xlu0 %4697
      %4699 = vrot.lane.b32.xlu0 %v4611, 28
      %v4700 = vpop.permute.xlu0 %4699
      %4701 = vrot.lane.b32.xlu0 %v4614, 28
      %v4702 = vpop.permute.xlu0 %4701
      %4703 = vrot.lane.b32.xlu0 %v4618, 28
      %v4704 = vpop.permute.xlu0 %4703
      %4705 = vrot.lane.b32.xlu0 %v4621, 28
      %v4706 = vpop.permute.xlu0 %4705
      %4707 = vrot.lane.b32.xlu0 %v4625, 28
      %v4708 = vpop.permute.xlu0 %4707
      %4709 = vrot.lane.b32.xlu0 %v4628, 28
      %v4710 = vpop.permute.xlu0 %4709
      %4711 = vrot.lane.b32.xlu0 %v4632, 28
      %v4712 = vpop.permute.xlu0 %4711
      %4713 = vrot.lane.b32.xlu0 %v4635, 28
      %v4714 = vpop.permute.xlu0 %4713
      %4715 = vrot.lane.b32.xlu0 %v4639, 28
      %v4716 = vpop.permute.xlu0 %4715
      %4717 = vrot.lane.b32.xlu0 %v4642, 28
      %v4718 = vpop.permute.xlu0 %4717
      %4719 = vrot.lane.b32.xlu0 %v4646, 28
      %v4720 = vpop.permute.xlu0 %4719
      %4721 = vrot.lane.b32.xlu0 %v4649, 28
      %v4722 = vpop.permute.xlu0 %4721
      %4723 = vrot.lane.b32.xlu0 %v4653, 28
      %v4724 = vpop.permute.xlu0 %4723
      %4725 = vrot.lane.b32.xlu0 %v4656, 28
      %v4726 = vpop.permute.xlu0 %4725
      %4727 = vrot.lane.b32.xlu0 %v4660, 28
      %v4728 = vpop.permute.xlu0 %4727
      %4729 = vrot.lane.b32.xlu0 %v4663, 28
      %v4730 = vpop.permute.xlu0 %4729
      %4731 = vrot.lane.b32.xlu0 %v4667, 28
      %v4732 = vpop.permute.xlu0 %4731
      %4733 = vrot.lane.b32.xlu0 %v4670, 28
      %v4734 = vpop.permute.xlu0 %4733
      %vm4767 = vcmask 257248
      %4768 = vst.msk [vmem:[#allocation3] sm:$0xf] %vm4767, %v4672
      %4769 = vst.msk [vmem:[#allocation3 + $0x4] sm:$0xf] %vm4767, %v4674
      %4770 = vst.msk [vmem:[#allocation3 + $0x8] sm:$0xf] %vm4767, %v4676
      %4771 = vst.msk [vmem:[#allocation3 + $0xc] sm:$0xf] %vm4767, %v4678
      %4772 = vst.msk [vmem:[#allocation3 + $0x10] sm:$0xf] %vm4767, %v4680
      %4773 = vst.msk [vmem:[#allocation3 + $0x14] sm:$0xf] %vm4767, %v4682
      %4774 = vst.msk [vmem:[#allocation3 + $0x18] sm:$0xf] %vm4767, %v4684
      %4775 = vst.msk [vmem:[#allocation3 + $0x1c] sm:$0xf] %vm4767, %v4686
      %4776 = vst.msk [vmem:[#allocation3 + $0x20] sm:$0xf] %vm4767, %v4688
      %4777 = vst.msk [vmem:[#allocation3 + $0x24] sm:$0xf] %vm4767, %v4690
      %4778 = vst.msk [vmem:[#allocation3 + $0x28] sm:$0xf] %vm4767, %v4692
      %4779 = vst.msk [vmem:[#allocation3 + $0x2c] sm:$0xf] %vm4767, %v4694
      %4780 = vst.msk [vmem:[#allocation3 + $0x30] sm:$0xf] %vm4767, %v4696
      %4781 = vst.msk [vmem:[#allocation3 + $0x34] sm:$0xf] %vm4767, %v4698
      %4782 = vst.msk [vmem:[#allocation3 + $0x38] sm:$0xf] %vm4767, %v4700
      %4783 = vst.msk [vmem:[#allocation3 + $0x3c] sm:$0xf] %vm4767, %v4702
      %4784 = vst.msk [vmem:[#allocation3 + $0x40] sm:$0xf] %vm4767, %v4704
      %4785 = vst.msk [vmem:[#allocation3 + $0x44] sm:$0xf] %vm4767, %v4706
      %4786 = vst.msk [vmem:[#allocation3 + $0x48] sm:$0xf] %vm4767, %v4708
      %4787 = vst.msk [vmem:[#allocation3 + $0x4c] sm:$0xf] %vm4767, %v4710
      %4788 = vst.msk [vmem:[#allocation3 + $0x50] sm:$0xf] %vm4767, %v4712
      %4789 = vst.msk [vmem:[#allocation3 + $0x54] sm:$0xf] %vm4767, %v4714
      %4790 = vst.msk [vmem:[#allocation3 + $0x58] sm:$0xf] %vm4767, %v4716
      %4791 = vst.msk [vmem:[#allocation3 + $0x5c] sm:$0xf] %vm4767, %v4718
      %4792 = vst.msk [vmem:[#allocation3 + $0x60] sm:$0xf] %vm4767, %v4720
      %4793 = vst.msk [vmem:[#allocation3 + $0x64] sm:$0xf] %vm4767, %v4722
      %4794 = vst.msk [vmem:[#allocation3 + $0x68] sm:$0xf] %vm4767, %v4724
      %4795 = vst.msk [vmem:[#allocation3 + $0x6c] sm:$0xf] %vm4767, %v4726
      %4796 = vst.msk [vmem:[#allocation3 + $0x70] sm:$0xf] %vm4767, %v4728
      %4797 = vst.msk [vmem:[#allocation3 + $0x74] sm:$0xf] %vm4767, %v4730
      %4798 = vst.msk [vmem:[#allocation3 + $0x78] sm:$0xf] %vm4767, %v4732
      %4799 = vst.msk [vmem:[#allocation3 + $0x7c] sm:$0xf] %vm4767, %v4734
      %v4800 = vld [vmem:[%s3901] sm:$0xe]
      %v4801 = vld [vmem:[%s3901 + $0x4] sm:$0xf]
      %v4802 = vld [vmem:[%s3901 + $0x8] sm:$0x3]
      %v4803 = vld [vmem:[%s3901 + $0xc] sm:$0xe]
      %v4804 = vld [vmem:[%s3901 + $0x10] sm:$0xf]
      %v4805 = vld [vmem:[%s3901 + $0x14] sm:$0x3]
      %v4806 = vld [vmem:[%s3901 + $0x18] sm:$0xe]
      %v4807 = vld [vmem:[%s3901 + $0x1c] sm:$0xf]
      %v4808 = vld [vmem:[%s3901 + $0x20] sm:$0x3]
      %v4809 = vld [vmem:[%s3901 + $0x24] sm:$0xe]
      %v4810 = vld [vmem:[%s3901 + $0x28] sm:$0xf]
      %v4811 = vld [vmem:[%s3901 + $0x2c] sm:$0x3]
      %v4812 = vld [vmem:[%s3901 + $0x30] sm:$0xe]
      %v4813 = vld [vmem:[%s3901 + $0x34] sm:$0xf]
      %v4814 = vld [vmem:[%s3901 + $0x38] sm:$0x3]
      %v4815 = vld [vmem:[%s3901 + $0x3c] sm:$0xe]
      %v4816 = vld [vmem:[%s3901 + $0x40] sm:$0xf]
      %v4817 = vld [vmem:[%s3901 + $0x44] sm:$0x3]
      %v4818 = vld [vmem:[%s3901 + $0x48] sm:$0xe]
      %v4819 = vld [vmem:[%s3901 + $0x4c] sm:$0xf]
      %v4820 = vld [vmem:[%s3901 + $0x50] sm:$0x3]
      %v4821 = vld [vmem:[%s3901 + $0x54] sm:$0xe]
      %v4822 = vld [vmem:[%s3901 + $0x58] sm:$0xf]
      %v4823 = vld [vmem:[%s3901 + $0x5c] sm:$0x3]
      %v4824 = vld [vmem:[%s3901 + $0x60] sm:$0xe]
      %v4825 = vld [vmem:[%s3901 + $0x64] sm:$0xf]
      %v4826 = vld [vmem:[%s3901 + $0x68] sm:$0x3]
      %v4827 = vld [vmem:[%s3901 + $0x6c] sm:$0xe]
      %v4828 = vld [vmem:[%s3901 + $0x70] sm:$0xf]
      %v4829 = vld [vmem:[%s3901 + $0x74] sm:$0x3]
      %v4830 = vld [vmem:[%s3901 + $0x78] sm:$0xe]
      %v4831 = vld [vmem:[%s3901 + $0x7c] sm:$0xf]
      %v4832 = vld [vmem:[%s3901 + $0x80] sm:$0x3]
      %v4833 = vld [vmem:[%s3901 + $0x84] sm:$0xe]
      %v4834 = vld [vmem:[%s3901 + $0x88] sm:$0xf]
      %v4835 = vld [vmem:[%s3901 + $0x8c] sm:$0x3]
      %v4836 = vld [vmem:[%s3901 + $0x90] sm:$0xe]
      %v4837 = vld [vmem:[%s3901 + $0x94] sm:$0xf]
      %v4838 = vld [vmem:[%s3901 + $0x98] sm:$0x3]
      %v4839 = vld [vmem:[%s3901 + $0x9c] sm:$0xe]
      %v4840 = vld [vmem:[%s3901 + $0xa0] sm:$0xf]
      %v4841 = vld [vmem:[%s3901 + $0xa4] sm:$0x3]
      %v4842 = vld [vmem:[%s3901 + $0xa8] sm:$0xe]
      %v4843 = vld [vmem:[%s3901 + $0xac] sm:$0xf]
      %v4844 = vld [vmem:[%s3901 + $0xb0] sm:$0x3]
      %v4845 = vld [vmem:[%s3901 + $0xb4] sm:$0xe]
      %v4846 = vld [vmem:[%s3901 + $0xb8] sm:$0xf]
      %v4847 = vld [vmem:[%s3901 + $0xbc] sm:$0x3]
      %v4849 = vshrl.u32 %v4800, 16
      %v4851 = vrot.slane %v4849, 5
      %v4852 = vshll.u32 %v4800, 16
      %v4854 = vrot.slane %v4852, 6
      %v4855 = vor.u32 %v4851, %v4854
      %v4856 = vrot.slane %v4855, 4
      %v4858 = vshrl.u32 %v4801, 16
      %v4860 = vrot.slane %v4858, 5
      %v4861 = vshll.u32 %v4801, 16
      %v4863 = vrot.slane %v4861, 6
      %v4864 = vor.u32 %v4860, %v4863
      %v4865 = vsel %vm1800, %v4856, %v4864
      %v4866 = vrot.slane %v4864, 4
      %v4868 = vshrl.u32 %v4802, 16
      %v4870 = vrot.slane %v4868, 5
      %v4871 = vshll.u32 %v4802, 16
      %v4873 = vrot.slane %v4871, 6
      %v4874 = vor.u32 %v4870, %v4873
      %v4875 = vsel %vm1800, %v4866, %v4874
      %v4877 = vshrl.u32 %v4803, 16
      %v4879 = vrot.slane %v4877, 5
      %v4880 = vshll.u32 %v4803, 16
      %v4882 = vrot.slane %v4880, 6
      %v4883 = vor.u32 %v4879, %v4882
      %v4884 = vrot.slane %v4883, 4
      %v4886 = vshrl.u32 %v4804, 16
      %v4888 = vrot.slane %v4886, 5
      %v4889 = vshll.u32 %v4804, 16
      %v4891 = vrot.slane %v4889, 6
      %v4892 = vor.u32 %v4888, %v4891
      %v4893 = vsel %vm1800, %v4884, %v4892
      %v4894 = vrot.slane %v4892, 4
      %v4896 = vshrl.u32 %v4805, 16
      %v4898 = vrot.slane %v4896, 5
      %v4899 = vshll.u32 %v4805, 16
      %v4901 = vrot.slane %v4899, 6
      %v4902 = vor.u32 %v4898, %v4901
      %v4903 = vsel %vm1800, %v4894, %v4902
      %v4905 = vshrl.u32 %v4806, 16
      %v4907 = vrot.slane %v4905, 5
      %v4908 = vshll.u32 %v4806, 16
      %v4910 = vrot.slane %v4908, 6
      %v4911 = vor.u32 %v4907, %v4910
      %v4912 = vrot.slane %v4911, 4
      %v4914 = vshrl.u32 %v4807, 16
      %v4916 = vrot.slane %v4914, 5
      %v4917 = vshll.u32 %v4807, 16
      %v4919 = vrot.slane %v4917, 6
      %v4920 = vor.u32 %v4916, %v4919
      %v4921 = vsel %vm1800, %v4912, %v4920
      %v4922 = vrot.slane %v4920, 4
      %v4924 = vshrl.u32 %v4808, 16
      %v4926 = vrot.slane %v4924, 5
      %v4927 = vshll.u32 %v4808, 16
      %v4929 = vrot.slane %v4927, 6
      %v4930 = vor.u32 %v4926, %v4929
      %v4931 = vsel %vm1800, %v4922, %v4930
      %v4933 = vshrl.u32 %v4809, 16
      %v4935 = vrot.slane %v4933, 5
      %v4936 = vshll.u32 %v4809, 16
      %v4938 = vrot.slane %v4936, 6
      %v4939 = vor.u32 %v4935, %v4938
      %v4940 = vrot.slane %v4939, 4
      %v4942 = vshrl.u32 %v4810, 16
      %v4944 = vrot.slane %v4942, 5
      %v4945 = vshll.u32 %v4810, 16
      %v4947 = vrot.slane %v4945, 6
      %v4948 = vor.u32 %v4944, %v4947
      %v4949 = vsel %vm1800, %v4940, %v4948
      %v4950 = vrot.slane %v4948, 4
      %v4952 = vshrl.u32 %v4811, 16
      %v4954 = vrot.slane %v4952, 5
      %v4955 = vshll.u32 %v4811, 16
      %v4957 = vrot.slane %v4955, 6
      %v4958 = vor.u32 %v4954, %v4957
      %v4959 = vsel %vm1800, %v4950, %v4958
      %v4961 = vshrl.u32 %v4812, 16
      %v4963 = vrot.slane %v4961, 5
      %v4964 = vshll.u32 %v4812, 16
      %v4966 = vrot.slane %v4964, 6
      %v4967 = vor.u32 %v4963, %v4966
      %v4968 = vrot.slane %v4967, 4
      %v4970 = vshrl.u32 %v4813, 16
      %v4972 = vrot.slane %v4970, 5
      %v4973 = vshll.u32 %v4813, 16
      %v4975 = vrot.slane %v4973, 6
      %v4976 = vor.u32 %v4972, %v4975
      %v4977 = vsel %vm1800, %v4968, %v4976
      %v4978 = vrot.slane %v4976, 4
      %v4980 = vshrl.u32 %v4814, 16
      %v4982 = vrot.slane %v4980, 5
      %v4983 = vshll.u32 %v4814, 16
      %v4985 = vrot.slane %v4983, 6
      %v4986 = vor.u32 %v4982, %v4985
      %v4987 = vsel %vm1800, %v4978, %v4986
      %v4989 = vshrl.u32 %v4815, 16
      %v4991 = vrot.slane %v4989, 5
      %v4992 = vshll.u32 %v4815, 16
      %v4994 = vrot.slane %v4992, 6
      %v4995 = vor.u32 %v4991, %v4994
      %v4996 = vrot.slane %v4995, 4
      %v4998 = vshrl.u32 %v4816, 16
      %v5000 = vrot.slane %v4998, 5
      %v5001 = vshll.u32 %v4816, 16
      %v5003 = vrot.slane %v5001, 6
      %v5004 = vor.u32 %v5000, %v5003
      %v5005 = vsel %vm1800, %v4996, %v5004
      %v5006 = vrot.slane %v5004, 4
      %v5008 = vshrl.u32 %v4817, 16
      %v5010 = vrot.slane %v5008, 5
      %v5011 = vshll.u32 %v4817, 16
      %v5013 = vrot.slane %v5011, 6
      %v5014 = vor.u32 %v5010, %v5013
      %v5015 = vsel %vm1800, %v5006, %v5014
      %v5017 = vshrl.u32 %v4818, 16
      %v5019 = vrot.slane %v5017, 5
      %v5020 = vshll.u32 %v4818, 16
      %v5022 = vrot.slane %v5020, 6
      %v5023 = vor.u32 %v5019, %v5022
      %v5024 = vrot.slane %v5023, 4
      %v5026 = vshrl.u32 %v4819, 16
      %v5028 = vrot.slane %v5026, 5
      %v5029 = vshll.u32 %v4819, 16
      %v5031 = vrot.slane %v5029, 6
      %v5032 = vor.u32 %v5028, %v5031
      %v5033 = vsel %vm1800, %v5024, %v5032
      %v5034 = vrot.slane %v5032, 4
      %v5036 = vshrl.u32 %v4820, 16
      %v5038 = vrot.slane %v5036, 5
      %v5039 = vshll.u32 %v4820, 16
      %v5041 = vrot.slane %v5039, 6
      %v5042 = vor.u32 %v5038, %v5041
      %v5043 = vsel %vm1800, %v5034, %v5042
      %v5045 = vshrl.u32 %v4821, 16
      %v5047 = vrot.slane %v5045, 5
      %v5048 = vshll.u32 %v4821, 16
      %v5050 = vrot.slane %v5048, 6
      %v5051 = vor.u32 %v5047, %v5050
      %v5052 = vrot.slane %v5051, 4
      %v5054 = vshrl.u32 %v4822, 16
      %v5056 = vrot.slane %v5054, 5
      %v5057 = vshll.u32 %v4822, 16
      %v5059 = vrot.slane %v5057, 6
      %v5060 = vor.u32 %v5056, %v5059
      %v5061 = vsel %vm1800, %v5052, %v5060
      %v5062 = vrot.slane %v5060, 4
      %v5064 = vshrl.u32 %v4823, 16
      %v5066 = vrot.slane %v5064, 5
      %v5067 = vshll.u32 %v4823, 16
      %v5069 = vrot.slane %v5067, 6
      %v5070 = vor.u32 %v5066, %v5069
      %v5071 = vsel %vm1800, %v5062, %v5070
      %v5073 = vshrl.u32 %v4824, 16
      %v5075 = vrot.slane %v5073, 5
      %v5076 = vshll.u32 %v4824, 16
      %v5078 = vrot.slane %v5076, 6
      %v5079 = vor.u32 %v5075, %v5078
      %v5080 = vrot.slane %v5079, 4
      %v5082 = vshrl.u32 %v4825, 16
      %v5084 = vrot.slane %v5082, 5
      %v5085 = vshll.u32 %v4825, 16
      %v5087 = vrot.slane %v5085, 6
      %v5088 = vor.u32 %v5084, %v5087
      %v5089 = vsel %vm1800, %v5080, %v5088
      %v5090 = vrot.slane %v5088, 4
      %v5092 = vshrl.u32 %v4826, 16
      %v5094 = vrot.slane %v5092, 5
      %v5095 = vshll.u32 %v4826, 16
      %v5097 = vrot.slane %v5095, 6
      %v5098 = vor.u32 %v5094, %v5097
      %v5099 = vsel %vm1800, %v5090, %v5098
      %v5101 = vshrl.u32 %v4827, 16
      %v5103 = vrot.slane %v5101, 5
      %v5104 = vshll.u32 %v4827, 16
      %v5106 = vrot.slane %v5104, 6
      %v5107 = vor.u32 %v5103, %v5106
      %v5108 = vrot.slane %v5107, 4
      %v5110 = vshrl.u32 %v4828, 16
      %v5112 = vrot.slane %v5110, 5
      %v5113 = vshll.u32 %v4828, 16
      %v5115 = vrot.slane %v5113, 6
      %v5116 = vor.u32 %v5112, %v5115
      %v5117 = vsel %vm1800, %v5108, %v5116
      %v5118 = vrot.slane %v5116, 4
      %v5120 = vshrl.u32 %v4829, 16
      %v5122 = vrot.slane %v5120, 5
      %v5123 = vshll.u32 %v4829, 16
      %v5125 = vrot.slane %v5123, 6
      %v5126 = vor.u32 %v5122, %v5125
      %v5127 = vsel %vm1800, %v5118, %v5126
      %v5129 = vshrl.u32 %v4830, 16
      %v5131 = vrot.slane %v5129, 5
      %v5132 = vshll.u32 %v4830, 16
      %v5134 = vrot.slane %v5132, 6
      %v5135 = vor.u32 %v5131, %v5134
      %v5136 = vrot.slane %v5135, 4
      %v5138 = vshrl.u32 %v4831, 16
      %v5140 = vrot.slane %v5138, 5
      %v5141 = vshll.u32 %v4831, 16
      %v5143 = vrot.slane %v5141, 6
      %v5144 = vor.u32 %v5140, %v5143
      %v5145 = vsel %vm1800, %v5136, %v5144
      %v5146 = vrot.slane %v5144, 4
      %v5148 = vshrl.u32 %v4832, 16
      %v5150 = vrot.slane %v5148, 5
      %v5151 = vshll.u32 %v4832, 16
      %v5153 = vrot.slane %v5151, 6
      %v5154 = vor.u32 %v5150, %v5153
      %v5155 = vsel %vm1800, %v5146, %v5154
      %v5157 = vshrl.u32 %v4833, 16
      %v5159 = vrot.slane %v5157, 5
      %v5160 = vshll.u32 %v4833, 16
      %v5162 = vrot.slane %v5160, 6
      %v5163 = vor.u32 %v5159, %v5162
      %v5164 = vrot.slane %v5163, 4
      %v5166 = vshrl.u32 %v4834, 16
      %v5168 = vrot.slane %v5166, 5
      %v5169 = vshll.u32 %v4834, 16
      %v5171 = vrot.slane %v5169, 6
      %v5172 = vor.u32 %v5168, %v5171
      %v5173 = vsel %vm1800, %v5164, %v5172
      %v5174 = vrot.slane %v5172, 4
      %v5176 = vshrl.u32 %v4835, 16
      %v5178 = vrot.slane %v5176, 5
      %v5179 = vshll.u32 %v4835, 16
      %v5181 = vrot.slane %v5179, 6
      %v5182 = vor.u32 %v5178, %v5181
      %v5183 = vsel %vm1800, %v5174, %v5182
      %v5185 = vshrl.u32 %v4836, 16
      %v5187 = vrot.slane %v5185, 5
      %v5188 = vshll.u32 %v4836, 16
      %v5190 = vrot.slane %v5188, 6
      %v5191 = vor.u32 %v5187, %v5190
      %v5192 = vrot.slane %v5191, 4
      %v5194 = vshrl.u32 %v4837, 16
      %v5196 = vrot.slane %v5194, 5
      %v5197 = vshll.u32 %v4837, 16
      %v5199 = vrot.slane %v5197, 6
      %v5200 = vor.u32 %v5196, %v5199
      %v5201 = vsel %vm1800, %v5192, %v5200
      %v5202 = vrot.slane %v5200, 4
      %v5204 = vshrl.u32 %v4838, 16
      %v5206 = vrot.slane %v5204, 5
      %v5207 = vshll.u32 %v4838, 16
      %v5209 = vrot.slane %v5207, 6
      %v5210 = vor.u32 %v5206, %v5209
      %v5211 = vsel %vm1800, %v5202, %v5210
      %v5213 = vshrl.u32 %v4839, 16
      %v5215 = vrot.slane %v5213, 5
      %v5216 = vshll.u32 %v4839, 16
      %v5218 = vrot.slane %v5216, 6
      %v5219 = vor.u32 %v5215, %v5218
      %v5220 = vrot.slane %v5219, 4
      %v5222 = vshrl.u32 %v4840, 16
      %v5224 = vrot.slane %v5222, 5
      %v5225 = vshll.u32 %v4840, 16
      %v5227 = vrot.slane %v5225, 6
      %v5228 = vor.u32 %v5224, %v5227
      %v5229 = vsel %vm1800, %v5220, %v5228
      %v5230 = vrot.slane %v5228, 4
      %v5232 = vshrl.u32 %v4841, 16
      %v5234 = vrot.slane %v5232, 5
      %v5235 = vshll.u32 %v4841, 16
      %v5237 = vrot.slane %v5235, 6
      %v5238 = vor.u32 %v5234, %v5237
      %v5239 = vsel %vm1800, %v5230, %v5238
      %v5241 = vshrl.u32 %v4842, 16
      %v5243 = vrot.slane %v5241, 5
      %v5244 = vshll.u32 %v4842, 16
      %v5246 = vrot.slane %v5244, 6
      %v5247 = vor.u32 %v5243, %v5246
      %v5248 = vrot.slane %v5247, 4
      %v5250 = vshrl.u32 %v4843, 16
      %v5252 = vrot.slane %v5250, 5
      %v5253 = vshll.u32 %v4843, 16
      %v5255 = vrot.slane %v5253, 6
      %v5256 = vor.u32 %v5252, %v5255
      %v5257 = vsel %vm1800, %v5248, %v5256
      %v5258 = vrot.slane %v5256, 4
      %v5260 = vshrl.u32 %v4844, 16
      %v5262 = vrot.slane %v5260, 5
      %v5263 = vshll.u32 %v4844, 16
      %v5265 = vrot.slane %v5263, 6
      %v5266 = vor.u32 %v5262, %v5265
      %v5267 = vsel %vm1800, %v5258, %v5266
      %v5269 = vshrl.u32 %v4845, 16
      %v5271 = vrot.slane %v5269, 5
      %v5272 = vshll.u32 %v4845, 16
      %v5274 = vrot.slane %v5272, 6
      %v5275 = vor.u32 %v5271, %v5274
      %v5276 = vrot.slane %v5275, 4
      %v5278 = vshrl.u32 %v4846, 16
      %v5280 = vrot.slane %v5278, 5
      %v5281 = vshll.u32 %v4846, 16
      %v5283 = vrot.slane %v5281, 6
      %v5284 = vor.u32 %v5280, %v5283
      %v5285 = vsel %vm1800, %v5276, %v5284
      %v5286 = vrot.slane %v5284, 4
      %v5288 = vshrl.u32 %v4847, 16
      %v5290 = vrot.slane %v5288, 5
      %v5291 = vshll.u32 %v4847, 16
      %v5293 = vrot.slane %v5291, 6
      %v5294 = vor.u32 %v5290, %v5293
      %v5295 = vsel %vm1800, %v5286, %v5294
      %5296 = vrot.lane.b32.xlu0 %v4865, 32
      %v5297 = vpop.permute.xlu0 %5296
      %5298 = vrot.lane.b32.xlu0 %v4875, 32
      %v5299 = vpop.permute.xlu0 %5298
      %5300 = vrot.lane.b32.xlu0 %v4893, 32
      %v5301 = vpop.permute.xlu0 %5300
      %5302 = vrot.lane.b32.xlu0 %v4903, 32
      %v5303 = vpop.permute.xlu0 %5302
      %5304 = vrot.lane.b32.xlu0 %v4921, 32
      %v5305 = vpop.permute.xlu0 %5304
      %5306 = vrot.lane.b32.xlu0 %v4931, 32
      %v5307 = vpop.permute.xlu0 %5306
      %5308 = vrot.lane.b32.xlu0 %v4949, 32
      %v5309 = vpop.permute.xlu0 %5308
      %5310 = vrot.lane.b32.xlu0 %v4959, 32
      %v5311 = vpop.permute.xlu0 %5310
      %5312 = vrot.lane.b32.xlu0 %v4977, 32
      %v5313 = vpop.permute.xlu0 %5312
      %5314 = vrot.lane.b32.xlu0 %v4987, 32
      %v5315 = vpop.permute.xlu0 %5314
      %5316 = vrot.lane.b32.xlu0 %v5005, 32
      %v5317 = vpop.permute.xlu0 %5316
      %5318 = vrot.lane.b32.xlu0 %v5015, 32
      %v5319 = vpop.permute.xlu0 %5318
      %5320 = vrot.lane.b32.xlu0 %v5033, 32
      %v5321 = vpop.permute.xlu0 %5320
      %5322 = vrot.lane.b32.xlu0 %v5043, 32
      %v5323 = vpop.permute.xlu0 %5322
      %5324 = vrot.lane.b32.xlu0 %v5061, 32
      %v5325 = vpop.permute.xlu0 %5324
      %5326 = vrot.lane.b32.xlu0 %v5071, 32
      %v5327 = vpop.permute.xlu0 %5326
      %5328 = vrot.lane.b32.xlu0 %v5089, 32
      %v5329 = vpop.permute.xlu0 %5328
      %5330 = vrot.lane.b32.xlu0 %v5099, 32
      %v5331 = vpop.permute.xlu0 %5330
      %5332 = vrot.lane.b32.xlu0 %v5117, 32
      %v5333 = vpop.permute.xlu0 %5332
      %5334 = vrot.lane.b32.xlu0 %v5127, 32
      %v5335 = vpop.permute.xlu0 %5334
      %5336 = vrot.lane.b32.xlu0 %v5145, 32
      %v5337 = vpop.permute.xlu0 %5336
      %5338 = vrot.lane.b32.xlu0 %v5155, 32
      %v5339 = vpop.permute.xlu0 %5338
      %5340 = vrot.lane.b32.xlu0 %v5173, 32
      %v5341 = vpop.permute.xlu0 %5340
      %5342 = vrot.lane.b32.xlu0 %v5183, 32
      %v5343 = vpop.permute.xlu0 %5342
      %5344 = vrot.lane.b32.xlu0 %v5201, 32
      %v5345 = vpop.permute.xlu0 %5344
      %5346 = vrot.lane.b32.xlu0 %v5211, 32
      %v5347 = vpop.permute.xlu0 %5346
      %5348 = vrot.lane.b32.xlu0 %v5229, 32
      %v5349 = vpop.permute.xlu0 %5348
      %5350 = vrot.lane.b32.xlu0 %v5239, 32
      %v5351 = vpop.permute.xlu0 %5350
      %5352 = vrot.lane.b32.xlu0 %v5257, 32
      %v5353 = vpop.permute.xlu0 %5352
      %5354 = vrot.lane.b32.xlu0 %v5267, 32
      %v5355 = vpop.permute.xlu0 %5354
      %5356 = vrot.lane.b32.xlu0 %v5285, 32
      %v5357 = vpop.permute.xlu0 %5356
      %5358 = vrot.lane.b32.xlu0 %v5295, 32
      %v5359 = vpop.permute.xlu0 %5358
      %vm5392 = vcmask 290048
      %5393 = vst.msk [vmem:[#allocation3] sm:$0xf] %vm5392, %v5297
      %5394 = vst.msk [vmem:[#allocation3 + $0x4] sm:$0xf] %vm5392, %v5299
      %5395 = vst.msk [vmem:[#allocation3 + $0x8] sm:$0xf] %vm5392, %v5301
      %5396 = vst.msk [vmem:[#allocation3 + $0xc] sm:$0xf] %vm5392, %v5303
      %5397 = vst.msk [vmem:[#allocation3 + $0x10] sm:$0xf] %vm5392, %v5305
      %5398 = vst.msk [vmem:[#allocation3 + $0x14] sm:$0xf] %vm5392, %v5307
      %5399 = vst.msk [vmem:[#allocation3 + $0x18] sm:$0xf] %vm5392, %v5309
      %5400 = vst.msk [vmem:[#allocation3 + $0x1c] sm:$0xf] %vm5392, %v5311
      %5401 = vst.msk [vmem:[#allocation3 + $0x20] sm:$0xf] %vm5392, %v5313
      %5402 = vst.msk [vmem:[#allocation3 + $0x24] sm:$0xf] %vm5392, %v5315
      %5403 = vst.msk [vmem:[#allocation3 + $0x28] sm:$0xf] %vm5392, %v5317
      %5404 = vst.msk [vmem:[#allocation3 + $0x2c] sm:$0xf] %vm5392, %v5319
      %5405 = vst.msk [vmem:[#allocation3 + $0x30] sm:$0xf] %vm5392, %v5321
      %5406 = vst.msk [vmem:[#allocation3 + $0x34] sm:$0xf] %vm5392, %v5323
      %5407 = vst.msk [vmem:[#allocation3 + $0x38] sm:$0xf] %vm5392, %v5325
      %5408 = vst.msk [vmem:[#allocation3 + $0x3c] sm:$0xf] %vm5392, %v5327
      %5409 = vst.msk [vmem:[#allocation3 + $0x40] sm:$0xf] %vm5392, %v5329
      %5410 = vst.msk [vmem:[#allocation3 + $0x44] sm:$0xf] %vm5392, %v5331
      %5411 = vst.msk [vmem:[#allocation3 + $0x48] sm:$0xf] %vm5392, %v5333
      %5412 = vst.msk [vmem:[#allocation3 + $0x4c] sm:$0xf] %vm5392, %v5335
      %5413 = vst.msk [vmem:[#allocation3 + $0x50] sm:$0xf] %vm5392, %v5337
      %5414 = vst.msk [vmem:[#allocation3 + $0x54] sm:$0xf] %vm5392, %v5339
      %5415 = vst.msk [vmem:[#allocation3 + $0x58] sm:$0xf] %vm5392, %v5341
      %5416 = vst.msk [vmem:[#allocation3 + $0x5c] sm:$0xf] %vm5392, %v5343
      %5417 = vst.msk [vmem:[#allocation3 + $0x60] sm:$0xf] %vm5392, %v5345
      %5418 = vst.msk [vmem:[#allocation3 + $0x64] sm:$0xf] %vm5392, %v5347
      %5419 = vst.msk [vmem:[#allocation3 + $0x68] sm:$0xf] %vm5392, %v5349
      %5420 = vst.msk [vmem:[#allocation3 + $0x6c] sm:$0xf] %vm5392, %v5351
      %5421 = vst.msk [vmem:[#allocation3 + $0x70] sm:$0xf] %vm5392, %v5353
      %5422 = vst.msk [vmem:[#allocation3 + $0x74] sm:$0xf] %vm5392, %v5355
      %5423 = vst.msk [vmem:[#allocation3 + $0x78] sm:$0xf] %vm5392, %v5357
      %5424 = vst.msk [vmem:[#allocation3 + $0x7c] sm:$0xf] %vm5392, %v5359
      %v5425 = vld [vmem:[#allocation3] sm:$0xf]
      %v5426 = vld [vmem:[#allocation3 + $0x4] sm:$0xf]
      %v5427 = vld [vmem:[#allocation3 + $0x8] sm:$0xf]
      %v5428 = vld [vmem:[#allocation3 + $0xc] sm:$0xf]
      %v5429 = vld [vmem:[#allocation3 + $0x10] sm:$0xf]
      %v5430 = vld [vmem:[#allocation3 + $0x14] sm:$0xf]
      %v5431 = vld [vmem:[#allocation3 + $0x18] sm:$0xf]
      %v5432 = vld [vmem:[#allocation3 + $0x1c] sm:$0xf]
      %v5433 = vld [vmem:[#allocation3 + $0x20] sm:$0xf]
      %v5434 = vld [vmem:[#allocation3 + $0x24] sm:$0xf]
      %v5435 = vld [vmem:[#allocation3 + $0x28] sm:$0xf]
      %v5436 = vld [vmem:[#allocation3 + $0x2c] sm:$0xf]
      %v5437 = vld [vmem:[#allocation3 + $0x30] sm:$0xf]
      %v5438 = vld [vmem:[#allocation3 + $0x34] sm:$0xf]
      %v5439 = vld [vmem:[#allocation3 + $0x38] sm:$0xf]
      %v5440 = vld [vmem:[#allocation3 + $0x3c] sm:$0xf]
      %v5441 = vld [vmem:[#allocation3 + $0x40] sm:$0xf]
      %v5442 = vld [vmem:[#allocation3 + $0x44] sm:$0xf]
      %v5443 = vld [vmem:[#allocation3 + $0x48] sm:$0xf]
      %v5444 = vld [vmem:[#allocation3 + $0x4c] sm:$0xf]
      %v5445 = vld [vmem:[#allocation3 + $0x50] sm:$0xf]
      %v5446 = vld [vmem:[#allocation3 + $0x54] sm:$0xf]
      %v5447 = vld [vmem:[#allocation3 + $0x58] sm:$0xf]
      %v5448 = vld [vmem:[#allocation3 + $0x5c] sm:$0xf]
      %v5449 = vld [vmem:[#allocation3 + $0x60] sm:$0xf]
      %v5450 = vld [vmem:[#allocation3 + $0x64] sm:$0xf]
      %v5451 = vld [vmem:[#allocation3 + $0x68] sm:$0xf]
      %v5452 = vld [vmem:[#allocation3 + $0x6c] sm:$0xf]
      %v5453 = vld [vmem:[#allocation3 + $0x70] sm:$0xf]
      %v5454 = vld [vmem:[#allocation3 + $0x74] sm:$0xf]
      %v5455 = vld [vmem:[#allocation3 + $0x78] sm:$0xf]
      %v5456 = vld [vmem:[#allocation3 + $0x7c] sm:$0xf]
      %v5457 = vld [vmem:[%s1] sm:$0xf]
      %v5458 = vld [vmem:[%s1 + $0x4] sm:$0xf]
      %v5459 = vld [vmem:[%s1 + $0x8] sm:$0xf]
      %v5460 = vld [vmem:[%s1 + $0xc] sm:$0xf]
      %v5461 = vld [vmem:[%s1 + $0x10] sm:$0x3]
      %v5462 = vld [vmem:[%s2] sm:$0x1]
      %v5464 = vlaneseq
      %v5465 = vshrl.u32 %v5464, 7
      %v5466 = vsub.s32 0, %v5465
      %v5467 = vrot.slane %v5462, %v5466
      %v5501 = vunpack.c.l.b16 %v5425
      %v5502 = vunpack.c.l.b16 %v5426
      %v5503 = vunpack.c.l.b16 %v5427
      %v5504 = vunpack.c.l.b16 %v5428
      %v5505 = vunpack.c.l.b16 %v5429
      %v5506 = vunpack.c.l.b16 %v5430
      %v5507 = vunpack.c.l.b16 %v5431
      %v5508 = vunpack.c.l.b16 %v5432
      %v5509 = vunpack.c.l.b16 %v5433
      %v5510 = vunpack.c.l.b16 %v5434
      %v5511 = vunpack.c.l.b16 %v5435
      %v5512 = vunpack.c.l.b16 %v5436
      %v5513 = vunpack.c.l.b16 %v5437
      %v5514 = vunpack.c.l.b16 %v5438
      %v5515 = vunpack.c.l.b16 %v5439
      %v5516 = vunpack.c.l.b16 %v5440
      %v5517 = vunpack.c.l.b16 %v5441
      %v5518 = vunpack.c.l.b16 %v5442
      %v5519 = vunpack.c.l.b16 %v5443
      %v5520 = vunpack.c.l.b16 %v5444
      %v5521 = vunpack.c.l.b16 %v5445
      %v5522 = vunpack.c.l.b16 %v5446
      %v5523 = vunpack.c.l.b16 %v5447
      %v5524 = vunpack.c.l.b16 %v5448
      %v5525 = vunpack.c.l.b16 %v5449
      %v5526 = vunpack.c.l.b16 %v5450
      %v5527 = vunpack.c.l.b16 %v5451
      %v5528 = vunpack.c.l.b16 %v5452
      %v5529 = vunpack.c.l.b16 %v5453
      %v5530 = vunpack.c.l.b16 %v5454
      %v5531 = vunpack.c.l.b16 %v5455
      %v5532 = vunpack.c.l.b16 %v5456
      %v5533 = vpack.c.b16 %v5502, %v5501
      %v5534 = vpack.c.b16 %v5504, %v5503
      %v5535 = vpack.c.b16 %v5506, %v5505
      %v5536 = vpack.c.b16 %v5508, %v5507
      %v5537 = vpack.c.b16 %v5510, %v5509
      %v5538 = vpack.c.b16 %v5512, %v5511
      %v5539 = vpack.c.b16 %v5514, %v5513
      %v5540 = vpack.c.b16 %v5516, %v5515
      %v5541 = vpack.c.b16 %v5518, %v5517
      %v5542 = vpack.c.b16 %v5520, %v5519
      %v5543 = vpack.c.b16 %v5522, %v5521
      %v5544 = vpack.c.b16 %v5524, %v5523
      %v5545 = vpack.c.b16 %v5526, %v5525
      %v5546 = vpack.c.b16 %v5528, %v5527
      %v5547 = vpack.c.b16 %v5530, %v5529
      %v5548 = vpack.c.b16 %v5532, %v5531
      %v5554 = vunpack.c.l.b16 %v5457
      %v5555 = vunpack.c.l.b16 %v5458
      %v5556 = vunpack.c.l.b16 %v5459
      %v5557 = vunpack.c.l.b16 %v5460
      %v5558 = vunpack.c.l.b16 %v5461
      %v5559 = vpack.c.b16 %v5555, %v5554
      %v5560 = vpack.c.b16 %v5557, %v5556
      %v5561 = vpack.c.b16 %v5558, %v5558
      %vm5564 = vcmask 293888
      %v5566 = vsel %vm5564, %v5533, 0
      %v5569 = vsel %vm5564, %v5534, 0
      %v5572 = vsel %vm5564, %v5535, 0
      %v5575 = vsel %vm5564, %v5536, 0
      %v5578 = vsel %vm5564, %v5537, 0
      %v5581 = vsel %vm5564, %v5538, 0
      %v5584 = vsel %vm5564, %v5539, 0
      %v5587 = vsel %vm5564, %v5540, 0
      %v5590 = vsel %vm5564, %v5541, 0
      %v5593 = vsel %vm5564, %v5542, 0
      %v5596 = vsel %vm5564, %v5543, 0
      %v5599 = vsel %vm5564, %v5544, 0
      %v5602 = vsel %vm5564, %v5545, 0
      %v5605 = vsel %vm5564, %v5546, 0
      %v5608 = vsel %vm5564, %v5547, 0
      %v5611 = vsel %vm5564, %v5548, 0
      %vm5613 = vcmask 1041408
      %v5615 = vsel %vm5613, %v5561, 0
      %5617 = vmatprep.subr.bf16.mxu0 0
      %5618 = vmatpush1.bf16.msra.mxu0 0
      %5619 = vmatprep.subr.bf16.mxu0 0
      %5620 = vmatpush1.bf16.msra.mxu0 0
      %5621 = vmatprep.subr.bf16.mxu0 0
      %5622 = vmatpush1.bf16.msra.mxu0 0
      %5623 = vmatprep.subr.bf16.mxu0 0
      %5624 = vmatpush1.bf16.msra.mxu0 0
      %5625 = vmatprep.subr.bf16.mxu0 0
      %5626 = vmatpush1.bf16.msra.mxu0 0
      %5627 = vmatprep.subr.bf16.mxu0 0
      %5628 = vmatpush1.bf16.msra.mxu0 %v5615
      %5629 = vmatprep.subr.bf16.mxu0 0
      %5630 = vmatpush1.bf16.msra.mxu0 %v5560
      %5631 = vmatprep.subr.bf16.mxu0 0
      %5632 = vmatpush1.bf16.msra.mxu0 %v5559
      %5633 = vmatprep.subr.bf16.mxu0 0
      %5634 = vmatpush2.bf16.msra.mxu0 0
      %5635 = vmatprep.subr.bf16.mxu0 0
      %5636 = vmatpush2.bf16.msra.mxu0 0
      %5637 = vmatprep.subr.bf16.mxu0 0
      %5638 = vmatpush2.bf16.msra.mxu0 0
      %5639 = vmatprep.subr.bf16.mxu0 0
      %5640 = vmatpush2.bf16.msra.mxu0 0
      %5641 = vmatprep.subr.bf16.mxu0 0
      %5642 = vmatpush2.bf16.msra.mxu0 0
      %5643 = vmatprep.subr.bf16.mxu0 0
      %5644 = vmatpush2.bf16.msra.mxu0 0
      %5645 = vmatprep.subr.bf16.mxu0 0
      %5646 = vmatpush2.bf16.msra.mxu0 0
      %5647 = vmatprep.subr.bf16.mxu0 0
      %5648 = vmatpush2.bf16.msra.mxu0 0
      %5649 = vmatprep.mubr.bf16.mxu0 0
      %5650 = vmatmul.mubr.bf16.gmra.mxu0 %v5566
      %v5651 = vpop.f32.mrf.mxu0
      %v5652 = vadd.f32 %v5467, %v5651
      %v5653 = vpop.f32.mrf.mxu0
      %v5654 = vpop.f32.mrf.mxu0
      %v5655 = vadd.f32 %v5467, %v5654
      %v5656 = vpop.f32.mrf.mxu0
      %5657 = vmatprep.mubr.bf16.mxu0 0
      %5658 = vmatmul.mubr.bf16.gmra.mxu0 %v5569
      %v5659 = vpop.f32.mrf.mxu0
      %v5660 = vadd.f32 %v5467, %v5659
      %v5661 = vpop.f32.mrf.mxu0
      %v5662 = vpop.f32.mrf.mxu0
      %v5663 = vadd.f32 %v5467, %v5662
      %v5664 = vpop.f32.mrf.mxu0
      %5665 = vmatprep.mubr.bf16.mxu0 0
      %5666 = vmatmul.mubr.bf16.gmra.mxu0 %v5572
      %v5667 = vpop.f32.mrf.mxu0
      %v5668 = vadd.f32 %v5467, %v5667
      %v5669 = vpop.f32.mrf.mxu0
      %v5670 = vpop.f32.mrf.mxu0
      %v5671 = vadd.f32 %v5467, %v5670
      %v5672 = vpop.f32.mrf.mxu0
      %5673 = vmatprep.mubr.bf16.mxu0 0
      %5674 = vmatmul.mubr.bf16.gmra.mxu0 %v5575
      %v5675 = vpop.f32.mrf.mxu0
      %v5676 = vadd.f32 %v5467, %v5675
      %v5677 = vpop.f32.mrf.mxu0
      %v5678 = vpop.f32.mrf.mxu0
      %v5679 = vadd.f32 %v5467, %v5678
      %v5680 = vpop.f32.mrf.mxu0
      %5681 = vmatprep.mubr.bf16.mxu0 0
      %5682 = vmatmul.mubr.bf16.gmra.mxu0 %v5578
      %v5683 = vpop.f32.mrf.mxu0
      %v5684 = vadd.f32 %v5467, %v5683
      %v5685 = vpop.f32.mrf.mxu0
      %v5686 = vpop.f32.mrf.mxu0
      %v5687 = vadd.f32 %v5467, %v5686
      %v5688 = vpop.f32.mrf.mxu0
      %5689 = vmatprep.mubr.bf16.mxu0 0
      %5690 = vmatmul.mubr.bf16.gmra.mxu0 %v5581
      %v5691 = vpop.f32.mrf.mxu0
      %v5692 = vadd.f32 %v5467, %v5691
      %v5693 = vpop.f32.mrf.mxu0
      %v5694 = vpop.f32.mrf.mxu0
      %v5695 = vadd.f32 %v5467, %v5694
      %v5696 = vpop.f32.mrf.mxu0
      %5697 = vmatprep.mubr.bf16.mxu0 0
      %5698 = vmatmul.mubr.bf16.gmra.mxu0 %v5584
      %v5699 = vpop.f32.mrf.mxu0
      %v5700 = vadd.f32 %v5467, %v5699
      %v5701 = vpop.f32.mrf.mxu0
      %v5702 = vpop.f32.mrf.mxu0
      %v5703 = vadd.f32 %v5467, %v5702
      %v5704 = vpop.f32.mrf.mxu0
      %5705 = vmatprep.mubr.bf16.mxu0 0
      %5706 = vmatmul.mubr.bf16.gmra.mxu0 %v5587
      %v5707 = vpop.f32.mrf.mxu0
      %v5708 = vadd.f32 %v5467, %v5707
      %v5709 = vpop.f32.mrf.mxu0
      %v5710 = vpop.f32.mrf.mxu0
      %v5711 = vadd.f32 %v5467, %v5710
      %v5712 = vpop.f32.mrf.mxu0
      %5713 = vmatprep.mubr.bf16.mxu0 0
      %5714 = vmatmul.mubr.bf16.gmra.mxu0 %v5590
      %v5715 = vpop.f32.mrf.mxu0
      %v5716 = vadd.f32 %v5467, %v5715
      %v5717 = vpop.f32.mrf.mxu0
      %v5718 = vpop.f32.mrf.mxu0
      %v5719 = vadd.f32 %v5467, %v5718
      %v5720 = vpop.f32.mrf.mxu0
      %5721 = vmatprep.mubr.bf16.mxu0 0
      %5722 = vmatmul.mubr.bf16.gmra.mxu0 %v5593
      %v5723 = vpop.f32.mrf.mxu0
      %v5724 = vadd.f32 %v5467, %v5723
      %v5725 = vpop.f32.mrf.mxu0
      %v5726 = vpop.f32.mrf.mxu0
      %v5727 = vadd.f32 %v5467, %v5726
      %v5728 = vpop.f32.mrf.mxu0
      %5729 = vmatprep.mubr.bf16.mxu0 0
      %5730 = vmatmul.mubr.bf16.gmra.mxu0 %v5596
      %v5731 = vpop.f32.mrf.mxu0
      %v5732 = vadd.f32 %v5467, %v5731
      %v5733 = vpop.f32.mrf.mxu0
      %v5734 = vpop.f32.mrf.mxu0
      %v5735 = vadd.f32 %v5467, %v5734
      %v5736 = vpop.f32.mrf.mxu0
      %5737 = vmatprep.mubr.bf16.mxu0 0
      %5738 = vmatmul.mubr.bf16.gmra.mxu0 %v5599
      %v5739 = vpop.f32.mrf.mxu0
      %v5740 = vadd.f32 %v5467, %v5739
      %v5741 = vpop.f32.mrf.mxu0
      %v5742 = vpop.f32.mrf.mxu0
      %v5743 = vadd.f32 %v5467, %v5742
      %v5744 = vpop.f32.mrf.mxu0
      %5745 = vmatprep.mubr.bf16.mxu0 0
      %5746 = vmatmul.mubr.bf16.gmra.mxu0 %v5602
      %v5747 = vpop.f32.mrf.mxu0
      %v5748 = vadd.f32 %v5467, %v5747
      %v5749 = vpop.f32.mrf.mxu0
      %v5750 = vpop.f32.mrf.mxu0
      %v5751 = vadd.f32 %v5467, %v5750
      %v5752 = vpop.f32.mrf.mxu0
      %5753 = vmatprep.mubr.bf16.mxu0 0
      %5754 = vmatmul.mubr.bf16.gmra.mxu0 %v5605
      %v5755 = vpop.f32.mrf.mxu0
      %v5756 = vadd.f32 %v5467, %v5755
      %v5757 = vpop.f32.mrf.mxu0
      %v5758 = vpop.f32.mrf.mxu0
      %v5759 = vadd.f32 %v5467, %v5758
      %v5760 = vpop.f32.mrf.mxu0
      %5761 = vmatprep.mubr.bf16.mxu0 0
      %5762 = vmatmul.mubr.bf16.gmra.mxu0 %v5608
      %v5763 = vpop.f32.mrf.mxu0
      %v5764 = vadd.f32 %v5467, %v5763
      %v5765 = vpop.f32.mrf.mxu0
      %v5766 = vpop.f32.mrf.mxu0
      %v5767 = vadd.f32 %v5467, %v5766
      %v5768 = vpop.f32.mrf.mxu0
      %5769 = vmatprep.mubr.bf16.mxu0 0
      %5770 = vmatmul.mubr.bf16.gmra.mxu0 %v5611
      %v5771 = vpop.f32.mrf.mxu0
      %v5772 = vadd.f32 %v5467, %v5771
      %v5773 = vpop.f32.mrf.mxu0
      %v5774 = vpop.f32.mrf.mxu0
      %v5775 = vadd.f32 %v5467, %v5774
      %v5776 = vpop.f32.mrf.mxu0
      %5777 = vdwg.mxu0
      %v5778 = vld [vmem:[%s7] sm:$0x1]
      %v5780 = vlaneseq
      %v5781 = vshrl.u32 %v5780, 7
      %v5782 = vsub.s32 0, %v5781
      %v5783 = vrot.slane %v5778, %v5782
      %v5785 = vmul.f32 %v5652, %v5783
      %v5786 = vmul.f32 %v5655, %v5783
      %v5787 = vmul.f32 %v5660, %v5783
      %v5788 = vmul.f32 %v5663, %v5783
      %v5789 = vmul.f32 %v5668, %v5783
      %v5790 = vmul.f32 %v5671, %v5783
      %v5791 = vmul.f32 %v5676, %v5783
      %v5792 = vmul.f32 %v5679, %v5783
      %v5793 = vmul.f32 %v5684, %v5783
      %v5794 = vmul.f32 %v5687, %v5783
      %v5795 = vmul.f32 %v5692, %v5783
      %v5796 = vmul.f32 %v5695, %v5783
      %v5797 = vmul.f32 %v5700, %v5783
      %v5798 = vmul.f32 %v5703, %v5783
      %v5799 = vmul.f32 %v5708, %v5783
      %v5800 = vmul.f32 %v5711, %v5783
      %v5801 = vmul.f32 %v5716, %v5783
      %v5802 = vmul.f32 %v5719, %v5783
      %v5803 = vmul.f32 %v5724, %v5783
      %v5804 = vmul.f32 %v5727, %v5783
      %v5805 = vmul.f32 %v5732, %v5783
      %v5806 = vmul.f32 %v5735, %v5783
      %v5807 = vmul.f32 %v5740, %v5783
      %v5808 = vmul.f32 %v5743, %v5783
      %v5809 = vmul.f32 %v5748, %v5783
      %v5810 = vmul.f32 %v5751, %v5783
      %v5811 = vmul.f32 %v5756, %v5783
      %v5812 = vmul.f32 %v5759, %v5783
      %v5813 = vmul.f32 %v5764, %v5783
      %v5814 = vmul.f32 %v5767, %v5783
      %v5815 = vmul.f32 %v5772, %v5783
      %v5816 = vmul.f32 %v5775, %v5783
      %v5817 = vld [vmem:[%s8] sm:$0x1]
      %v5819 = vlaneseq
      %v5820 = vshrl.u32 %v5819, 7
      %v5821 = vsub.s32 0, %v5820
      %v5822 = vrot.slane %v5817, %v5821
      %v5824 = vadd.f32 %v5785, %v5822
      %v5825 = vadd.f32 %v5786, %v5822
      %v5826 = vadd.f32 %v5787, %v5822
      %v5827 = vadd.f32 %v5788, %v5822
      %v5828 = vadd.f32 %v5789, %v5822
      %v5829 = vadd.f32 %v5790, %v5822
      %v5830 = vadd.f32 %v5791, %v5822
      %v5831 = vadd.f32 %v5792, %v5822
      %v5832 = vadd.f32 %v5793, %v5822
      %v5833 = vadd.f32 %v5794, %v5822
      %v5834 = vadd.f32 %v5795, %v5822
      %v5835 = vadd.f32 %v5796, %v5822
      %v5836 = vadd.f32 %v5797, %v5822
      %v5837 = vadd.f32 %v5798, %v5822
      %v5838 = vadd.f32 %v5799, %v5822
      %v5839 = vadd.f32 %v5800, %v5822
      %v5840 = vadd.f32 %v5801, %v5822
      %v5841 = vadd.f32 %v5802, %v5822
      %v5842 = vadd.f32 %v5803, %v5822
      %v5843 = vadd.f32 %v5804, %v5822
      %v5844 = vadd.f32 %v5805, %v5822
      %v5845 = vadd.f32 %v5806, %v5822
      %v5846 = vadd.f32 %v5807, %v5822
      %v5847 = vadd.f32 %v5808, %v5822
      %v5848 = vadd.f32 %v5809, %v5822
      %v5849 = vadd.f32 %v5810, %v5822
      %v5850 = vadd.f32 %v5811, %v5822
      %v5851 = vadd.f32 %v5812, %v5822
      %v5852 = vadd.f32 %v5813, %v5822
      %v5853 = vadd.f32 %v5814, %v5822
      %v5854 = vadd.f32 %v5815, %v5822
      %v5855 = vadd.f32 %v5816, %v5822
      %vm5856 = vcmp.ge.f32.partialorder %v5824, 0.0
      %vm5857 = vcmp.ge.f32.partialorder %v5825, 0.0
      %vm5858 = vcmp.ge.f32.partialorder %v5826, 0.0
      %vm5859 = vcmp.ge.f32.partialorder %v5827, 0.0
      %vm5860 = vcmp.ge.f32.partialorder %v5828, 0.0
      %vm5861 = vcmp.ge.f32.partialorder %v5829, 0.0
      %vm5862 = vcmp.ge.f32.partialorder %v5830, 0.0
      %vm5863 = vcmp.ge.f32.partialorder %v5831, 0.0
      %vm5864 = vcmp.ge.f32.partialorder %v5832, 0.0
      %vm5865 = vcmp.ge.f32.partialorder %v5833, 0.0
      %vm5866 = vcmp.ge.f32.partialorder %v5834, 0.0
      %vm5867 = vcmp.ge.f32.partialorder %v5835, 0.0
      %vm5868 = vcmp.ge.f32.partialorder %v5836, 0.0
      %vm5869 = vcmp.ge.f32.partialorder %v5837, 0.0
      %vm5870 = vcmp.ge.f32.partialorder %v5838, 0.0
      %vm5871 = vcmp.ge.f32.partialorder %v5839, 0.0
      %vm5872 = vcmp.ge.f32.partialorder %v5840, 0.0
      %vm5873 = vcmp.ge.f32.partialorder %v5841, 0.0
      %vm5874 = vcmp.ge.f32.partialorder %v5842, 0.0
      %vm5875 = vcmp.ge.f32.partialorder %v5843, 0.0
      %vm5876 = vcmp.ge.f32.partialorder %v5844, 0.0
      %vm5877 = vcmp.ge.f32.partialorder %v5845, 0.0
      %vm5878 = vcmp.ge.f32.partialorder %v5846, 0.0
      %vm5879 = vcmp.ge.f32.partialorder %v5847, 0.0
      %vm5880 = vcmp.ge.f32.partialorder %v5848, 0.0
      %vm5881 = vcmp.ge.f32.partialorder %v5849, 0.0
      %vm5882 = vcmp.ge.f32.partialorder %v5850, 0.0
      %vm5883 = vcmp.ge.f32.partialorder %v5851, 0.0
      %vm5884 = vcmp.ge.f32.partialorder %v5852, 0.0
      %vm5885 = vcmp.ge.f32.partialorder %v5853, 0.0
      %vm5886 = vcmp.ge.f32.partialorder %v5854, 0.0
      %vm5887 = vcmp.ge.f32.partialorder %v5855, 0.0
      %v5888 = vmul.f32 %v5824, 0.2
      %v5889 = vmul.f32 %v5825, 0.2
      %v5890 = vmul.f32 %v5826, 0.2
      %v5891 = vmul.f32 %v5827, 0.2
      %v5892 = vmul.f32 %v5828, 0.2
      %v5893 = vmul.f32 %v5829, 0.2
      %v5894 = vmul.f32 %v5830, 0.2
      %v5895 = vmul.f32 %v5831, 0.2
      %v5896 = vmul.f32 %v5832, 0.2
      %v5897 = vmul.f32 %v5833, 0.2
      %v5898 = vmul.f32 %v5834, 0.2
      %v5899 = vmul.f32 %v5835, 0.2
      %v5900 = vmul.f32 %v5836, 0.2
      %v5901 = vmul.f32 %v5837, 0.2
      %v5902 = vmul.f32 %v5838, 0.2
      %v5903 = vmul.f32 %v5839, 0.2
      %v5904 = vmul.f32 %v5840, 0.2
      %v5905 = vmul.f32 %v5841, 0.2
      %v5906 = vmul.f32 %v5842, 0.2
      %v5907 = vmul.f32 %v5843, 0.2
      %v5908 = vmul.f32 %v5844, 0.2
      %v5909 = vmul.f32 %v5845, 0.2
      %v5910 = vmul.f32 %v5846, 0.2
      %v5911 = vmul.f32 %v5847, 0.2
      %v5912 = vmul.f32 %v5848, 0.2
      %v5913 = vmul.f32 %v5849, 0.2
      %v5914 = vmul.f32 %v5850, 0.2
      %v5915 = vmul.f32 %v5851, 0.2
      %v5916 = vmul.f32 %v5852, 0.2
      %v5917 = vmul.f32 %v5853, 0.2
      %v5918 = vmul.f32 %v5854, 0.2
      %v5919 = vmul.f32 %v5855, 0.2
      %v5920 = vsel %vm5856, %v5824, %v5888
      %v5921 = vsel %vm5857, %v5825, %v5889
      %v5922 = vsel %vm5858, %v5826, %v5890
      %v5923 = vsel %vm5859, %v5827, %v5891
      %v5924 = vsel %vm5860, %v5828, %v5892
      %v5925 = vsel %vm5861, %v5829, %v5893
      %v5926 = vsel %vm5862, %v5830, %v5894
      %v5927 = vsel %vm5863, %v5831, %v5895
      %v5928 = vsel %vm5864, %v5832, %v5896
      %v5929 = vsel %vm5865, %v5833, %v5897
      %v5930 = vsel %vm5866, %v5834, %v5898
      %v5931 = vsel %vm5867, %v5835, %v5899
      %v5932 = vsel %vm5868, %v5836, %v5900
      %v5933 = vsel %vm5869, %v5837, %v5901
      %v5934 = vsel %vm5870, %v5838, %v5902
      %v5935 = vsel %vm5871, %v5839, %v5903
      %v5936 = vsel %vm5872, %v5840, %v5904
      %v5937 = vsel %vm5873, %v5841, %v5905
      %v5938 = vsel %vm5874, %v5842, %v5906
      %v5939 = vsel %vm5875, %v5843, %v5907
      %v5940 = vsel %vm5876, %v5844, %v5908
      %v5941 = vsel %vm5877, %v5845, %v5909
      %v5942 = vsel %vm5878, %v5846, %v5910
      %v5943 = vsel %vm5879, %v5847, %v5911
      %v5944 = vsel %vm5880, %v5848, %v5912
      %v5945 = vsel %vm5881, %v5849, %v5913
      %v5946 = vsel %vm5882, %v5850, %v5914
      %v5947 = vsel %vm5883, %v5851, %v5915
      %v5948 = vsel %vm5884, %v5852, %v5916
      %v5949 = vsel %vm5885, %v5853, %v5917
      %v5950 = vsel %vm5886, %v5854, %v5918
      %v5951 = vsel %vm5887, %v5855, %v5919
      %v5952 = vpack.c.bf16 %v5921, %v5920
      %v5953 = vpack.c.bf16 %v5923, %v5922
      %v5954 = vpack.c.bf16 %v5925, %v5924
      %v5955 = vpack.c.bf16 %v5927, %v5926
      %v5956 = vpack.c.bf16 %v5929, %v5928
      %v5957 = vpack.c.bf16 %v5931, %v5930
      %v5958 = vpack.c.bf16 %v5933, %v5932
      %v5959 = vpack.c.bf16 %v5935, %v5934
      %v5960 = vpack.c.bf16 %v5937, %v5936
      %v5961 = vpack.c.bf16 %v5939, %v5938
      %v5962 = vpack.c.bf16 %v5941, %v5940
      %v5963 = vpack.c.bf16 %v5943, %v5942
      %v5964 = vpack.c.bf16 %v5945, %v5944
      %v5965 = vpack.c.bf16 %v5947, %v5946
      %v5966 = vpack.c.bf16 %v5949, %v5948
      %v5967 = vpack.c.bf16 %v5951, %v5950
      %v5984 = vunpack.c.l.b16 %v5952
      %v5985 = vunpack.c.h.b16 %v5952
      %v5986 = vunpack.c.l.b16 %v5953
      %v5987 = vunpack.c.h.b16 %v5953
      %v5988 = vunpack.c.l.b16 %v5954
      %v5989 = vunpack.c.h.b16 %v5954
      %v5990 = vunpack.c.l.b16 %v5955
      %v5991 = vunpack.c.h.b16 %v5955
      %v5992 = vunpack.c.l.b16 %v5956
      %v5993 = vunpack.c.h.b16 %v5956
      %v5994 = vunpack.c.l.b16 %v5957
      %v5995 = vunpack.c.h.b16 %v5957
      %v5996 = vunpack.c.l.b16 %v5958
      %v5997 = vunpack.c.h.b16 %v5958
      %v5998 = vunpack.c.l.b16 %v5959
      %v5999 = vunpack.c.h.b16 %v5959
      %v6000 = vunpack.c.l.b16 %v5960
      %v6001 = vunpack.c.h.b16 %v5960
      %v6002 = vunpack.c.l.b16 %v5961
      %v6003 = vunpack.c.h.b16 %v5961
      %v6004 = vunpack.c.l.b16 %v5962
      %v6005 = vunpack.c.h.b16 %v5962
      %v6006 = vunpack.c.l.b16 %v5963
      %v6007 = vunpack.c.h.b16 %v5963
      %v6008 = vunpack.c.l.b16 %v5964
      %v6009 = vunpack.c.h.b16 %v5964
      %v6010 = vunpack.c.l.b16 %v5965
      %v6011 = vunpack.c.h.b16 %v5965
      %v6012 = vunpack.c.l.b16 %v5966
      %v6013 = vunpack.c.h.b16 %v5966
      %v6014 = vunpack.c.l.b16 %v5967
      %v6015 = vunpack.c.h.b16 %v5967
      %v6016 = vpack.c.b16 %v5984, %v5984
      %v6017 = vpack.c.b16 %v5985, %v5985
      %v6018 = vpack.c.b16 %v5986, %v5986
      %v6019 = vpack.c.b16 %v5987, %v5987
      %v6020 = vpack.c.b16 %v5988, %v5988
      %v6021 = vpack.c.b16 %v5989, %v5989
      %v6022 = vpack.c.b16 %v5990, %v5990
      %v6023 = vpack.c.b16 %v5991, %v5991
      %v6024 = vpack.c.b16 %v5992, %v5992
      %v6025 = vpack.c.b16 %v5993, %v5993
      %v6026 = vpack.c.b16 %v5994, %v5994
      %v6027 = vpack.c.b16 %v5995, %v5995
      %v6028 = vpack.c.b16 %v5996, %v5996
      %v6029 = vpack.c.b16 %v5997, %v5997
      %v6030 = vpack.c.b16 %v5998, %v5998
      %v6031 = vpack.c.b16 %v5999, %v5999
      %v6032 = vpack.c.b16 %v6000, %v6000
      %v6033 = vpack.c.b16 %v6001, %v6001
      %v6034 = vpack.c.b16 %v6002, %v6002
      %v6035 = vpack.c.b16 %v6003, %v6003
      %v6036 = vpack.c.b16 %v6004, %v6004
      %v6037 = vpack.c.b16 %v6005, %v6005
      %v6038 = vpack.c.b16 %v6006, %v6006
      %v6039 = vpack.c.b16 %v6007, %v6007
      %v6040 = vpack.c.b16 %v6008, %v6008
      %v6041 = vpack.c.b16 %v6009, %v6009
      %v6042 = vpack.c.b16 %v6010, %v6010
      %v6043 = vpack.c.b16 %v6011, %v6011
      %v6044 = vpack.c.b16 %v6012, %v6012
      %v6045 = vpack.c.b16 %v6013, %v6013
      %v6046 = vpack.c.b16 %v6014, %v6014
      %v6047 = vpack.c.b16 %v6015, %v6015
      %v6048 = vrot.slane %v6016, 7
      %v6049 = vrot.slane %v6048, 4
      %v6050 = vrot.slane %v6017, 7
      %v6051 = vsel %vm732, %v6049, %v6050
      %v6052 = vrot.slane %v6050, 4
      %v6053 = vrot.slane %v6018, 7
      %v6054 = vrot.slane %v6053, 4
      %v6055 = vrot.slane %v6019, 7
      %v6056 = vsel %vm732, %v6054, %v6055
      %v6057 = vrot.slane %v6055, 4
      %v6058 = vrot.slane %v6020, 7
      %v6059 = vrot.slane %v6058, 4
      %v6060 = vrot.slane %v6021, 7
      %v6061 = vsel %vm732, %v6059, %v6060
      %v6062 = vrot.slane %v6060, 4
      %v6063 = vrot.slane %v6022, 7
      %v6064 = vrot.slane %v6063, 4
      %v6065 = vrot.slane %v6023, 7
      %v6066 = vsel %vm732, %v6064, %v6065
      %v6067 = vrot.slane %v6065, 4
      %v6068 = vrot.slane %v6024, 7
      %v6069 = vrot.slane %v6068, 4
      %v6070 = vrot.slane %v6025, 7
      %v6071 = vsel %vm732, %v6069, %v6070
      %v6072 = vrot.slane %v6070, 4
      %v6073 = vrot.slane %v6026, 7
      %v6074 = vrot.slane %v6073, 4
      %v6075 = vrot.slane %v6027, 7
      %v6076 = vsel %vm732, %v6074, %v6075
      %v6077 = vrot.slane %v6075, 4
      %v6078 = vrot.slane %v6028, 7
      %v6079 = vrot.slane %v6078, 4
      %v6080 = vrot.slane %v6029, 7
      %v6081 = vsel %vm732, %v6079, %v6080
      %v6082 = vrot.slane %v6080, 4
      %v6083 = vrot.slane %v6030, 7
      %v6084 = vrot.slane %v6083, 4
      %v6085 = vrot.slane %v6031, 7
      %v6086 = vsel %vm732, %v6084, %v6085
      %v6087 = vrot.slane %v6085, 4
      %v6088 = vrot.slane %v6032, 7
      %v6089 = vrot.slane %v6088, 4
      %v6090 = vrot.slane %v6033, 7
      %v6091 = vsel %vm732, %v6089, %v6090
      %v6092 = vrot.slane %v6090, 4
      %v6093 = vrot.slane %v6034, 7
      %v6094 = vrot.slane %v6093, 4
      %v6095 = vrot.slane %v6035, 7
      %v6096 = vsel %vm732, %v6094, %v6095
      %v6097 = vrot.slane %v6095, 4
      %v6098 = vrot.slane %v6036, 7
      %v6099 = vrot.slane %v6098, 4
      %v6100 = vrot.slane %v6037, 7
      %v6101 = vsel %vm732, %v6099, %v6100
      %v6102 = vrot.slane %v6100, 4
      %v6103 = vrot.slane %v6038, 7
      %v6104 = vrot.slane %v6103, 4
      %v6105 = vrot.slane %v6039, 7
      %v6106 = vsel %vm732, %v6104, %v6105
      %v6107 = vrot.slane %v6105, 4
      %v6108 = vrot.slane %v6040, 7
      %v6109 = vrot.slane %v6108, 4
      %v6110 = vrot.slane %v6041, 7
      %v6111 = vsel %vm732, %v6109, %v6110
      %v6112 = vrot.slane %v6110, 4
      %v6113 = vrot.slane %v6042, 7
      %v6114 = vrot.slane %v6113, 4
      %v6115 = vrot.slane %v6043, 7
      %v6116 = vsel %vm732, %v6114, %v6115
      %v6117 = vrot.slane %v6115, 4
      %v6118 = vrot.slane %v6044, 7
      %v6119 = vrot.slane %v6118, 4
      %v6120 = vrot.slane %v6045, 7
      %v6121 = vsel %vm732, %v6119, %v6120
      %v6122 = vrot.slane %v6120, 4
      %v6123 = vrot.slane %v6046, 7
      %v6124 = vrot.slane %v6123, 4
      %v6125 = vrot.slane %v6047, 7
      %v6126 = vsel %vm732, %v6124, %v6125
      %v6127 = vrot.slane %v6125, 4
      %s6176 = scalar_lea.vmem [#allocation4], 12
      %vm6177 = vcmask 257025
      %6178 = vst.msk [vmem:[%s6176] sm:$0xe] %vm6177, %v6048
      %6179 = vst.msk [vmem:[%s6176 + $0x4] sm:$0xf] %vm381, %v6051
      %6180 = vst.msk [vmem:[%s6176 + $0x8] sm:$0x1] %vm390, %v6052
      %6181 = vst.msk [vmem:[%s6176 + $0xc] sm:$0xe] %vm6177, %v6053
      %6182 = vst.msk [vmem:[%s6176 + $0x10] sm:$0xf] %vm381, %v6056
      %6183 = vst.msk [vmem:[%s6176 + $0x14] sm:$0x1] %vm390, %v6057
      %6184 = vst.msk [vmem:[%s6176 + $0x18] sm:$0xe] %vm6177, %v6058
      %6185 = vst.msk [vmem:[%s6176 + $0x1c] sm:$0xf] %vm381, %v6061
      %6186 = vst.msk [vmem:[%s6176 + $0x20] sm:$0x1] %vm390, %v6062
      %6187 = vst.msk [vmem:[%s6176 + $0x24] sm:$0xe] %vm6177, %v6063
      %6188 = vst.msk [vmem:[%s6176 + $0x28] sm:$0xf] %vm381, %v6066
      %6189 = vst.msk [vmem:[%s6176 + $0x2c] sm:$0x1] %vm390, %v6067
      %6190 = vst.msk [vmem:[%s6176 + $0x30] sm:$0xe] %vm6177, %v6068
      %6191 = vst.msk [vmem:[%s6176 + $0x34] sm:$0xf] %vm381, %v6071
      %6192 = vst.msk [vmem:[%s6176 + $0x38] sm:$0x1] %vm390, %v6072
      %6193 = vst.msk [vmem:[%s6176 + $0x3c] sm:$0xe] %vm6177, %v6073
      %6194 = vst.msk [vmem:[%s6176 + $0x40] sm:$0xf] %vm381, %v6076
      %6195 = vst.msk [vmem:[%s6176 + $0x44] sm:$0x1] %vm390, %v6077
      %6196 = vst.msk [vmem:[%s6176 + $0x48] sm:$0xe] %vm6177, %v6078
      %6197 = vst.msk [vmem:[%s6176 + $0x4c] sm:$0xf] %vm381, %v6081
      %6198 = vst.msk [vmem:[%s6176 + $0x50] sm:$0x1] %vm390, %v6082
      %6199 = vst.msk [vmem:[%s6176 + $0x54] sm:$0xe] %vm6177, %v6083
      %6200 = vst.msk [vmem:[%s6176 + $0x58] sm:$0xf] %vm381, %v6086
      %6201 = vst.msk [vmem:[%s6176 + $0x5c] sm:$0x1] %vm390, %v6087
      %6202 = vst.msk [vmem:[%s6176 + $0x60] sm:$0xe] %vm6177, %v6088
      %6203 = vst.msk [vmem:[%s6176 + $0x64] sm:$0xf] %vm381, %v6091
      %6204 = vst.msk [vmem:[%s6176 + $0x68] sm:$0x1] %vm390, %v6092
      %6205 = vst.msk [vmem:[%s6176 + $0x6c] sm:$0xe] %vm6177, %v6093
      %6206 = vst.msk [vmem:[%s6176 + $0x70] sm:$0xf] %vm381, %v6096
      %6207 = vst.msk [vmem:[%s6176 + $0x74] sm:$0x1] %vm390, %v6097
      %6208 = vst.msk [vmem:[%s6176 + $0x78] sm:$0xe] %vm6177, %v6098
      %6209 = vst.msk [vmem:[%s6176 + $0x7c] sm:$0xf] %vm381, %v6101
      %6210 = vst.msk [vmem:[%s6176 + $0x80] sm:$0x1] %vm390, %v6102
      %6211 = vst.msk [vmem:[%s6176 + $0x84] sm:$0xe] %vm6177, %v6103
      %6212 = vst.msk [vmem:[%s6176 + $0x88] sm:$0xf] %vm381, %v6106
      %6213 = vst.msk [vmem:[%s6176 + $0x8c] sm:$0x1] %vm390, %v6107
      %6214 = vst.msk [vmem:[%s6176 + $0x90] sm:$0xe] %vm6177, %v6108
      %6215 = vst.msk [vmem:[%s6176 + $0x94] sm:$0xf] %vm381, %v6111
      %6216 = vst.msk [vmem:[%s6176 + $0x98] sm:$0x1] %vm390, %v6112
      %6217 = vst.msk [vmem:[%s6176 + $0x9c] sm:$0xe] %vm6177, %v6113
      %6218 = vst.msk [vmem:[%s6176 + $0xa0] sm:$0xf] %vm381, %v6116
      %6219 = vst.msk [vmem:[%s6176 + $0xa4] sm:$0x1] %vm390, %v6117
      %6220 = vst.msk [vmem:[%s6176 + $0xa8] sm:$0xe] %vm6177, %v6118
      %6221 = vst.msk [vmem:[%s6176 + $0xac] sm:$0xf] %vm381, %v6121
      %6222 = vst.msk [vmem:[%s6176 + $0xb0] sm:$0x1] %vm390, %v6122
      %6223 = vst.msk [vmem:[%s6176 + $0xb4] sm:$0xe] %vm6177, %v6123
      %6224 = vst.msk [vmem:[%s6176 + $0xb8] sm:$0xf] %vm381, %v6126
      %6225 = vst.msk [vmem:[%s6176 + $0xbc] sm:$0x1] %vm390, %v6127
      %v6226 = vld [vmem:[#allocation4] sm:$0xf]
      %v6227 = vld [vmem:[#allocation4 + $0x4] sm:$0xf]
      %v6228 = vld [vmem:[#allocation4 + $0x8] sm:$0x1]
      %v6229 = vld [vmem:[#allocation4 + $0xc] sm:$0xf]
      %v6230 = vld [vmem:[#allocation4 + $0x10] sm:$0xf]
      %v6231 = vld [vmem:[#allocation4 + $0x14] sm:$0x1]
      %v6232 = vld [vmem:[#allocation4 + $0x18] sm:$0xf]
      %v6233 = vld [vmem:[#allocation4 + $0x1c] sm:$0xf]
      %v6234 = vld [vmem:[#allocation4 + $0x20] sm:$0x1]
      %v6235 = vld [vmem:[#allocation4 + $0x24] sm:$0xf]
      %v6236 = vld [vmem:[#allocation4 + $0x28] sm:$0xf]
      %v6237 = vld [vmem:[#allocation4 + $0x2c] sm:$0x1]
      %v6238 = vld [vmem:[#allocation4 + $0x30] sm:$0xf]
      %v6239 = vld [vmem:[#allocation4 + $0x34] sm:$0xf]
      %v6240 = vld [vmem:[#allocation4 + $0x38] sm:$0x1]
      %v6241 = vld [vmem:[#allocation4 + $0x3c] sm:$0xf]
      %v6242 = vld [vmem:[#allocation4 + $0x40] sm:$0xf]
      %v6243 = vld [vmem:[#allocation4 + $0x44] sm:$0x1]
      %v6244 = vld [vmem:[#allocation4 + $0x48] sm:$0xf]
      %v6245 = vld [vmem:[#allocation4 + $0x4c] sm:$0xf]
      %v6246 = vld [vmem:[#allocation4 + $0x50] sm:$0x1]
      %v6247 = vld [vmem:[#allocation4 + $0x54] sm:$0xf]
      %v6248 = vld [vmem:[#allocation4 + $0x58] sm:$0xf]
      %v6249 = vld [vmem:[#allocation4 + $0x5c] sm:$0x1]
      %v6250 = vld [vmem:[#allocation4 + $0x60] sm:$0xf]
      %v6251 = vld [vmem:[#allocation4 + $0x64] sm:$0xf]
      %v6252 = vld [vmem:[#allocation4 + $0x68] sm:$0x1]
      %v6253 = vld [vmem:[#allocation4 + $0x6c] sm:$0xf]
      %v6254 = vld [vmem:[#allocation4 + $0x70] sm:$0xf]
      %v6255 = vld [vmem:[#allocation4 + $0x74] sm:$0x1]
      %v6256 = vld [vmem:[#allocation4 + $0x78] sm:$0xf]
      %v6257 = vld [vmem:[#allocation4 + $0x7c] sm:$0xf]
      %v6258 = vld [vmem:[#allocation4 + $0x80] sm:$0x1]
      %v6259 = vld [vmem:[#allocation4 + $0x84] sm:$0xf]
      %v6260 = vld [vmem:[#allocation4 + $0x88] sm:$0xf]
      %v6261 = vld [vmem:[#allocation4 + $0x8c] sm:$0x1]
      %v6262 = vld [vmem:[#allocation4 + $0x90] sm:$0xf]
      %v6263 = vld [vmem:[#allocation4 + $0x94] sm:$0xf]
      %v6264 = vld [vmem:[#allocation4 + $0x98] sm:$0x1]
      %v6265 = vld [vmem:[#allocation4 + $0x9c] sm:$0xf]
      %v6266 = vld [vmem:[#allocation4 + $0xa0] sm:$0xf]
      %v6267 = vld [vmem:[#allocation4 + $0xa4] sm:$0x1]
      %v6268 = vld [vmem:[#allocation4 + $0xa8] sm:$0xf]
      %v6269 = vld [vmem:[#allocation4 + $0xac] sm:$0xf]
      %v6270 = vld [vmem:[#allocation4 + $0xb0] sm:$0x1]
      %v6271 = vld [vmem:[#allocation4 + $0xb4] sm:$0xf]
      %v6272 = vld [vmem:[#allocation4 + $0xb8] sm:$0xf]
      %v6273 = vld [vmem:[#allocation4 + $0xbc] sm:$0x1]
      %v6275 = vshrl.u32 %v6226, 16
      %v6277 = vrot.slane %v6275, 4
      %v6278 = vshll.u32 %v6226, 16
      %v6280 = vrot.slane %v6278, 5
      %v6281 = vor.u32 %v6277, %v6280
      %v6282 = vrot.slane %v6281, 4
      %v6284 = vshll.u32 %v6227, 16
      %v6286 = vrot.slane %v6284, 5
      %v6287 = vsel %vm961, %v6282, %v6286
      %v6288 = vshrl.u32 %v6227, 16
      %v6290 = vrot.slane %v6288, 4
      %v6291 = vor.u32 %v6290, %v6286
      %v6292 = vrot.slane %v6291, 4
      %v6294 = vshll.u32 %v6228, 16
      %v6296 = vrot.slane %v6294, 5
      %v6297 = vsel %vm961, %v6292, %v6296
      %v6299 = vshrl.u32 %v6229, 16
      %v6301 = vrot.slane %v6299, 4
      %v6302 = vshll.u32 %v6229, 16
      %v6304 = vrot.slane %v6302, 5
      %v6305 = vor.u32 %v6301, %v6304
      %v6306 = vrot.slane %v6305, 4
      %v6308 = vshll.u32 %v6230, 16
      %v6310 = vrot.slane %v6308, 5
      %v6311 = vsel %vm961, %v6306, %v6310
      %v6312 = vshrl.u32 %v6230, 16
      %v6314 = vrot.slane %v6312, 4
      %v6315 = vor.u32 %v6314, %v6310
      %v6316 = vrot.slane %v6315, 4
      %v6318 = vshll.u32 %v6231, 16
      %v6320 = vrot.slane %v6318, 5
      %v6321 = vsel %vm961, %v6316, %v6320
      %v6323 = vshrl.u32 %v6232, 16
      %v6325 = vrot.slane %v6323, 4
      %v6326 = vshll.u32 %v6232, 16
      %v6328 = vrot.slane %v6326, 5
      %v6329 = vor.u32 %v6325, %v6328
      %v6330 = vrot.slane %v6329, 4
      %v6332 = vshll.u32 %v6233, 16
      %v6334 = vrot.slane %v6332, 5
      %v6335 = vsel %vm961, %v6330, %v6334
      %v6336 = vshrl.u32 %v6233, 16
      %v6338 = vrot.slane %v6336, 4
      %v6339 = vor.u32 %v6338, %v6334
      %v6340 = vrot.slane %v6339, 4
      %v6342 = vshll.u32 %v6234, 16
      %v6344 = vrot.slane %v6342, 5
      %v6345 = vsel %vm961, %v6340, %v6344
      %v6347 = vshrl.u32 %v6235, 16
      %v6349 = vrot.slane %v6347, 4
      %v6350 = vshll.u32 %v6235, 16
      %v6352 = vrot.slane %v6350, 5
      %v6353 = vor.u32 %v6349, %v6352
      %v6354 = vrot.slane %v6353, 4
      %v6356 = vshll.u32 %v6236, 16
      %v6358 = vrot.slane %v6356, 5
      %v6359 = vsel %vm961, %v6354, %v6358
      %v6360 = vshrl.u32 %v6236, 16
      %v6362 = vrot.slane %v6360, 4
      %v6363 = vor.u32 %v6362, %v6358
      %v6364 = vrot.slane %v6363, 4
      %v6366 = vshll.u32 %v6237, 16
      %v6368 = vrot.slane %v6366, 5
      %v6369 = vsel %vm961, %v6364, %v6368
      %v6371 = vshrl.u32 %v6238, 16
      %v6373 = vrot.slane %v6371, 4
      %v6374 = vshll.u32 %v6238, 16
      %v6376 = vrot.slane %v6374, 5
      %v6377 = vor.u32 %v6373, %v6376
      %v6378 = vrot.slane %v6377, 4
      %v6380 = vshll.u32 %v6239, 16
      %v6382 = vrot.slane %v6380, 5
      %v6383 = vsel %vm961, %v6378, %v6382
      %v6384 = vshrl.u32 %v6239, 16
      %v6386 = vrot.slane %v6384, 4
      %v6387 = vor.u32 %v6386, %v6382
      %v6388 = vrot.slane %v6387, 4
      %v6390 = vshll.u32 %v6240, 16
      %v6392 = vrot.slane %v6390, 5
      %v6393 = vsel %vm961, %v6388, %v6392
      %v6395 = vshrl.u32 %v6241, 16
      %v6397 = vrot.slane %v6395, 4
      %v6398 = vshll.u32 %v6241, 16
      %v6400 = vrot.slane %v6398, 5
      %v6401 = vor.u32 %v6397, %v6400
      %v6402 = vrot.slane %v6401, 4
      %v6404 = vshll.u32 %v6242, 16
      %v6406 = vrot.slane %v6404, 5
      %v6407 = vsel %vm961, %v6402, %v6406
      %v6408 = vshrl.u32 %v6242, 16
      %v6410 = vrot.slane %v6408, 4
      %v6411 = vor.u32 %v6410, %v6406
      %v6412 = vrot.slane %v6411, 4
      %v6414 = vshll.u32 %v6243, 16
      %v6416 = vrot.slane %v6414, 5
      %v6417 = vsel %vm961, %v6412, %v6416
      %v6419 = vshrl.u32 %v6244, 16
      %v6421 = vrot.slane %v6419, 4
      %v6422 = vshll.u32 %v6244, 16
      %v6424 = vrot.slane %v6422, 5
      %v6425 = vor.u32 %v6421, %v6424
      %v6426 = vrot.slane %v6425, 4
      %v6428 = vshll.u32 %v6245, 16
      %v6430 = vrot.slane %v6428, 5
      %v6431 = vsel %vm961, %v6426, %v6430
      %v6432 = vshrl.u32 %v6245, 16
      %v6434 = vrot.slane %v6432, 4
      %v6435 = vor.u32 %v6434, %v6430
      %v6436 = vrot.slane %v6435, 4
      %v6438 = vshll.u32 %v6246, 16
      %v6440 = vrot.slane %v6438, 5
      %v6441 = vsel %vm961, %v6436, %v6440
      %v6443 = vshrl.u32 %v6247, 16
      %v6445 = vrot.slane %v6443, 4
      %v6446 = vshll.u32 %v6247, 16
      %v6448 = vrot.slane %v6446, 5
      %v6449 = vor.u32 %v6445, %v6448
      %v6450 = vrot.slane %v6449, 4
      %v6452 = vshll.u32 %v6248, 16
      %v6454 = vrot.slane %v6452, 5
      %v6455 = vsel %vm961, %v6450, %v6454
      %v6456 = vshrl.u32 %v6248, 16
      %v6458 = vrot.slane %v6456, 4
      %v6459 = vor.u32 %v6458, %v6454
      %v6460 = vrot.slane %v6459, 4
      %v6462 = vshll.u32 %v6249, 16
      %v6464 = vrot.slane %v6462, 5
      %v6465 = vsel %vm961, %v6460, %v6464
      %v6467 = vshrl.u32 %v6250, 16
      %v6469 = vrot.slane %v6467, 4
      %v6470 = vshll.u32 %v6250, 16
      %v6472 = vrot.slane %v6470, 5
      %v6473 = vor.u32 %v6469, %v6472
      %v6474 = vrot.slane %v6473, 4
      %v6476 = vshll.u32 %v6251, 16
      %v6478 = vrot.slane %v6476, 5
      %v6479 = vsel %vm961, %v6474, %v6478
      %v6480 = vshrl.u32 %v6251, 16
      %v6482 = vrot.slane %v6480, 4
      %v6483 = vor.u32 %v6482, %v6478
      %v6484 = vrot.slane %v6483, 4
      %v6486 = vshll.u32 %v6252, 16
      %v6488 = vrot.slane %v6486, 5
      %v6489 = vsel %vm961, %v6484, %v6488
      %v6491 = vshrl.u32 %v6253, 16
      %v6493 = vrot.slane %v6491, 4
      %v6494 = vshll.u32 %v6253, 16
      %v6496 = vrot.slane %v6494, 5
      %v6497 = vor.u32 %v6493, %v6496
      %v6498 = vrot.slane %v6497, 4
      %v6500 = vshll.u32 %v6254, 16
      %v6502 = vrot.slane %v6500, 5
      %v6503 = vsel %vm961, %v6498, %v6502
      %v6504 = vshrl.u32 %v6254, 16
      %v6506 = vrot.slane %v6504, 4
      %v6507 = vor.u32 %v6506, %v6502
      %v6508 = vrot.slane %v6507, 4
      %v6510 = vshll.u32 %v6255, 16
      %v6512 = vrot.slane %v6510, 5
      %v6513 = vsel %vm961, %v6508, %v6512
      %v6515 = vshrl.u32 %v6256, 16
      %v6517 = vrot.slane %v6515, 4
      %v6518 = vshll.u32 %v6256, 16
      %v6520 = vrot.slane %v6518, 5
      %v6521 = vor.u32 %v6517, %v6520
      %v6522 = vrot.slane %v6521, 4
      %v6524 = vshll.u32 %v6257, 16
      %v6526 = vrot.slane %v6524, 5
      %v6527 = vsel %vm961, %v6522, %v6526
      %v6528 = vshrl.u32 %v6257, 16
      %v6530 = vrot.slane %v6528, 4
      %v6531 = vor.u32 %v6530, %v6526
      %v6532 = vrot.slane %v6531, 4
      %v6534 = vshll.u32 %v6258, 16
      %v6536 = vrot.slane %v6534, 5
      %v6537 = vsel %vm961, %v6532, %v6536
      %v6539 = vshrl.u32 %v6259, 16
      %v6541 = vrot.slane %v6539, 4
      %v6542 = vshll.u32 %v6259, 16
      %v6544 = vrot.slane %v6542, 5
      %v6545 = vor.u32 %v6541, %v6544
      %v6546 = vrot.slane %v6545, 4
      %v6548 = vshll.u32 %v6260, 16
      %v6550 = vrot.slane %v6548, 5
      %v6551 = vsel %vm961, %v6546, %v6550
      %v6552 = vshrl.u32 %v6260, 16
      %v6554 = vrot.slane %v6552, 4
      %v6555 = vor.u32 %v6554, %v6550
      %v6556 = vrot.slane %v6555, 4
      %v6558 = vshll.u32 %v6261, 16
      %v6560 = vrot.slane %v6558, 5
      %v6561 = vsel %vm961, %v6556, %v6560
      %v6563 = vshrl.u32 %v6262, 16
      %v6565 = vrot.slane %v6563, 4
      %v6566 = vshll.u32 %v6262, 16
      %v6568 = vrot.slane %v6566, 5
      %v6569 = vor.u32 %v6565, %v6568
      %v6570 = vrot.slane %v6569, 4
      %v6572 = vshll.u32 %v6263, 16
      %v6574 = vrot.slane %v6572, 5
      %v6575 = vsel %vm961, %v6570, %v6574
      %v6576 = vshrl.u32 %v6263, 16
      %v6578 = vrot.slane %v6576, 4
      %v6579 = vor.u32 %v6578, %v6574
      %v6580 = vrot.slane %v6579, 4
      %v6582 = vshll.u32 %v6264, 16
      %v6584 = vrot.slane %v6582, 5
      %v6585 = vsel %vm961, %v6580, %v6584
      %v6587 = vshrl.u32 %v6265, 16
      %v6589 = vrot.slane %v6587, 4
      %v6590 = vshll.u32 %v6265, 16
      %v6592 = vrot.slane %v6590, 5
      %v6593 = vor.u32 %v6589, %v6592
      %v6594 = vrot.slane %v6593, 4
      %v6596 = vshll.u32 %v6266, 16
      %v6598 = vrot.slane %v6596, 5
      %v6599 = vsel %vm961, %v6594, %v6598
      %v6600 = vshrl.u32 %v6266, 16
      %v6602 = vrot.slane %v6600, 4
      %v6603 = vor.u32 %v6602, %v6598
      %v6604 = vrot.slane %v6603, 4
      %v6606 = vshll.u32 %v6267, 16
      %v6608 = vrot.slane %v6606, 5
      %v6609 = vsel %vm961, %v6604, %v6608
      %v6611 = vshrl.u32 %v6268, 16
      %v6613 = vrot.slane %v6611, 4
      %v6614 = vshll.u32 %v6268, 16
      %v6616 = vrot.slane %v6614, 5
      %v6617 = vor.u32 %v6613, %v6616
      %v6618 = vrot.slane %v6617, 4
      %v6620 = vshll.u32 %v6269, 16
      %v6622 = vrot.slane %v6620, 5
      %v6623 = vsel %vm961, %v6618, %v6622
      %v6624 = vshrl.u32 %v6269, 16
      %v6626 = vrot.slane %v6624, 4
      %v6627 = vor.u32 %v6626, %v6622
      %v6628 = vrot.slane %v6627, 4
      %v6630 = vshll.u32 %v6270, 16
      %v6632 = vrot.slane %v6630, 5
      %v6633 = vsel %vm961, %v6628, %v6632
      %v6635 = vshrl.u32 %v6271, 16
      %v6637 = vrot.slane %v6635, 4
      %v6638 = vshll.u32 %v6271, 16
      %v6640 = vrot.slane %v6638, 5
      %v6641 = vor.u32 %v6637, %v6640
      %v6642 = vrot.slane %v6641, 4
      %v6644 = vshll.u32 %v6272, 16
      %v6646 = vrot.slane %v6644, 5
      %v6647 = vsel %vm961, %v6642, %v6646
      %v6648 = vshrl.u32 %v6272, 16
      %v6650 = vrot.slane %v6648, 4
      %v6651 = vor.u32 %v6650, %v6646
      %v6652 = vrot.slane %v6651, 4
      %v6654 = vshll.u32 %v6273, 16
      %v6656 = vrot.slane %v6654, 5
      %v6657 = vsel %vm961, %v6652, %v6656
      %6690 = vst.msk [vmem:[#allocation5] sm:$0xf] %vm381, %v6287
      %6691 = vst.msk [vmem:[#allocation5 + $0xc] sm:$0xf] %vm381, %v6297
      %6692 = vst.msk [vmem:[#allocation5 + $0x18] sm:$0xf] %vm381, %v6311
      %6693 = vst.msk [vmem:[#allocation5 + $0x24] sm:$0xf] %vm381, %v6321
      %6694 = vst.msk [vmem:[#allocation5 + $0x30] sm:$0xf] %vm381, %v6335
      %6695 = vst.msk [vmem:[#allocation5 + $0x3c] sm:$0xf] %vm381, %v6345
      %6696 = vst.msk [vmem:[#allocation5 + $0x48] sm:$0xf] %vm381, %v6359
      %6697 = vst.msk [vmem:[#allocation5 + $0x54] sm:$0xf] %vm381, %v6369
      %6698 = vst.msk [vmem:[#allocation5 + $0x60] sm:$0xf] %vm381, %v6383
      %6699 = vst.msk [vmem:[#allocation5 + $0x6c] sm:$0xf] %vm381, %v6393
      %6700 = vst.msk [vmem:[#allocation5 + $0x78] sm:$0xf] %vm381, %v6407
      %6701 = vst.msk [vmem:[#allocation5 + $0x84] sm:$0xf] %vm381, %v6417
      %6702 = vst.msk [vmem:[#allocation5 + $0x90] sm:$0xf] %vm381, %v6431
      %6703 = vst.msk [vmem:[#allocation5 + $0x9c] sm:$0xf] %vm381, %v6441
      %6704 = vst.msk [vmem:[#allocation5 + $0xa8] sm:$0xf] %vm381, %v6455
      %6705 = vst.msk [vmem:[#allocation5 + $0xb4] sm:$0xf] %vm381, %v6465
      %6706 = vst.msk [vmem:[#allocation5 + $0xc0] sm:$0xf] %vm381, %v6479
      %6707 = vst.msk [vmem:[#allocation5 + $0xcc] sm:$0xf] %vm381, %v6489
      %6708 = vst.msk [vmem:[#allocation5 + $0xd8] sm:$0xf] %vm381, %v6503
      %6709 = vst.msk [vmem:[#allocation5 + $0xe4] sm:$0xf] %vm381, %v6513
      %6710 = vst.msk [vmem:[#allocation5 + $0xf0] sm:$0xf] %vm381, %v6527
      %6711 = vst.msk [vmem:[#allocation5 + $0xfc] sm:$0xf] %vm381, %v6537
      %6712 = vst.msk [vmem:[#allocation5 + $0x108] sm:$0xf] %vm381, %v6551
      %6713 = vst.msk [vmem:[#allocation5 + $0x114] sm:$0xf] %vm381, %v6561
      %6714 = vst.msk [vmem:[#allocation5 + $0x120] sm:$0xf] %vm381, %v6575
      %6715 = vst.msk [vmem:[#allocation5 + $0x12c] sm:$0xf] %vm381, %v6585
      %6716 = vst.msk [vmem:[#allocation5 + $0x138] sm:$0xf] %vm381, %v6599
      %6717 = vst.msk [vmem:[#allocation5 + $0x144] sm:$0xf] %vm381, %v6609
      %6718 = vst.msk [vmem:[#allocation5 + $0x150] sm:$0xf] %vm381, %v6623
      %6719 = vst.msk [vmem:[#allocation5 + $0x15c] sm:$0xf] %vm381, %v6633
      %6720 = vst.msk [vmem:[#allocation5 + $0x168] sm:$0xf] %vm381, %v6647
      %6721 = vst.msk [vmem:[#allocation5 + $0x174] sm:$0xf] %vm381, %v6657
      %v6722 = vld [vmem:[#allocation4] sm:$0xe]
      %v6723 = vld [vmem:[#allocation4 + $0x4] sm:$0xf]
      %v6724 = vld [vmem:[#allocation4 + $0x8] sm:$0x1]
      %v6725 = vld [vmem:[#allocation4 + $0xc] sm:$0xe]
      %v6726 = vld [vmem:[#allocation4 + $0x10] sm:$0xf]
      %v6727 = vld [vmem:[#allocation4 + $0x14] sm:$0x1]
      %v6728 = vld [vmem:[#allocation4 + $0x18] sm:$0xe]
      %v6729 = vld [vmem:[#allocation4 + $0x1c] sm:$0xf]
      %v6730 = vld [vmem:[#allocation4 + $0x20] sm:$0x1]
      %v6731 = vld [vmem:[#allocation4 + $0x24] sm:$0xe]
      %v6732 = vld [vmem:[#allocation4 + $0x28] sm:$0xf]
      %v6733 = vld [vmem:[#allocation4 + $0x2c] sm:$0x1]
      %v6734 = vld [vmem:[#allocation4 + $0x30] sm:$0xe]
      %v6735 = vld [vmem:[#allocation4 + $0x34] sm:$0xf]
      %v6736 = vld [vmem:[#allocation4 + $0x38] sm:$0x1]
      %v6737 = vld [vmem:[#allocation4 + $0x3c] sm:$0xe]
      %v6738 = vld [vmem:[#allocation4 + $0x40] sm:$0xf]
      %v6739 = vld [vmem:[#allocation4 + $0x44] sm:$0x1]
      %v6740 = vld [vmem:[#allocation4 + $0x48] sm:$0xe]
      %v6741 = vld [vmem:[#allocation4 + $0x4c] sm:$0xf]
      %v6742 = vld [vmem:[#allocation4 + $0x50] sm:$0x1]
      %v6743 = vld [vmem:[#allocation4 + $0x54] sm:$0xe]
      %v6744 = vld [vmem:[#allocation4 + $0x58] sm:$0xf]
      %v6745 = vld [vmem:[#allocation4 + $0x5c] sm:$0x1]
      %v6746 = vld [vmem:[#allocation4 + $0x60] sm:$0xe]
      %v6747 = vld [vmem:[#allocation4 + $0x64] sm:$0xf]
      %v6748 = vld [vmem:[#allocation4 + $0x68] sm:$0x1]
      %v6749 = vld [vmem:[#allocation4 + $0x6c] sm:$0xe]
      %v6750 = vld [vmem:[#allocation4 + $0x70] sm:$0xf]
      %v6751 = vld [vmem:[#allocation4 + $0x74] sm:$0x1]
      %v6752 = vld [vmem:[#allocation4 + $0x78] sm:$0xe]
      %v6753 = vld [vmem:[#allocation4 + $0x7c] sm:$0xf]
      %v6754 = vld [vmem:[#allocation4 + $0x80] sm:$0x1]
      %v6755 = vld [vmem:[#allocation4 + $0x84] sm:$0xe]
      %v6756 = vld [vmem:[#allocation4 + $0x88] sm:$0xf]
      %v6757 = vld [vmem:[#allocation4 + $0x8c] sm:$0x1]
      %v6758 = vld [vmem:[#allocation4 + $0x90] sm:$0xe]
      %v6759 = vld [vmem:[#allocation4 + $0x94] sm:$0xf]
      %v6760 = vld [vmem:[#allocation4 + $0x98] sm:$0x1]
      %v6761 = vld [vmem:[#allocation4 + $0x9c] sm:$0xe]
      %v6762 = vld [vmem:[#allocation4 + $0xa0] sm:$0xf]
      %v6763 = vld [vmem:[#allocation4 + $0xa4] sm:$0x1]
      %v6764 = vld [vmem:[#allocation4 + $0xa8] sm:$0xe]
      %v6765 = vld [vmem:[#allocation4 + $0xac] sm:$0xf]
      %v6766 = vld [vmem:[#allocation4 + $0xb0] sm:$0x1]
      %v6767 = vld [vmem:[#allocation4 + $0xb4] sm:$0xe]
      %v6768 = vld [vmem:[#allocation4 + $0xb8] sm:$0xf]
      %v6769 = vld [vmem:[#allocation4 + $0xbc] sm:$0x1]
      %v6818 = vrot.slane %v6722, 5
      %v6819 = vrot.slane %v6818, 4
      %v6820 = vrot.slane %v6723, 5
      %v6821 = vsel %vm1508, %v6819, %v6820
      %v6822 = vrot.slane %v6820, 4
      %v6823 = vrot.slane %v6724, 5
      %v6824 = vsel %vm1508, %v6822, %v6823
      %v6825 = vrot.slane %v6725, 5
      %v6826 = vrot.slane %v6825, 4
      %v6827 = vrot.slane %v6726, 5
      %v6828 = vsel %vm1508, %v6826, %v6827
      %v6829 = vrot.slane %v6827, 4
      %v6830 = vrot.slane %v6727, 5
      %v6831 = vsel %vm1508, %v6829, %v6830
      %v6832 = vrot.slane %v6728, 5
      %v6833 = vrot.slane %v6832, 4
      %v6834 = vrot.slane %v6729, 5
      %v6835 = vsel %vm1508, %v6833, %v6834
      %v6836 = vrot.slane %v6834, 4
      %v6837 = vrot.slane %v6730, 5
      %v6838 = vsel %vm1508, %v6836, %v6837
      %v6839 = vrot.slane %v6731, 5
      %v6840 = vrot.slane %v6839, 4
      %v6841 = vrot.slane %v6732, 5
      %v6842 = vsel %vm1508, %v6840, %v6841
      %v6843 = vrot.slane %v6841, 4
      %v6844 = vrot.slane %v6733, 5
      %v6845 = vsel %vm1508, %v6843, %v6844
      %v6846 = vrot.slane %v6734, 5
      %v6847 = vrot.slane %v6846, 4
      %v6848 = vrot.slane %v6735, 5
      %v6849 = vsel %vm1508, %v6847, %v6848
      %v6850 = vrot.slane %v6848, 4
      %v6851 = vrot.slane %v6736, 5
      %v6852 = vsel %vm1508, %v6850, %v6851
      %v6853 = vrot.slane %v6737, 5
      %v6854 = vrot.slane %v6853, 4
      %v6855 = vrot.slane %v6738, 5
      %v6856 = vsel %vm1508, %v6854, %v6855
      %v6857 = vrot.slane %v6855, 4
      %v6858 = vrot.slane %v6739, 5
      %v6859 = vsel %vm1508, %v6857, %v6858
      %v6860 = vrot.slane %v6740, 5
      %v6861 = vrot.slane %v6860, 4
      %v6862 = vrot.slane %v6741, 5
      %v6863 = vsel %vm1508, %v6861, %v6862
      %v6864 = vrot.slane %v6862, 4
      %v6865 = vrot.slane %v6742, 5
      %v6866 = vsel %vm1508, %v6864, %v6865
      %v6867 = vrot.slane %v6743, 5
      %v6868 = vrot.slane %v6867, 4
      %v6869 = vrot.slane %v6744, 5
      %v6870 = vsel %vm1508, %v6868, %v6869
      %v6871 = vrot.slane %v6869, 4
      %v6872 = vrot.slane %v6745, 5
      %v6873 = vsel %vm1508, %v6871, %v6872
      %v6874 = vrot.slane %v6746, 5
      %v6875 = vrot.slane %v6874, 4
      %v6876 = vrot.slane %v6747, 5
      %v6877 = vsel %vm1508, %v6875, %v6876
      %v6878 = vrot.slane %v6876, 4
      %v6879 = vrot.slane %v6748, 5
      %v6880 = vsel %vm1508, %v6878, %v6879
      %v6881 = vrot.slane %v6749, 5
      %v6882 = vrot.slane %v6881, 4
      %v6883 = vrot.slane %v6750, 5
      %v6884 = vsel %vm1508, %v6882, %v6883
      %v6885 = vrot.slane %v6883, 4
      %v6886 = vrot.slane %v6751, 5
      %v6887 = vsel %vm1508, %v6885, %v6886
      %v6888 = vrot.slane %v6752, 5
      %v6889 = vrot.slane %v6888, 4
      %v6890 = vrot.slane %v6753, 5
      %v6891 = vsel %vm1508, %v6889, %v6890
      %v6892 = vrot.slane %v6890, 4
      %v6893 = vrot.slane %v6754, 5
      %v6894 = vsel %vm1508, %v6892, %v6893
      %v6895 = vrot.slane %v6755, 5
      %v6896 = vrot.slane %v6895, 4
      %v6897 = vrot.slane %v6756, 5
      %v6898 = vsel %vm1508, %v6896, %v6897
      %v6899 = vrot.slane %v6897, 4
      %v6900 = vrot.slane %v6757, 5
      %v6901 = vsel %vm1508, %v6899, %v6900
      %v6902 = vrot.slane %v6758, 5
      %v6903 = vrot.slane %v6902, 4
      %v6904 = vrot.slane %v6759, 5
      %v6905 = vsel %vm1508, %v6903, %v6904
      %v6906 = vrot.slane %v6904, 4
      %v6907 = vrot.slane %v6760, 5
      %v6908 = vsel %vm1508, %v6906, %v6907
      %v6909 = vrot.slane %v6761, 5
      %v6910 = vrot.slane %v6909, 4
      %v6911 = vrot.slane %v6762, 5
      %v6912 = vsel %vm1508, %v6910, %v6911
      %v6913 = vrot.slane %v6911, 4
      %v6914 = vrot.slane %v6763, 5
      %v6915 = vsel %vm1508, %v6913, %v6914
      %v6916 = vrot.slane %v6764, 5
      %v6917 = vrot.slane %v6916, 4
      %v6918 = vrot.slane %v6765, 5
      %v6919 = vsel %vm1508, %v6917, %v6918
      %v6920 = vrot.slane %v6918, 4
      %v6921 = vrot.slane %v6766, 5
      %v6922 = vsel %vm1508, %v6920, %v6921
      %v6923 = vrot.slane %v6767, 5
      %v6924 = vrot.slane %v6923, 4
      %v6925 = vrot.slane %v6768, 5
      %v6926 = vsel %vm1508, %v6924, %v6925
      %v6927 = vrot.slane %v6925, 4
      %v6928 = vrot.slane %v6769, 5
      %v6929 = vsel %vm1508, %v6927, %v6928
      %6930 = vrot.lane.b32.xlu0 %v6821, 32
      %v6931 = vpop.permute.xlu0 %6930
      %6932 = vrot.lane.b32.xlu0 %v6824, 32
      %v6933 = vpop.permute.xlu0 %6932
      %6934 = vrot.lane.b32.xlu0 %v6828, 32
      %v6935 = vpop.permute.xlu0 %6934
      %6936 = vrot.lane.b32.xlu0 %v6831, 32
      %v6937 = vpop.permute.xlu0 %6936
      %6938 = vrot.lane.b32.xlu0 %v6835, 32
      %v6939 = vpop.permute.xlu0 %6938
      %6940 = vrot.lane.b32.xlu0 %v6838, 32
      %v6941 = vpop.permute.xlu0 %6940
      %6942 = vrot.lane.b32.xlu0 %v6842, 32
      %v6943 = vpop.permute.xlu0 %6942
      %6944 = vrot.lane.b32.xlu0 %v6845, 32
      %v6945 = vpop.permute.xlu0 %6944
      %6946 = vrot.lane.b32.xlu0 %v6849, 32
      %v6947 = vpop.permute.xlu0 %6946
      %6948 = vrot.lane.b32.xlu0 %v6852, 32
      %v6949 = vpop.permute.xlu0 %6948
      %6950 = vrot.lane.b32.xlu0 %v6856, 32
      %v6951 = vpop.permute.xlu0 %6950
      %6952 = vrot.lane.b32.xlu0 %v6859, 32
      %v6953 = vpop.permute.xlu0 %6952
      %6954 = vrot.lane.b32.xlu0 %v6863, 32
      %v6955 = vpop.permute.xlu0 %6954
      %6956 = vrot.lane.b32.xlu0 %v6866, 32
      %v6957 = vpop.permute.xlu0 %6956
      %6958 = vrot.lane.b32.xlu0 %v6870, 32
      %v6959 = vpop.permute.xlu0 %6958
      %6960 = vrot.lane.b32.xlu0 %v6873, 32
      %v6961 = vpop.permute.xlu0 %6960
      %6962 = vrot.lane.b32.xlu0 %v6877, 32
      %v6963 = vpop.permute.xlu0 %6962
      %6964 = vrot.lane.b32.xlu0 %v6880, 32
      %v6965 = vpop.permute.xlu0 %6964
      %6966 = vrot.lane.b32.xlu0 %v6884, 32
      %v6967 = vpop.permute.xlu0 %6966
      %6968 = vrot.lane.b32.xlu0 %v6887, 32
      %v6969 = vpop.permute.xlu0 %6968
      %6970 = vrot.lane.b32.xlu0 %v6891, 32
      %v6971 = vpop.permute.xlu0 %6970
      %6972 = vrot.lane.b32.xlu0 %v6894, 32
      %v6973 = vpop.permute.xlu0 %6972
      %6974 = vrot.lane.b32.xlu0 %v6898, 32
      %v6975 = vpop.permute.xlu0 %6974
      %6976 = vrot.lane.b32.xlu0 %v6901, 32
      %v6977 = vpop.permute.xlu0 %6976
      %6978 = vrot.lane.b32.xlu0 %v6905, 32
      %v6979 = vpop.permute.xlu0 %6978
      %6980 = vrot.lane.b32.xlu0 %v6908, 32
      %v6981 = vpop.permute.xlu0 %6980
      %6982 = vrot.lane.b32.xlu0 %v6912, 32
      %v6983 = vpop.permute.xlu0 %6982
      %6984 = vrot.lane.b32.xlu0 %v6915, 32
      %v6985 = vpop.permute.xlu0 %6984
      %6986 = vrot.lane.b32.xlu0 %v6919, 32
      %v6987 = vpop.permute.xlu0 %6986
      %6988 = vrot.lane.b32.xlu0 %v6922, 32
      %v6989 = vpop.permute.xlu0 %6988
      %6990 = vrot.lane.b32.xlu0 %v6926, 32
      %v6991 = vpop.permute.xlu0 %6990
      %6992 = vrot.lane.b32.xlu0 %v6929, 32
      %v6993 = vpop.permute.xlu0 %6992
      %vm7026 = vcmask 519424
      %7027 = vst.msk [vmem:[#allocation5] sm:$0xf] %vm7026, %v6931
      %7028 = vst.msk [vmem:[#allocation5 + $0xc] sm:$0xf] %vm7026, %v6933
      %7029 = vst.msk [vmem:[#allocation5 + $0x18] sm:$0xf] %vm7026, %v6935
      %7030 = vst.msk [vmem:[#allocation5 + $0x24] sm:$0xf] %vm7026, %v6937
      %7031 = vst.msk [vmem:[#allocation5 + $0x30] sm:$0xf] %vm7026, %v6939
      %7032 = vst.msk [vmem:[#allocation5 + $0x3c] sm:$0xf] %vm7026, %v6941
      %7033 = vst.msk [vmem:[#allocation5 + $0x48] sm:$0xf] %vm7026, %v6943
      %7034 = vst.msk [vmem:[#allocation5 + $0x54] sm:$0xf] %vm7026, %v6945
      %7035 = vst.msk [vmem:[#allocation5 + $0x60] sm:$0xf] %vm7026, %v6947
      %7036 = vst.msk [vmem:[#allocation5 + $0x6c] sm:$0xf] %vm7026, %v6949
      %7037 = vst.msk [vmem:[#allocation5 + $0x78] sm:$0xf] %vm7026, %v6951
      %7038 = vst.msk [vmem:[#allocation5 + $0x84] sm:$0xf] %vm7026, %v6953
      %7039 = vst.msk [vmem:[#allocation5 + $0x90] sm:$0xf] %vm7026, %v6955
      %7040 = vst.msk [vmem:[#allocation5 + $0x9c] sm:$0xf] %vm7026, %v6957
      %7041 = vst.msk [vmem:[#allocation5 + $0xa8] sm:$0xf] %vm7026, %v6959
      %7042 = vst.msk [vmem:[#allocation5 + $0xb4] sm:$0xf] %vm7026, %v6961
      %7043 = vst.msk [vmem:[#allocation5 + $0xc0] sm:$0xf] %vm7026, %v6963
      %7044 = vst.msk [vmem:[#allocation5 + $0xcc] sm:$0xf] %vm7026, %v6965
      %7045 = vst.msk [vmem:[#allocation5 + $0xd8] sm:$0xf] %vm7026, %v6967
      %7046 = vst.msk [vmem:[#allocation5 + $0xe4] sm:$0xf] %vm7026, %v6969
      %7047 = vst.msk [vmem:[#allocation5 + $0xf0] sm:$0xf] %vm7026, %v6971
      %7048 = vst.msk [vmem:[#allocation5 + $0xfc] sm:$0xf] %vm7026, %v6973
      %7049 = vst.msk [vmem:[#allocation5 + $0x108] sm:$0xf] %vm7026, %v6975
      %7050 = vst.msk [vmem:[#allocation5 + $0x114] sm:$0xf] %vm7026, %v6977
      %7051 = vst.msk [vmem:[#allocation5 + $0x120] sm:$0xf] %vm7026, %v6979
      %7052 = vst.msk [vmem:[#allocation5 + $0x12c] sm:$0xf] %vm7026, %v6981
      %7053 = vst.msk [vmem:[#allocation5 + $0x138] sm:$0xf] %vm7026, %v6983
      %7054 = vst.msk [vmem:[#allocation5 + $0x144] sm:$0xf] %vm7026, %v6985
      %7055 = vst.msk [vmem:[#allocation5 + $0x150] sm:$0xf] %vm7026, %v6987
      %7056 = vst.msk [vmem:[#allocation5 + $0x15c] sm:$0xf] %vm7026, %v6989
      %7057 = vst.msk [vmem:[#allocation5 + $0x168] sm:$0xf] %vm7026, %v6991
      %7058 = vst.msk [vmem:[#allocation5 + $0x174] sm:$0xf] %vm7026, %v6993
      %v7059 = vld [vmem:[#allocation4] sm:$0xe]
      %v7060 = vld [vmem:[#allocation4 + $0x4] sm:$0xf]
      %v7061 = vld [vmem:[#allocation4 + $0x8] sm:$0x3]
      %v7062 = vld [vmem:[#allocation4 + $0xc] sm:$0xe]
      %v7063 = vld [vmem:[#allocation4 + $0x10] sm:$0xf]
      %v7064 = vld [vmem:[#allocation4 + $0x14] sm:$0x3]
      %v7065 = vld [vmem:[#allocation4 + $0x18] sm:$0xe]
      %v7066 = vld [vmem:[#allocation4 + $0x1c] sm:$0xf]
      %v7067 = vld [vmem:[#allocation4 + $0x20] sm:$0x3]
      %v7068 = vld [vmem:[#allocation4 + $0x24] sm:$0xe]
      %v7069 = vld [vmem:[#allocation4 + $0x28] sm:$0xf]
      %v7070 = vld [vmem:[#allocation4 + $0x2c] sm:$0x3]
      %v7071 = vld [vmem:[#allocation4 + $0x30] sm:$0xe]
      %v7072 = vld [vmem:[#allocation4 + $0x34] sm:$0xf]
      %v7073 = vld [vmem:[#allocation4 + $0x38] sm:$0x3]
      %v7074 = vld [vmem:[#allocation4 + $0x3c] sm:$0xe]
      %v7075 = vld [vmem:[#allocation4 + $0x40] sm:$0xf]
      %v7076 = vld [vmem:[#allocation4 + $0x44] sm:$0x3]
      %v7077 = vld [vmem:[#allocation4 + $0x48] sm:$0xe]
      %v7078 = vld [vmem:[#allocation4 + $0x4c] sm:$0xf]
      %v7079 = vld [vmem:[#allocation4 + $0x50] sm:$0x3]
      %v7080 = vld [vmem:[#allocation4 + $0x54] sm:$0xe]
      %v7081 = vld [vmem:[#allocation4 + $0x58] sm:$0xf]
      %v7082 = vld [vmem:[#allocation4 + $0x5c] sm:$0x3]
      %v7083 = vld [vmem:[#allocation4 + $0x60] sm:$0xe]
      %v7084 = vld [vmem:[#allocation4 + $0x64] sm:$0xf]
      %v7085 = vld [vmem:[#allocation4 + $0x68] sm:$0x3]
      %v7086 = vld [vmem:[#allocation4 + $0x6c] sm:$0xe]
      %v7087 = vld [vmem:[#allocation4 + $0x70] sm:$0xf]
      %v7088 = vld [vmem:[#allocation4 + $0x74] sm:$0x3]
      %v7089 = vld [vmem:[#allocation4 + $0x78] sm:$0xe]
      %v7090 = vld [vmem:[#allocation4 + $0x7c] sm:$0xf]
      %v7091 = vld [vmem:[#allocation4 + $0x80] sm:$0x3]
      %v7092 = vld [vmem:[#allocation4 + $0x84] sm:$0xe]
      %v7093 = vld [vmem:[#allocation4 + $0x88] sm:$0xf]
      %v7094 = vld [vmem:[#allocation4 + $0x8c] sm:$0x3]
      %v7095 = vld [vmem:[#allocation4 + $0x90] sm:$0xe]
      %v7096 = vld [vmem:[#allocation4 + $0x94] sm:$0xf]
      %v7097 = vld [vmem:[#allocation4 + $0x98] sm:$0x3]
      %v7098 = vld [vmem:[#allocation4 + $0x9c] sm:$0xe]
      %v7099 = vld [vmem:[#allocation4 + $0xa0] sm:$0xf]
      %v7100 = vld [vmem:[#allocation4 + $0xa4] sm:$0x3]
      %v7101 = vld [vmem:[#allocation4 + $0xa8] sm:$0xe]
      %v7102 = vld [vmem:[#allocation4 + $0xac] sm:$0xf]
      %v7103 = vld [vmem:[#allocation4 + $0xb0] sm:$0x3]
      %v7104 = vld [vmem:[#allocation4 + $0xb4] sm:$0xe]
      %v7105 = vld [vmem:[#allocation4 + $0xb8] sm:$0xf]
      %v7106 = vld [vmem:[#allocation4 + $0xbc] sm:$0x3]
      %v7108 = vshrl.u32 %v7059, 16
      %v7110 = vrot.slane %v7108, 5
      %v7111 = vshll.u32 %v7059, 16
      %v7113 = vrot.slane %v7111, 6
      %v7114 = vor.u32 %v7110, %v7113
      %v7115 = vrot.slane %v7114, 4
      %v7117 = vshrl.u32 %v7060, 16
      %v7119 = vrot.slane %v7117, 5
      %v7120 = vshll.u32 %v7060, 16
      %v7122 = vrot.slane %v7120, 6
      %v7123 = vor.u32 %v7119, %v7122
      %v7124 = vsel %vm1800, %v7115, %v7123
      %v7125 = vrot.slane %v7123, 4
      %v7127 = vshrl.u32 %v7061, 16
      %v7129 = vrot.slane %v7127, 5
      %v7130 = vshll.u32 %v7061, 16
      %v7132 = vrot.slane %v7130, 6
      %v7133 = vor.u32 %v7129, %v7132
      %v7134 = vsel %vm1800, %v7125, %v7133
      %v7136 = vshrl.u32 %v7062, 16
      %v7138 = vrot.slane %v7136, 5
      %v7139 = vshll.u32 %v7062, 16
      %v7141 = vrot.slane %v7139, 6
      %v7142 = vor.u32 %v7138, %v7141
      %v7143 = vrot.slane %v7142, 4
      %v7145 = vshrl.u32 %v7063, 16
      %v7147 = vrot.slane %v7145, 5
      %v7148 = vshll.u32 %v7063, 16
      %v7150 = vrot.slane %v7148, 6
      %v7151 = vor.u32 %v7147, %v7150
      %v7152 = vsel %vm1800, %v7143, %v7151
      %v7153 = vrot.slane %v7151, 4
      %v7155 = vshrl.u32 %v7064, 16
      %v7157 = vrot.slane %v7155, 5
      %v7158 = vshll.u32 %v7064, 16
      %v7160 = vrot.slane %v7158, 6
      %v7161 = vor.u32 %v7157, %v7160
      %v7162 = vsel %vm1800, %v7153, %v7161
      %v7164 = vshrl.u32 %v7065, 16
      %v7166 = vrot.slane %v7164, 5
      %v7167 = vshll.u32 %v7065, 16
      %v7169 = vrot.slane %v7167, 6
      %v7170 = vor.u32 %v7166, %v7169
      %v7171 = vrot.slane %v7170, 4
      %v7173 = vshrl.u32 %v7066, 16
      %v7175 = vrot.slane %v7173, 5
      %v7176 = vshll.u32 %v7066, 16
      %v7178 = vrot.slane %v7176, 6
      %v7179 = vor.u32 %v7175, %v7178
      %v7180 = vsel %vm1800, %v7171, %v7179
      %v7181 = vrot.slane %v7179, 4
      %v7183 = vshrl.u32 %v7067, 16
      %v7185 = vrot.slane %v7183, 5
      %v7186 = vshll.u32 %v7067, 16
      %v7188 = vrot.slane %v7186, 6
      %v7189 = vor.u32 %v7185, %v7188
      %v7190 = vsel %vm1800, %v7181, %v7189
      %v7192 = vshrl.u32 %v7068, 16
      %v7194 = vrot.slane %v7192, 5
      %v7195 = vshll.u32 %v7068, 16
      %v7197 = vrot.slane %v7195, 6
      %v7198 = vor.u32 %v7194, %v7197
      %v7199 = vrot.slane %v7198, 4
      %v7201 = vshrl.u32 %v7069, 16
      %v7203 = vrot.slane %v7201, 5
      %v7204 = vshll.u32 %v7069, 16
      %v7206 = vrot.slane %v7204, 6
      %v7207 = vor.u32 %v7203, %v7206
      %v7208 = vsel %vm1800, %v7199, %v7207
      %v7209 = vrot.slane %v7207, 4
      %v7211 = vshrl.u32 %v7070, 16
      %v7213 = vrot.slane %v7211, 5
      %v7214 = vshll.u32 %v7070, 16
      %v7216 = vrot.slane %v7214, 6
      %v7217 = vor.u32 %v7213, %v7216
      %v7218 = vsel %vm1800, %v7209, %v7217
      %v7220 = vshrl.u32 %v7071, 16
      %v7222 = vrot.slane %v7220, 5
      %v7223 = vshll.u32 %v7071, 16
      %v7225 = vrot.slane %v7223, 6
      %v7226 = vor.u32 %v7222, %v7225
      %v7227 = vrot.slane %v7226, 4
      %v7229 = vshrl.u32 %v7072, 16
      %v7231 = vrot.slane %v7229, 5
      %v7232 = vshll.u32 %v7072, 16
      %v7234 = vrot.slane %v7232, 6
      %v7235 = vor.u32 %v7231, %v7234
      %v7236 = vsel %vm1800, %v7227, %v7235
      %v7237 = vrot.slane %v7235, 4
      %v7239 = vshrl.u32 %v7073, 16
      %v7241 = vrot.slane %v7239, 5
      %v7242 = vshll.u32 %v7073, 16
      %v7244 = vrot.slane %v7242, 6
      %v7245 = vor.u32 %v7241, %v7244
      %v7246 = vsel %vm1800, %v7237, %v7245
      %v7248 = vshrl.u32 %v7074, 16
      %v7250 = vrot.slane %v7248, 5
      %v7251 = vshll.u32 %v7074, 16
      %v7253 = vrot.slane %v7251, 6
      %v7254 = vor.u32 %v7250, %v7253
      %v7255 = vrot.slane %v7254, 4
      %v7257 = vshrl.u32 %v7075, 16
      %v7259 = vrot.slane %v7257, 5
      %v7260 = vshll.u32 %v7075, 16
      %v7262 = vrot.slane %v7260, 6
      %v7263 = vor.u32 %v7259, %v7262
      %v7264 = vsel %vm1800, %v7255, %v7263
      %v7265 = vrot.slane %v7263, 4
      %v7267 = vshrl.u32 %v7076, 16
      %v7269 = vrot.slane %v7267, 5
      %v7270 = vshll.u32 %v7076, 16
      %v7272 = vrot.slane %v7270, 6
      %v7273 = vor.u32 %v7269, %v7272
      %v7274 = vsel %vm1800, %v7265, %v7273
      %v7276 = vshrl.u32 %v7077, 16
      %v7278 = vrot.slane %v7276, 5
      %v7279 = vshll.u32 %v7077, 16
      %v7281 = vrot.slane %v7279, 6
      %v7282 = vor.u32 %v7278, %v7281
      %v7283 = vrot.slane %v7282, 4
      %v7285 = vshrl.u32 %v7078, 16
      %v7287 = vrot.slane %v7285, 5
      %v7288 = vshll.u32 %v7078, 16
      %v7290 = vrot.slane %v7288, 6
      %v7291 = vor.u32 %v7287, %v7290
      %v7292 = vsel %vm1800, %v7283, %v7291
      %v7293 = vrot.slane %v7291, 4
      %v7295 = vshrl.u32 %v7079, 16
      %v7297 = vrot.slane %v7295, 5
      %v7298 = vshll.u32 %v7079, 16
      %v7300 = vrot.slane %v7298, 6
      %v7301 = vor.u32 %v7297, %v7300
      %v7302 = vsel %vm1800, %v7293, %v7301
      %v7304 = vshrl.u32 %v7080, 16
      %v7306 = vrot.slane %v7304, 5
      %v7307 = vshll.u32 %v7080, 16
      %v7309 = vrot.slane %v7307, 6
      %v7310 = vor.u32 %v7306, %v7309
      %v7311 = vrot.slane %v7310, 4
      %v7313 = vshrl.u32 %v7081, 16
      %v7315 = vrot.slane %v7313, 5
      %v7316 = vshll.u32 %v7081, 16
      %v7318 = vrot.slane %v7316, 6
      %v7319 = vor.u32 %v7315, %v7318
      %v7320 = vsel %vm1800, %v7311, %v7319
      %v7321 = vrot.slane %v7319, 4
      %v7323 = vshrl.u32 %v7082, 16
      %v7325 = vrot.slane %v7323, 5
      %v7326 = vshll.u32 %v7082, 16
      %v7328 = vrot.slane %v7326, 6
      %v7329 = vor.u32 %v7325, %v7328
      %v7330 = vsel %vm1800, %v7321, %v7329
      %v7332 = vshrl.u32 %v7083, 16
      %v7334 = vrot.slane %v7332, 5
      %v7335 = vshll.u32 %v7083, 16
      %v7337 = vrot.slane %v7335, 6
      %v7338 = vor.u32 %v7334, %v7337
      %v7339 = vrot.slane %v7338, 4
      %v7341 = vshrl.u32 %v7084, 16
      %v7343 = vrot.slane %v7341, 5
      %v7344 = vshll.u32 %v7084, 16
      %v7346 = vrot.slane %v7344, 6
      %v7347 = vor.u32 %v7343, %v7346
      %v7348 = vsel %vm1800, %v7339, %v7347
      %v7349 = vrot.slane %v7347, 4
      %v7351 = vshrl.u32 %v7085, 16
      %v7353 = vrot.slane %v7351, 5
      %v7354 = vshll.u32 %v7085, 16
      %v7356 = vrot.slane %v7354, 6
      %v7357 = vor.u32 %v7353, %v7356
      %v7358 = vsel %vm1800, %v7349, %v7357
      %v7360 = vshrl.u32 %v7086, 16
      %v7362 = vrot.slane %v7360, 5
      %v7363 = vshll.u32 %v7086, 16
      %v7365 = vrot.slane %v7363, 6
      %v7366 = vor.u32 %v7362, %v7365
      %v7367 = vrot.slane %v7366, 4
      %v7369 = vshrl.u32 %v7087, 16
      %v7371 = vrot.slane %v7369, 5
      %v7372 = vshll.u32 %v7087, 16
      %v7374 = vrot.slane %v7372, 6
      %v7375 = vor.u32 %v7371, %v7374
      %v7376 = vsel %vm1800, %v7367, %v7375
      %v7377 = vrot.slane %v7375, 4
      %v7379 = vshrl.u32 %v7088, 16
      %v7381 = vrot.slane %v7379, 5
      %v7382 = vshll.u32 %v7088, 16
      %v7384 = vrot.slane %v7382, 6
      %v7385 = vor.u32 %v7381, %v7384
      %v7386 = vsel %vm1800, %v7377, %v7385
      %v7388 = vshrl.u32 %v7089, 16
      %v7390 = vrot.slane %v7388, 5
      %v7391 = vshll.u32 %v7089, 16
      %v7393 = vrot.slane %v7391, 6
      %v7394 = vor.u32 %v7390, %v7393
      %v7395 = vrot.slane %v7394, 4
      %v7397 = vshrl.u32 %v7090, 16
      %v7399 = vrot.slane %v7397, 5
      %v7400 = vshll.u32 %v7090, 16
      %v7402 = vrot.slane %v7400, 6
      %v7403 = vor.u32 %v7399, %v7402
      %v7404 = vsel %vm1800, %v7395, %v7403
      %v7405 = vrot.slane %v7403, 4
      %v7407 = vshrl.u32 %v7091, 16
      %v7409 = vrot.slane %v7407, 5
      %v7410 = vshll.u32 %v7091, 16
      %v7412 = vrot.slane %v7410, 6
      %v7413 = vor.u32 %v7409, %v7412
      %v7414 = vsel %vm1800, %v7405, %v7413
      %v7416 = vshrl.u32 %v7092, 16
      %v7418 = vrot.slane %v7416, 5
      %v7419 = vshll.u32 %v7092, 16
      %v7421 = vrot.slane %v7419, 6
      %v7422 = vor.u32 %v7418, %v7421
      %v7423 = vrot.slane %v7422, 4
      %v7425 = vshrl.u32 %v7093, 16
      %v7427 = vrot.slane %v7425, 5
      %v7428 = vshll.u32 %v7093, 16
      %v7430 = vrot.slane %v7428, 6
      %v7431 = vor.u32 %v7427, %v7430
      %v7432 = vsel %vm1800, %v7423, %v7431
      %v7433 = vrot.slane %v7431, 4
      %v7435 = vshrl.u32 %v7094, 16
      %v7437 = vrot.slane %v7435, 5
      %v7438 = vshll.u32 %v7094, 16
      %v7440 = vrot.slane %v7438, 6
      %v7441 = vor.u32 %v7437, %v7440
      %v7442 = vsel %vm1800, %v7433, %v7441
      %v7444 = vshrl.u32 %v7095, 16
      %v7446 = vrot.slane %v7444, 5
      %v7447 = vshll.u32 %v7095, 16
      %v7449 = vrot.slane %v7447, 6
      %v7450 = vor.u32 %v7446, %v7449
      %v7451 = vrot.slane %v7450, 4
      %v7453 = vshrl.u32 %v7096, 16
      %v7455 = vrot.slane %v7453, 5
      %v7456 = vshll.u32 %v7096, 16
      %v7458 = vrot.slane %v7456, 6
      %v7459 = vor.u32 %v7455, %v7458
      %v7460 = vsel %vm1800, %v7451, %v7459
      %v7461 = vrot.slane %v7459, 4
      %v7463 = vshrl.u32 %v7097, 16
      %v7465 = vrot.slane %v7463, 5
      %v7466 = vshll.u32 %v7097, 16
      %v7468 = vrot.slane %v7466, 6
      %v7469 = vor.u32 %v7465, %v7468
      %v7470 = vsel %vm1800, %v7461, %v7469
      %v7472 = vshrl.u32 %v7098, 16
      %v7474 = vrot.slane %v7472, 5
      %v7475 = vshll.u32 %v7098, 16
      %v7477 = vrot.slane %v7475, 6
      %v7478 = vor.u32 %v7474, %v7477
      %v7479 = vrot.slane %v7478, 4
      %v7481 = vshrl.u32 %v7099, 16
      %v7483 = vrot.slane %v7481, 5
      %v7484 = vshll.u32 %v7099, 16
      %v7486 = vrot.slane %v7484, 6
      %v7487 = vor.u32 %v7483, %v7486
      %v7488 = vsel %vm1800, %v7479, %v7487
      %v7489 = vrot.slane %v7487, 4
      %v7491 = vshrl.u32 %v7100, 16
      %v7493 = vrot.slane %v7491, 5
      %v7494 = vshll.u32 %v7100, 16
      %v7496 = vrot.slane %v7494, 6
      %v7497 = vor.u32 %v7493, %v7496
      %v7498 = vsel %vm1800, %v7489, %v7497
      %v7500 = vshrl.u32 %v7101, 16
      %v7502 = vrot.slane %v7500, 5
      %v7503 = vshll.u32 %v7101, 16
      %v7505 = vrot.slane %v7503, 6
      %v7506 = vor.u32 %v7502, %v7505
      %v7507 = vrot.slane %v7506, 4
      %v7509 = vshrl.u32 %v7102, 16
      %v7511 = vrot.slane %v7509, 5
      %v7512 = vshll.u32 %v7102, 16
      %v7514 = vrot.slane %v7512, 6
      %v7515 = vor.u32 %v7511, %v7514
      %v7516 = vsel %vm1800, %v7507, %v7515
      %v7517 = vrot.slane %v7515, 4
      %v7519 = vshrl.u32 %v7103, 16
      %v7521 = vrot.slane %v7519, 5
      %v7522 = vshll.u32 %v7103, 16
      %v7524 = vrot.slane %v7522, 6
      %v7525 = vor.u32 %v7521, %v7524
      %v7526 = vsel %vm1800, %v7517, %v7525
      %v7528 = vshrl.u32 %v7104, 16
      %v7530 = vrot.slane %v7528, 5
      %v7531 = vshll.u32 %v7104, 16
      %v7533 = vrot.slane %v7531, 6
      %v7534 = vor.u32 %v7530, %v7533
      %v7535 = vrot.slane %v7534, 4
      %v7537 = vshrl.u32 %v7105, 16
      %v7539 = vrot.slane %v7537, 5
      %v7540 = vshll.u32 %v7105, 16
      %v7542 = vrot.slane %v7540, 6
      %v7543 = vor.u32 %v7539, %v7542
      %v7544 = vsel %vm1800, %v7535, %v7543
      %v7545 = vrot.slane %v7543, 4
      %v7547 = vshrl.u32 %v7106, 16
      %v7549 = vrot.slane %v7547, 5
      %v7550 = vshll.u32 %v7106, 16
      %v7552 = vrot.slane %v7550, 6
      %v7553 = vor.u32 %v7549, %v7552
      %v7554 = vsel %vm1800, %v7545, %v7553
      %7555 = vrot.lane.b32.xlu0 %v7124, 64
      %v7556 = vpop.permute.xlu0 %7555
      %7557 = vrot.lane.b32.xlu0 %v7134, 64
      %v7558 = vpop.permute.xlu0 %7557
      %7559 = vrot.lane.b32.xlu0 %v7152, 64
      %v7560 = vpop.permute.xlu0 %7559
      %7561 = vrot.lane.b32.xlu0 %v7162, 64
      %v7562 = vpop.permute.xlu0 %7561
      %7563 = vrot.lane.b32.xlu0 %v7180, 64
      %v7564 = vpop.permute.xlu0 %7563
      %7565 = vrot.lane.b32.xlu0 %v7190, 64
      %v7566 = vpop.permute.xlu0 %7565
      %7567 = vrot.lane.b32.xlu0 %v7208, 64
      %v7568 = vpop.permute.xlu0 %7567
      %7569 = vrot.lane.b32.xlu0 %v7218, 64
      %v7570 = vpop.permute.xlu0 %7569
      %7571 = vrot.lane.b32.xlu0 %v7236, 64
      %v7572 = vpop.permute.xlu0 %7571
      %7573 = vrot.lane.b32.xlu0 %v7246, 64
      %v7574 = vpop.permute.xlu0 %7573
      %7575 = vrot.lane.b32.xlu0 %v7264, 64
      %v7576 = vpop.permute.xlu0 %7575
      %7577 = vrot.lane.b32.xlu0 %v7274, 64
      %v7578 = vpop.permute.xlu0 %7577
      %7579 = vrot.lane.b32.xlu0 %v7292, 64
      %v7580 = vpop.permute.xlu0 %7579
      %7581 = vrot.lane.b32.xlu0 %v7302, 64
      %v7582 = vpop.permute.xlu0 %7581
      %7583 = vrot.lane.b32.xlu0 %v7320, 64
      %v7584 = vpop.permute.xlu0 %7583
      %7585 = vrot.lane.b32.xlu0 %v7330, 64
      %v7586 = vpop.permute.xlu0 %7585
      %7587 = vrot.lane.b32.xlu0 %v7348, 64
      %v7588 = vpop.permute.xlu0 %7587
      %7589 = vrot.lane.b32.xlu0 %v7358, 64
      %v7590 = vpop.permute.xlu0 %7589
      %7591 = vrot.lane.b32.xlu0 %v7376, 64
      %v7592 = vpop.permute.xlu0 %7591
      %7593 = vrot.lane.b32.xlu0 %v7386, 64
      %v7594 = vpop.permute.xlu0 %7593
      %7595 = vrot.lane.b32.xlu0 %v7404, 64
      %v7596 = vpop.permute.xlu0 %7595
      %7597 = vrot.lane.b32.xlu0 %v7414, 64
      %v7598 = vpop.permute.xlu0 %7597
      %7599 = vrot.lane.b32.xlu0 %v7432, 64
      %v7600 = vpop.permute.xlu0 %7599
      %7601 = vrot.lane.b32.xlu0 %v7442, 64
      %v7602 = vpop.permute.xlu0 %7601
      %7603 = vrot.lane.b32.xlu0 %v7460, 64
      %v7604 = vpop.permute.xlu0 %7603
      %7605 = vrot.lane.b32.xlu0 %v7470, 64
      %v7606 = vpop.permute.xlu0 %7605
      %7607 = vrot.lane.b32.xlu0 %v7488, 64
      %v7608 = vpop.permute.xlu0 %7607
      %7609 = vrot.lane.b32.xlu0 %v7498, 64
      %v7610 = vpop.permute.xlu0 %7609
      %7611 = vrot.lane.b32.xlu0 %v7516, 64
      %v7612 = vpop.permute.xlu0 %7611
      %7613 = vrot.lane.b32.xlu0 %v7526, 64
      %v7614 = vpop.permute.xlu0 %7613
      %7615 = vrot.lane.b32.xlu0 %v7544, 64
      %v7616 = vpop.permute.xlu0 %7615
      %7617 = vrot.lane.b32.xlu0 %v7554, 64
      %v7618 = vpop.permute.xlu0 %7617
      %vm7651 = vcmask 781824
      %7652 = vst.msk [vmem:[#allocation5] sm:$0xf] %vm7651, %v7556
      %7653 = vst.msk [vmem:[#allocation5 + $0xc] sm:$0xf] %vm7651, %v7558
      %7654 = vst.msk [vmem:[#allocation5 + $0x18] sm:$0xf] %vm7651, %v7560
      %7655 = vst.msk [vmem:[#allocation5 + $0x24] sm:$0xf] %vm7651, %v7562
      %7656 = vst.msk [vmem:[#allocation5 + $0x30] sm:$0xf] %vm7651, %v7564
      %7657 = vst.msk [vmem:[#allocation5 + $0x3c] sm:$0xf] %vm7651, %v7566
      %7658 = vst.msk [vmem:[#allocation5 + $0x48] sm:$0xf] %vm7651, %v7568
      %7659 = vst.msk [vmem:[#allocation5 + $0x54] sm:$0xf] %vm7651, %v7570
      %7660 = vst.msk [vmem:[#allocation5 + $0x60] sm:$0xf] %vm7651, %v7572
      %7661 = vst.msk [vmem:[#allocation5 + $0x6c] sm:$0xf] %vm7651, %v7574
      %7662 = vst.msk [vmem:[#allocation5 + $0x78] sm:$0xf] %vm7651, %v7576
      %7663 = vst.msk [vmem:[#allocation5 + $0x84] sm:$0xf] %vm7651, %v7578
      %7664 = vst.msk [vmem:[#allocation5 + $0x90] sm:$0xf] %vm7651, %v7580
      %7665 = vst.msk [vmem:[#allocation5 + $0x9c] sm:$0xf] %vm7651, %v7582
      %7666 = vst.msk [vmem:[#allocation5 + $0xa8] sm:$0xf] %vm7651, %v7584
      %7667 = vst.msk [vmem:[#allocation5 + $0xb4] sm:$0xf] %vm7651, %v7586
      %7668 = vst.msk [vmem:[#allocation5 + $0xc0] sm:$0xf] %vm7651, %v7588
      %7669 = vst.msk [vmem:[#allocation5 + $0xcc] sm:$0xf] %vm7651, %v7590
      %7670 = vst.msk [vmem:[#allocation5 + $0xd8] sm:$0xf] %vm7651, %v7592
      %7671 = vst.msk [vmem:[#allocation5 + $0xe4] sm:$0xf] %vm7651, %v7594
      %7672 = vst.msk [vmem:[#allocation5 + $0xf0] sm:$0xf] %vm7651, %v7596
      %7673 = vst.msk [vmem:[#allocation5 + $0xfc] sm:$0xf] %vm7651, %v7598
      %7674 = vst.msk [vmem:[#allocation5 + $0x108] sm:$0xf] %vm7651, %v7600
      %7675 = vst.msk [vmem:[#allocation5 + $0x114] sm:$0xf] %vm7651, %v7602
      %7676 = vst.msk [vmem:[#allocation5 + $0x120] sm:$0xf] %vm7651, %v7604
      %7677 = vst.msk [vmem:[#allocation5 + $0x12c] sm:$0xf] %vm7651, %v7606
      %7678 = vst.msk [vmem:[#allocation5 + $0x138] sm:$0xf] %vm7651, %v7608
      %7679 = vst.msk [vmem:[#allocation5 + $0x144] sm:$0xf] %vm7651, %v7610
      %7680 = vst.msk [vmem:[#allocation5 + $0x150] sm:$0xf] %vm7651, %v7612
      %7681 = vst.msk [vmem:[#allocation5 + $0x15c] sm:$0xf] %vm7651, %v7614
      %7682 = vst.msk [vmem:[#allocation5 + $0x168] sm:$0xf] %vm7651, %v7616
      %7683 = vst.msk [vmem:[#allocation5 + $0x174] sm:$0xf] %vm7651, %v7618
      %v7684 = vld [vmem:[%s6176] sm:$0xf]
      %v7685 = vld [vmem:[%s6176 + $0x4] sm:$0xf]
      %v7686 = vld [vmem:[%s6176 + $0x8] sm:$0x1]
      %v7687 = vld [vmem:[%s6176 + $0xc] sm:$0xf]
      %v7688 = vld [vmem:[%s6176 + $0x10] sm:$0xf]
      %v7689 = vld [vmem:[%s6176 + $0x14] sm:$0x1]
      %v7690 = vld [vmem:[%s6176 + $0x18] sm:$0xf]
      %v7691 = vld [vmem:[%s6176 + $0x1c] sm:$0xf]
      %v7692 = vld [vmem:[%s6176 + $0x20] sm:$0x1]
      %v7693 = vld [vmem:[%s6176 + $0x24] sm:$0xf]
      %v7694 = vld [vmem:[%s6176 + $0x28] sm:$0xf]
      %v7695 = vld [vmem:[%s6176 + $0x2c] sm:$0x1]
      %v7696 = vld [vmem:[%s6176 + $0x30] sm:$0xf]
      %v7697 = vld [vmem:[%s6176 + $0x34] sm:$0xf]
      %v7698 = vld [vmem:[%s6176 + $0x38] sm:$0x1]
      %v7699 = vld [vmem:[%s6176 + $0x3c] sm:$0xf]
      %v7700 = vld [vmem:[%s6176 + $0x40] sm:$0xf]
      %v7701 = vld [vmem:[%s6176 + $0x44] sm:$0x1]
      %v7702 = vld [vmem:[%s6176 + $0x48] sm:$0xf]
      %v7703 = vld [vmem:[%s6176 + $0x4c] sm:$0xf]
      %v7704 = vld [vmem:[%s6176 + $0x50] sm:$0x1]
      %v7705 = vld [vmem:[%s6176 + $0x54] sm:$0xf]
      %v7706 = vld [vmem:[%s6176 + $0x58] sm:$0xf]
      %v7707 = vld [vmem:[%s6176 + $0x5c] sm:$0x1]
      %v7708 = vld [vmem:[%s6176 + $0x60] sm:$0xf]
      %v7709 = vld [vmem:[%s6176 + $0x64] sm:$0xf]
      %v7710 = vld [vmem:[%s6176 + $0x68] sm:$0x1]
      %v7711 = vld [vmem:[%s6176 + $0x6c] sm:$0xf]
      %v7712 = vld [vmem:[%s6176 + $0x70] sm:$0xf]
      %v7713 = vld [vmem:[%s6176 + $0x74] sm:$0x1]
      %v7714 = vld [vmem:[%s6176 + $0x78] sm:$0xf]
      %v7715 = vld [vmem:[%s6176 + $0x7c] sm:$0xf]
      %v7716 = vld [vmem:[%s6176 + $0x80] sm:$0x1]
      %v7717 = vld [vmem:[%s6176 + $0x84] sm:$0xf]
      %v7718 = vld [vmem:[%s6176 + $0x88] sm:$0xf]
      %v7719 = vld [vmem:[%s6176 + $0x8c] sm:$0x1]
      %v7720 = vld [vmem:[%s6176 + $0x90] sm:$0xf]
      %v7721 = vld [vmem:[%s6176 + $0x94] sm:$0xf]
      %v7722 = vld [vmem:[%s6176 + $0x98] sm:$0x1]
      %v7723 = vld [vmem:[%s6176 + $0x9c] sm:$0xf]
      %v7724 = vld [vmem:[%s6176 + $0xa0] sm:$0xf]
      %v7725 = vld [vmem:[%s6176 + $0xa4] sm:$0x1]
      %v7726 = vld [vmem:[%s6176 + $0xa8] sm:$0xf]
      %v7727 = vld [vmem:[%s6176 + $0xac] sm:$0xf]
      %v7728 = vld [vmem:[%s6176 + $0xb0] sm:$0x1]
      %v7729 = vld [vmem:[%s6176 + $0xb4] sm:$0xf]
      %v7730 = vld [vmem:[%s6176 + $0xb8] sm:$0xf]
      %v7731 = vld [vmem:[%s6176 + $0xbc] sm:$0x1]
      %v7733 = vshrl.u32 %v7684, 16
      %v7735 = vrot.slane %v7733, 4
      %v7736 = vshll.u32 %v7684, 16
      %v7738 = vrot.slane %v7736, 5
      %v7739 = vor.u32 %v7735, %v7738
      %v7740 = vrot.slane %v7739, 4
      %v7742 = vshll.u32 %v7685, 16
      %v7744 = vrot.slane %v7742, 5
      %v7745 = vsel %vm961, %v7740, %v7744
      %v7746 = vshrl.u32 %v7685, 16
      %v7748 = vrot.slane %v7746, 4
      %v7749 = vor.u32 %v7748, %v7744
      %v7750 = vrot.slane %v7749, 4
      %v7752 = vshll.u32 %v7686, 16
      %v7754 = vrot.slane %v7752, 5
      %v7755 = vsel %vm961, %v7750, %v7754
      %v7757 = vshrl.u32 %v7687, 16
      %v7759 = vrot.slane %v7757, 4
      %v7760 = vshll.u32 %v7687, 16
      %v7762 = vrot.slane %v7760, 5
      %v7763 = vor.u32 %v7759, %v7762
      %v7764 = vrot.slane %v7763, 4
      %v7766 = vshll.u32 %v7688, 16
      %v7768 = vrot.slane %v7766, 5
      %v7769 = vsel %vm961, %v7764, %v7768
      %v7770 = vshrl.u32 %v7688, 16
      %v7772 = vrot.slane %v7770, 4
      %v7773 = vor.u32 %v7772, %v7768
      %v7774 = vrot.slane %v7773, 4
      %v7776 = vshll.u32 %v7689, 16
      %v7778 = vrot.slane %v7776, 5
      %v7779 = vsel %vm961, %v7774, %v7778
      %v7781 = vshrl.u32 %v7690, 16
      %v7783 = vrot.slane %v7781, 4
      %v7784 = vshll.u32 %v7690, 16
      %v7786 = vrot.slane %v7784, 5
      %v7787 = vor.u32 %v7783, %v7786
      %v7788 = vrot.slane %v7787, 4
      %v7790 = vshll.u32 %v7691, 16
      %v7792 = vrot.slane %v7790, 5
      %v7793 = vsel %vm961, %v7788, %v7792
      %v7794 = vshrl.u32 %v7691, 16
      %v7796 = vrot.slane %v7794, 4
      %v7797 = vor.u32 %v7796, %v7792
      %v7798 = vrot.slane %v7797, 4
      %v7800 = vshll.u32 %v7692, 16
      %v7802 = vrot.slane %v7800, 5
      %v7803 = vsel %vm961, %v7798, %v7802
      %v7805 = vshrl.u32 %v7693, 16
      %v7807 = vrot.slane %v7805, 4
      %v7808 = vshll.u32 %v7693, 16
      %v7810 = vrot.slane %v7808, 5
      %v7811 = vor.u32 %v7807, %v7810
      %v7812 = vrot.slane %v7811, 4
      %v7814 = vshll.u32 %v7694, 16
      %v7816 = vrot.slane %v7814, 5
      %v7817 = vsel %vm961, %v7812, %v7816
      %v7818 = vshrl.u32 %v7694, 16
      %v7820 = vrot.slane %v7818, 4
      %v7821 = vor.u32 %v7820, %v7816
      %v7822 = vrot.slane %v7821, 4
      %v7824 = vshll.u32 %v7695, 16
      %v7826 = vrot.slane %v7824, 5
      %v7827 = vsel %vm961, %v7822, %v7826
      %v7829 = vshrl.u32 %v7696, 16
      %v7831 = vrot.slane %v7829, 4
      %v7832 = vshll.u32 %v7696, 16
      %v7834 = vrot.slane %v7832, 5
      %v7835 = vor.u32 %v7831, %v7834
      %v7836 = vrot.slane %v7835, 4
      %v7838 = vshll.u32 %v7697, 16
      %v7840 = vrot.slane %v7838, 5
      %v7841 = vsel %vm961, %v7836, %v7840
      %v7842 = vshrl.u32 %v7697, 16
      %v7844 = vrot.slane %v7842, 4
      %v7845 = vor.u32 %v7844, %v7840
      %v7846 = vrot.slane %v7845, 4
      %v7848 = vshll.u32 %v7698, 16
      %v7850 = vrot.slane %v7848, 5
      %v7851 = vsel %vm961, %v7846, %v7850
      %v7853 = vshrl.u32 %v7699, 16
      %v7855 = vrot.slane %v7853, 4
      %v7856 = vshll.u32 %v7699, 16
      %v7858 = vrot.slane %v7856, 5
      %v7859 = vor.u32 %v7855, %v7858
      %v7860 = vrot.slane %v7859, 4
      %v7862 = vshll.u32 %v7700, 16
      %v7864 = vrot.slane %v7862, 5
      %v7865 = vsel %vm961, %v7860, %v7864
      %v7866 = vshrl.u32 %v7700, 16
      %v7868 = vrot.slane %v7866, 4
      %v7869 = vor.u32 %v7868, %v7864
      %v7870 = vrot.slane %v7869, 4
      %v7872 = vshll.u32 %v7701, 16
      %v7874 = vrot.slane %v7872, 5
      %v7875 = vsel %vm961, %v7870, %v7874
      %v7877 = vshrl.u32 %v7702, 16
      %v7879 = vrot.slane %v7877, 4
      %v7880 = vshll.u32 %v7702, 16
      %v7882 = vrot.slane %v7880, 5
      %v7883 = vor.u32 %v7879, %v7882
      %v7884 = vrot.slane %v7883, 4
      %v7886 = vshll.u32 %v7703, 16
      %v7888 = vrot.slane %v7886, 5
      %v7889 = vsel %vm961, %v7884, %v7888
      %v7890 = vshrl.u32 %v7703, 16
      %v7892 = vrot.slane %v7890, 4
      %v7893 = vor.u32 %v7892, %v7888
      %v7894 = vrot.slane %v7893, 4
      %v7896 = vshll.u32 %v7704, 16
      %v7898 = vrot.slane %v7896, 5
      %v7899 = vsel %vm961, %v7894, %v7898
      %v7901 = vshrl.u32 %v7705, 16
      %v7903 = vrot.slane %v7901, 4
      %v7904 = vshll.u32 %v7705, 16
      %v7906 = vrot.slane %v7904, 5
      %v7907 = vor.u32 %v7903, %v7906
      %v7908 = vrot.slane %v7907, 4
      %v7910 = vshll.u32 %v7706, 16
      %v7912 = vrot.slane %v7910, 5
      %v7913 = vsel %vm961, %v7908, %v7912
      %v7914 = vshrl.u32 %v7706, 16
      %v7916 = vrot.slane %v7914, 4
      %v7917 = vor.u32 %v7916, %v7912
      %v7918 = vrot.slane %v7917, 4
      %v7920 = vshll.u32 %v7707, 16
      %v7922 = vrot.slane %v7920, 5
      %v7923 = vsel %vm961, %v7918, %v7922
      %v7925 = vshrl.u32 %v7708, 16
      %v7927 = vrot.slane %v7925, 4
      %v7928 = vshll.u32 %v7708, 16
      %v7930 = vrot.slane %v7928, 5
      %v7931 = vor.u32 %v7927, %v7930
      %v7932 = vrot.slane %v7931, 4
      %v7934 = vshll.u32 %v7709, 16
      %v7936 = vrot.slane %v7934, 5
      %v7937 = vsel %vm961, %v7932, %v7936
      %v7938 = vshrl.u32 %v7709, 16
      %v7940 = vrot.slane %v7938, 4
      %v7941 = vor.u32 %v7940, %v7936
      %v7942 = vrot.slane %v7941, 4
      %v7944 = vshll.u32 %v7710, 16
      %v7946 = vrot.slane %v7944, 5
      %v7947 = vsel %vm961, %v7942, %v7946
      %v7949 = vshrl.u32 %v7711, 16
      %v7951 = vrot.slane %v7949, 4
      %v7952 = vshll.u32 %v7711, 16
      %v7954 = vrot.slane %v7952, 5
      %v7955 = vor.u32 %v7951, %v7954
      %v7956 = vrot.slane %v7955, 4
      %v7958 = vshll.u32 %v7712, 16
      %v7960 = vrot.slane %v7958, 5
      %v7961 = vsel %vm961, %v7956, %v7960
      %v7962 = vshrl.u32 %v7712, 16
      %v7964 = vrot.slane %v7962, 4
      %v7965 = vor.u32 %v7964, %v7960
      %v7966 = vrot.slane %v7965, 4
      %v7968 = vshll.u32 %v7713, 16
      %v7970 = vrot.slane %v7968, 5
      %v7971 = vsel %vm961, %v7966, %v7970
      %v7973 = vshrl.u32 %v7714, 16
      %v7975 = vrot.slane %v7973, 4
      %v7976 = vshll.u32 %v7714, 16
      %v7978 = vrot.slane %v7976, 5
      %v7979 = vor.u32 %v7975, %v7978
      %v7980 = vrot.slane %v7979, 4
      %v7982 = vshll.u32 %v7715, 16
      %v7984 = vrot.slane %v7982, 5
      %v7985 = vsel %vm961, %v7980, %v7984
      %v7986 = vshrl.u32 %v7715, 16
      %v7988 = vrot.slane %v7986, 4
      %v7989 = vor.u32 %v7988, %v7984
      %v7990 = vrot.slane %v7989, 4
      %v7992 = vshll.u32 %v7716, 16
      %v7994 = vrot.slane %v7992, 5
      %v7995 = vsel %vm961, %v7990, %v7994
      %v7997 = vshrl.u32 %v7717, 16
      %v7999 = vrot.slane %v7997, 4
      %v8000 = vshll.u32 %v7717, 16
      %v8002 = vrot.slane %v8000, 5
      %v8003 = vor.u32 %v7999, %v8002
      %v8004 = vrot.slane %v8003, 4
      %v8006 = vshll.u32 %v7718, 16
      %v8008 = vrot.slane %v8006, 5
      %v8009 = vsel %vm961, %v8004, %v8008
      %v8010 = vshrl.u32 %v7718, 16
      %v8012 = vrot.slane %v8010, 4
      %v8013 = vor.u32 %v8012, %v8008
      %v8014 = vrot.slane %v8013, 4
      %v8016 = vshll.u32 %v7719, 16
      %v8018 = vrot.slane %v8016, 5
      %v8019 = vsel %vm961, %v8014, %v8018
      %v8021 = vshrl.u32 %v7720, 16
      %v8023 = vrot.slane %v8021, 4
      %v8024 = vshll.u32 %v7720, 16
      %v8026 = vrot.slane %v8024, 5
      %v8027 = vor.u32 %v8023, %v8026
      %v8028 = vrot.slane %v8027, 4
      %v8030 = vshll.u32 %v7721, 16
      %v8032 = vrot.slane %v8030, 5
      %v8033 = vsel %vm961, %v8028, %v8032
      %v8034 = vshrl.u32 %v7721, 16
      %v8036 = vrot.slane %v8034, 4
      %v8037 = vor.u32 %v8036, %v8032
      %v8038 = vrot.slane %v8037, 4
      %v8040 = vshll.u32 %v7722, 16
      %v8042 = vrot.slane %v8040, 5
      %v8043 = vsel %vm961, %v8038, %v8042
      %v8045 = vshrl.u32 %v7723, 16
      %v8047 = vrot.slane %v8045, 4
      %v8048 = vshll.u32 %v7723, 16
      %v8050 = vrot.slane %v8048, 5
      %v8051 = vor.u32 %v8047, %v8050
      %v8052 = vrot.slane %v8051, 4
      %v8054 = vshll.u32 %v7724, 16
      %v8056 = vrot.slane %v8054, 5
      %v8057 = vsel %vm961, %v8052, %v8056
      %v8058 = vshrl.u32 %v7724, 16
      %v8060 = vrot.slane %v8058, 4
      %v8061 = vor.u32 %v8060, %v8056
      %v8062 = vrot.slane %v8061, 4
      %v8064 = vshll.u32 %v7725, 16
      %v8066 = vrot.slane %v8064, 5
      %v8067 = vsel %vm961, %v8062, %v8066
      %v8069 = vshrl.u32 %v7726, 16
      %v8071 = vrot.slane %v8069, 4
      %v8072 = vshll.u32 %v7726, 16
      %v8074 = vrot.slane %v8072, 5
      %v8075 = vor.u32 %v8071, %v8074
      %v8076 = vrot.slane %v8075, 4
      %v8078 = vshll.u32 %v7727, 16
      %v8080 = vrot.slane %v8078, 5
      %v8081 = vsel %vm961, %v8076, %v8080
      %v8082 = vshrl.u32 %v7727, 16
      %v8084 = vrot.slane %v8082, 4
      %v8085 = vor.u32 %v8084, %v8080
      %v8086 = vrot.slane %v8085, 4
      %v8088 = vshll.u32 %v7728, 16
      %v8090 = vrot.slane %v8088, 5
      %v8091 = vsel %vm961, %v8086, %v8090
      %v8093 = vshrl.u32 %v7729, 16
      %v8095 = vrot.slane %v8093, 4
      %v8096 = vshll.u32 %v7729, 16
      %v8098 = vrot.slane %v8096, 5
      %v8099 = vor.u32 %v8095, %v8098
      %v8100 = vrot.slane %v8099, 4
      %v8102 = vshll.u32 %v7730, 16
      %v8104 = vrot.slane %v8102, 5
      %v8105 = vsel %vm961, %v8100, %v8104
      %v8106 = vshrl.u32 %v7730, 16
      %v8108 = vrot.slane %v8106, 4
      %v8109 = vor.u32 %v8108, %v8104
      %v8110 = vrot.slane %v8109, 4
      %v8112 = vshll.u32 %v7731, 16
      %v8114 = vrot.slane %v8112, 5
      %v8115 = vsel %vm961, %v8110, %v8114
      %8116 = vrot.lane.b32.xlu0 %v7745, 96
      %v8117 = vpop.permute.xlu0 %8116
      %8118 = vrot.lane.b32.xlu0 %v7755, 96
      %v8119 = vpop.permute.xlu0 %8118
      %8120 = vrot.lane.b32.xlu0 %v7769, 96
      %v8121 = vpop.permute.xlu0 %8120
      %8122 = vrot.lane.b32.xlu0 %v7779, 96
      %v8123 = vpop.permute.xlu0 %8122
      %8124 = vrot.lane.b32.xlu0 %v7793, 96
      %v8125 = vpop.permute.xlu0 %8124
      %8126 = vrot.lane.b32.xlu0 %v7803, 96
      %v8127 = vpop.permute.xlu0 %8126
      %8128 = vrot.lane.b32.xlu0 %v7817, 96
      %v8129 = vpop.permute.xlu0 %8128
      %8130 = vrot.lane.b32.xlu0 %v7827, 96
      %v8131 = vpop.permute.xlu0 %8130
      %8132 = vrot.lane.b32.xlu0 %v7841, 96
      %v8133 = vpop.permute.xlu0 %8132
      %8134 = vrot.lane.b32.xlu0 %v7851, 96
      %v8135 = vpop.permute.xlu0 %8134
      %8136 = vrot.lane.b32.xlu0 %v7865, 96
      %v8137 = vpop.permute.xlu0 %8136
      %8138 = vrot.lane.b32.xlu0 %v7875, 96
      %v8139 = vpop.permute.xlu0 %8138
      %8140 = vrot.lane.b32.xlu0 %v7889, 96
      %v8141 = vpop.permute.xlu0 %8140
      %8142 = vrot.lane.b32.xlu0 %v7899, 96
      %v8143 = vpop.permute.xlu0 %8142
      %8144 = vrot.lane.b32.xlu0 %v7913, 96
      %v8145 = vpop.permute.xlu0 %8144
      %8146 = vrot.lane.b32.xlu0 %v7923, 96
      %v8147 = vpop.permute.xlu0 %8146
      %8148 = vrot.lane.b32.xlu0 %v7937, 96
      %v8149 = vpop.permute.xlu0 %8148
      %8150 = vrot.lane.b32.xlu0 %v7947, 96
      %v8151 = vpop.permute.xlu0 %8150
      %8152 = vrot.lane.b32.xlu0 %v7961, 96
      %v8153 = vpop.permute.xlu0 %8152
      %8154 = vrot.lane.b32.xlu0 %v7971, 96
      %v8155 = vpop.permute.xlu0 %8154
      %8156 = vrot.lane.b32.xlu0 %v7985, 96
      %v8157 = vpop.permute.xlu0 %8156
      %8158 = vrot.lane.b32.xlu0 %v7995, 96
      %v8159 = vpop.permute.xlu0 %8158
      %8160 = vrot.lane.b32.xlu0 %v8009, 96
      %v8161 = vpop.permute.xlu0 %8160
      %8162 = vrot.lane.b32.xlu0 %v8019, 96
      %v8163 = vpop.permute.xlu0 %8162
      %8164 = vrot.lane.b32.xlu0 %v8033, 96
      %v8165 = vpop.permute.xlu0 %8164
      %8166 = vrot.lane.b32.xlu0 %v8043, 96
      %v8167 = vpop.permute.xlu0 %8166
      %8168 = vrot.lane.b32.xlu0 %v8057, 96
      %v8169 = vpop.permute.xlu0 %8168
      %8170 = vrot.lane.b32.xlu0 %v8067, 96
      %v8171 = vpop.permute.xlu0 %8170
      %8172 = vrot.lane.b32.xlu0 %v8081, 96
      %v8173 = vpop.permute.xlu0 %8172
      %8174 = vrot.lane.b32.xlu0 %v8091, 96
      %v8175 = vpop.permute.xlu0 %8174
      %8176 = vrot.lane.b32.xlu0 %v8105, 96
      %v8177 = vpop.permute.xlu0 %8176
      %8178 = vrot.lane.b32.xlu0 %v8115, 96
      %v8179 = vpop.permute.xlu0 %8178
      %vm8212 = vcmask 1044224
      %8213 = vst.msk [vmem:[#allocation5] sm:$0xf] %vm8212, %v8117
      %8214 = vst.msk [vmem:[#allocation5 + $0xc] sm:$0xf] %vm8212, %v8119
      %8215 = vst.msk [vmem:[#allocation5 + $0x18] sm:$0xf] %vm8212, %v8121
      %8216 = vst.msk [vmem:[#allocation5 + $0x24] sm:$0xf] %vm8212, %v8123
      %8217 = vst.msk [vmem:[#allocation5 + $0x30] sm:$0xf] %vm8212, %v8125
      %8218 = vst.msk [vmem:[#allocation5 + $0x3c] sm:$0xf] %vm8212, %v8127
      %8219 = vst.msk [vmem:[#allocation5 + $0x48] sm:$0xf] %vm8212, %v8129
      %8220 = vst.msk [vmem:[#allocation5 + $0x54] sm:$0xf] %vm8212, %v8131
      %8221 = vst.msk [vmem:[#allocation5 + $0x60] sm:$0xf] %vm8212, %v8133
      %8222 = vst.msk [vmem:[#allocation5 + $0x6c] sm:$0xf] %vm8212, %v8135
      %8223 = vst.msk [vmem:[#allocation5 + $0x78] sm:$0xf] %vm8212, %v8137
      %8224 = vst.msk [vmem:[#allocation5 + $0x84] sm:$0xf] %vm8212, %v8139
      %8225 = vst.msk [vmem:[#allocation5 + $0x90] sm:$0xf] %vm8212, %v8141
      %8226 = vst.msk [vmem:[#allocation5 + $0x9c] sm:$0xf] %vm8212, %v8143
      %8227 = vst.msk [vmem:[#allocation5 + $0xa8] sm:$0xf] %vm8212, %v8145
      %8228 = vst.msk [vmem:[#allocation5 + $0xb4] sm:$0xf] %vm8212, %v8147
      %8229 = vst.msk [vmem:[#allocation5 + $0xc0] sm:$0xf] %vm8212, %v8149
      %8230 = vst.msk [vmem:[#allocation5 + $0xcc] sm:$0xf] %vm8212, %v8151
      %8231 = vst.msk [vmem:[#allocation5 + $0xd8] sm:$0xf] %vm8212, %v8153
      %8232 = vst.msk [vmem:[#allocation5 + $0xe4] sm:$0xf] %vm8212, %v8155
      %8233 = vst.msk [vmem:[#allocation5 + $0xf0] sm:$0xf] %vm8212, %v8157
      %8234 = vst.msk [vmem:[#allocation5 + $0xfc] sm:$0xf] %vm8212, %v8159
      %8235 = vst.msk [vmem:[#allocation5 + $0x108] sm:$0xf] %vm8212, %v8161
      %8236 = vst.msk [vmem:[#allocation5 + $0x114] sm:$0xf] %vm8212, %v8163
      %8237 = vst.msk [vmem:[#allocation5 + $0x120] sm:$0xf] %vm8212, %v8165
      %8238 = vst.msk [vmem:[#allocation5 + $0x12c] sm:$0xf] %vm8212, %v8167
      %8239 = vst.msk [vmem:[#allocation5 + $0x138] sm:$0xf] %vm8212, %v8169
      %8240 = vst.msk [vmem:[#allocation5 + $0x144] sm:$0xf] %vm8212, %v8171
      %8241 = vst.msk [vmem:[#allocation5 + $0x150] sm:$0xf] %vm8212, %v8173
      %8242 = vst.msk [vmem:[#allocation5 + $0x15c] sm:$0xf] %vm8212, %v8175
      %8243 = vst.msk [vmem:[#allocation5 + $0x168] sm:$0xf] %vm8212, %v8177
      %8244 = vst.msk [vmem:[#allocation5 + $0x174] sm:$0xf] %vm8212, %v8179
      %v8245 = vld [vmem:[%s6176] sm:$0xe]
      %v8246 = vld [vmem:[%s6176 + $0x4] sm:$0xf]
      %v8247 = vld [vmem:[%s6176 + $0x8] sm:$0x1]
      %v8248 = vld [vmem:[%s6176 + $0xc] sm:$0xe]
      %v8249 = vld [vmem:[%s6176 + $0x10] sm:$0xf]
      %v8250 = vld [vmem:[%s6176 + $0x14] sm:$0x1]
      %v8251 = vld [vmem:[%s6176 + $0x18] sm:$0xe]
      %v8252 = vld [vmem:[%s6176 + $0x1c] sm:$0xf]
      %v8253 = vld [vmem:[%s6176 + $0x20] sm:$0x1]
      %v8254 = vld [vmem:[%s6176 + $0x24] sm:$0xe]
      %v8255 = vld [vmem:[%s6176 + $0x28] sm:$0xf]
      %v8256 = vld [vmem:[%s6176 + $0x2c] sm:$0x1]
      %v8257 = vld [vmem:[%s6176 + $0x30] sm:$0xe]
      %v8258 = vld [vmem:[%s6176 + $0x34] sm:$0xf]
      %v8259 = vld [vmem:[%s6176 + $0x38] sm:$0x1]
      %v8260 = vld [vmem:[%s6176 + $0x3c] sm:$0xe]
      %v8261 = vld [vmem:[%s6176 + $0x40] sm:$0xf]
      %v8262 = vld [vmem:[%s6176 + $0x44] sm:$0x1]
      %v8263 = vld [vmem:[%s6176 + $0x48] sm:$0xe]
      %v8264 = vld [vmem:[%s6176 + $0x4c] sm:$0xf]
      %v8265 = vld [vmem:[%s6176 + $0x50] sm:$0x1]
      %v8266 = vld [vmem:[%s6176 + $0x54] sm:$0xe]
      %v8267 = vld [vmem:[%s6176 + $0x58] sm:$0xf]
      %v8268 = vld [vmem:[%s6176 + $0x5c] sm:$0x1]
      %v8269 = vld [vmem:[%s6176 + $0x60] sm:$0xe]
      %v8270 = vld [vmem:[%s6176 + $0x64] sm:$0xf]
      %v8271 = vld [vmem:[%s6176 + $0x68] sm:$0x1]
      %v8272 = vld [vmem:[%s6176 + $0x6c] sm:$0xe]
      %v8273 = vld [vmem:[%s6176 + $0x70] sm:$0xf]
      %v8274 = vld [vmem:[%s6176 + $0x74] sm:$0x1]
      %v8275 = vld [vmem:[%s6176 + $0x78] sm:$0xe]
      %v8276 = vld [vmem:[%s6176 + $0x7c] sm:$0xf]
      %v8277 = vld [vmem:[%s6176 + $0x80] sm:$0x1]
      %v8278 = vld [vmem:[%s6176 + $0x84] sm:$0xe]
      %v8279 = vld [vmem:[%s6176 + $0x88] sm:$0xf]
      %v8280 = vld [vmem:[%s6176 + $0x8c] sm:$0x1]
      %v8281 = vld [vmem:[%s6176 + $0x90] sm:$0xe]
      %v8282 = vld [vmem:[%s6176 + $0x94] sm:$0xf]
      %v8283 = vld [vmem:[%s6176 + $0x98] sm:$0x1]
      %v8284 = vld [vmem:[%s6176 + $0x9c] sm:$0xe]
      %v8285 = vld [vmem:[%s6176 + $0xa0] sm:$0xf]
      %v8286 = vld [vmem:[%s6176 + $0xa4] sm:$0x1]
      %v8287 = vld [vmem:[%s6176 + $0xa8] sm:$0xe]
      %v8288 = vld [vmem:[%s6176 + $0xac] sm:$0xf]
      %v8289 = vld [vmem:[%s6176 + $0xb0] sm:$0x1]
      %v8290 = vld [vmem:[%s6176 + $0xb4] sm:$0xe]
      %v8291 = vld [vmem:[%s6176 + $0xb8] sm:$0xf]
      %v8292 = vld [vmem:[%s6176 + $0xbc] sm:$0x1]
      %v8341 = vrot.slane %v8245, 5
      %v8342 = vrot.slane %v8341, 4
      %v8343 = vrot.slane %v8246, 5
      %v8344 = vsel %vm1508, %v8342, %v8343
      %v8345 = vrot.slane %v8343, 4
      %v8346 = vrot.slane %v8247, 5
      %v8347 = vsel %vm1508, %v8345, %v8346
      %v8348 = vrot.slane %v8248, 5
      %v8349 = vrot.slane %v8348, 4
      %v8350 = vrot.slane %v8249, 5
      %v8351 = vsel %vm1508, %v8349, %v8350
      %v8352 = vrot.slane %v8350, 4
      %v8353 = vrot.slane %v8250, 5
      %v8354 = vsel %vm1508, %v8352, %v8353
      %v8355 = vrot.slane %v8251, 5
      %v8356 = vrot.slane %v8355, 4
      %v8357 = vrot.slane %v8252, 5
      %v8358 = vsel %vm1508, %v8356, %v8357
      %v8359 = vrot.slane %v8357, 4
      %v8360 = vrot.slane %v8253, 5
      %v8361 = vsel %vm1508, %v8359, %v8360
      %v8362 = vrot.slane %v8254, 5
      %v8363 = vrot.slane %v8362, 4
      %v8364 = vrot.slane %v8255, 5
      %v8365 = vsel %vm1508, %v8363, %v8364
      %v8366 = vrot.slane %v8364, 4
      %v8367 = vrot.slane %v8256, 5
      %v8368 = vsel %vm1508, %v8366, %v8367
      %v8369 = vrot.slane %v8257, 5
      %v8370 = vrot.slane %v8369, 4
      %v8371 = vrot.slane %v8258, 5
      %v8372 = vsel %vm1508, %v8370, %v8371
      %v8373 = vrot.slane %v8371, 4
      %v8374 = vrot.slane %v8259, 5
      %v8375 = vsel %vm1508, %v8373, %v8374
      %v8376 = vrot.slane %v8260, 5
      %v8377 = vrot.slane %v8376, 4
      %v8378 = vrot.slane %v8261, 5
      %v8379 = vsel %vm1508, %v8377, %v8378
      %v8380 = vrot.slane %v8378, 4
      %v8381 = vrot.slane %v8262, 5
      %v8382 = vsel %vm1508, %v8380, %v8381
      %v8383 = vrot.slane %v8263, 5
      %v8384 = vrot.slane %v8383, 4
      %v8385 = vrot.slane %v8264, 5
      %v8386 = vsel %vm1508, %v8384, %v8385
      %v8387 = vrot.slane %v8385, 4
      %v8388 = vrot.slane %v8265, 5
      %v8389 = vsel %vm1508, %v8387, %v8388
      %v8390 = vrot.slane %v8266, 5
      %v8391 = vrot.slane %v8390, 4
      %v8392 = vrot.slane %v8267, 5
      %v8393 = vsel %vm1508, %v8391, %v8392
      %v8394 = vrot.slane %v8392, 4
      %v8395 = vrot.slane %v8268, 5
      %v8396 = vsel %vm1508, %v8394, %v8395
      %v8397 = vrot.slane %v8269, 5
      %v8398 = vrot.slane %v8397, 4
      %v8399 = vrot.slane %v8270, 5
      %v8400 = vsel %vm1508, %v8398, %v8399
      %v8401 = vrot.slane %v8399, 4
      %v8402 = vrot.slane %v8271, 5
      %v8403 = vsel %vm1508, %v8401, %v8402
      %v8404 = vrot.slane %v8272, 5
      %v8405 = vrot.slane %v8404, 4
      %v8406 = vrot.slane %v8273, 5
      %v8407 = vsel %vm1508, %v8405, %v8406
      %v8408 = vrot.slane %v8406, 4
      %v8409 = vrot.slane %v8274, 5
      %v8410 = vsel %vm1508, %v8408, %v8409
      %v8411 = vrot.slane %v8275, 5
      %v8412 = vrot.slane %v8411, 4
      %v8413 = vrot.slane %v8276, 5
      %v8414 = vsel %vm1508, %v8412, %v8413
      %v8415 = vrot.slane %v8413, 4
      %v8416 = vrot.slane %v8277, 5
      %v8417 = vsel %vm1508, %v8415, %v8416
      %v8418 = vrot.slane %v8278, 5
      %v8419 = vrot.slane %v8418, 4
      %v8420 = vrot.slane %v8279, 5
      %v8421 = vsel %vm1508, %v8419, %v8420
      %v8422 = vrot.slane %v8420, 4
      %v8423 = vrot.slane %v8280, 5
      %v8424 = vsel %vm1508, %v8422, %v8423
      %v8425 = vrot.slane %v8281, 5
      %v8426 = vrot.slane %v8425, 4
      %v8427 = vrot.slane %v8282, 5
      %v8428 = vsel %vm1508, %v8426, %v8427
      %v8429 = vrot.slane %v8427, 4
      %v8430 = vrot.slane %v8283, 5
      %v8431 = vsel %vm1508, %v8429, %v8430
      %v8432 = vrot.slane %v8284, 5
      %v8433 = vrot.slane %v8432, 4
      %v8434 = vrot.slane %v8285, 5
      %v8435 = vsel %vm1508, %v8433, %v8434
      %v8436 = vrot.slane %v8434, 4
      %v8437 = vrot.slane %v8286, 5
      %v8438 = vsel %vm1508, %v8436, %v8437
      %v8439 = vrot.slane %v8287, 5
      %v8440 = vrot.slane %v8439, 4
      %v8441 = vrot.slane %v8288, 5
      %v8442 = vsel %vm1508, %v8440, %v8441
      %v8443 = vrot.slane %v8441, 4
      %v8444 = vrot.slane %v8289, 5
      %v8445 = vsel %vm1508, %v8443, %v8444
      %v8446 = vrot.slane %v8290, 5
      %v8447 = vrot.slane %v8446, 4
      %v8448 = vrot.slane %v8291, 5
      %v8449 = vsel %vm1508, %v8447, %v8448
      %v8450 = vrot.slane %v8448, 4
      %v8451 = vrot.slane %v8292, 5
      %v8452 = vsel %vm1508, %v8450, %v8451
      %8485 = vst.msk [vmem:[#allocation5 + $0x4] sm:$0xf] %vm381, %v8344
      %8486 = vst.msk [vmem:[#allocation5 + $0x10] sm:$0xf] %vm381, %v8347
      %8487 = vst.msk [vmem:[#allocation5 + $0x1c] sm:$0xf] %vm381, %v8351
      %8488 = vst.msk [vmem:[#allocation5 + $0x28] sm:$0xf] %vm381, %v8354
      %8489 = vst.msk [vmem:[#allocation5 + $0x34] sm:$0xf] %vm381, %v8358
      %8490 = vst.msk [vmem:[#allocation5 + $0x40] sm:$0xf] %vm381, %v8361
      %8491 = vst.msk [vmem:[#allocation5 + $0x4c] sm:$0xf] %vm381, %v8365
      %8492 = vst.msk [vmem:[#allocation5 + $0x58] sm:$0xf] %vm381, %v8368
      %8493 = vst.msk [vmem:[#allocation5 + $0x64] sm:$0xf] %vm381, %v8372
      %8494 = vst.msk [vmem:[#allocation5 + $0x70] sm:$0xf] %vm381, %v8375
      %8495 = vst.msk [vmem:[#allocation5 + $0x7c] sm:$0xf] %vm381, %v8379
      %8496 = vst.msk [vmem:[#allocation5 + $0x88] sm:$0xf] %vm381, %v8382
      %8497 = vst.msk [vmem:[#allocation5 + $0x94] sm:$0xf] %vm381, %v8386
      %8498 = vst.msk [vmem:[#allocation5 + $0xa0] sm:$0xf] %vm381, %v8389
      %8499 = vst.msk [vmem:[#allocation5 + $0xac] sm:$0xf] %vm381, %v8393
      %8500 = vst.msk [vmem:[#allocation5 + $0xb8] sm:$0xf] %vm381, %v8396
      %8501 = vst.msk [vmem:[#allocation5 + $0xc4] sm:$0xf] %vm381, %v8400
      %8502 = vst.msk [vmem:[#allocation5 + $0xd0] sm:$0xf] %vm381, %v8403
      %8503 = vst.msk [vmem:[#allocation5 + $0xdc] sm:$0xf] %vm381, %v8407
      %8504 = vst.msk [vmem:[#allocation5 + $0xe8] sm:$0xf] %vm381, %v8410
      %8505 = vst.msk [vmem:[#allocation5 + $0xf4] sm:$0xf] %vm381, %v8414
      %8506 = vst.msk [vmem:[#allocation5 + $0x100] sm:$0xf] %vm381, %v8417
      %8507 = vst.msk [vmem:[#allocation5 + $0x10c] sm:$0xf] %vm381, %v8421
      %8508 = vst.msk [vmem:[#allocation5 + $0x118] sm:$0xf] %vm381, %v8424
      %8509 = vst.msk [vmem:[#allocation5 + $0x124] sm:$0xf] %vm381, %v8428
      %8510 = vst.msk [vmem:[#allocation5 + $0x130] sm:$0xf] %vm381, %v8431
      %8511 = vst.msk [vmem:[#allocation5 + $0x13c] sm:$0xf] %vm381, %v8435
      %8512 = vst.msk [vmem:[#allocation5 + $0x148] sm:$0xf] %vm381, %v8438
      %8513 = vst.msk [vmem:[#allocation5 + $0x154] sm:$0xf] %vm381, %v8442
      %8514 = vst.msk [vmem:[#allocation5 + $0x160] sm:$0xf] %vm381, %v8445
      %8515 = vst.msk [vmem:[#allocation5 + $0x16c] sm:$0xf] %vm381, %v8449
      %8516 = vst.msk [vmem:[#allocation5 + $0x178] sm:$0xf] %vm381, %v8452
      %v8517 = vld [vmem:[%s6176] sm:$0xe]
      %v8518 = vld [vmem:[%s6176 + $0x4] sm:$0xf]
      %v8519 = vld [vmem:[%s6176 + $0x8] sm:$0x3]
      %v8520 = vld [vmem:[%s6176 + $0xc] sm:$0xe]
      %v8521 = vld [vmem:[%s6176 + $0x10] sm:$0xf]
      %v8522 = vld [vmem:[%s6176 + $0x14] sm:$0x3]
      %v8523 = vld [vmem:[%s6176 + $0x18] sm:$0xe]
      %v8524 = vld [vmem:[%s6176 + $0x1c] sm:$0xf]
      %v8525 = vld [vmem:[%s6176 + $0x20] sm:$0x3]
      %v8526 = vld [vmem:[%s6176 + $0x24] sm:$0xe]
      %v8527 = vld [vmem:[%s6176 + $0x28] sm:$0xf]
      %v8528 = vld [vmem:[%s6176 + $0x2c] sm:$0x3]
      %v8529 = vld [vmem:[%s6176 + $0x30] sm:$0xe]
      %v8530 = vld [vmem:[%s6176 + $0x34] sm:$0xf]
      %v8531 = vld [vmem:[%s6176 + $0x38] sm:$0x3]
      %v8532 = vld [vmem:[%s6176 + $0x3c] sm:$0xe]
      %v8533 = vld [vmem:[%s6176 + $0x40] sm:$0xf]
      %v8534 = vld [vmem:[%s6176 + $0x44] sm:$0x3]
      %v8535 = vld [vmem:[%s6176 + $0x48] sm:$0xe]
      %v8536 = vld [vmem:[%s6176 + $0x4c] sm:$0xf]
      %v8537 = vld [vmem:[%s6176 + $0x50] sm:$0x3]
      %v8538 = vld [vmem:[%s6176 + $0x54] sm:$0xe]
      %v8539 = vld [vmem:[%s6176 + $0x58] sm:$0xf]
      %v8540 = vld [vmem:[%s6176 + $0x5c] sm:$0x3]
      %v8541 = vld [vmem:[%s6176 + $0x60] sm:$0xe]
      %v8542 = vld [vmem:[%s6176 + $0x64] sm:$0xf]
      %v8543 = vld [vmem:[%s6176 + $0x68] sm:$0x3]
      %v8544 = vld [vmem:[%s6176 + $0x6c] sm:$0xe]
      %v8545 = vld [vmem:[%s6176 + $0x70] sm:$0xf]
      %v8546 = vld [vmem:[%s6176 + $0x74] sm:$0x3]
      %v8547 = vld [vmem:[%s6176 + $0x78] sm:$0xe]
      %v8548 = vld [vmem:[%s6176 + $0x7c] sm:$0xf]
      %v8549 = vld [vmem:[%s6176 + $0x80] sm:$0x3]
      %v8550 = vld [vmem:[%s6176 + $0x84] sm:$0xe]
      %v8551 = vld [vmem:[%s6176 + $0x88] sm:$0xf]
      %v8552 = vld [vmem:[%s6176 + $0x8c] sm:$0x3]
      %v8553 = vld [vmem:[%s6176 + $0x90] sm:$0xe]
      %v8554 = vld [vmem:[%s6176 + $0x94] sm:$0xf]
      %v8555 = vld [vmem:[%s6176 + $0x98] sm:$0x3]
      %v8556 = vld [vmem:[%s6176 + $0x9c] sm:$0xe]
      %v8557 = vld [vmem:[%s6176 + $0xa0] sm:$0xf]
      %v8558 = vld [vmem:[%s6176 + $0xa4] sm:$0x3]
      %v8559 = vld [vmem:[%s6176 + $0xa8] sm:$0xe]
      %v8560 = vld [vmem:[%s6176 + $0xac] sm:$0xf]
      %v8561 = vld [vmem:[%s6176 + $0xb0] sm:$0x3]
      %v8562 = vld [vmem:[%s6176 + $0xb4] sm:$0xe]
      %v8563 = vld [vmem:[%s6176 + $0xb8] sm:$0xf]
      %v8564 = vld [vmem:[%s6176 + $0xbc] sm:$0x3]
      %v8566 = vshrl.u32 %v8517, 16
      %v8568 = vrot.slane %v8566, 5
      %v8569 = vshll.u32 %v8517, 16
      %v8571 = vrot.slane %v8569, 6
      %v8572 = vor.u32 %v8568, %v8571
      %v8573 = vrot.slane %v8572, 4
      %v8575 = vshrl.u32 %v8518, 16
      %v8577 = vrot.slane %v8575, 5
      %v8578 = vshll.u32 %v8518, 16
      %v8580 = vrot.slane %v8578, 6
      %v8581 = vor.u32 %v8577, %v8580
      %v8582 = vsel %vm1800, %v8573, %v8581
      %v8583 = vrot.slane %v8581, 4
      %v8585 = vshrl.u32 %v8519, 16
      %v8587 = vrot.slane %v8585, 5
      %v8588 = vshll.u32 %v8519, 16
      %v8590 = vrot.slane %v8588, 6
      %v8591 = vor.u32 %v8587, %v8590
      %v8592 = vsel %vm1800, %v8583, %v8591
      %v8594 = vshrl.u32 %v8520, 16
      %v8596 = vrot.slane %v8594, 5
      %v8597 = vshll.u32 %v8520, 16
      %v8599 = vrot.slane %v8597, 6
      %v8600 = vor.u32 %v8596, %v8599
      %v8601 = vrot.slane %v8600, 4
      %v8603 = vshrl.u32 %v8521, 16
      %v8605 = vrot.slane %v8603, 5
      %v8606 = vshll.u32 %v8521, 16
      %v8608 = vrot.slane %v8606, 6
      %v8609 = vor.u32 %v8605, %v8608
      %v8610 = vsel %vm1800, %v8601, %v8609
      %v8611 = vrot.slane %v8609, 4
      %v8613 = vshrl.u32 %v8522, 16
      %v8615 = vrot.slane %v8613, 5
      %v8616 = vshll.u32 %v8522, 16
      %v8618 = vrot.slane %v8616, 6
      %v8619 = vor.u32 %v8615, %v8618
      %v8620 = vsel %vm1800, %v8611, %v8619
      %v8622 = vshrl.u32 %v8523, 16
      %v8624 = vrot.slane %v8622, 5
      %v8625 = vshll.u32 %v8523, 16
      %v8627 = vrot.slane %v8625, 6
      %v8628 = vor.u32 %v8624, %v8627
      %v8629 = vrot.slane %v8628, 4
      %v8631 = vshrl.u32 %v8524, 16
      %v8633 = vrot.slane %v8631, 5
      %v8634 = vshll.u32 %v8524, 16
      %v8636 = vrot.slane %v8634, 6
      %v8637 = vor.u32 %v8633, %v8636
      %v8638 = vsel %vm1800, %v8629, %v8637
      %v8639 = vrot.slane %v8637, 4
      %v8641 = vshrl.u32 %v8525, 16
      %v8643 = vrot.slane %v8641, 5
      %v8644 = vshll.u32 %v8525, 16
      %v8646 = vrot.slane %v8644, 6
      %v8647 = vor.u32 %v8643, %v8646
      %v8648 = vsel %vm1800, %v8639, %v8647
      %v8650 = vshrl.u32 %v8526, 16
      %v8652 = vrot.slane %v8650, 5
      %v8653 = vshll.u32 %v8526, 16
      %v8655 = vrot.slane %v8653, 6
      %v8656 = vor.u32 %v8652, %v8655
      %v8657 = vrot.slane %v8656, 4
      %v8659 = vshrl.u32 %v8527, 16
      %v8661 = vrot.slane %v8659, 5
      %v8662 = vshll.u32 %v8527, 16
      %v8664 = vrot.slane %v8662, 6
      %v8665 = vor.u32 %v8661, %v8664
      %v8666 = vsel %vm1800, %v8657, %v8665
      %v8667 = vrot.slane %v8665, 4
      %v8669 = vshrl.u32 %v8528, 16
      %v8671 = vrot.slane %v8669, 5
      %v8672 = vshll.u32 %v8528, 16
      %v8674 = vrot.slane %v8672, 6
      %v8675 = vor.u32 %v8671, %v8674
      %v8676 = vsel %vm1800, %v8667, %v8675
      %v8678 = vshrl.u32 %v8529, 16
      %v8680 = vrot.slane %v8678, 5
      %v8681 = vshll.u32 %v8529, 16
      %v8683 = vrot.slane %v8681, 6
      %v8684 = vor.u32 %v8680, %v8683
      %v8685 = vrot.slane %v8684, 4
      %v8687 = vshrl.u32 %v8530, 16
      %v8689 = vrot.slane %v8687, 5
      %v8690 = vshll.u32 %v8530, 16
      %v8692 = vrot.slane %v8690, 6
      %v8693 = vor.u32 %v8689, %v8692
      %v8694 = vsel %vm1800, %v8685, %v8693
      %v8695 = vrot.slane %v8693, 4
      %v8697 = vshrl.u32 %v8531, 16
      %v8699 = vrot.slane %v8697, 5
      %v8700 = vshll.u32 %v8531, 16
      %v8702 = vrot.slane %v8700, 6
      %v8703 = vor.u32 %v8699, %v8702
      %v8704 = vsel %vm1800, %v8695, %v8703
      %v8706 = vshrl.u32 %v8532, 16
      %v8708 = vrot.slane %v8706, 5
      %v8709 = vshll.u32 %v8532, 16
      %v8711 = vrot.slane %v8709, 6
      %v8712 = vor.u32 %v8708, %v8711
      %v8713 = vrot.slane %v8712, 4
      %v8715 = vshrl.u32 %v8533, 16
      %v8717 = vrot.slane %v8715, 5
      %v8718 = vshll.u32 %v8533, 16
      %v8720 = vrot.slane %v8718, 6
      %v8721 = vor.u32 %v8717, %v8720
      %v8722 = vsel %vm1800, %v8713, %v8721
      %v8723 = vrot.slane %v8721, 4
      %v8725 = vshrl.u32 %v8534, 16
      %v8727 = vrot.slane %v8725, 5
      %v8728 = vshll.u32 %v8534, 16
      %v8730 = vrot.slane %v8728, 6
      %v8731 = vor.u32 %v8727, %v8730
      %v8732 = vsel %vm1800, %v8723, %v8731
      %v8734 = vshrl.u32 %v8535, 16
      %v8736 = vrot.slane %v8734, 5
      %v8737 = vshll.u32 %v8535, 16
      %v8739 = vrot.slane %v8737, 6
      %v8740 = vor.u32 %v8736, %v8739
      %v8741 = vrot.slane %v8740, 4
      %v8743 = vshrl.u32 %v8536, 16
      %v8745 = vrot.slane %v8743, 5
      %v8746 = vshll.u32 %v8536, 16
      %v8748 = vrot.slane %v8746, 6
      %v8749 = vor.u32 %v8745, %v8748
      %v8750 = vsel %vm1800, %v8741, %v8749
      %v8751 = vrot.slane %v8749, 4
      %v8753 = vshrl.u32 %v8537, 16
      %v8755 = vrot.slane %v8753, 5
      %v8756 = vshll.u32 %v8537, 16
      %v8758 = vrot.slane %v8756, 6
      %v8759 = vor.u32 %v8755, %v8758
      %v8760 = vsel %vm1800, %v8751, %v8759
      %v8762 = vshrl.u32 %v8538, 16
      %v8764 = vrot.slane %v8762, 5
      %v8765 = vshll.u32 %v8538, 16
      %v8767 = vrot.slane %v8765, 6
      %v8768 = vor.u32 %v8764, %v8767
      %v8769 = vrot.slane %v8768, 4
      %v8771 = vshrl.u32 %v8539, 16
      %v8773 = vrot.slane %v8771, 5
      %v8774 = vshll.u32 %v8539, 16
      %v8776 = vrot.slane %v8774, 6
      %v8777 = vor.u32 %v8773, %v8776
      %v8778 = vsel %vm1800, %v8769, %v8777
      %v8779 = vrot.slane %v8777, 4
      %v8781 = vshrl.u32 %v8540, 16
      %v8783 = vrot.slane %v8781, 5
      %v8784 = vshll.u32 %v8540, 16
      %v8786 = vrot.slane %v8784, 6
      %v8787 = vor.u32 %v8783, %v8786
      %v8788 = vsel %vm1800, %v8779, %v8787
      %v8790 = vshrl.u32 %v8541, 16
      %v8792 = vrot.slane %v8790, 5
      %v8793 = vshll.u32 %v8541, 16
      %v8795 = vrot.slane %v8793, 6
      %v8796 = vor.u32 %v8792, %v8795
      %v8797 = vrot.slane %v8796, 4
      %v8799 = vshrl.u32 %v8542, 16
      %v8801 = vrot.slane %v8799, 5
      %v8802 = vshll.u32 %v8542, 16
      %v8804 = vrot.slane %v8802, 6
      %v8805 = vor.u32 %v8801, %v8804
      %v8806 = vsel %vm1800, %v8797, %v8805
      %v8807 = vrot.slane %v8805, 4
      %v8809 = vshrl.u32 %v8543, 16
      %v8811 = vrot.slane %v8809, 5
      %v8812 = vshll.u32 %v8543, 16
      %v8814 = vrot.slane %v8812, 6
      %v8815 = vor.u32 %v8811, %v8814
      %v8816 = vsel %vm1800, %v8807, %v8815
      %v8818 = vshrl.u32 %v8544, 16
      %v8820 = vrot.slane %v8818, 5
      %v8821 = vshll.u32 %v8544, 16
      %v8823 = vrot.slane %v8821, 6
      %v8824 = vor.u32 %v8820, %v8823
      %v8825 = vrot.slane %v8824, 4
      %v8827 = vshrl.u32 %v8545, 16
      %v8829 = vrot.slane %v8827, 5
      %v8830 = vshll.u32 %v8545, 16
      %v8832 = vrot.slane %v8830, 6
      %v8833 = vor.u32 %v8829, %v8832
      %v8834 = vsel %vm1800, %v8825, %v8833
      %v8835 = vrot.slane %v8833, 4
      %v8837 = vshrl.u32 %v8546, 16
      %v8839 = vrot.slane %v8837, 5
      %v8840 = vshll.u32 %v8546, 16
      %v8842 = vrot.slane %v8840, 6
      %v8843 = vor.u32 %v8839, %v8842
      %v8844 = vsel %vm1800, %v8835, %v8843
      %v8846 = vshrl.u32 %v8547, 16
      %v8848 = vrot.slane %v8846, 5
      %v8849 = vshll.u32 %v8547, 16
      %v8851 = vrot.slane %v8849, 6
      %v8852 = vor.u32 %v8848, %v8851
      %v8853 = vrot.slane %v8852, 4
      %v8855 = vshrl.u32 %v8548, 16
      %v8857 = vrot.slane %v8855, 5
      %v8858 = vshll.u32 %v8548, 16
      %v8860 = vrot.slane %v8858, 6
      %v8861 = vor.u32 %v8857, %v8860
      %v8862 = vsel %vm1800, %v8853, %v8861
      %v8863 = vrot.slane %v8861, 4
      %v8865 = vshrl.u32 %v8549, 16
      %v8867 = vrot.slane %v8865, 5
      %v8868 = vshll.u32 %v8549, 16
      %v8870 = vrot.slane %v8868, 6
      %v8871 = vor.u32 %v8867, %v8870
      %v8872 = vsel %vm1800, %v8863, %v8871
      %v8874 = vshrl.u32 %v8550, 16
      %v8876 = vrot.slane %v8874, 5
      %v8877 = vshll.u32 %v8550, 16
      %v8879 = vrot.slane %v8877, 6
      %v8880 = vor.u32 %v8876, %v8879
      %v8881 = vrot.slane %v8880, 4
      %v8883 = vshrl.u32 %v8551, 16
      %v8885 = vrot.slane %v8883, 5
      %v8886 = vshll.u32 %v8551, 16
      %v8888 = vrot.slane %v8886, 6
      %v8889 = vor.u32 %v8885, %v8888
      %v8890 = vsel %vm1800, %v8881, %v8889
      %v8891 = vrot.slane %v8889, 4
      %v8893 = vshrl.u32 %v8552, 16
      %v8895 = vrot.slane %v8893, 5
      %v8896 = vshll.u32 %v8552, 16
      %v8898 = vrot.slane %v8896, 6
      %v8899 = vor.u32 %v8895, %v8898
      %v8900 = vsel %vm1800, %v8891, %v8899
      %v8902 = vshrl.u32 %v8553, 16
      %v8904 = vrot.slane %v8902, 5
      %v8905 = vshll.u32 %v8553, 16
      %v8907 = vrot.slane %v8905, 6
      %v8908 = vor.u32 %v8904, %v8907
      %v8909 = vrot.slane %v8908, 4
      %v8911 = vshrl.u32 %v8554, 16
      %v8913 = vrot.slane %v8911, 5
      %v8914 = vshll.u32 %v8554, 16
      %v8916 = vrot.slane %v8914, 6
      %v8917 = vor.u32 %v8913, %v8916
      %v8918 = vsel %vm1800, %v8909, %v8917
      %v8919 = vrot.slane %v8917, 4
      %v8921 = vshrl.u32 %v8555, 16
      %v8923 = vrot.slane %v8921, 5
      %v8924 = vshll.u32 %v8555, 16
      %v8926 = vrot.slane %v8924, 6
      %v8927 = vor.u32 %v8923, %v8926
      %v8928 = vsel %vm1800, %v8919, %v8927
      %v8930 = vshrl.u32 %v8556, 16
      %v8932 = vrot.slane %v8930, 5
      %v8933 = vshll.u32 %v8556, 16
      %v8935 = vrot.slane %v8933, 6
      %v8936 = vor.u32 %v8932, %v8935
      %v8937 = vrot.slane %v8936, 4
      %v8939 = vshrl.u32 %v8557, 16
      %v8941 = vrot.slane %v8939, 5
      %v8942 = vshll.u32 %v8557, 16
      %v8944 = vrot.slane %v8942, 6
      %v8945 = vor.u32 %v8941, %v8944
      %v8946 = vsel %vm1800, %v8937, %v8945
      %v8947 = vrot.slane %v8945, 4
      %v8949 = vshrl.u32 %v8558, 16
      %v8951 = vrot.slane %v8949, 5
      %v8952 = vshll.u32 %v8558, 16
      %v8954 = vrot.slane %v8952, 6
      %v8955 = vor.u32 %v8951, %v8954
      %v8956 = vsel %vm1800, %v8947, %v8955
      %v8958 = vshrl.u32 %v8559, 16
      %v8960 = vrot.slane %v8958, 5
      %v8961 = vshll.u32 %v8559, 16
      %v8963 = vrot.slane %v8961, 6
      %v8964 = vor.u32 %v8960, %v8963
      %v8965 = vrot.slane %v8964, 4
      %v8967 = vshrl.u32 %v8560, 16
      %v8969 = vrot.slane %v8967, 5
      %v8970 = vshll.u32 %v8560, 16
      %v8972 = vrot.slane %v8970, 6
      %v8973 = vor.u32 %v8969, %v8972
      %v8974 = vsel %vm1800, %v8965, %v8973
      %v8975 = vrot.slane %v8973, 4
      %v8977 = vshrl.u32 %v8561, 16
      %v8979 = vrot.slane %v8977, 5
      %v8980 = vshll.u32 %v8561, 16
      %v8982 = vrot.slane %v8980, 6
      %v8983 = vor.u32 %v8979, %v8982
      %v8984 = vsel %vm1800, %v8975, %v8983
      %v8986 = vshrl.u32 %v8562, 16
      %v8988 = vrot.slane %v8986, 5
      %v8989 = vshll.u32 %v8562, 16
      %v8991 = vrot.slane %v8989, 6
      %v8992 = vor.u32 %v8988, %v8991
      %v8993 = vrot.slane %v8992, 4
      %v8995 = vshrl.u32 %v8563, 16
      %v8997 = vrot.slane %v8995, 5
      %v8998 = vshll.u32 %v8563, 16
      %v9000 = vrot.slane %v8998, 6
      %v9001 = vor.u32 %v8997, %v9000
      %v9002 = vsel %vm1800, %v8993, %v9001
      %v9003 = vrot.slane %v9001, 4
      %v9005 = vshrl.u32 %v8564, 16
      %v9007 = vrot.slane %v9005, 5
      %v9008 = vshll.u32 %v8564, 16
      %v9010 = vrot.slane %v9008, 6
      %v9011 = vor.u32 %v9007, %v9010
      %v9012 = vsel %vm1800, %v9003, %v9011
      %9013 = vrot.lane.b32.xlu0 %v8582, 32
      %v9014 = vpop.permute.xlu0 %9013
      %9015 = vrot.lane.b32.xlu0 %v8592, 32
      %v9016 = vpop.permute.xlu0 %9015
      %9017 = vrot.lane.b32.xlu0 %v8610, 32
      %v9018 = vpop.permute.xlu0 %9017
      %9019 = vrot.lane.b32.xlu0 %v8620, 32
      %v9020 = vpop.permute.xlu0 %9019
      %9021 = vrot.lane.b32.xlu0 %v8638, 32
      %v9022 = vpop.permute.xlu0 %9021
      %9023 = vrot.lane.b32.xlu0 %v8648, 32
      %v9024 = vpop.permute.xlu0 %9023
      %9025 = vrot.lane.b32.xlu0 %v8666, 32
      %v9026 = vpop.permute.xlu0 %9025
      %9027 = vrot.lane.b32.xlu0 %v8676, 32
      %v9028 = vpop.permute.xlu0 %9027
      %9029 = vrot.lane.b32.xlu0 %v8694, 32
      %v9030 = vpop.permute.xlu0 %9029
      %9031 = vrot.lane.b32.xlu0 %v8704, 32
      %v9032 = vpop.permute.xlu0 %9031
      %9033 = vrot.lane.b32.xlu0 %v8722, 32
      %v9034 = vpop.permute.xlu0 %9033
      %9035 = vrot.lane.b32.xlu0 %v8732, 32
      %v9036 = vpop.permute.xlu0 %9035
      %9037 = vrot.lane.b32.xlu0 %v8750, 32
      %v9038 = vpop.permute.xlu0 %9037
      %9039 = vrot.lane.b32.xlu0 %v8760, 32
      %v9040 = vpop.permute.xlu0 %9039
      %9041 = vrot.lane.b32.xlu0 %v8778, 32
      %v9042 = vpop.permute.xlu0 %9041
      %9043 = vrot.lane.b32.xlu0 %v8788, 32
      %v9044 = vpop.permute.xlu0 %9043
      %9045 = vrot.lane.b32.xlu0 %v8806, 32
      %v9046 = vpop.permute.xlu0 %9045
      %9047 = vrot.lane.b32.xlu0 %v8816, 32
      %v9048 = vpop.permute.xlu0 %9047
      %9049 = vrot.lane.b32.xlu0 %v8834, 32
      %v9050 = vpop.permute.xlu0 %9049
      %9051 = vrot.lane.b32.xlu0 %v8844, 32
      %v9052 = vpop.permute.xlu0 %9051
      %9053 = vrot.lane.b32.xlu0 %v8862, 32
      %v9054 = vpop.permute.xlu0 %9053
      %9055 = vrot.lane.b32.xlu0 %v8872, 32
      %v9056 = vpop.permute.xlu0 %9055
      %9057 = vrot.lane.b32.xlu0 %v8890, 32
      %v9058 = vpop.permute.xlu0 %9057
      %9059 = vrot.lane.b32.xlu0 %v8900, 32
      %v9060 = vpop.permute.xlu0 %9059
      %9061 = vrot.lane.b32.xlu0 %v8918, 32
      %v9062 = vpop.permute.xlu0 %9061
      %9063 = vrot.lane.b32.xlu0 %v8928, 32
      %v9064 = vpop.permute.xlu0 %9063
      %9065 = vrot.lane.b32.xlu0 %v8946, 32
      %v9066 = vpop.permute.xlu0 %9065
      %9067 = vrot.lane.b32.xlu0 %v8956, 32
      %v9068 = vpop.permute.xlu0 %9067
      %9069 = vrot.lane.b32.xlu0 %v8974, 32
      %v9070 = vpop.permute.xlu0 %9069
      %9071 = vrot.lane.b32.xlu0 %v8984, 32
      %v9072 = vpop.permute.xlu0 %9071
      %9073 = vrot.lane.b32.xlu0 %v9002, 32
      %v9074 = vpop.permute.xlu0 %9073
      %9075 = vrot.lane.b32.xlu0 %v9012, 32
      %v9076 = vpop.permute.xlu0 %9075
      %9109 = vst.msk [vmem:[#allocation5 + $0x4] sm:$0xf] %vm7026, %v9014
      %9110 = vst.msk [vmem:[#allocation5 + $0x10] sm:$0xf] %vm7026, %v9016
      %9111 = vst.msk [vmem:[#allocation5 + $0x1c] sm:$0xf] %vm7026, %v9018
      %9112 = vst.msk [vmem:[#allocation5 + $0x28] sm:$0xf] %vm7026, %v9020
      %9113 = vst.msk [vmem:[#allocation5 + $0x34] sm:$0xf] %vm7026, %v9022
      %9114 = vst.msk [vmem:[#allocation5 + $0x40] sm:$0xf] %vm7026, %v9024
      %9115 = vst.msk [vmem:[#allocation5 + $0x4c] sm:$0xf] %vm7026, %v9026
      %9116 = vst.msk [vmem:[#allocation5 + $0x58] sm:$0xf] %vm7026, %v9028
      %9117 = vst.msk [vmem:[#allocation5 + $0x64] sm:$0xf] %vm7026, %v9030
      %9118 = vst.msk [vmem:[#allocation5 + $0x70] sm:$0xf] %vm7026, %v9032
      %9119 = vst.msk [vmem:[#allocation5 + $0x7c] sm:$0xf] %vm7026, %v9034
      %9120 = vst.msk [vmem:[#allocation5 + $0x88] sm:$0xf] %vm7026, %v9036
      %9121 = vst.msk [vmem:[#allocation5 + $0x94] sm:$0xf] %vm7026, %v9038
      %9122 = vst.msk [vmem:[#allocation5 + $0xa0] sm:$0xf] %vm7026, %v9040
      %9123 = vst.msk [vmem:[#allocation5 + $0xac] sm:$0xf] %vm7026, %v9042
      %9124 = vst.msk [vmem:[#allocation5 + $0xb8] sm:$0xf] %vm7026, %v9044
      %9125 = vst.msk [vmem:[#allocation5 + $0xc4] sm:$0xf] %vm7026, %v9046
      %9126 = vst.msk [vmem:[#allocation5 + $0xd0] sm:$0xf] %vm7026, %v9048
      %9127 = vst.msk [vmem:[#allocation5 + $0xdc] sm:$0xf] %vm7026, %v9050
      %9128 = vst.msk [vmem:[#allocation5 + $0xe8] sm:$0xf] %vm7026, %v9052
      %9129 = vst.msk [vmem:[#allocation5 + $0xf4] sm:$0xf] %vm7026, %v9054
      %9130 = vst.msk [vmem:[#allocation5 + $0x100] sm:$0xf] %vm7026, %v9056
      %9131 = vst.msk [vmem:[#allocation5 + $0x10c] sm:$0xf] %vm7026, %v9058
      %9132 = vst.msk [vmem:[#allocation5 + $0x118] sm:$0xf] %vm7026, %v9060
      %9133 = vst.msk [vmem:[#allocation5 + $0x124] sm:$0xf] %vm7026, %v9062
      %9134 = vst.msk [vmem:[#allocation5 + $0x130] sm:$0xf] %vm7026, %v9064
      %9135 = vst.msk [vmem:[#allocation5 + $0x13c] sm:$0xf] %vm7026, %v9066
      %9136 = vst.msk [vmem:[#allocation5 + $0x148] sm:$0xf] %vm7026, %v9068
      %9137 = vst.msk [vmem:[#allocation5 + $0x154] sm:$0xf] %vm7026, %v9070
      %9138 = vst.msk [vmem:[#allocation5 + $0x160] sm:$0xf] %vm7026, %v9072
      %9139 = vst.msk [vmem:[#allocation5 + $0x16c] sm:$0xf] %vm7026, %v9074
      %9140 = vst.msk [vmem:[#allocation5 + $0x178] sm:$0xf] %vm7026, %v9076
      %s9141 = scalar_lea.vmem [#allocation4], 24
      %v9142 = vld [vmem:[%s9141] sm:$0xf]
      %v9143 = vld [vmem:[%s9141 + $0x4] sm:$0xf]
      %v9144 = vld [vmem:[%s9141 + $0x8] sm:$0x1]
      %v9145 = vld [vmem:[%s9141 + $0xc] sm:$0xf]
      %v9146 = vld [vmem:[%s9141 + $0x10] sm:$0xf]
      %v9147 = vld [vmem:[%s9141 + $0x14] sm:$0x1]
      %v9148 = vld [vmem:[%s9141 + $0x18] sm:$0xf]
      %v9149 = vld [vmem:[%s9141 + $0x1c] sm:$0xf]
      %v9150 = vld [vmem:[%s9141 + $0x20] sm:$0x1]
      %v9151 = vld [vmem:[%s9141 + $0x24] sm:$0xf]
      %v9152 = vld [vmem:[%s9141 + $0x28] sm:$0xf]
      %v9153 = vld [vmem:[%s9141 + $0x2c] sm:$0x1]
      %v9154 = vld [vmem:[%s9141 + $0x30] sm:$0xf]
      %v9155 = vld [vmem:[%s9141 + $0x34] sm:$0xf]
      %v9156 = vld [vmem:[%s9141 + $0x38] sm:$0x1]
      %v9157 = vld [vmem:[%s9141 + $0x3c] sm:$0xf]
      %v9158 = vld [vmem:[%s9141 + $0x40] sm:$0xf]
      %v9159 = vld [vmem:[%s9141 + $0x44] sm:$0x1]
      %v9160 = vld [vmem:[%s9141 + $0x48] sm:$0xf]
      %v9161 = vld [vmem:[%s9141 + $0x4c] sm:$0xf]
      %v9162 = vld [vmem:[%s9141 + $0x50] sm:$0x1]
      %v9163 = vld [vmem:[%s9141 + $0x54] sm:$0xf]
      %v9164 = vld [vmem:[%s9141 + $0x58] sm:$0xf]
      %v9165 = vld [vmem:[%s9141 + $0x5c] sm:$0x1]
      %v9166 = vld [vmem:[%s9141 + $0x60] sm:$0xf]
      %v9167 = vld [vmem:[%s9141 + $0x64] sm:$0xf]
      %v9168 = vld [vmem:[%s9141 + $0x68] sm:$0x1]
      %v9169 = vld [vmem:[%s9141 + $0x6c] sm:$0xf]
      %v9170 = vld [vmem:[%s9141 + $0x70] sm:$0xf]
      %v9171 = vld [vmem:[%s9141 + $0x74] sm:$0x1]
      %v9172 = vld [vmem:[%s9141 + $0x78] sm:$0xf]
      %v9173 = vld [vmem:[%s9141 + $0x7c] sm:$0xf]
      %v9174 = vld [vmem:[%s9141 + $0x80] sm:$0x1]
      %v9175 = vld [vmem:[%s9141 + $0x84] sm:$0xf]
      %v9176 = vld [vmem:[%s9141 + $0x88] sm:$0xf]
      %v9177 = vld [vmem:[%s9141 + $0x8c] sm:$0x1]
      %v9178 = vld [vmem:[%s9141 + $0x90] sm:$0xf]
      %v9179 = vld [vmem:[%s9141 + $0x94] sm:$0xf]
      %v9180 = vld [vmem:[%s9141 + $0x98] sm:$0x1]
      %v9181 = vld [vmem:[%s9141 + $0x9c] sm:$0xf]
      %v9182 = vld [vmem:[%s9141 + $0xa0] sm:$0xf]
      %v9183 = vld [vmem:[%s9141 + $0xa4] sm:$0x1]
      %v9184 = vld [vmem:[%s9141 + $0xa8] sm:$0xf]
      %v9185 = vld [vmem:[%s9141 + $0xac] sm:$0xf]
      %v9186 = vld [vmem:[%s9141 + $0xb0] sm:$0x1]
      %v9187 = vld [vmem:[%s9141 + $0xb4] sm:$0xf]
      %v9188 = vld [vmem:[%s9141 + $0xb8] sm:$0xf]
      %v9189 = vld [vmem:[%s9141 + $0xbc] sm:$0x1]
      %v9191 = vshrl.u32 %v9142, 16
      %v9193 = vrot.slane %v9191, 4
      %v9194 = vshll.u32 %v9142, 16
      %v9196 = vrot.slane %v9194, 5
      %v9197 = vor.u32 %v9193, %v9196
      %v9198 = vrot.slane %v9197, 4
      %v9200 = vshll.u32 %v9143, 16
      %v9202 = vrot.slane %v9200, 5
      %v9203 = vsel %vm961, %v9198, %v9202
      %v9204 = vshrl.u32 %v9143, 16
      %v9206 = vrot.slane %v9204, 4
      %v9207 = vor.u32 %v9206, %v9202
      %v9208 = vrot.slane %v9207, 4
      %v9210 = vshll.u32 %v9144, 16
      %v9212 = vrot.slane %v9210, 5
      %v9213 = vsel %vm961, %v9208, %v9212
      %v9215 = vshrl.u32 %v9145, 16
      %v9217 = vrot.slane %v9215, 4
      %v9218 = vshll.u32 %v9145, 16
      %v9220 = vrot.slane %v9218, 5
      %v9221 = vor.u32 %v9217, %v9220
      %v9222 = vrot.slane %v9221, 4
      %v9224 = vshll.u32 %v9146, 16
      %v9226 = vrot.slane %v9224, 5
      %v9227 = vsel %vm961, %v9222, %v9226
      %v9228 = vshrl.u32 %v9146, 16
      %v9230 = vrot.slane %v9228, 4
      %v9231 = vor.u32 %v9230, %v9226
      %v9232 = vrot.slane %v9231, 4
      %v9234 = vshll.u32 %v9147, 16
      %v9236 = vrot.slane %v9234, 5
      %v9237 = vsel %vm961, %v9232, %v9236
      %v9239 = vshrl.u32 %v9148, 16
      %v9241 = vrot.slane %v9239, 4
      %v9242 = vshll.u32 %v9148, 16
      %v9244 = vrot.slane %v9242, 5
      %v9245 = vor.u32 %v9241, %v9244
      %v9246 = vrot.slane %v9245, 4
      %v9248 = vshll.u32 %v9149, 16
      %v9250 = vrot.slane %v9248, 5
      %v9251 = vsel %vm961, %v9246, %v9250
      %v9252 = vshrl.u32 %v9149, 16
      %v9254 = vrot.slane %v9252, 4
      %v9255 = vor.u32 %v9254, %v9250
      %v9256 = vrot.slane %v9255, 4
      %v9258 = vshll.u32 %v9150, 16
      %v9260 = vrot.slane %v9258, 5
      %v9261 = vsel %vm961, %v9256, %v9260
      %v9263 = vshrl.u32 %v9151, 16
      %v9265 = vrot.slane %v9263, 4
      %v9266 = vshll.u32 %v9151, 16
      %v9268 = vrot.slane %v9266, 5
      %v9269 = vor.u32 %v9265, %v9268
      %v9270 = vrot.slane %v9269, 4
      %v9272 = vshll.u32 %v9152, 16
      %v9274 = vrot.slane %v9272, 5
      %v9275 = vsel %vm961, %v9270, %v9274
      %v9276 = vshrl.u32 %v9152, 16
      %v9278 = vrot.slane %v9276, 4
      %v9279 = vor.u32 %v9278, %v9274
      %v9280 = vrot.slane %v9279, 4
      %v9282 = vshll.u32 %v9153, 16
      %v9284 = vrot.slane %v9282, 5
      %v9285 = vsel %vm961, %v9280, %v9284
      %v9287 = vshrl.u32 %v9154, 16
      %v9289 = vrot.slane %v9287, 4
      %v9290 = vshll.u32 %v9154, 16
      %v9292 = vrot.slane %v9290, 5
      %v9293 = vor.u32 %v9289, %v9292
      %v9294 = vrot.slane %v9293, 4
      %v9296 = vshll.u32 %v9155, 16
      %v9298 = vrot.slane %v9296, 5
      %v9299 = vsel %vm961, %v9294, %v9298
      %v9300 = vshrl.u32 %v9155, 16
      %v9302 = vrot.slane %v9300, 4
      %v9303 = vor.u32 %v9302, %v9298
      %v9304 = vrot.slane %v9303, 4
      %v9306 = vshll.u32 %v9156, 16
      %v9308 = vrot.slane %v9306, 5
      %v9309 = vsel %vm961, %v9304, %v9308
      %v9311 = vshrl.u32 %v9157, 16
      %v9313 = vrot.slane %v9311, 4
      %v9314 = vshll.u32 %v9157, 16
      %v9316 = vrot.slane %v9314, 5
      %v9317 = vor.u32 %v9313, %v9316
      %v9318 = vrot.slane %v9317, 4
      %v9320 = vshll.u32 %v9158, 16
      %v9322 = vrot.slane %v9320, 5
      %v9323 = vsel %vm961, %v9318, %v9322
      %v9324 = vshrl.u32 %v9158, 16
      %v9326 = vrot.slane %v9324, 4
      %v9327 = vor.u32 %v9326, %v9322
      %v9328 = vrot.slane %v9327, 4
      %v9330 = vshll.u32 %v9159, 16
      %v9332 = vrot.slane %v9330, 5
      %v9333 = vsel %vm961, %v9328, %v9332
      %v9335 = vshrl.u32 %v9160, 16
      %v9337 = vrot.slane %v9335, 4
      %v9338 = vshll.u32 %v9160, 16
      %v9340 = vrot.slane %v9338, 5
      %v9341 = vor.u32 %v9337, %v9340
      %v9342 = vrot.slane %v9341, 4
      %v9344 = vshll.u32 %v9161, 16
      %v9346 = vrot.slane %v9344, 5
      %v9347 = vsel %vm961, %v9342, %v9346
      %v9348 = vshrl.u32 %v9161, 16
      %v9350 = vrot.slane %v9348, 4
      %v9351 = vor.u32 %v9350, %v9346
      %v9352 = vrot.slane %v9351, 4
      %v9354 = vshll.u32 %v9162, 16
      %v9356 = vrot.slane %v9354, 5
      %v9357 = vsel %vm961, %v9352, %v9356
      %v9359 = vshrl.u32 %v9163, 16
      %v9361 = vrot.slane %v9359, 4
      %v9362 = vshll.u32 %v9163, 16
      %v9364 = vrot.slane %v9362, 5
      %v9365 = vor.u32 %v9361, %v9364
      %v9366 = vrot.slane %v9365, 4
      %v9368 = vshll.u32 %v9164, 16
      %v9370 = vrot.slane %v9368, 5
      %v9371 = vsel %vm961, %v9366, %v9370
      %v9372 = vshrl.u32 %v9164, 16
      %v9374 = vrot.slane %v9372, 4
      %v9375 = vor.u32 %v9374, %v9370
      %v9376 = vrot.slane %v9375, 4
      %v9378 = vshll.u32 %v9165, 16
      %v9380 = vrot.slane %v9378, 5
      %v9381 = vsel %vm961, %v9376, %v9380
      %v9383 = vshrl.u32 %v9166, 16
      %v9385 = vrot.slane %v9383, 4
      %v9386 = vshll.u32 %v9166, 16
      %v9388 = vrot.slane %v9386, 5
      %v9389 = vor.u32 %v9385, %v9388
      %v9390 = vrot.slane %v9389, 4
      %v9392 = vshll.u32 %v9167, 16
      %v9394 = vrot.slane %v9392, 5
      %v9395 = vsel %vm961, %v9390, %v9394
      %v9396 = vshrl.u32 %v9167, 16
      %v9398 = vrot.slane %v9396, 4
      %v9399 = vor.u32 %v9398, %v9394
      %v9400 = vrot.slane %v9399, 4
      %v9402 = vshll.u32 %v9168, 16
      %v9404 = vrot.slane %v9402, 5
      %v9405 = vsel %vm961, %v9400, %v9404
      %v9407 = vshrl.u32 %v9169, 16
      %v9409 = vrot.slane %v9407, 4
      %v9410 = vshll.u32 %v9169, 16
      %v9412 = vrot.slane %v9410, 5
      %v9413 = vor.u32 %v9409, %v9412
      %v9414 = vrot.slane %v9413, 4
      %v9416 = vshll.u32 %v9170, 16
      %v9418 = vrot.slane %v9416, 5
      %v9419 = vsel %vm961, %v9414, %v9418
      %v9420 = vshrl.u32 %v9170, 16
      %v9422 = vrot.slane %v9420, 4
      %v9423 = vor.u32 %v9422, %v9418
      %v9424 = vrot.slane %v9423, 4
      %v9426 = vshll.u32 %v9171, 16
      %v9428 = vrot.slane %v9426, 5
      %v9429 = vsel %vm961, %v9424, %v9428
      %v9431 = vshrl.u32 %v9172, 16
      %v9433 = vrot.slane %v9431, 4
      %v9434 = vshll.u32 %v9172, 16
      %v9436 = vrot.slane %v9434, 5
      %v9437 = vor.u32 %v9433, %v9436
      %v9438 = vrot.slane %v9437, 4
      %v9440 = vshll.u32 %v9173, 16
      %v9442 = vrot.slane %v9440, 5
      %v9443 = vsel %vm961, %v9438, %v9442
      %v9444 = vshrl.u32 %v9173, 16
      %v9446 = vrot.slane %v9444, 4
      %v9447 = vor.u32 %v9446, %v9442
      %v9448 = vrot.slane %v9447, 4
      %v9450 = vshll.u32 %v9174, 16
      %v9452 = vrot.slane %v9450, 5
      %v9453 = vsel %vm961, %v9448, %v9452
      %v9455 = vshrl.u32 %v9175, 16
      %v9457 = vrot.slane %v9455, 4
      %v9458 = vshll.u32 %v9175, 16
      %v9460 = vrot.slane %v9458, 5
      %v9461 = vor.u32 %v9457, %v9460
      %v9462 = vrot.slane %v9461, 4
      %v9464 = vshll.u32 %v9176, 16
      %v9466 = vrot.slane %v9464, 5
      %v9467 = vsel %vm961, %v9462, %v9466
      %v9468 = vshrl.u32 %v9176, 16
      %v9470 = vrot.slane %v9468, 4
      %v9471 = vor.u32 %v9470, %v9466
      %v9472 = vrot.slane %v9471, 4
      %v9474 = vshll.u32 %v9177, 16
      %v9476 = vrot.slane %v9474, 5
      %v9477 = vsel %vm961, %v9472, %v9476
      %v9479 = vshrl.u32 %v9178, 16
      %v9481 = vrot.slane %v9479, 4
      %v9482 = vshll.u32 %v9178, 16
      %v9484 = vrot.slane %v9482, 5
      %v9485 = vor.u32 %v9481, %v9484
      %v9486 = vrot.slane %v9485, 4
      %v9488 = vshll.u32 %v9179, 16
      %v9490 = vrot.slane %v9488, 5
      %v9491 = vsel %vm961, %v9486, %v9490
      %v9492 = vshrl.u32 %v9179, 16
      %v9494 = vrot.slane %v9492, 4
      %v9495 = vor.u32 %v9494, %v9490
      %v9496 = vrot.slane %v9495, 4
      %v9498 = vshll.u32 %v9180, 16
      %v9500 = vrot.slane %v9498, 5
      %v9501 = vsel %vm961, %v9496, %v9500
      %v9503 = vshrl.u32 %v9181, 16
      %v9505 = vrot.slane %v9503, 4
      %v9506 = vshll.u32 %v9181, 16
      %v9508 = vrot.slane %v9506, 5
      %v9509 = vor.u32 %v9505, %v9508
      %v9510 = vrot.slane %v9509, 4
      %v9512 = vshll.u32 %v9182, 16
      %v9514 = vrot.slane %v9512, 5
      %v9515 = vsel %vm961, %v9510, %v9514
      %v9516 = vshrl.u32 %v9182, 16
      %v9518 = vrot.slane %v9516, 4
      %v9519 = vor.u32 %v9518, %v9514
      %v9520 = vrot.slane %v9519, 4
      %v9522 = vshll.u32 %v9183, 16
      %v9524 = vrot.slane %v9522, 5
      %v9525 = vsel %vm961, %v9520, %v9524
      %v9527 = vshrl.u32 %v9184, 16
      %v9529 = vrot.slane %v9527, 4
      %v9530 = vshll.u32 %v9184, 16
      %v9532 = vrot.slane %v9530, 5
      %v9533 = vor.u32 %v9529, %v9532
      %v9534 = vrot.slane %v9533, 4
      %v9536 = vshll.u32 %v9185, 16
      %v9538 = vrot.slane %v9536, 5
      %v9539 = vsel %vm961, %v9534, %v9538
      %v9540 = vshrl.u32 %v9185, 16
      %v9542 = vrot.slane %v9540, 4
      %v9543 = vor.u32 %v9542, %v9538
      %v9544 = vrot.slane %v9543, 4
      %v9546 = vshll.u32 %v9186, 16
      %v9548 = vrot.slane %v9546, 5
      %v9549 = vsel %vm961, %v9544, %v9548
      %v9551 = vshrl.u32 %v9187, 16
      %v9553 = vrot.slane %v9551, 4
      %v9554 = vshll.u32 %v9187, 16
      %v9556 = vrot.slane %v9554, 5
      %v9557 = vor.u32 %v9553, %v9556
      %v9558 = vrot.slane %v9557, 4
      %v9560 = vshll.u32 %v9188, 16
      %v9562 = vrot.slane %v9560, 5
      %v9563 = vsel %vm961, %v9558, %v9562
      %v9564 = vshrl.u32 %v9188, 16
      %v9566 = vrot.slane %v9564, 4
      %v9567 = vor.u32 %v9566, %v9562
      %v9568 = vrot.slane %v9567, 4
      %v9570 = vshll.u32 %v9189, 16
      %v9572 = vrot.slane %v9570, 5
      %v9573 = vsel %vm961, %v9568, %v9572
      %9574 = vrot.lane.b32.xlu0 %v9203, 64
      %v9575 = vpop.permute.xlu0 %9574
      %9576 = vrot.lane.b32.xlu0 %v9213, 64
      %v9577 = vpop.permute.xlu0 %9576
      %9578 = vrot.lane.b32.xlu0 %v9227, 64
      %v9579 = vpop.permute.xlu0 %9578
      %9580 = vrot.lane.b32.xlu0 %v9237, 64
      %v9581 = vpop.permute.xlu0 %9580
      %9582 = vrot.lane.b32.xlu0 %v9251, 64
      %v9583 = vpop.permute.xlu0 %9582
      %9584 = vrot.lane.b32.xlu0 %v9261, 64
      %v9585 = vpop.permute.xlu0 %9584
      %9586 = vrot.lane.b32.xlu0 %v9275, 64
      %v9587 = vpop.permute.xlu0 %9586
      %9588 = vrot.lane.b32.xlu0 %v9285, 64
      %v9589 = vpop.permute.xlu0 %9588
      %9590 = vrot.lane.b32.xlu0 %v9299, 64
      %v9591 = vpop.permute.xlu0 %9590
      %9592 = vrot.lane.b32.xlu0 %v9309, 64
      %v9593 = vpop.permute.xlu0 %9592
      %9594 = vrot.lane.b32.xlu0 %v9323, 64
      %v9595 = vpop.permute.xlu0 %9594
      %9596 = vrot.lane.b32.xlu0 %v9333, 64
      %v9597 = vpop.permute.xlu0 %9596
      %9598 = vrot.lane.b32.xlu0 %v9347, 64
      %v9599 = vpop.permute.xlu0 %9598
      %9600 = vrot.lane.b32.xlu0 %v9357, 64
      %v9601 = vpop.permute.xlu0 %9600
      %9602 = vrot.lane.b32.xlu0 %v9371, 64
      %v9603 = vpop.permute.xlu0 %9602
      %9604 = vrot.lane.b32.xlu0 %v9381, 64
      %v9605 = vpop.permute.xlu0 %9604
      %9606 = vrot.lane.b32.xlu0 %v9395, 64
      %v9607 = vpop.permute.xlu0 %9606
      %9608 = vrot.lane.b32.xlu0 %v9405, 64
      %v9609 = vpop.permute.xlu0 %9608
      %9610 = vrot.lane.b32.xlu0 %v9419, 64
      %v9611 = vpop.permute.xlu0 %9610
      %9612 = vrot.lane.b32.xlu0 %v9429, 64
      %v9613 = vpop.permute.xlu0 %9612
      %9614 = vrot.lane.b32.xlu0 %v9443, 64
      %v9615 = vpop.permute.xlu0 %9614
      %9616 = vrot.lane.b32.xlu0 %v9453, 64
      %v9617 = vpop.permute.xlu0 %9616
      %9618 = vrot.lane.b32.xlu0 %v9467, 64
      %v9619 = vpop.permute.xlu0 %9618
      %9620 = vrot.lane.b32.xlu0 %v9477, 64
      %v9621 = vpop.permute.xlu0 %9620
      %9622 = vrot.lane.b32.xlu0 %v9491, 64
      %v9623 = vpop.permute.xlu0 %9622
      %9624 = vrot.lane.b32.xlu0 %v9501, 64
      %v9625 = vpop.permute.xlu0 %9624
      %9626 = vrot.lane.b32.xlu0 %v9515, 64
      %v9627 = vpop.permute.xlu0 %9626
      %9628 = vrot.lane.b32.xlu0 %v9525, 64
      %v9629 = vpop.permute.xlu0 %9628
      %9630 = vrot.lane.b32.xlu0 %v9539, 64
      %v9631 = vpop.permute.xlu0 %9630
      %9632 = vrot.lane.b32.xlu0 %v9549, 64
      %v9633 = vpop.permute.xlu0 %9632
      %9634 = vrot.lane.b32.xlu0 %v9563, 64
      %v9635 = vpop.permute.xlu0 %9634
      %9636 = vrot.lane.b32.xlu0 %v9573, 64
      %v9637 = vpop.permute.xlu0 %9636
      %9670 = vst.msk [vmem:[#allocation5 + $0x4] sm:$0xf] %vm7651, %v9575
      %9671 = vst.msk [vmem:[#allocation5 + $0x10] sm:$0xf] %vm7651, %v9577
      %9672 = vst.msk [vmem:[#allocation5 + $0x1c] sm:$0xf] %vm7651, %v9579
      %9673 = vst.msk [vmem:[#allocation5 + $0x28] sm:$0xf] %vm7651, %v9581
      %9674 = vst.msk [vmem:[#allocation5 + $0x34] sm:$0xf] %vm7651, %v9583
      %9675 = vst.msk [vmem:[#allocation5 + $0x40] sm:$0xf] %vm7651, %v9585
      %9676 = vst.msk [vmem:[#allocation5 + $0x4c] sm:$0xf] %vm7651, %v9587
      %9677 = vst.msk [vmem:[#allocation5 + $0x58] sm:$0xf] %vm7651, %v9589
      %9678 = vst.msk [vmem:[#allocation5 + $0x64] sm:$0xf] %vm7651, %v9591
      %9679 = vst.msk [vmem:[#allocation5 + $0x70] sm:$0xf] %vm7651, %v9593
      %9680 = vst.msk [vmem:[#allocation5 + $0x7c] sm:$0xf] %vm7651, %v9595
      %9681 = vst.msk [vmem:[#allocation5 + $0x88] sm:$0xf] %vm7651, %v9597
      %9682 = vst.msk [vmem:[#allocation5 + $0x94] sm:$0xf] %vm7651, %v9599
      %9683 = vst.msk [vmem:[#allocation5 + $0xa0] sm:$0xf] %vm7651, %v9601
      %9684 = vst.msk [vmem:[#allocation5 + $0xac] sm:$0xf] %vm7651, %v9603
      %9685 = vst.msk [vmem:[#allocation5 + $0xb8] sm:$0xf] %vm7651, %v9605
      %9686 = vst.msk [vmem:[#allocation5 + $0xc4] sm:$0xf] %vm7651, %v9607
      %9687 = vst.msk [vmem:[#allocation5 + $0xd0] sm:$0xf] %vm7651, %v9609
      %9688 = vst.msk [vmem:[#allocation5 + $0xdc] sm:$0xf] %vm7651, %v9611
      %9689 = vst.msk [vmem:[#allocation5 + $0xe8] sm:$0xf] %vm7651, %v9613
      %9690 = vst.msk [vmem:[#allocation5 + $0xf4] sm:$0xf] %vm7651, %v9615
      %9691 = vst.msk [vmem:[#allocation5 + $0x100] sm:$0xf] %vm7651, %v9617
      %9692 = vst.msk [vmem:[#allocation5 + $0x10c] sm:$0xf] %vm7651, %v9619
      %9693 = vst.msk [vmem:[#allocation5 + $0x118] sm:$0xf] %vm7651, %v9621
      %9694 = vst.msk [vmem:[#allocation5 + $0x124] sm:$0xf] %vm7651, %v9623
      %9695 = vst.msk [vmem:[#allocation5 + $0x130] sm:$0xf] %vm7651, %v9625
      %9696 = vst.msk [vmem:[#allocation5 + $0x13c] sm:$0xf] %vm7651, %v9627
      %9697 = vst.msk [vmem:[#allocation5 + $0x148] sm:$0xf] %vm7651, %v9629
      %9698 = vst.msk [vmem:[#allocation5 + $0x154] sm:$0xf] %vm7651, %v9631
      %9699 = vst.msk [vmem:[#allocation5 + $0x160] sm:$0xf] %vm7651, %v9633
      %9700 = vst.msk [vmem:[#allocation5 + $0x16c] sm:$0xf] %vm7651, %v9635
      %9701 = vst.msk [vmem:[#allocation5 + $0x178] sm:$0xf] %vm7651, %v9637
      %v9702 = vld [vmem:[%s9141] sm:$0xe]
      %v9703 = vld [vmem:[%s9141 + $0x4] sm:$0xf]
      %v9704 = vld [vmem:[%s9141 + $0x8] sm:$0x1]
      %v9705 = vld [vmem:[%s9141 + $0xc] sm:$0xe]
      %v9706 = vld [vmem:[%s9141 + $0x10] sm:$0xf]
      %v9707 = vld [vmem:[%s9141 + $0x14] sm:$0x1]
      %v9708 = vld [vmem:[%s9141 + $0x18] sm:$0xe]
      %v9709 = vld [vmem:[%s9141 + $0x1c] sm:$0xf]
      %v9710 = vld [vmem:[%s9141 + $0x20] sm:$0x1]
      %v9711 = vld [vmem:[%s9141 + $0x24] sm:$0xe]
      %v9712 = vld [vmem:[%s9141 + $0x28] sm:$0xf]
      %v9713 = vld [vmem:[%s9141 + $0x2c] sm:$0x1]
      %v9714 = vld [vmem:[%s9141 + $0x30] sm:$0xe]
      %v9715 = vld [vmem:[%s9141 + $0x34] sm:$0xf]
      %v9716 = vld [vmem:[%s9141 + $0x38] sm:$0x1]
      %v9717 = vld [vmem:[%s9141 + $0x3c] sm:$0xe]
      %v9718 = vld [vmem:[%s9141 + $0x40] sm:$0xf]
      %v9719 = vld [vmem:[%s9141 + $0x44] sm:$0x1]
      %v9720 = vld [vmem:[%s9141 + $0x48] sm:$0xe]
      %v9721 = vld [vmem:[%s9141 + $0x4c] sm:$0xf]
      %v9722 = vld [vmem:[%s9141 + $0x50] sm:$0x1]
      %v9723 = vld [vmem:[%s9141 + $0x54] sm:$0xe]
      %v9724 = vld [vmem:[%s9141 + $0x58] sm:$0xf]
      %v9725 = vld [vmem:[%s9141 + $0x5c] sm:$0x1]
      %v9726 = vld [vmem:[%s9141 + $0x60] sm:$0xe]
      %v9727 = vld [vmem:[%s9141 + $0x64] sm:$0xf]
      %v9728 = vld [vmem:[%s9141 + $0x68] sm:$0x1]
      %v9729 = vld [vmem:[%s9141 + $0x6c] sm:$0xe]
      %v9730 = vld [vmem:[%s9141 + $0x70] sm:$0xf]
      %v9731 = vld [vmem:[%s9141 + $0x74] sm:$0x1]
      %v9732 = vld [vmem:[%s9141 + $0x78] sm:$0xe]
      %v9733 = vld [vmem:[%s9141 + $0x7c] sm:$0xf]
      %v9734 = vld [vmem:[%s9141 + $0x80] sm:$0x1]
      %v9735 = vld [vmem:[%s9141 + $0x84] sm:$0xe]
      %v9736 = vld [vmem:[%s9141 + $0x88] sm:$0xf]
      %v9737 = vld [vmem:[%s9141 + $0x8c] sm:$0x1]
      %v9738 = vld [vmem:[%s9141 + $0x90] sm:$0xe]
      %v9739 = vld [vmem:[%s9141 + $0x94] sm:$0xf]
      %v9740 = vld [vmem:[%s9141 + $0x98] sm:$0x1]
      %v9741 = vld [vmem:[%s9141 + $0x9c] sm:$0xe]
      %v9742 = vld [vmem:[%s9141 + $0xa0] sm:$0xf]
      %v9743 = vld [vmem:[%s9141 + $0xa4] sm:$0x1]
      %v9744 = vld [vmem:[%s9141 + $0xa8] sm:$0xe]
      %v9745 = vld [vmem:[%s9141 + $0xac] sm:$0xf]
      %v9746 = vld [vmem:[%s9141 + $0xb0] sm:$0x1]
      %v9747 = vld [vmem:[%s9141 + $0xb4] sm:$0xe]
      %v9748 = vld [vmem:[%s9141 + $0xb8] sm:$0xf]
      %v9749 = vld [vmem:[%s9141 + $0xbc] sm:$0x1]
      %v9798 = vrot.slane %v9702, 5
      %v9799 = vrot.slane %v9798, 4
      %v9800 = vrot.slane %v9703, 5
      %v9801 = vsel %vm1508, %v9799, %v9800
      %v9802 = vrot.slane %v9800, 4
      %v9803 = vrot.slane %v9704, 5
      %v9804 = vsel %vm1508, %v9802, %v9803
      %v9805 = vrot.slane %v9705, 5
      %v9806 = vrot.slane %v9805, 4
      %v9807 = vrot.slane %v9706, 5
      %v9808 = vsel %vm1508, %v9806, %v9807
      %v9809 = vrot.slane %v9807, 4
      %v9810 = vrot.slane %v9707, 5
      %v9811 = vsel %vm1508, %v9809, %v9810
      %v9812 = vrot.slane %v9708, 5
      %v9813 = vrot.slane %v9812, 4
      %v9814 = vrot.slane %v9709, 5
      %v9815 = vsel %vm1508, %v9813, %v9814
      %v9816 = vrot.slane %v9814, 4
      %v9817 = vrot.slane %v9710, 5
      %v9818 = vsel %vm1508, %v9816, %v9817
      %v9819 = vrot.slane %v9711, 5
      %v9820 = vrot.slane %v9819, 4
      %v9821 = vrot.slane %v9712, 5
      %v9822 = vsel %vm1508, %v9820, %v9821
      %v9823 = vrot.slane %v9821, 4
      %v9824 = vrot.slane %v9713, 5
      %v9825 = vsel %vm1508, %v9823, %v9824
      %v9826 = vrot.slane %v9714, 5
      %v9827 = vrot.slane %v9826, 4
      %v9828 = vrot.slane %v9715, 5
      %v9829 = vsel %vm1508, %v9827, %v9828
      %v9830 = vrot.slane %v9828, 4
      %v9831 = vrot.slane %v9716, 5
      %v9832 = vsel %vm1508, %v9830, %v9831
      %v9833 = vrot.slane %v9717, 5
      %v9834 = vrot.slane %v9833, 4
      %v9835 = vrot.slane %v9718, 5
      %v9836 = vsel %vm1508, %v9834, %v9835
      %v9837 = vrot.slane %v9835, 4
      %v9838 = vrot.slane %v9719, 5
      %v9839 = vsel %vm1508, %v9837, %v9838
      %v9840 = vrot.slane %v9720, 5
      %v9841 = vrot.slane %v9840, 4
      %v9842 = vrot.slane %v9721, 5
      %v9843 = vsel %vm1508, %v9841, %v9842
      %v9844 = vrot.slane %v9842, 4
      %v9845 = vrot.slane %v9722, 5
      %v9846 = vsel %vm1508, %v9844, %v9845
      %v9847 = vrot.slane %v9723, 5
      %v9848 = vrot.slane %v9847, 4
      %v9849 = vrot.slane %v9724, 5
      %v9850 = vsel %vm1508, %v9848, %v9849
      %v9851 = vrot.slane %v9849, 4
      %v9852 = vrot.slane %v9725, 5
      %v9853 = vsel %vm1508, %v9851, %v9852
      %v9854 = vrot.slane %v9726, 5
      %v9855 = vrot.slane %v9854, 4
      %v9856 = vrot.slane %v9727, 5
      %v9857 = vsel %vm1508, %v9855, %v9856
      %v9858 = vrot.slane %v9856, 4
      %v9859 = vrot.slane %v9728, 5
      %v9860 = vsel %vm1508, %v9858, %v9859
      %v9861 = vrot.slane %v9729, 5
      %v9862 = vrot.slane %v9861, 4
      %v9863 = vrot.slane %v9730, 5
      %v9864 = vsel %vm1508, %v9862, %v9863
      %v9865 = vrot.slane %v9863, 4
      %v9866 = vrot.slane %v9731, 5
      %v9867 = vsel %vm1508, %v9865, %v9866
      %v9868 = vrot.slane %v9732, 5
      %v9869 = vrot.slane %v9868, 4
      %v9870 = vrot.slane %v9733, 5
      %v9871 = vsel %vm1508, %v9869, %v9870
      %v9872 = vrot.slane %v9870, 4
      %v9873 = vrot.slane %v9734, 5
      %v9874 = vsel %vm1508, %v9872, %v9873
      %v9875 = vrot.slane %v9735, 5
      %v9876 = vrot.slane %v9875, 4
      %v9877 = vrot.slane %v9736, 5
      %v9878 = vsel %vm1508, %v9876, %v9877
      %v9879 = vrot.slane %v9877, 4
      %v9880 = vrot.slane %v9737, 5
      %v9881 = vsel %vm1508, %v9879, %v9880
      %v9882 = vrot.slane %v9738, 5
      %v9883 = vrot.slane %v9882, 4
      %v9884 = vrot.slane %v9739, 5
      %v9885 = vsel %vm1508, %v9883, %v9884
      %v9886 = vrot.slane %v9884, 4
      %v9887 = vrot.slane %v9740, 5
      %v9888 = vsel %vm1508, %v9886, %v9887
      %v9889 = vrot.slane %v9741, 5
      %v9890 = vrot.slane %v9889, 4
      %v9891 = vrot.slane %v9742, 5
      %v9892 = vsel %vm1508, %v9890, %v9891
      %v9893 = vrot.slane %v9891, 4
      %v9894 = vrot.slane %v9743, 5
      %v9895 = vsel %vm1508, %v9893, %v9894
      %v9896 = vrot.slane %v9744, 5
      %v9897 = vrot.slane %v9896, 4
      %v9898 = vrot.slane %v9745, 5
      %v9899 = vsel %vm1508, %v9897, %v9898
      %v9900 = vrot.slane %v9898, 4
      %v9901 = vrot.slane %v9746, 5
      %v9902 = vsel %vm1508, %v9900, %v9901
      %v9903 = vrot.slane %v9747, 5
      %v9904 = vrot.slane %v9903, 4
      %v9905 = vrot.slane %v9748, 5
      %v9906 = vsel %vm1508, %v9904, %v9905
      %v9907 = vrot.slane %v9905, 4
      %v9908 = vrot.slane %v9749, 5
      %v9909 = vsel %vm1508, %v9907, %v9908
      %9910 = vrot.lane.b32.xlu0 %v9801, 96
      %v9911 = vpop.permute.xlu0 %9910
      %9912 = vrot.lane.b32.xlu0 %v9804, 96
      %v9913 = vpop.permute.xlu0 %9912
      %9914 = vrot.lane.b32.xlu0 %v9808, 96
      %v9915 = vpop.permute.xlu0 %9914
      %9916 = vrot.lane.b32.xlu0 %v9811, 96
      %v9917 = vpop.permute.xlu0 %9916
      %9918 = vrot.lane.b32.xlu0 %v9815, 96
      %v9919 = vpop.permute.xlu0 %9918
      %9920 = vrot.lane.b32.xlu0 %v9818, 96
      %v9921 = vpop.permute.xlu0 %9920
      %9922 = vrot.lane.b32.xlu0 %v9822, 96
      %v9923 = vpop.permute.xlu0 %9922
      %9924 = vrot.lane.b32.xlu0 %v9825, 96
      %v9925 = vpop.permute.xlu0 %9924
      %9926 = vrot.lane.b32.xlu0 %v9829, 96
      %v9927 = vpop.permute.xlu0 %9926
      %9928 = vrot.lane.b32.xlu0 %v9832, 96
      %v9929 = vpop.permute.xlu0 %9928
      %9930 = vrot.lane.b32.xlu0 %v9836, 96
      %v9931 = vpop.permute.xlu0 %9930
      %9932 = vrot.lane.b32.xlu0 %v9839, 96
      %v9933 = vpop.permute.xlu0 %9932
      %9934 = vrot.lane.b32.xlu0 %v9843, 96
      %v9935 = vpop.permute.xlu0 %9934
      %9936 = vrot.lane.b32.xlu0 %v9846, 96
      %v9937 = vpop.permute.xlu0 %9936
      %9938 = vrot.lane.b32.xlu0 %v9850, 96
      %v9939 = vpop.permute.xlu0 %9938
      %9940 = vrot.lane.b32.xlu0 %v9853, 96
      %v9941 = vpop.permute.xlu0 %9940
      %9942 = vrot.lane.b32.xlu0 %v9857, 96
      %v9943 = vpop.permute.xlu0 %9942
      %9944 = vrot.lane.b32.xlu0 %v9860, 96
      %v9945 = vpop.permute.xlu0 %9944
      %9946 = vrot.lane.b32.xlu0 %v9864, 96
      %v9947 = vpop.permute.xlu0 %9946
      %9948 = vrot.lane.b32.xlu0 %v9867, 96
      %v9949 = vpop.permute.xlu0 %9948
      %9950 = vrot.lane.b32.xlu0 %v9871, 96
      %v9951 = vpop.permute.xlu0 %9950
      %9952 = vrot.lane.b32.xlu0 %v9874, 96
      %v9953 = vpop.permute.xlu0 %9952
      %9954 = vrot.lane.b32.xlu0 %v9878, 96
      %v9955 = vpop.permute.xlu0 %9954
      %9956 = vrot.lane.b32.xlu0 %v9881, 96
      %v9957 = vpop.permute.xlu0 %9956
      %9958 = vrot.lane.b32.xlu0 %v9885, 96
      %v9959 = vpop.permute.xlu0 %9958
      %9960 = vrot.lane.b32.xlu0 %v9888, 96
      %v9961 = vpop.permute.xlu0 %9960
      %9962 = vrot.lane.b32.xlu0 %v9892, 96
      %v9963 = vpop.permute.xlu0 %9962
      %9964 = vrot.lane.b32.xlu0 %v9895, 96
      %v9965 = vpop.permute.xlu0 %9964
      %9966 = vrot.lane.b32.xlu0 %v9899, 96
      %v9967 = vpop.permute.xlu0 %9966
      %9968 = vrot.lane.b32.xlu0 %v9902, 96
      %v9969 = vpop.permute.xlu0 %9968
      %9970 = vrot.lane.b32.xlu0 %v9906, 96
      %v9971 = vpop.permute.xlu0 %9970
      %9972 = vrot.lane.b32.xlu0 %v9909, 96
      %v9973 = vpop.permute.xlu0 %9972
      %10006 = vst.msk [vmem:[#allocation5 + $0x4] sm:$0xf] %vm8212, %v9911
      %10007 = vst.msk [vmem:[#allocation5 + $0x10] sm:$0xf] %vm8212, %v9913
      %10008 = vst.msk [vmem:[#allocation5 + $0x1c] sm:$0xf] %vm8212, %v9915
      %10009 = vst.msk [vmem:[#allocation5 + $0x28] sm:$0xf] %vm8212, %v9917
      %10010 = vst.msk [vmem:[#allocation5 + $0x34] sm:$0xf] %vm8212, %v9919
      %10011 = vst.msk [vmem:[#allocation5 + $0x40] sm:$0xf] %vm8212, %v9921
      %10012 = vst.msk [vmem:[#allocation5 + $0x4c] sm:$0xf] %vm8212, %v9923
      %10013 = vst.msk [vmem:[#allocation5 + $0x58] sm:$0xf] %vm8212, %v9925
      %10014 = vst.msk [vmem:[#allocation5 + $0x64] sm:$0xf] %vm8212, %v9927
      %10015 = vst.msk [vmem:[#allocation5 + $0x70] sm:$0xf] %vm8212, %v9929
      %10016 = vst.msk [vmem:[#allocation5 + $0x7c] sm:$0xf] %vm8212, %v9931
      %10017 = vst.msk [vmem:[#allocation5 + $0x88] sm:$0xf] %vm8212, %v9933
      %10018 = vst.msk [vmem:[#allocation5 + $0x94] sm:$0xf] %vm8212, %v9935
      %10019 = vst.msk [vmem:[#allocation5 + $0xa0] sm:$0xf] %vm8212, %v9937
      %10020 = vst.msk [vmem:[#allocation5 + $0xac] sm:$0xf] %vm8212, %v9939
      %10021 = vst.msk [vmem:[#allocation5 + $0xb8] sm:$0xf] %vm8212, %v9941
      %10022 = vst.msk [vmem:[#allocation5 + $0xc4] sm:$0xf] %vm8212, %v9943
      %10023 = vst.msk [vmem:[#allocation5 + $0xd0] sm:$0xf] %vm8212, %v9945
      %10024 = vst.msk [vmem:[#allocation5 + $0xdc] sm:$0xf] %vm8212, %v9947
      %10025 = vst.msk [vmem:[#allocation5 + $0xe8] sm:$0xf] %vm8212, %v9949
      %10026 = vst.msk [vmem:[#allocation5 + $0xf4] sm:$0xf] %vm8212, %v9951
      %10027 = vst.msk [vmem:[#allocation5 + $0x100] sm:$0xf] %vm8212, %v9953
      %10028 = vst.msk [vmem:[#allocation5 + $0x10c] sm:$0xf] %vm8212, %v9955
      %10029 = vst.msk [vmem:[#allocation5 + $0x118] sm:$0xf] %vm8212, %v9957
      %10030 = vst.msk [vmem:[#allocation5 + $0x124] sm:$0xf] %vm8212, %v9959
      %10031 = vst.msk [vmem:[#allocation5 + $0x130] sm:$0xf] %vm8212, %v9961
      %10032 = vst.msk [vmem:[#allocation5 + $0x13c] sm:$0xf] %vm8212, %v9963
      %10033 = vst.msk [vmem:[#allocation5 + $0x148] sm:$0xf] %vm8212, %v9965
      %10034 = vst.msk [vmem:[#allocation5 + $0x154] sm:$0xf] %vm8212, %v9967
      %10035 = vst.msk [vmem:[#allocation5 + $0x160] sm:$0xf] %vm8212, %v9969
      %10036 = vst.msk [vmem:[#allocation5 + $0x16c] sm:$0xf] %vm8212, %v9971
      %10037 = vst.msk [vmem:[#allocation5 + $0x178] sm:$0xf] %vm8212, %v9973
      %v10038 = vld [vmem:[%s9141] sm:$0xe]
      %v10039 = vld [vmem:[%s9141 + $0x4] sm:$0xf]
      %v10040 = vld [vmem:[%s9141 + $0x8] sm:$0x3]
      %v10041 = vld [vmem:[%s9141 + $0xc] sm:$0xe]
      %v10042 = vld [vmem:[%s9141 + $0x10] sm:$0xf]
      %v10043 = vld [vmem:[%s9141 + $0x14] sm:$0x3]
      %v10044 = vld [vmem:[%s9141 + $0x18] sm:$0xe]
      %v10045 = vld [vmem:[%s9141 + $0x1c] sm:$0xf]
      %v10046 = vld [vmem:[%s9141 + $0x20] sm:$0x3]
      %v10047 = vld [vmem:[%s9141 + $0x24] sm:$0xe]
      %v10048 = vld [vmem:[%s9141 + $0x28] sm:$0xf]
      %v10049 = vld [vmem:[%s9141 + $0x2c] sm:$0x3]
      %v10050 = vld [vmem:[%s9141 + $0x30] sm:$0xe]
      %v10051 = vld [vmem:[%s9141 + $0x34] sm:$0xf]
      %v10052 = vld [vmem:[%s9141 + $0x38] sm:$0x3]
      %v10053 = vld [vmem:[%s9141 + $0x3c] sm:$0xe]
      %v10054 = vld [vmem:[%s9141 + $0x40] sm:$0xf]
      %v10055 = vld [vmem:[%s9141 + $0x44] sm:$0x3]
      %v10056 = vld [vmem:[%s9141 + $0x48] sm:$0xe]
      %v10057 = vld [vmem:[%s9141 + $0x4c] sm:$0xf]
      %v10058 = vld [vmem:[%s9141 + $0x50] sm:$0x3]
      %v10059 = vld [vmem:[%s9141 + $0x54] sm:$0xe]
      %v10060 = vld [vmem:[%s9141 + $0x58] sm:$0xf]
      %v10061 = vld [vmem:[%s9141 + $0x5c] sm:$0x3]
      %v10062 = vld [vmem:[%s9141 + $0x60] sm:$0xe]
      %v10063 = vld [vmem:[%s9141 + $0x64] sm:$0xf]
      %v10064 = vld [vmem:[%s9141 + $0x68] sm:$0x3]
      %v10065 = vld [vmem:[%s9141 + $0x6c] sm:$0xe]
      %v10066 = vld [vmem:[%s9141 + $0x70] sm:$0xf]
      %v10067 = vld [vmem:[%s9141 + $0x74] sm:$0x3]
      %v10068 = vld [vmem:[%s9141 + $0x78] sm:$0xe]
      %v10069 = vld [vmem:[%s9141 + $0x7c] sm:$0xf]
      %v10070 = vld [vmem:[%s9141 + $0x80] sm:$0x3]
      %v10071 = vld [vmem:[%s9141 + $0x84] sm:$0xe]
      %v10072 = vld [vmem:[%s9141 + $0x88] sm:$0xf]
      %v10073 = vld [vmem:[%s9141 + $0x8c] sm:$0x3]
      %v10074 = vld [vmem:[%s9141 + $0x90] sm:$0xe]
      %v10075 = vld [vmem:[%s9141 + $0x94] sm:$0xf]
      %v10076 = vld [vmem:[%s9141 + $0x98] sm:$0x3]
      %v10077 = vld [vmem:[%s9141 + $0x9c] sm:$0xe]
      %v10078 = vld [vmem:[%s9141 + $0xa0] sm:$0xf]
      %v10079 = vld [vmem:[%s9141 + $0xa4] sm:$0x3]
      %v10080 = vld [vmem:[%s9141 + $0xa8] sm:$0xe]
      %v10081 = vld [vmem:[%s9141 + $0xac] sm:$0xf]
      %v10082 = vld [vmem:[%s9141 + $0xb0] sm:$0x3]
      %v10083 = vld [vmem:[%s9141 + $0xb4] sm:$0xe]
      %v10084 = vld [vmem:[%s9141 + $0xb8] sm:$0xf]
      %v10085 = vld [vmem:[%s9141 + $0xbc] sm:$0x3]
      %v10087 = vshrl.u32 %v10038, 16
      %v10089 = vrot.slane %v10087, 5
      %v10090 = vshll.u32 %v10038, 16
      %v10092 = vrot.slane %v10090, 6
      %v10093 = vor.u32 %v10089, %v10092
      %v10094 = vrot.slane %v10093, 4
      %v10096 = vshrl.u32 %v10039, 16
      %v10098 = vrot.slane %v10096, 5
      %v10099 = vshll.u32 %v10039, 16
      %v10101 = vrot.slane %v10099, 6
      %v10102 = vor.u32 %v10098, %v10101
      %v10103 = vsel %vm1800, %v10094, %v10102
      %v10104 = vrot.slane %v10102, 4
      %v10106 = vshrl.u32 %v10040, 16
      %v10108 = vrot.slane %v10106, 5
      %v10109 = vshll.u32 %v10040, 16
      %v10111 = vrot.slane %v10109, 6
      %v10112 = vor.u32 %v10108, %v10111
      %v10113 = vsel %vm1800, %v10104, %v10112
      %v10115 = vshrl.u32 %v10041, 16
      %v10117 = vrot.slane %v10115, 5
      %v10118 = vshll.u32 %v10041, 16
      %v10120 = vrot.slane %v10118, 6
      %v10121 = vor.u32 %v10117, %v10120
      %v10122 = vrot.slane %v10121, 4
      %v10124 = vshrl.u32 %v10042, 16
      %v10126 = vrot.slane %v10124, 5
      %v10127 = vshll.u32 %v10042, 16
      %v10129 = vrot.slane %v10127, 6
      %v10130 = vor.u32 %v10126, %v10129
      %v10131 = vsel %vm1800, %v10122, %v10130
      %v10132 = vrot.slane %v10130, 4
      %v10134 = vshrl.u32 %v10043, 16
      %v10136 = vrot.slane %v10134, 5
      %v10137 = vshll.u32 %v10043, 16
      %v10139 = vrot.slane %v10137, 6
      %v10140 = vor.u32 %v10136, %v10139
      %v10141 = vsel %vm1800, %v10132, %v10140
      %v10143 = vshrl.u32 %v10044, 16
      %v10145 = vrot.slane %v10143, 5
      %v10146 = vshll.u32 %v10044, 16
      %v10148 = vrot.slane %v10146, 6
      %v10149 = vor.u32 %v10145, %v10148
      %v10150 = vrot.slane %v10149, 4
      %v10152 = vshrl.u32 %v10045, 16
      %v10154 = vrot.slane %v10152, 5
      %v10155 = vshll.u32 %v10045, 16
      %v10157 = vrot.slane %v10155, 6
      %v10158 = vor.u32 %v10154, %v10157
      %v10159 = vsel %vm1800, %v10150, %v10158
      %v10160 = vrot.slane %v10158, 4
      %v10162 = vshrl.u32 %v10046, 16
      %v10164 = vrot.slane %v10162, 5
      %v10165 = vshll.u32 %v10046, 16
      %v10167 = vrot.slane %v10165, 6
      %v10168 = vor.u32 %v10164, %v10167
      %v10169 = vsel %vm1800, %v10160, %v10168
      %v10171 = vshrl.u32 %v10047, 16
      %v10173 = vrot.slane %v10171, 5
      %v10174 = vshll.u32 %v10047, 16
      %v10176 = vrot.slane %v10174, 6
      %v10177 = vor.u32 %v10173, %v10176
      %v10178 = vrot.slane %v10177, 4
      %v10180 = vshrl.u32 %v10048, 16
      %v10182 = vrot.slane %v10180, 5
      %v10183 = vshll.u32 %v10048, 16
      %v10185 = vrot.slane %v10183, 6
      %v10186 = vor.u32 %v10182, %v10185
      %v10187 = vsel %vm1800, %v10178, %v10186
      %v10188 = vrot.slane %v10186, 4
      %v10190 = vshrl.u32 %v10049, 16
      %v10192 = vrot.slane %v10190, 5
      %v10193 = vshll.u32 %v10049, 16
      %v10195 = vrot.slane %v10193, 6
      %v10196 = vor.u32 %v10192, %v10195
      %v10197 = vsel %vm1800, %v10188, %v10196
      %v10199 = vshrl.u32 %v10050, 16
      %v10201 = vrot.slane %v10199, 5
      %v10202 = vshll.u32 %v10050, 16
      %v10204 = vrot.slane %v10202, 6
      %v10205 = vor.u32 %v10201, %v10204
      %v10206 = vrot.slane %v10205, 4
      %v10208 = vshrl.u32 %v10051, 16
      %v10210 = vrot.slane %v10208, 5
      %v10211 = vshll.u32 %v10051, 16
      %v10213 = vrot.slane %v10211, 6
      %v10214 = vor.u32 %v10210, %v10213
      %v10215 = vsel %vm1800, %v10206, %v10214
      %v10216 = vrot.slane %v10214, 4
      %v10218 = vshrl.u32 %v10052, 16
      %v10220 = vrot.slane %v10218, 5
      %v10221 = vshll.u32 %v10052, 16
      %v10223 = vrot.slane %v10221, 6
      %v10224 = vor.u32 %v10220, %v10223
      %v10225 = vsel %vm1800, %v10216, %v10224
      %v10227 = vshrl.u32 %v10053, 16
      %v10229 = vrot.slane %v10227, 5
      %v10230 = vshll.u32 %v10053, 16
      %v10232 = vrot.slane %v10230, 6
      %v10233 = vor.u32 %v10229, %v10232
      %v10234 = vrot.slane %v10233, 4
      %v10236 = vshrl.u32 %v10054, 16
      %v10238 = vrot.slane %v10236, 5
      %v10239 = vshll.u32 %v10054, 16
      %v10241 = vrot.slane %v10239, 6
      %v10242 = vor.u32 %v10238, %v10241
      %v10243 = vsel %vm1800, %v10234, %v10242
      %v10244 = vrot.slane %v10242, 4
      %v10246 = vshrl.u32 %v10055, 16
      %v10248 = vrot.slane %v10246, 5
      %v10249 = vshll.u32 %v10055, 16
      %v10251 = vrot.slane %v10249, 6
      %v10252 = vor.u32 %v10248, %v10251
      %v10253 = vsel %vm1800, %v10244, %v10252
      %v10255 = vshrl.u32 %v10056, 16
      %v10257 = vrot.slane %v10255, 5
      %v10258 = vshll.u32 %v10056, 16
      %v10260 = vrot.slane %v10258, 6
      %v10261 = vor.u32 %v10257, %v10260
      %v10262 = vrot.slane %v10261, 4
      %v10264 = vshrl.u32 %v10057, 16
      %v10266 = vrot.slane %v10264, 5
      %v10267 = vshll.u32 %v10057, 16
      %v10269 = vrot.slane %v10267, 6
      %v10270 = vor.u32 %v10266, %v10269
      %v10271 = vsel %vm1800, %v10262, %v10270
      %v10272 = vrot.slane %v10270, 4
      %v10274 = vshrl.u32 %v10058, 16
      %v10276 = vrot.slane %v10274, 5
      %v10277 = vshll.u32 %v10058, 16
      %v10279 = vrot.slane %v10277, 6
      %v10280 = vor.u32 %v10276, %v10279
      %v10281 = vsel %vm1800, %v10272, %v10280
      %v10283 = vshrl.u32 %v10059, 16
      %v10285 = vrot.slane %v10283, 5
      %v10286 = vshll.u32 %v10059, 16
      %v10288 = vrot.slane %v10286, 6
      %v10289 = vor.u32 %v10285, %v10288
      %v10290 = vrot.slane %v10289, 4
      %v10292 = vshrl.u32 %v10060, 16
      %v10294 = vrot.slane %v10292, 5
      %v10295 = vshll.u32 %v10060, 16
      %v10297 = vrot.slane %v10295, 6
      %v10298 = vor.u32 %v10294, %v10297
      %v10299 = vsel %vm1800, %v10290, %v10298
      %v10300 = vrot.slane %v10298, 4
      %v10302 = vshrl.u32 %v10061, 16
      %v10304 = vrot.slane %v10302, 5
      %v10305 = vshll.u32 %v10061, 16
      %v10307 = vrot.slane %v10305, 6
      %v10308 = vor.u32 %v10304, %v10307
      %v10309 = vsel %vm1800, %v10300, %v10308
      %v10311 = vshrl.u32 %v10062, 16
      %v10313 = vrot.slane %v10311, 5
      %v10314 = vshll.u32 %v10062, 16
      %v10316 = vrot.slane %v10314, 6
      %v10317 = vor.u32 %v10313, %v10316
      %v10318 = vrot.slane %v10317, 4
      %v10320 = vshrl.u32 %v10063, 16
      %v10322 = vrot.slane %v10320, 5
      %v10323 = vshll.u32 %v10063, 16
      %v10325 = vrot.slane %v10323, 6
      %v10326 = vor.u32 %v10322, %v10325
      %v10327 = vsel %vm1800, %v10318, %v10326
      %v10328 = vrot.slane %v10326, 4
      %v10330 = vshrl.u32 %v10064, 16
      %v10332 = vrot.slane %v10330, 5
      %v10333 = vshll.u32 %v10064, 16
      %v10335 = vrot.slane %v10333, 6
      %v10336 = vor.u32 %v10332, %v10335
      %v10337 = vsel %vm1800, %v10328, %v10336
      %v10339 = vshrl.u32 %v10065, 16
      %v10341 = vrot.slane %v10339, 5
      %v10342 = vshll.u32 %v10065, 16
      %v10344 = vrot.slane %v10342, 6
      %v10345 = vor.u32 %v10341, %v10344
      %v10346 = vrot.slane %v10345, 4
      %v10348 = vshrl.u32 %v10066, 16
      %v10350 = vrot.slane %v10348, 5
      %v10351 = vshll.u32 %v10066, 16
      %v10353 = vrot.slane %v10351, 6
      %v10354 = vor.u32 %v10350, %v10353
      %v10355 = vsel %vm1800, %v10346, %v10354
      %v10356 = vrot.slane %v10354, 4
      %v10358 = vshrl.u32 %v10067, 16
      %v10360 = vrot.slane %v10358, 5
      %v10361 = vshll.u32 %v10067, 16
      %v10363 = vrot.slane %v10361, 6
      %v10364 = vor.u32 %v10360, %v10363
      %v10365 = vsel %vm1800, %v10356, %v10364
      %v10367 = vshrl.u32 %v10068, 16
      %v10369 = vrot.slane %v10367, 5
      %v10370 = vshll.u32 %v10068, 16
      %v10372 = vrot.slane %v10370, 6
      %v10373 = vor.u32 %v10369, %v10372
      %v10374 = vrot.slane %v10373, 4
      %v10376 = vshrl.u32 %v10069, 16
      %v10378 = vrot.slane %v10376, 5
      %v10379 = vshll.u32 %v10069, 16
      %v10381 = vrot.slane %v10379, 6
      %v10382 = vor.u32 %v10378, %v10381
      %v10383 = vsel %vm1800, %v10374, %v10382
      %v10384 = vrot.slane %v10382, 4
      %v10386 = vshrl.u32 %v10070, 16
      %v10388 = vrot.slane %v10386, 5
      %v10389 = vshll.u32 %v10070, 16
      %v10391 = vrot.slane %v10389, 6
      %v10392 = vor.u32 %v10388, %v10391
      %v10393 = vsel %vm1800, %v10384, %v10392
      %v10395 = vshrl.u32 %v10071, 16
      %v10397 = vrot.slane %v10395, 5
      %v10398 = vshll.u32 %v10071, 16
      %v10400 = vrot.slane %v10398, 6
      %v10401 = vor.u32 %v10397, %v10400
      %v10402 = vrot.slane %v10401, 4
      %v10404 = vshrl.u32 %v10072, 16
      %v10406 = vrot.slane %v10404, 5
      %v10407 = vshll.u32 %v10072, 16
      %v10409 = vrot.slane %v10407, 6
      %v10410 = vor.u32 %v10406, %v10409
      %v10411 = vsel %vm1800, %v10402, %v10410
      %v10412 = vrot.slane %v10410, 4
      %v10414 = vshrl.u32 %v10073, 16
      %v10416 = vrot.slane %v10414, 5
      %v10417 = vshll.u32 %v10073, 16
      %v10419 = vrot.slane %v10417, 6
      %v10420 = vor.u32 %v10416, %v10419
      %v10421 = vsel %vm1800, %v10412, %v10420
      %v10423 = vshrl.u32 %v10074, 16
      %v10425 = vrot.slane %v10423, 5
      %v10426 = vshll.u32 %v10074, 16
      %v10428 = vrot.slane %v10426, 6
      %v10429 = vor.u32 %v10425, %v10428
      %v10430 = vrot.slane %v10429, 4
      %v10432 = vshrl.u32 %v10075, 16
      %v10434 = vrot.slane %v10432, 5
      %v10435 = vshll.u32 %v10075, 16
      %v10437 = vrot.slane %v10435, 6
      %v10438 = vor.u32 %v10434, %v10437
      %v10439 = vsel %vm1800, %v10430, %v10438
      %v10440 = vrot.slane %v10438, 4
      %v10442 = vshrl.u32 %v10076, 16
      %v10444 = vrot.slane %v10442, 5
      %v10445 = vshll.u32 %v10076, 16
      %v10447 = vrot.slane %v10445, 6
      %v10448 = vor.u32 %v10444, %v10447
      %v10449 = vsel %vm1800, %v10440, %v10448
      %v10451 = vshrl.u32 %v10077, 16
      %v10453 = vrot.slane %v10451, 5
      %v10454 = vshll.u32 %v10077, 16
      %v10456 = vrot.slane %v10454, 6
      %v10457 = vor.u32 %v10453, %v10456
      %v10458 = vrot.slane %v10457, 4
      %v10460 = vshrl.u32 %v10078, 16
      %v10462 = vrot.slane %v10460, 5
      %v10463 = vshll.u32 %v10078, 16
      %v10465 = vrot.slane %v10463, 6
      %v10466 = vor.u32 %v10462, %v10465
      %v10467 = vsel %vm1800, %v10458, %v10466
      %v10468 = vrot.slane %v10466, 4
      %v10470 = vshrl.u32 %v10079, 16
      %v10472 = vrot.slane %v10470, 5
      %v10473 = vshll.u32 %v10079, 16
      %v10475 = vrot.slane %v10473, 6
      %v10476 = vor.u32 %v10472, %v10475
      %v10477 = vsel %vm1800, %v10468, %v10476
      %v10479 = vshrl.u32 %v10080, 16
      %v10481 = vrot.slane %v10479, 5
      %v10482 = vshll.u32 %v10080, 16
      %v10484 = vrot.slane %v10482, 6
      %v10485 = vor.u32 %v10481, %v10484
      %v10486 = vrot.slane %v10485, 4
      %v10488 = vshrl.u32 %v10081, 16
      %v10490 = vrot.slane %v10488, 5
      %v10491 = vshll.u32 %v10081, 16
      %v10493 = vrot.slane %v10491, 6
      %v10494 = vor.u32 %v10490, %v10493
      %v10495 = vsel %vm1800, %v10486, %v10494
      %v10496 = vrot.slane %v10494, 4
      %v10498 = vshrl.u32 %v10082, 16
      %v10500 = vrot.slane %v10498, 5
      %v10501 = vshll.u32 %v10082, 16
      %v10503 = vrot.slane %v10501, 6
      %v10504 = vor.u32 %v10500, %v10503
      %v10505 = vsel %vm1800, %v10496, %v10504
      %v10507 = vshrl.u32 %v10083, 16
      %v10509 = vrot.slane %v10507, 5
      %v10510 = vshll.u32 %v10083, 16
      %v10512 = vrot.slane %v10510, 6
      %v10513 = vor.u32 %v10509, %v10512
      %v10514 = vrot.slane %v10513, 4
      %v10516 = vshrl.u32 %v10084, 16
      %v10518 = vrot.slane %v10516, 5
      %v10519 = vshll.u32 %v10084, 16
      %v10521 = vrot.slane %v10519, 6
      %v10522 = vor.u32 %v10518, %v10521
      %v10523 = vsel %vm1800, %v10514, %v10522
      %v10524 = vrot.slane %v10522, 4
      %v10526 = vshrl.u32 %v10085, 16
      %v10528 = vrot.slane %v10526, 5
      %v10529 = vshll.u32 %v10085, 16
      %v10531 = vrot.slane %v10529, 6
      %v10532 = vor.u32 %v10528, %v10531
      %v10533 = vsel %vm1800, %v10524, %v10532
      %10566 = vst.msk [vmem:[#allocation5 + $0x8] sm:$0xf] %vm381, %v10103
      %10567 = vst.msk [vmem:[#allocation5 + $0x14] sm:$0xf] %vm381, %v10113
      %10568 = vst.msk [vmem:[#allocation5 + $0x20] sm:$0xf] %vm381, %v10131
      %10569 = vst.msk [vmem:[#allocation5 + $0x2c] sm:$0xf] %vm381, %v10141
      %10570 = vst.msk [vmem:[#allocation5 + $0x38] sm:$0xf] %vm381, %v10159
      %10571 = vst.msk [vmem:[#allocation5 + $0x44] sm:$0xf] %vm381, %v10169
      %10572 = vst.msk [vmem:[#allocation5 + $0x50] sm:$0xf] %vm381, %v10187
      %10573 = vst.msk [vmem:[#allocation5 + $0x5c] sm:$0xf] %vm381, %v10197
      %10574 = vst.msk [vmem:[#allocation5 + $0x68] sm:$0xf] %vm381, %v10215
      %10575 = vst.msk [vmem:[#allocation5 + $0x74] sm:$0xf] %vm381, %v10225
      %10576 = vst.msk [vmem:[#allocation5 + $0x80] sm:$0xf] %vm381, %v10243
      %10577 = vst.msk [vmem:[#allocation5 + $0x8c] sm:$0xf] %vm381, %v10253
      %10578 = vst.msk [vmem:[#allocation5 + $0x98] sm:$0xf] %vm381, %v10271
      %10579 = vst.msk [vmem:[#allocation5 + $0xa4] sm:$0xf] %vm381, %v10281
      %10580 = vst.msk [vmem:[#allocation5 + $0xb0] sm:$0xf] %vm381, %v10299
      %10581 = vst.msk [vmem:[#allocation5 + $0xbc] sm:$0xf] %vm381, %v10309
      %10582 = vst.msk [vmem:[#allocation5 + $0xc8] sm:$0xf] %vm381, %v10327
      %10583 = vst.msk [vmem:[#allocation5 + $0xd4] sm:$0xf] %vm381, %v10337
      %10584 = vst.msk [vmem:[#allocation5 + $0xe0] sm:$0xf] %vm381, %v10355
      %10585 = vst.msk [vmem:[#allocation5 + $0xec] sm:$0xf] %vm381, %v10365
      %10586 = vst.msk [vmem:[#allocation5 + $0xf8] sm:$0xf] %vm381, %v10383
      %10587 = vst.msk [vmem:[#allocation5 + $0x104] sm:$0xf] %vm381, %v10393
      %10588 = vst.msk [vmem:[#allocation5 + $0x110] sm:$0xf] %vm381, %v10411
      %10589 = vst.msk [vmem:[#allocation5 + $0x11c] sm:$0xf] %vm381, %v10421
      %10590 = vst.msk [vmem:[#allocation5 + $0x128] sm:$0xf] %vm381, %v10439
      %10591 = vst.msk [vmem:[#allocation5 + $0x134] sm:$0xf] %vm381, %v10449
      %10592 = vst.msk [vmem:[#allocation5 + $0x140] sm:$0xf] %vm381, %v10467
      %10593 = vst.msk [vmem:[#allocation5 + $0x14c] sm:$0xf] %vm381, %v10477
      %10594 = vst.msk [vmem:[#allocation5 + $0x158] sm:$0xf] %vm381, %v10495
      %10595 = vst.msk [vmem:[#allocation5 + $0x164] sm:$0xf] %vm381, %v10505
      %10596 = vst.msk [vmem:[#allocation5 + $0x170] sm:$0xf] %vm381, %v10523
      %10597 = vst.msk [vmem:[#allocation5 + $0x17c] sm:$0xf] %vm381, %v10533
      %v10598 = vpack.c.bf16 %v429, %v428
      %v10599 = vpack.c.bf16 %v431, %v430
      %v10600 = vpack.c.bf16 %v433, %v432
      %v10601 = vpack.c.bf16 %v435, %v434
      %v10602 = vpack.c.bf16 %v437, %v436
      %v10603 = vpack.c.bf16 %v439, %v438
      %v10604 = vpack.c.bf16 %v441, %v440
      %v10605 = vpack.c.bf16 %v443, %v442
      %v10606 = vpack.c.bf16 %v445, %v444
      %v10607 = vpack.c.bf16 %v447, %v446
      %v10608 = vpack.c.bf16 %v449, %v448
      %v10609 = vpack.c.bf16 %v451, %v450
      %v10610 = vpack.c.bf16 %v453, %v452
      %v10611 = vpack.c.bf16 %v455, %v454
      %v10612 = vpack.c.bf16 %v457, %v456
      %v10613 = vpack.c.bf16 %v459, %v458
      %v10630 = vunpack.c.l.b16 %v10598
      %v10631 = vunpack.c.h.b16 %v10598
      %v10632 = vunpack.c.l.b16 %v10599
      %v10633 = vunpack.c.h.b16 %v10599
      %v10634 = vunpack.c.l.b16 %v10600
      %v10635 = vunpack.c.h.b16 %v10600
      %v10636 = vunpack.c.l.b16 %v10601
      %v10637 = vunpack.c.h.b16 %v10601
      %v10638 = vunpack.c.l.b16 %v10602
      %v10639 = vunpack.c.h.b16 %v10602
      %v10640 = vunpack.c.l.b16 %v10603
      %v10641 = vunpack.c.h.b16 %v10603
      %v10642 = vunpack.c.l.b16 %v10604
      %v10643 = vunpack.c.h.b16 %v10604
      %v10644 = vunpack.c.l.b16 %v10605
      %v10645 = vunpack.c.h.b16 %v10605
      %v10646 = vunpack.c.l.b16 %v10606
      %v10647 = vunpack.c.h.b16 %v10606
      %v10648 = vunpack.c.l.b16 %v10607
      %v10649 = vunpack.c.h.b16 %v10607
      %v10650 = vunpack.c.l.b16 %v10608
      %v10651 = vunpack.c.h.b16 %v10608
      %v10652 = vunpack.c.l.b16 %v10609
      %v10653 = vunpack.c.h.b16 %v10609
      %v10654 = vunpack.c.l.b16 %v10610
      %v10655 = vunpack.c.h.b16 %v10610
      %v10656 = vunpack.c.l.b16 %v10611
      %v10657 = vunpack.c.h.b16 %v10611
      %v10658 = vunpack.c.l.b16 %v10612
      %v10659 = vunpack.c.h.b16 %v10612
      %v10660 = vunpack.c.l.b16 %v10613
      %v10661 = vunpack.c.h.b16 %v10613
      %v10662 = vpack.c.b16 %v10630, %v10630
      %v10663 = vpack.c.b16 %v10631, %v10631
      %v10664 = vpack.c.b16 %v10632, %v10632
      %v10665 = vpack.c.b16 %v10633, %v10633
      %v10666 = vpack.c.b16 %v10634, %v10634
      %v10667 = vpack.c.b16 %v10635, %v10635
      %v10668 = vpack.c.b16 %v10636, %v10636
      %v10669 = vpack.c.b16 %v10637, %v10637
      %v10670 = vpack.c.b16 %v10638, %v10638
      %v10671 = vpack.c.b16 %v10639, %v10639
      %v10672 = vpack.c.b16 %v10640, %v10640
      %v10673 = vpack.c.b16 %v10641, %v10641
      %v10674 = vpack.c.b16 %v10642, %v10642
      %v10675 = vpack.c.b16 %v10643, %v10643
      %v10676 = vpack.c.b16 %v10644, %v10644
      %v10677 = vpack.c.b16 %v10645, %v10645
      %v10678 = vpack.c.b16 %v10646, %v10646
      %v10679 = vpack.c.b16 %v10647, %v10647
      %v10680 = vpack.c.b16 %v10648, %v10648
      %v10681 = vpack.c.b16 %v10649, %v10649
      %v10682 = vpack.c.b16 %v10650, %v10650
      %v10683 = vpack.c.b16 %v10651, %v10651
      %v10684 = vpack.c.b16 %v10652, %v10652
      %v10685 = vpack.c.b16 %v10653, %v10653
      %v10686 = vpack.c.b16 %v10654, %v10654
      %v10687 = vpack.c.b16 %v10655, %v10655
      %v10688 = vpack.c.b16 %v10656, %v10656
      %v10689 = vpack.c.b16 %v10657, %v10657
      %v10690 = vpack.c.b16 %v10658, %v10658
      %v10691 = vpack.c.b16 %v10659, %v10659
      %v10692 = vpack.c.b16 %v10660, %v10660
      %v10693 = vpack.c.b16 %v10661, %v10661
      %10694 = vrot.lane.b32.xlu0 %v10662, 32
      %v10695 = vpop.permute.xlu0 %10694
      %10696 = vrot.lane.b32.xlu0 %v10663, 32
      %v10697 = vpop.permute.xlu0 %10696
      %10698 = vrot.lane.b32.xlu0 %v10664, 32
      %v10699 = vpop.permute.xlu0 %10698
      %10700 = vrot.lane.b32.xlu0 %v10665, 32
      %v10701 = vpop.permute.xlu0 %10700
      %10702 = vrot.lane.b32.xlu0 %v10666, 32
      %v10703 = vpop.permute.xlu0 %10702
      %10704 = vrot.lane.b32.xlu0 %v10667, 32
      %v10705 = vpop.permute.xlu0 %10704
      %10706 = vrot.lane.b32.xlu0 %v10668, 32
      %v10707 = vpop.permute.xlu0 %10706
      %10708 = vrot.lane.b32.xlu0 %v10669, 32
      %v10709 = vpop.permute.xlu0 %10708
      %10710 = vrot.lane.b32.xlu0 %v10670, 32
      %v10711 = vpop.permute.xlu0 %10710
      %10712 = vrot.lane.b32.xlu0 %v10671, 32
      %v10713 = vpop.permute.xlu0 %10712
      %10714 = vrot.lane.b32.xlu0 %v10672, 32
      %v10715 = vpop.permute.xlu0 %10714
      %10716 = vrot.lane.b32.xlu0 %v10673, 32
      %v10717 = vpop.permute.xlu0 %10716
      %10718 = vrot.lane.b32.xlu0 %v10674, 32
      %v10719 = vpop.permute.xlu0 %10718
      %10720 = vrot.lane.b32.xlu0 %v10675, 32
      %v10721 = vpop.permute.xlu0 %10720
      %10722 = vrot.lane.b32.xlu0 %v10676, 32
      %v10723 = vpop.permute.xlu0 %10722
      %10724 = vrot.lane.b32.xlu0 %v10677, 32
      %v10725 = vpop.permute.xlu0 %10724
      %10726 = vrot.lane.b32.xlu0 %v10678, 32
      %v10727 = vpop.permute.xlu0 %10726
      %10728 = vrot.lane.b32.xlu0 %v10679, 32
      %v10729 = vpop.permute.xlu0 %10728
      %10730 = vrot.lane.b32.xlu0 %v10680, 32
      %v10731 = vpop.permute.xlu0 %10730
      %10732 = vrot.lane.b32.xlu0 %v10681, 32
      %v10733 = vpop.permute.xlu0 %10732
      %10734 = vrot.lane.b32.xlu0 %v10682, 32
      %v10735 = vpop.permute.xlu0 %10734
      %10736 = vrot.lane.b32.xlu0 %v10683, 32
      %v10737 = vpop.permute.xlu0 %10736
      %10738 = vrot.lane.b32.xlu0 %v10684, 32
      %v10739 = vpop.permute.xlu0 %10738
      %10740 = vrot.lane.b32.xlu0 %v10685, 32
      %v10741 = vpop.permute.xlu0 %10740
      %10742 = vrot.lane.b32.xlu0 %v10686, 32
      %v10743 = vpop.permute.xlu0 %10742
      %10744 = vrot.lane.b32.xlu0 %v10687, 32
      %v10745 = vpop.permute.xlu0 %10744
      %10746 = vrot.lane.b32.xlu0 %v10688, 32
      %v10747 = vpop.permute.xlu0 %10746
      %10748 = vrot.lane.b32.xlu0 %v10689, 32
      %v10749 = vpop.permute.xlu0 %10748
      %10750 = vrot.lane.b32.xlu0 %v10690, 32
      %v10751 = vpop.permute.xlu0 %10750
      %10752 = vrot.lane.b32.xlu0 %v10691, 32
      %v10753 = vpop.permute.xlu0 %10752
      %10754 = vrot.lane.b32.xlu0 %v10692, 32
      %v10755 = vpop.permute.xlu0 %10754
      %10756 = vrot.lane.b32.xlu0 %v10693, 32
      %v10757 = vpop.permute.xlu0 %10756
      %10790 = vst.msk [vmem:[#allocation5 + $0x8] sm:$0xf] %vm5392, %v10695
      %10791 = vst.msk [vmem:[#allocation5 + $0x14] sm:$0xf] %vm5392, %v10697
      %10792 = vst.msk [vmem:[#allocation5 + $0x20] sm:$0xf] %vm5392, %v10699
      %10793 = vst.msk [vmem:[#allocation5 + $0x2c] sm:$0xf] %vm5392, %v10701
      %10794 = vst.msk [vmem:[#allocation5 + $0x38] sm:$0xf] %vm5392, %v10703
      %10795 = vst.msk [vmem:[#allocation5 + $0x44] sm:$0xf] %vm5392, %v10705
      %10796 = vst.msk [vmem:[#allocation5 + $0x50] sm:$0xf] %vm5392, %v10707
      %10797 = vst.msk [vmem:[#allocation5 + $0x5c] sm:$0xf] %vm5392, %v10709
      %10798 = vst.msk [vmem:[#allocation5 + $0x68] sm:$0xf] %vm5392, %v10711
      %10799 = vst.msk [vmem:[#allocation5 + $0x74] sm:$0xf] %vm5392, %v10713
      %10800 = vst.msk [vmem:[#allocation5 + $0x80] sm:$0xf] %vm5392, %v10715
      %10801 = vst.msk [vmem:[#allocation5 + $0x8c] sm:$0xf] %vm5392, %v10717
      %10802 = vst.msk [vmem:[#allocation5 + $0x98] sm:$0xf] %vm5392, %v10719
      %10803 = vst.msk [vmem:[#allocation5 + $0xa4] sm:$0xf] %vm5392, %v10721
      %10804 = vst.msk [vmem:[#allocation5 + $0xb0] sm:$0xf] %vm5392, %v10723
      %10805 = vst.msk [vmem:[#allocation5 + $0xbc] sm:$0xf] %vm5392, %v10725
      %10806 = vst.msk [vmem:[#allocation5 + $0xc8] sm:$0xf] %vm5392, %v10727
      %10807 = vst.msk [vmem:[#allocation5 + $0xd4] sm:$0xf] %vm5392, %v10729
      %10808 = vst.msk [vmem:[#allocation5 + $0xe0] sm:$0xf] %vm5392, %v10731
      %10809 = vst.msk [vmem:[#allocation5 + $0xec] sm:$0xf] %vm5392, %v10733
      %10810 = vst.msk [vmem:[#allocation5 + $0xf8] sm:$0xf] %vm5392, %v10735
      %10811 = vst.msk [vmem:[#allocation5 + $0x104] sm:$0xf] %vm5392, %v10737
      %10812 = vst.msk [vmem:[#allocation5 + $0x110] sm:$0xf] %vm5392, %v10739
      %10813 = vst.msk [vmem:[#allocation5 + $0x11c] sm:$0xf] %vm5392, %v10741
      %10814 = vst.msk [vmem:[#allocation5 + $0x128] sm:$0xf] %vm5392, %v10743
      %10815 = vst.msk [vmem:[#allocation5 + $0x134] sm:$0xf] %vm5392, %v10745
      %10816 = vst.msk [vmem:[#allocation5 + $0x140] sm:$0xf] %vm5392, %v10747
      %10817 = vst.msk [vmem:[#allocation5 + $0x14c] sm:$0xf] %vm5392, %v10749
      %10818 = vst.msk [vmem:[#allocation5 + $0x158] sm:$0xf] %vm5392, %v10751
      %10819 = vst.msk [vmem:[#allocation5 + $0x164] sm:$0xf] %vm5392, %v10753
      %10820 = vst.msk [vmem:[#allocation5 + $0x170] sm:$0xf] %vm5392, %v10755
      %10821 = vst.msk [vmem:[#allocation5 + $0x17c] sm:$0xf] %vm5392, %v10757
      %v10822 = vld [vmem:[#allocation5] sm:$0xff]
      %v10823 = vld [vmem:[#allocation5 + $0x8] sm:$0xf]
      %v10824 = vld [vmem:[#allocation5 + $0xc] sm:$0xff]
      %v10825 = vld [vmem:[#allocation5 + $0x14] sm:$0xf]
      %v10826 = vld [vmem:[#allocation5 + $0x18] sm:$0xff]
      %v10827 = vld [vmem:[#allocation5 + $0x20] sm:$0xf]
      %v10828 = vld [vmem:[#allocation5 + $0x24] sm:$0xff]
      %v10829 = vld [vmem:[#allocation5 + $0x2c] sm:$0xf]
      %v10830 = vld [vmem:[#allocation5 + $0x30] sm:$0xff]
      %v10831 = vld [vmem:[#allocation5 + $0x38] sm:$0xf]
      %v10832 = vld [vmem:[#allocation5 + $0x3c] sm:$0xff]
      %v10833 = vld [vmem:[#allocation5 + $0x44] sm:$0xf]
      %v10834 = vld [vmem:[#allocation5 + $0x48] sm:$0xff]
      %v10835 = vld [vmem:[#allocation5 + $0x50] sm:$0xf]
      %v10836 = vld [vmem:[#allocation5 + $0x54] sm:$0xff]
      %v10837 = vld [vmem:[#allocation5 + $0x5c] sm:$0xf]
      %v10838 = vld [vmem:[#allocation5 + $0x60] sm:$0xff]
      %v10839 = vld [vmem:[#allocation5 + $0x68] sm:$0xf]
      %v10840 = vld [vmem:[#allocation5 + $0x6c] sm:$0xff]
      %v10841 = vld [vmem:[#allocation5 + $0x74] sm:$0xf]
      %v10842 = vld [vmem:[#allocation5 + $0x78] sm:$0xff]
      %v10843 = vld [vmem:[#allocation5 + $0x80] sm:$0xf]
      %v10844 = vld [vmem:[#allocation5 + $0x84] sm:$0xff]
      %v10845 = vld [vmem:[#allocation5 + $0x8c] sm:$0xf]
      %v10846 = vld [vmem:[#allocation5 + $0x90] sm:$0xff]
      %v10847 = vld [vmem:[#allocation5 + $0x98] sm:$0xf]
      %v10848 = vld [vmem:[#allocation5 + $0x9c] sm:$0xff]
      %v10849 = vld [vmem:[#allocation5 + $0xa4] sm:$0xf]
      %v10850 = vld [vmem:[#allocation5 + $0xa8] sm:$0xff]
      %v10851 = vld [vmem:[#allocation5 + $0xb0] sm:$0xf]
      %v10852 = vld [vmem:[#allocation5 + $0xb4] sm:$0xff]
      %v10853 = vld [vmem:[#allocation5 + $0xbc] sm:$0xf]
      %v10854 = vld [vmem:[#allocation5 + $0xc0] sm:$0xff]
      %v10855 = vld [vmem:[#allocation5 + $0xc8] sm:$0xf]
      %v10856 = vld [vmem:[#allocation5 + $0xcc] sm:$0xff]
      %v10857 = vld [vmem:[#allocation5 + $0xd4] sm:$0xf]
      %v10858 = vld [vmem:[#allocation5 + $0xd8] sm:$0xff]
      %v10859 = vld [vmem:[#allocation5 + $0xe0] sm:$0xf]
      %v10860 = vld [vmem:[#allocation5 + $0xe4] sm:$0xff]
      %v10861 = vld [vmem:[#allocation5 + $0xec] sm:$0xf]
      %v10862 = vld [vmem:[#allocation5 + $0xf0] sm:$0xff]
      %v10863 = vld [vmem:[#allocation5 + $0xf8] sm:$0xf]
      %v10864 = vld [vmem:[#allocation5 + $0xfc] sm:$0xff]
      %v10865 = vld [vmem:[#allocation5 + $0x104] sm:$0xf]
      %v10866 = vld [vmem:[#allocation5 + $0x108] sm:$0xff]
      %v10867 = vld [vmem:[#allocation5 + $0x110] sm:$0xf]
      %v10868 = vld [vmem:[#allocation5 + $0x114] sm:$0xff]
      %v10869 = vld [vmem:[#allocation5 + $0x11c] sm:$0xf]
      %v10870 = vld [vmem:[#allocation5 + $0x120] sm:$0xff]
      %v10871 = vld [vmem:[#allocation5 + $0x128] sm:$0xf]
      %v10872 = vld [vmem:[#allocation5 + $0x12c] sm:$0xff]
      %v10873 = vld [vmem:[#allocation5 + $0x134] sm:$0xf]
      %v10874 = vld [vmem:[#allocation5 + $0x138] sm:$0xff]
      %v10875 = vld [vmem:[#allocation5 + $0x140] sm:$0xf]
      %v10876 = vld [vmem:[#allocation5 + $0x144] sm:$0xff]
      %v10877 = vld [vmem:[#allocation5 + $0x14c] sm:$0xf]
      %v10878 = vld [vmem:[#allocation5 + $0x150] sm:$0xff]
      %v10879 = vld [vmem:[#allocation5 + $0x158] sm:$0xf]
      %v10880 = vld [vmem:[#allocation5 + $0x15c] sm:$0xff]
      %v10881 = vld [vmem:[#allocation5 + $0x164] sm:$0xf]
      %v10882 = vld [vmem:[#allocation5 + $0x168] sm:$0xff]
      %v10883 = vld [vmem:[#allocation5 + $0x170] sm:$0xf]
      %v10884 = vld [vmem:[#allocation5 + $0x174] sm:$0xff]
      %v10885 = vld [vmem:[#allocation5 + $0x17c] sm:$0xf]
      %v10886 = vld [vmem:[%s5] sm:$0xf]
      %v10887 = vld [vmem:[%s5 + $0x4] sm:$0xf]
      %v10888 = vld [vmem:[%s5 + $0x8] sm:$0xf]
      %v10889 = vld [vmem:[%s5 + $0xc] sm:$0xf]
      %v10890 = vld [vmem:[%s5 + $0x10] sm:$0xf]
      %v10891 = vld [vmem:[%s5 + $0x14] sm:$0xf]
      %v10892 = vld [vmem:[%s5 + $0x18] sm:$0xf]
      %v10893 = vld [vmem:[%s5 + $0x1c] sm:$0xf]
      %v10894 = vld [vmem:[%s5 + $0x20] sm:$0xf]
      %v10895 = vld [vmem:[%s5 + $0x24] sm:$0xf]
      %v10896 = vld [vmem:[%s5 + $0x28] sm:$0xf]
      %v10897 = vld [vmem:[%s5 + $0x2c] sm:$0xf]
      %v10898 = vld [vmem:[%s5 + $0x30] sm:$0xf]
      %v10899 = vld [vmem:[%s5 + $0x34] sm:$0xf]
      %v10900 = vld [vmem:[%s5 + $0x38] sm:$0xf]
      %v10901 = vld [vmem:[%s5 + $0x3c] sm:$0xf]
      %v10902 = vld [vmem:[%s5 + $0x40] sm:$0xf]
      %v10903 = vld [vmem:[%s5 + $0x44] sm:$0xf]
      %v10904 = vld [vmem:[%s5 + $0x48] sm:$0xf]
      %v10905 = vld [vmem:[%s5 + $0x4c] sm:$0xf]
      %v10906 = vld [vmem:[%s5 + $0x50] sm:$0xf]
      %v10907 = vld [vmem:[%s5 + $0x54] sm:$0xf]
      %v10908 = vld [vmem:[%s5 + $0x58] sm:$0xf]
      %v10909 = vld [vmem:[%s5 + $0x5c] sm:$0xf]
      %v10910 = vld [vmem:[%s5 + $0x60] sm:$0xf]
      %v10911 = vld [vmem:[%s5 + $0x64] sm:$0xf]
      %v10912 = vld [vmem:[%s5 + $0x68] sm:$0xf]
      %v10913 = vld [vmem:[%s5 + $0x6c] sm:$0xf]
      %v10914 = vld [vmem:[%s5 + $0x70] sm:$0xf]
      %v10915 = vld [vmem:[%s5 + $0x74] sm:$0xf]
      %v10916 = vld [vmem:[%s5 + $0x78] sm:$0xf]
      %v10917 = vld [vmem:[%s5 + $0x7c] sm:$0xf]
      %v10918 = vld [vmem:[%s5 + $0x80] sm:$0xf]
      %v10919 = vld [vmem:[%s5 + $0x84] sm:$0xf]
      %v10920 = vld [vmem:[%s5 + $0x88] sm:$0xf]
      %v10921 = vld [vmem:[%s5 + $0x8c] sm:$0xf]
      %v10922 = vld [vmem:[%s5 + $0x90] sm:$0x3]
      %v10923 = vld [vmem:[%s6] sm:$0x1]
      %v10925 = vlaneseq
      %v10926 = vshrl.u32 %v10925, 7
      %v10927 = vsub.s32 0, %v10926
      %v10928 = vrot.slane %v10923, %v10927
      %v10994 = vunpack.c.l.b16 %v10822
      %v10995 = vunpack.c.h.b16 %v10822
      %v10996 = vunpack.c.l.b16 %v10823
      %v10997 = vunpack.c.l.b16 %v10824
      %v10998 = vunpack.c.h.b16 %v10824
      %v10999 = vunpack.c.l.b16 %v10825
      %v11000 = vunpack.c.l.b16 %v10826
      %v11001 = vunpack.c.h.b16 %v10826
      %v11002 = vunpack.c.l.b16 %v10827
      %v11003 = vunpack.c.l.b16 %v10828
      %v11004 = vunpack.c.h.b16 %v10828
      %v11005 = vunpack.c.l.b16 %v10829
      %v11006 = vunpack.c.l.b16 %v10830
      %v11007 = vunpack.c.h.b16 %v10830
      %v11008 = vunpack.c.l.b16 %v10831
      %v11009 = vunpack.c.l.b16 %v10832
      %v11010 = vunpack.c.h.b16 %v10832
      %v11011 = vunpack.c.l.b16 %v10833
      %v11012 = vunpack.c.l.b16 %v10834
      %v11013 = vunpack.c.h.b16 %v10834
      %v11014 = vunpack.c.l.b16 %v10835
      %v11015 = vunpack.c.l.b16 %v10836
      %v11016 = vunpack.c.h.b16 %v10836
      %v11017 = vunpack.c.l.b16 %v10837
      %v11018 = vunpack.c.l.b16 %v10838
      %v11019 = vunpack.c.h.b16 %v10838
      %v11020 = vunpack.c.l.b16 %v10839
      %v11021 = vunpack.c.l.b16 %v10840
      %v11022 = vunpack.c.h.b16 %v10840
      %v11023 = vunpack.c.l.b16 %v10841
      %v11024 = vunpack.c.l.b16 %v10842
      %v11025 = vunpack.c.h.b16 %v10842
      %v11026 = vunpack.c.l.b16 %v10843
      %v11027 = vunpack.c.l.b16 %v10844
      %v11028 = vunpack.c.h.b16 %v10844
      %v11029 = vunpack.c.l.b16 %v10845
      %v11030 = vunpack.c.l.b16 %v10846
      %v11031 = vunpack.c.h.b16 %v10846
      %v11032 = vunpack.c.l.b16 %v10847
      %v11033 = vunpack.c.l.b16 %v10848
      %v11034 = vunpack.c.h.b16 %v10848
      %v11035 = vunpack.c.l.b16 %v10849
      %v11036 = vunpack.c.l.b16 %v10850
      %v11037 = vunpack.c.h.b16 %v10850
      %v11038 = vunpack.c.l.b16 %v10851
      %v11039 = vunpack.c.l.b16 %v10852
      %v11040 = vunpack.c.h.b16 %v10852
      %v11041 = vunpack.c.l.b16 %v10853
      %v11042 = vunpack.c.l.b16 %v10854
      %v11043 = vunpack.c.h.b16 %v10854
      %v11044 = vunpack.c.l.b16 %v10855
      %v11045 = vunpack.c.l.b16 %v10856
      %v11046 = vunpack.c.h.b16 %v10856
      %v11047 = vunpack.c.l.b16 %v10857
      %v11048 = vunpack.c.l.b16 %v10858
      %v11049 = vunpack.c.h.b16 %v10858
      %v11050 = vunpack.c.l.b16 %v10859
      %v11051 = vunpack.c.l.b16 %v10860
      %v11052 = vunpack.c.h.b16 %v10860
      %v11053 = vunpack.c.l.b16 %v10861
      %v11054 = vunpack.c.l.b16 %v10862
      %v11055 = vunpack.c.h.b16 %v10862
      %v11056 = vunpack.c.l.b16 %v10863
      %v11057 = vunpack.c.l.b16 %v10864
      %v11058 = vunpack.c.h.b16 %v10864
      %v11059 = vunpack.c.l.b16 %v10865
      %v11060 = vunpack.c.l.b16 %v10866
      %v11061 = vunpack.c.h.b16 %v10866
      %v11062 = vunpack.c.l.b16 %v10867
      %v11063 = vunpack.c.l.b16 %v10868
      %v11064 = vunpack.c.h.b16 %v10868
      %v11065 = vunpack.c.l.b16 %v10869
      %v11066 = vunpack.c.l.b16 %v10870
      %v11067 = vunpack.c.h.b16 %v10870
      %v11068 = vunpack.c.l.b16 %v10871
      %v11069 = vunpack.c.l.b16 %v10872
      %v11070 = vunpack.c.h.b16 %v10872
      %v11071 = vunpack.c.l.b16 %v10873
      %v11072 = vunpack.c.l.b16 %v10874
      %v11073 = vunpack.c.h.b16 %v10874
      %v11074 = vunpack.c.l.b16 %v10875
      %v11075 = vunpack.c.l.b16 %v10876
      %v11076 = vunpack.c.h.b16 %v10876
      %v11077 = vunpack.c.l.b16 %v10877
      %v11078 = vunpack.c.l.b16 %v10878
      %v11079 = vunpack.c.h.b16 %v10878
      %v11080 = vunpack.c.l.b16 %v10879
      %v11081 = vunpack.c.l.b16 %v10880
      %v11082 = vunpack.c.h.b16 %v10880
      %v11083 = vunpack.c.l.b16 %v10881
      %v11084 = vunpack.c.l.b16 %v10882
      %v11085 = vunpack.c.h.b16 %v10882
      %v11086 = vunpack.c.l.b16 %v10883
      %v11087 = vunpack.c.l.b16 %v10884
      %v11088 = vunpack.c.h.b16 %v10884
      %v11089 = vunpack.c.l.b16 %v10885
      %v11090 = vpack.c.b16 %v10997, %v10994
      %v11091 = vpack.c.b16 %v10998, %v10995
      %v11092 = vpack.c.b16 %v10999, %v10996
      %v11093 = vpack.c.b16 %v11003, %v11000
      %v11094 = vpack.c.b16 %v11004, %v11001
      %v11095 = vpack.c.b16 %v11005, %v11002
      %v11096 = vpack.c.b16 %v11009, %v11006
      %v11097 = vpack.c.b16 %v11010, %v11007
      %v11098 = vpack.c.b16 %v11011, %v11008
      %v11099 = vpack.c.b16 %v11015, %v11012
      %v11100 = vpack.c.b16 %v11016, %v11013
      %v11101 = vpack.c.b16 %v11017, %v11014
      %v11102 = vpack.c.b16 %v11021, %v11018
      %v11103 = vpack.c.b16 %v11022, %v11019
      %v11104 = vpack.c.b16 %v11023, %v11020
      %v11105 = vpack.c.b16 %v11027, %v11024
      %v11106 = vpack.c.b16 %v11028, %v11025
      %v11107 = vpack.c.b16 %v11029, %v11026
      %v11108 = vpack.c.b16 %v11033, %v11030
      %v11109 = vpack.c.b16 %v11034, %v11031
      %v11110 = vpack.c.b16 %v11035, %v11032
      %v11111 = vpack.c.b16 %v11039, %v11036
      %v11112 = vpack.c.b16 %v11040, %v11037
      %v11113 = vpack.c.b16 %v11041, %v11038
      %v11114 = vpack.c.b16 %v11045, %v11042
      %v11115 = vpack.c.b16 %v11046, %v11043
      %v11116 = vpack.c.b16 %v11047, %v11044
      %v11117 = vpack.c.b16 %v11051, %v11048
      %v11118 = vpack.c.b16 %v11052, %v11049
      %v11119 = vpack.c.b16 %v11053, %v11050
      %v11120 = vpack.c.b16 %v11057, %v11054
      %v11121 = vpack.c.b16 %v11058, %v11055
      %v11122 = vpack.c.b16 %v11059, %v11056
      %v11123 = vpack.c.b16 %v11063, %v11060
      %v11124 = vpack.c.b16 %v11064, %v11061
      %v11125 = vpack.c.b16 %v11065, %v11062
      %v11126 = vpack.c.b16 %v11069, %v11066
      %v11127 = vpack.c.b16 %v11070, %v11067
      %v11128 = vpack.c.b16 %v11071, %v11068
      %v11129 = vpack.c.b16 %v11075, %v11072
      %v11130 = vpack.c.b16 %v11076, %v11073
      %v11131 = vpack.c.b16 %v11077, %v11074
      %v11132 = vpack.c.b16 %v11081, %v11078
      %v11133 = vpack.c.b16 %v11082, %v11079
      %v11134 = vpack.c.b16 %v11083, %v11080
      %v11135 = vpack.c.b16 %v11087, %v11084
      %v11136 = vpack.c.b16 %v11088, %v11085
      %v11137 = vpack.c.b16 %v11089, %v11086
      %v11207 = vunpack.c.l.b16 %v10886
      %v11208 = vunpack.c.l.b16 %v10887
      %v11209 = vunpack.c.l.b16 %v10888
      %v11210 = vunpack.c.l.b16 %v10889
      %v11211 = vunpack.c.l.b16 %v10890
      %v11212 = vunpack.c.l.b16 %v10891
      %v11213 = vunpack.c.l.b16 %v10892
      %v11214 = vunpack.c.l.b16 %v10893
      %v11215 = vunpack.c.l.b16 %v10894
      %v11216 = vunpack.c.l.b16 %v10895
      %v11217 = vunpack.c.l.b16 %v10896
      %v11218 = vunpack.c.l.b16 %v10897
      %v11219 = vunpack.c.l.b16 %v10898
      %v11220 = vunpack.c.l.b16 %v10899
      %v11221 = vunpack.c.l.b16 %v10900
      %v11222 = vunpack.c.l.b16 %v10901
      %v11223 = vunpack.c.l.b16 %v10902
      %v11224 = vunpack.c.l.b16 %v10903
      %v11225 = vunpack.c.l.b16 %v10904
      %v11226 = vunpack.c.l.b16 %v10905
      %v11227 = vunpack.c.l.b16 %v10906
      %v11228 = vunpack.c.l.b16 %v10907
      %v11229 = vunpack.c.l.b16 %v10908
      %v11230 = vunpack.c.l.b16 %v10909
      %v11231 = vunpack.c.l.b16 %v10910
      %v11232 = vunpack.c.l.b16 %v10911
      %v11233 = vunpack.c.l.b16 %v10912
      %v11234 = vunpack.c.l.b16 %v10913
      %v11235 = vunpack.c.l.b16 %v10914
      %v11236 = vunpack.c.l.b16 %v10915
      %v11237 = vunpack.c.l.b16 %v10916
      %v11238 = vunpack.c.l.b16 %v10917
      %v11239 = vunpack.c.l.b16 %v10918
      %v11240 = vunpack.c.l.b16 %v10919
      %v11241 = vunpack.c.l.b16 %v10920
      %v11242 = vunpack.c.l.b16 %v10921
      %v11243 = vunpack.c.l.b16 %v10922
      %v11244 = vpack.c.b16 %v11208, %v11207
      %v11245 = vpack.c.b16 %v11210, %v11209
      %v11246 = vpack.c.b16 %v11212, %v11211
      %v11247 = vpack.c.b16 %v11214, %v11213
      %v11248 = vpack.c.b16 %v11216, %v11215
      %v11249 = vpack.c.b16 %v11218, %v11217
      %v11250 = vpack.c.b16 %v11220, %v11219
      %v11251 = vpack.c.b16 %v11222, %v11221
      %v11252 = vpack.c.b16 %v11224, %v11223
      %v11253 = vpack.c.b16 %v11226, %v11225
      %v11254 = vpack.c.b16 %v11228, %v11227
      %v11255 = vpack.c.b16 %v11230, %v11229
      %v11256 = vpack.c.b16 %v11232, %v11231
      %v11257 = vpack.c.b16 %v11234, %v11233
      %v11258 = vpack.c.b16 %v11236, %v11235
      %v11259 = vpack.c.b16 %v11238, %v11237
      %v11260 = vpack.c.b16 %v11240, %v11239
      %v11261 = vpack.c.b16 %v11242, %v11241
      %v11262 = vpack.c.b16 %v11243, %v11243
      %v11282 = vsel %vm5564, %v11092, 0
      %v11285 = vsel %vm5564, %v11095, 0
      %v11288 = vsel %vm5564, %v11098, 0
      %v11291 = vsel %vm5564, %v11101, 0
      %v11294 = vsel %vm5564, %v11104, 0
      %v11297 = vsel %vm5564, %v11107, 0
      %v11300 = vsel %vm5564, %v11110, 0
      %v11303 = vsel %vm5564, %v11113, 0
      %v11306 = vsel %vm5564, %v11116, 0
      %v11309 = vsel %vm5564, %v11119, 0
      %v11312 = vsel %vm5564, %v11122, 0
      %v11315 = vsel %vm5564, %v11125, 0
      %v11318 = vsel %vm5564, %v11128, 0
      %v11321 = vsel %vm5564, %v11131, 0
      %v11324 = vsel %vm5564, %v11134, 0
      %v11327 = vsel %vm5564, %v11137, 0
      %v11330 = vsel %vm5613, %v11262, 0
      %11332 = vmatprep.subr.bf16.mxu0 0
      %11333 = vmatpush1.bf16.msra.mxu0 %v11251
      %11334 = vmatprep.subr.bf16.mxu0 0
      %11335 = vmatpush1.bf16.msra.mxu0 %v11250
      %11336 = vmatprep.subr.bf16.mxu0 0
      %11337 = vmatpush1.bf16.msra.mxu0 %v11249
      %11338 = vmatprep.subr.bf16.mxu0 0
      %11339 = vmatpush1.bf16.msra.mxu0 %v11248
      %11340 = vmatprep.subr.bf16.mxu0 0
      %11341 = vmatpush1.bf16.msra.mxu0 %v11247
      %11342 = vmatprep.subr.bf16.mxu0 0
      %11343 = vmatpush1.bf16.msra.mxu0 %v11246
      %11344 = vmatprep.subr.bf16.mxu0 0
      %11345 = vmatpush1.bf16.msra.mxu0 %v11245
      %11346 = vmatprep.subr.bf16.mxu0 0
      %11347 = vmatpush1.bf16.msra.mxu0 %v11244
      %11348 = vmatprep.subr.bf16.mxu0 0
      %11349 = vmatpush2.bf16.msra.mxu0 %v11259
      %11350 = vmatprep.subr.bf16.mxu0 0
      %11351 = vmatpush2.bf16.msra.mxu0 %v11258
      %11352 = vmatprep.subr.bf16.mxu0 0
      %11353 = vmatpush2.bf16.msra.mxu0 %v11257
      %11354 = vmatprep.subr.bf16.mxu0 0
      %11355 = vmatpush2.bf16.msra.mxu0 %v11256
      %11356 = vmatprep.subr.bf16.mxu0 0
      %11357 = vmatpush2.bf16.msra.mxu0 %v11255
      %11358 = vmatprep.subr.bf16.mxu0 0
      %11359 = vmatpush2.bf16.msra.mxu0 %v11254
      %11360 = vmatprep.subr.bf16.mxu0 0
      %11361 = vmatpush2.bf16.msra.mxu0 %v11253
      %11362 = vmatprep.subr.bf16.mxu0 0
      %11363 = vmatpush2.bf16.msra.mxu0 %v11252
      %11364 = vmatprep.mubr.bf16.mxu0 %v11091
      %11365 = vmatmul.mubr.bf16.gmra.mxu0 %v11090
      %v11366 = vpop.f32.mrf.mxu0
      %v11367 = vadd.f32 %v10928, %v11366
      %v11368 = vpop.f32.mrf.mxu0
      %v11369 = vpop.f32.mrf.mxu0
      %v11370 = vadd.f32 %v10928, %v11369
      %v11371 = vpop.f32.mrf.mxu0
      %11372 = vmatprep.mubr.bf16.mxu0 %v11094
      %11373 = vmatmul.mubr.bf16.gmra.mxu0 %v11093
      %v11374 = vpop.f32.mrf.mxu0
      %v11375 = vadd.f32 %v10928, %v11374
      %v11376 = vpop.f32.mrf.mxu0
      %v11377 = vpop.f32.mrf.mxu0
      %v11378 = vadd.f32 %v10928, %v11377
      %v11379 = vpop.f32.mrf.mxu0
      %11380 = vmatprep.mubr.bf16.mxu0 %v11097
      %11381 = vmatmul.mubr.bf16.gmra.mxu0 %v11096
      %v11382 = vpop.f32.mrf.mxu0
      %v11383 = vadd.f32 %v10928, %v11382
      %v11384 = vpop.f32.mrf.mxu0
      %v11385 = vpop.f32.mrf.mxu0
      %v11386 = vadd.f32 %v10928, %v11385
      %v11387 = vpop.f32.mrf.mxu0
      %11388 = vmatprep.mubr.bf16.mxu0 %v11100
      %11389 = vmatmul.mubr.bf16.gmra.mxu0 %v11099
      %v11390 = vpop.f32.mrf.mxu0
      %v11391 = vadd.f32 %v10928, %v11390
      %v11392 = vpop.f32.mrf.mxu0
      %v11393 = vpop.f32.mrf.mxu0
      %v11394 = vadd.f32 %v10928, %v11393
      %v11395 = vpop.f32.mrf.mxu0
      %11396 = vmatprep.mubr.bf16.mxu0 %v11103
      %11397 = vmatmul.mubr.bf16.gmra.mxu0 %v11102
      %v11398 = vpop.f32.mrf.mxu0
      %v11399 = vadd.f32 %v10928, %v11398
      %v11400 = vpop.f32.mrf.mxu0
      %v11401 = vpop.f32.mrf.mxu0
      %v11402 = vadd.f32 %v10928, %v11401
      %v11403 = vpop.f32.mrf.mxu0
      %11404 = vmatprep.mubr.bf16.mxu0 %v11106
      %11405 = vmatmul.mubr.bf16.gmra.mxu0 %v11105
      %v11406 = vpop.f32.mrf.mxu0
      %v11407 = vadd.f32 %v10928, %v11406
      %v11408 = vpop.f32.mrf.mxu0
      %v11409 = vpop.f32.mrf.mxu0
      %v11410 = vadd.f32 %v10928, %v11409
      %v11411 = vpop.f32.mrf.mxu0
      %11412 = vmatprep.mubr.bf16.mxu0 %v11109
      %11413 = vmatmul.mubr.bf16.gmra.mxu0 %v11108
      %v11414 = vpop.f32.mrf.mxu0
      %v11415 = vadd.f32 %v10928, %v11414
      %v11416 = vpop.f32.mrf.mxu0
      %v11417 = vpop.f32.mrf.mxu0
      %v11418 = vadd.f32 %v10928, %v11417
      %v11419 = vpop.f32.mrf.mxu0
      %11420 = vmatprep.mubr.bf16.mxu0 %v11112
      %11421 = vmatmul.mubr.bf16.gmra.mxu0 %v11111
      %v11422 = vpop.f32.mrf.mxu0
      %v11423 = vadd.f32 %v10928, %v11422
      %v11424 = vpop.f32.mrf.mxu0
      %v11425 = vpop.f32.mrf.mxu0
      %v11426 = vadd.f32 %v10928, %v11425
      %v11427 = vpop.f32.mrf.mxu0
      %11428 = vmatprep.mubr.bf16.mxu0 %v11115
      %11429 = vmatmul.mubr.bf16.gmra.mxu0 %v11114
      %v11430 = vpop.f32.mrf.mxu0
      %v11431 = vadd.f32 %v10928, %v11430
      %v11432 = vpop.f32.mrf.mxu0
      %v11433 = vpop.f32.mrf.mxu0
      %v11434 = vadd.f32 %v10928, %v11433
      %v11435 = vpop.f32.mrf.mxu0
      %11436 = vmatprep.mubr.bf16.mxu0 %v11118
      %11437 = vmatmul.mubr.bf16.gmra.mxu0 %v11117
      %v11438 = vpop.f32.mrf.mxu0
      %v11439 = vadd.f32 %v10928, %v11438
      %v11440 = vpop.f32.mrf.mxu0
      %v11441 = vpop.f32.mrf.mxu0
      %v11442 = vadd.f32 %v10928, %v11441
      %v11443 = vpop.f32.mrf.mxu0
      %11444 = vmatprep.mubr.bf16.mxu0 %v11121
      %11445 = vmatmul.mubr.bf16.gmra.mxu0 %v11120
      %v11446 = vpop.f32.mrf.mxu0
      %v11447 = vadd.f32 %v10928, %v11446
      %v11448 = vpop.f32.mrf.mxu0
      %v11449 = vpop.f32.mrf.mxu0
      %v11450 = vadd.f32 %v10928, %v11449
      %v11451 = vpop.f32.mrf.mxu0
      %11452 = vmatprep.mubr.bf16.mxu0 %v11124
      %11453 = vmatmul.mubr.bf16.gmra.mxu0 %v11123
      %v11454 = vpop.f32.mrf.mxu0
      %v11455 = vadd.f32 %v10928, %v11454
      %v11456 = vpop.f32.mrf.mxu0
      %v11457 = vpop.f32.mrf.mxu0
      %v11458 = vadd.f32 %v10928, %v11457
      %v11459 = vpop.f32.mrf.mxu0
      %11460 = vmatprep.mubr.bf16.mxu0 %v11127
      %11461 = vmatmul.mubr.bf16.gmra.mxu0 %v11126
      %v11462 = vpop.f32.mrf.mxu0
      %v11463 = vadd.f32 %v10928, %v11462
      %v11464 = vpop.f32.mrf.mxu0
      %v11465 = vpop.f32.mrf.mxu0
      %v11466 = vadd.f32 %v10928, %v11465
      %v11467 = vpop.f32.mrf.mxu0
      %11468 = vmatprep.mubr.bf16.mxu0 %v11130
      %11469 = vmatmul.mubr.bf16.gmra.mxu0 %v11129
      %v11470 = vpop.f32.mrf.mxu0
      %v11471 = vadd.f32 %v10928, %v11470
      %v11472 = vpop.f32.mrf.mxu0
      %v11473 = vpop.f32.mrf.mxu0
      %v11474 = vadd.f32 %v10928, %v11473
      %v11475 = vpop.f32.mrf.mxu0
      %11476 = vmatprep.mubr.bf16.mxu0 %v11133
      %11477 = vmatmul.mubr.bf16.gmra.mxu0 %v11132
      %v11478 = vpop.f32.mrf.mxu0
      %v11479 = vadd.f32 %v10928, %v11478
      %v11480 = vpop.f32.mrf.mxu0
      %v11481 = vpop.f32.mrf.mxu0
      %v11482 = vadd.f32 %v10928, %v11481
      %v11483 = vpop.f32.mrf.mxu0
      %11484 = vmatprep.mubr.bf16.mxu0 %v11136
      %11485 = vmatmul.mubr.bf16.gmra.mxu0 %v11135
      %v11486 = vpop.f32.mrf.mxu0
      %v11487 = vadd.f32 %v10928, %v11486
      %v11488 = vpop.f32.mrf.mxu0
      %v11489 = vpop.f32.mrf.mxu0
      %v11490 = vadd.f32 %v10928, %v11489
      %v11491 = vpop.f32.mrf.mxu0
      %11492 = vdwg.mxu0
      %11493 = vmatprep.subr.bf16.mxu0 0
      %11494 = vmatpush1.bf16.msra.mxu0 0
      %11495 = vmatprep.subr.bf16.mxu0 0
      %11496 = vmatpush1.bf16.msra.mxu0 0
      %11497 = vmatprep.subr.bf16.mxu0 0
      %11498 = vmatpush1.bf16.msra.mxu0 0
      %11499 = vmatprep.subr.bf16.mxu0 0
      %11500 = vmatpush1.bf16.msra.mxu0 0
      %11501 = vmatprep.subr.bf16.mxu0 0
      %11502 = vmatpush1.bf16.msra.mxu0 0
      %11503 = vmatprep.subr.bf16.mxu0 0
      %11504 = vmatpush1.bf16.msra.mxu0 %v11330
      %11505 = vmatprep.subr.bf16.mxu0 0
      %11506 = vmatpush1.bf16.msra.mxu0 %v11261
      %11507 = vmatprep.subr.bf16.mxu0 0
      %11508 = vmatpush1.bf16.msra.mxu0 %v11260
      %11509 = vmatprep.subr.bf16.mxu0 0
      %11510 = vmatpush2.bf16.msra.mxu0 0
      %11511 = vmatprep.subr.bf16.mxu0 0
      %11512 = vmatpush2.bf16.msra.mxu0 0
      %11513 = vmatprep.subr.bf16.mxu0 0
      %11514 = vmatpush2.bf16.msra.mxu0 0
      %11515 = vmatprep.subr.bf16.mxu0 0
      %11516 = vmatpush2.bf16.msra.mxu0 0
      %11517 = vmatprep.subr.bf16.mxu0 0
      %11518 = vmatpush2.bf16.msra.mxu0 0
      %11519 = vmatprep.subr.bf16.mxu0 0
      %11520 = vmatpush2.bf16.msra.mxu0 0
      %11521 = vmatprep.subr.bf16.mxu0 0
      %11522 = vmatpush2.bf16.msra.mxu0 0
      %11523 = vmatprep.subr.bf16.mxu0 0
      %11524 = vmatpush2.bf16.msra.mxu0 0
      %11525 = vmatprep.mubr.bf16.mxu0 0
      %11526 = vmatmul.mubr.bf16.gmra.mxu0 %v11282
      %v11527 = vpop.f32.mrf.mxu0
      %v11528 = vadd.f32 %v11367, %v11527
      %v11529 = vpop.f32.mrf.mxu0
      %v11530 = vpop.f32.mrf.mxu0
      %v11531 = vadd.f32 %v11370, %v11530
      %v11532 = vpop.f32.mrf.mxu0
      %11533 = vmatprep.mubr.bf16.mxu0 0
      %11534 = vmatmul.mubr.bf16.gmra.mxu0 %v11285
      %v11535 = vpop.f32.mrf.mxu0
      %v11536 = vadd.f32 %v11375, %v11535
      %v11537 = vpop.f32.mrf.mxu0
      %v11538 = vpop.f32.mrf.mxu0
      %v11539 = vadd.f32 %v11378, %v11538
      %v11540 = vpop.f32.mrf.mxu0
      %11541 = vmatprep.mubr.bf16.mxu0 0
      %11542 = vmatmul.mubr.bf16.gmra.mxu0 %v11288
      %v11543 = vpop.f32.mrf.mxu0
      %v11544 = vadd.f32 %v11383, %v11543
      %v11545 = vpop.f32.mrf.mxu0
      %v11546 = vpop.f32.mrf.mxu0
      %v11547 = vadd.f32 %v11386, %v11546
      %v11548 = vpop.f32.mrf.mxu0
      %11549 = vmatprep.mubr.bf16.mxu0 0
      %11550 = vmatmul.mubr.bf16.gmra.mxu0 %v11291
      %v11551 = vpop.f32.mrf.mxu0
      %v11552 = vadd.f32 %v11391, %v11551
      %v11553 = vpop.f32.mrf.mxu0
      %v11554 = vpop.f32.mrf.mxu0
      %v11555 = vadd.f32 %v11394, %v11554
      %v11556 = vpop.f32.mrf.mxu0
      %11557 = vmatprep.mubr.bf16.mxu0 0
      %11558 = vmatmul.mubr.bf16.gmra.mxu0 %v11294
      %v11559 = vpop.f32.mrf.mxu0
      %v11560 = vadd.f32 %v11399, %v11559
      %v11561 = vpop.f32.mrf.mxu0
      %v11562 = vpop.f32.mrf.mxu0
      %v11563 = vadd.f32 %v11402, %v11562
      %v11564 = vpop.f32.mrf.mxu0
      %11565 = vmatprep.mubr.bf16.mxu0 0
      %11566 = vmatmul.mubr.bf16.gmra.mxu0 %v11297
      %v11567 = vpop.f32.mrf.mxu0
      %v11568 = vadd.f32 %v11407, %v11567
      %v11569 = vpop.f32.mrf.mxu0
      %v11570 = vpop.f32.mrf.mxu0
      %v11571 = vadd.f32 %v11410, %v11570
      %v11572 = vpop.f32.mrf.mxu0
      %11573 = vmatprep.mubr.bf16.mxu0 0
      %11574 = vmatmul.mubr.bf16.gmra.mxu0 %v11300
      %v11575 = vpop.f32.mrf.mxu0
      %v11576 = vadd.f32 %v11415, %v11575
      %v11577 = vpop.f32.mrf.mxu0
      %v11578 = vpop.f32.mrf.mxu0
      %v11579 = vadd.f32 %v11418, %v11578
      %v11580 = vpop.f32.mrf.mxu0
      %11581 = vmatprep.mubr.bf16.mxu0 0
      %11582 = vmatmul.mubr.bf16.gmra.mxu0 %v11303
      %v11583 = vpop.f32.mrf.mxu0
      %v11584 = vadd.f32 %v11423, %v11583
      %v11585 = vpop.f32.mrf.mxu0
      %v11586 = vpop.f32.mrf.mxu0
      %v11587 = vadd.f32 %v11426, %v11586
      %v11588 = vpop.f32.mrf.mxu0
      %11589 = vmatprep.mubr.bf16.mxu0 0
      %11590 = vmatmul.mubr.bf16.gmra.mxu0 %v11306
      %v11591 = vpop.f32.mrf.mxu0
      %v11592 = vadd.f32 %v11431, %v11591
      %v11593 = vpop.f32.mrf.mxu0
      %v11594 = vpop.f32.mrf.mxu0
      %v11595 = vadd.f32 %v11434, %v11594
      %v11596 = vpop.f32.mrf.mxu0
      %11597 = vmatprep.mubr.bf16.mxu0 0
      %11598 = vmatmul.mubr.bf16.gmra.mxu0 %v11309
      %v11599 = vpop.f32.mrf.mxu0
      %v11600 = vadd.f32 %v11439, %v11599
      %v11601 = vpop.f32.mrf.mxu0
      %v11602 = vpop.f32.mrf.mxu0
      %v11603 = vadd.f32 %v11442, %v11602
      %v11604 = vpop.f32.mrf.mxu0
      %11605 = vmatprep.mubr.bf16.mxu0 0
      %11606 = vmatmul.mubr.bf16.gmra.mxu0 %v11312
      %v11607 = vpop.f32.mrf.mxu0
      %v11608 = vadd.f32 %v11447, %v11607
      %v11609 = vpop.f32.mrf.mxu0
      %v11610 = vpop.f32.mrf.mxu0
      %v11611 = vadd.f32 %v11450, %v11610
      %v11612 = vpop.f32.mrf.mxu0
      %11613 = vmatprep.mubr.bf16.mxu0 0
      %11614 = vmatmul.mubr.bf16.gmra.mxu0 %v11315
      %v11615 = vpop.f32.mrf.mxu0
      %v11616 = vadd.f32 %v11455, %v11615
      %v11617 = vpop.f32.mrf.mxu0
      %v11618 = vpop.f32.mrf.mxu0
      %v11619 = vadd.f32 %v11458, %v11618
      %v11620 = vpop.f32.mrf.mxu0
      %11621 = vmatprep.mubr.bf16.mxu0 0
      %11622 = vmatmul.mubr.bf16.gmra.mxu0 %v11318
      %v11623 = vpop.f32.mrf.mxu0
      %v11624 = vadd.f32 %v11463, %v11623
      %v11625 = vpop.f32.mrf.mxu0
      %v11626 = vpop.f32.mrf.mxu0
      %v11627 = vadd.f32 %v11466, %v11626
      %v11628 = vpop.f32.mrf.mxu0
      %11629 = vmatprep.mubr.bf16.mxu0 0
      %11630 = vmatmul.mubr.bf16.gmra.mxu0 %v11321
      %v11631 = vpop.f32.mrf.mxu0
      %v11632 = vadd.f32 %v11471, %v11631
      %v11633 = vpop.f32.mrf.mxu0
      %v11634 = vpop.f32.mrf.mxu0
      %v11635 = vadd.f32 %v11474, %v11634
      %v11636 = vpop.f32.mrf.mxu0
      %11637 = vmatprep.mubr.bf16.mxu0 0
      %11638 = vmatmul.mubr.bf16.gmra.mxu0 %v11324
      %v11639 = vpop.f32.mrf.mxu0
      %v11640 = vadd.f32 %v11479, %v11639
      %v11641 = vpop.f32.mrf.mxu0
      %v11642 = vpop.f32.mrf.mxu0
      %v11643 = vadd.f32 %v11482, %v11642
      %v11644 = vpop.f32.mrf.mxu0
      %11645 = vmatprep.mubr.bf16.mxu0 0
      %11646 = vmatmul.mubr.bf16.gmra.mxu0 %v11327
      %v11647 = vpop.f32.mrf.mxu0
      %v11648 = vadd.f32 %v11487, %v11647
      %v11649 = vpop.f32.mrf.mxu0
      %v11650 = vpop.f32.mrf.mxu0
      %v11651 = vadd.f32 %v11490, %v11650
      %v11652 = vpop.f32.mrf.mxu0
      %11653 = vdwg.mxu0
      %vm11654 = vcmask 261120
      %11655 = vst.msk [vmem:[%s332] sm:$0xff] %vm11654, %v11528
      %11656 = vst.msk [vmem:[%s332 + $0x8] sm:$0xff] %vm11654, %v11531
      %11657 = vst.msk [vmem:[%s332 + $0x10] sm:$0xff] %vm11654, %v11536
      %11658 = vst.msk [vmem:[%s332 + $0x18] sm:$0xff] %vm11654, %v11539
      %11659 = vst.msk [vmem:[%s332 + $0x20] sm:$0xff] %vm11654, %v11544
      %11660 = vst.msk [vmem:[%s332 + $0x28] sm:$0xff] %vm11654, %v11547
      %11661 = vst.msk [vmem:[%s332 + $0x30] sm:$0xff] %vm11654, %v11552
      %11662 = vst.msk [vmem:[%s332 + $0x38] sm:$0xff] %vm11654, %v11555
      %11663 = vst.msk [vmem:[%s332 + $0x40] sm:$0xff] %vm11654, %v11560
      %11664 = vst.msk [vmem:[%s332 + $0x48] sm:$0xff] %vm11654, %v11563
      %11665 = vst.msk [vmem:[%s332 + $0x50] sm:$0xff] %vm11654, %v11568
      %11666 = vst.msk [vmem:[%s332 + $0x58] sm:$0xff] %vm11654, %v11571
      %11667 = vst.msk [vmem:[%s332 + $0x60] sm:$0xff] %vm11654, %v11576
      %11668 = vst.msk [vmem:[%s332 + $0x68] sm:$0xff] %vm11654, %v11579
      %11669 = vst.msk [vmem:[%s332 + $0x70] sm:$0xff] %vm11654, %v11584
      %11670 = vst.msk [vmem:[%s332 + $0x78] sm:$0xff] %vm11654, %v11587
      %11671 = vst.msk [vmem:[%s332 + $0x80] sm:$0xff] %vm11654, %v11592
      %11672 = vst.msk [vmem:[%s332 + $0x88] sm:$0xff] %vm11654, %v11595
      %11673 = vst.msk [vmem:[%s332 + $0x90] sm:$0xff] %vm11654, %v11600
      %11674 = vst.msk [vmem:[%s332 + $0x98] sm:$0xff] %vm11654, %v11603
      %11675 = vst.msk [vmem:[%s332 + $0xa0] sm:$0xff] %vm11654, %v11608
      %11676 = vst.msk [vmem:[%s332 + $0xa8] sm:$0xff] %vm11654, %v11611
      %11677 = vst.msk [vmem:[%s332 + $0xb0] sm:$0xff] %vm11654, %v11616
      %11678 = vst.msk [vmem:[%s332 + $0xb8] sm:$0xff] %vm11654, %v11619
      %11679 = vst.msk [vmem:[%s332 + $0xc0] sm:$0xff] %vm11654, %v11624
      %11680 = vst.msk [vmem:[%s332 + $0xc8] sm:$0xff] %vm11654, %v11627
      %11681 = vst.msk [vmem:[%s332 + $0xd0] sm:$0xff] %vm11654, %v11632
      %11682 = vst.msk [vmem:[%s332 + $0xd8] sm:$0xff] %vm11654, %v11635
      %11683 = vst.msk [vmem:[%s332 + $0xe0] sm:$0xff] %vm11654, %v11640
      %11684 = vst.msk [vmem:[%s332 + $0xe8] sm:$0xff] %vm11654, %v11643
      %11685 = vst.msk [vmem:[%s332 + $0xf0] sm:$0xff] %vm11654, %v11648
      %11686 = vst.msk [vmem:[%s332 + $0xf8] sm:$0xff] %vm11654, %v11651
      %p11687 = scmp.lt.s32.totalorder %s20, 1
      %s11688 = scalar_select %p11687, %s20, 1
      %s11689 = smul.addr %s11688, 32
      %s11690 = smul.addr %s11689, 8
      %s11691 = scalar_lea.vmem %s9, %s11690
      // Predicated region
      $region57: #{tpu_custom_call.1} parent=55 // pred_check
        %p11692 = pneg %p232
      $region58: #{tpu_custom_call.1} parent=55 // pred_check_branch
        %11694 = sbr.rel (%p11692) target = $region60
      $region59: #{tpu_custom_call.1} parent=55 // pred_region
        _
      $region60: #{tpu_custom_call.1} parent=55 // pred_fallthru
        _
    $region56: #{tpu_custom_call.1} parent=5 // pred_fallthru
      _
    %p11695 = scmp.le.s32.totalorder 2, %s15
    // Predicated region
    $region61: #{tpu_custom_call.1} parent=5 // pred_check
      %p11696 = pneg %p11695
    $region62: #{tpu_custom_call.1} parent=5 // pred_check_branch
      %11698 = sbr.rel (%p11696) target = $region64
    $region63: #{tpu_custom_call.1} parent=5 // pred_region
      %s11699 = ssub.s32 %s15, 2
      // Predicated region
      $region65: #{tpu_custom_call.1} parent=63 // pred_check
        %p11700 = pneg %p238
      $region66: #{tpu_custom_call.1} parent=63 // pred_check_branch
        %11702 = sbr.rel (%p11700) target = $region68
      $region67: #{tpu_custom_call.1} parent=63 // pred_region
        %p11703 = scmp.lt.s32.totalorder %s21, 1
        %s11704 = scalar_select %p11703, %s21, 1
        %s11705 = smul.addr %s11704, 32
        %s11706 = smul.addr %s11705, 8
        %s11707 = scalar_lea.vmem %s9, %s11706
      $region68: #{tpu_custom_call.1} parent=63 // pred_fallthru
        _
    $region64: #{tpu_custom_call.1} parent=5 // pred_fallthru
      _
  $region6: #{tpu_custom_call.1} parent=0 // loop_footer
    %s19 = sadd.s32 1, %s15
  $region7: #{tpu_custom_call.1} parent=0 // loop_footer_branch
    %14 = sbr.rel target = $region3
  $region8: #{tpu_custom_call.1} parent=0 // loop_exit
    _

</llo_original>
